<compile_context>
chip_gen: v6e
topology: v6e:2x2x1
jax: 0.10.0
libtpu: 0.0.40
codegen_flags: <defaults>
</compile_context>

<pallas_src>
import jax
import jax.numpy as jnp
from jax.experimental import pallas as pl
from jax.experimental.pallas import tpu as pltpu

C_IN = 2048        # backbone channels
D1 = 1000          # expert hidden / output width (PyTorch)
D1P = 1024         # padded to a multiple of 128
GATE_H = 100       # gate hidden width (PyTorch)
GATE_HP = 128      # padded
N_EXPERTS = 3
N_CLASSES = 61
TILE_J = 512       # hidden units streamed per grid step


def _gate_head_kernel(feat_ref, wg1_ref, bg1_ref, wg2_ref, bg2_ref,
                      wa_ref, ba_ref, wb_ref, bb_ref, wc_ref, bc_ref,
                      out_ref, gate_sc, acc_sc):
    # feat_ref : [N, 2048] bf16 (resident)
    # wg1/bg1  : [2048,128] bf16 / [1,128] f32     gate layer 1
    # wg2/bg2  : [128,3]    bf16 / [1,3]   f32     gate layer 2
    # wa/ba    : [1,2048,TILE_J] bf16 / [1,1,TILE_J] f32   expert first Linear (tile)
    # wb/bb    : [1,TILE_J,D1P]  bf16 / [1,1,D1P]   f32    expert second Linear (tile)
    # wc/bc    : [D1P,61]   bf16 / [1,61]  f32     classifier
    # gate_sc  : [N,3]  f32 scratch (softmax gate, computed once)
    # acc_sc   : [N,D1P] f32 scratch (gated-sum accumulator)
    e = pl.program_id(0)                       # expert index
    j = pl.program_id(1)                       # hidden-unit tile index
    is_first = (e == 0) & (j == 0)
    is_last = (e == pl.num_programs(0) - 1) & (j == pl.num_programs(1) - 1)

    feat = feat_ref[...]                       # [N, 2048] bf16

    @pl.when(is_first)
    def _():
        # Gate MLP + softmax, computed once; accumulator init.
        g1 = jnp.dot(feat, wg1_ref[...], preferred_element_type=jnp.float32)
        g1 = jnp.maximum(g1 + bg1_ref[...], 0.0)                          # [N, 128]
        z = jnp.dot(g1.astype(jnp.bfloat16), wg2_ref[...],
                    preferred_element_type=jnp.float32) + bg2_ref[...]    # [N, 3]
        z = z - jnp.max(z, axis=-1, keepdims=True)
        p = jnp.exp(z)
        gate_sc[...] = p / jnp.sum(p, axis=-1, keepdims=True)
        acc_sc[...] = jnp.zeros_like(acc_sc)

    # Per-row gate weight of expert e (mask-reduce avoids dynamic lane slicing).
    lane = jax.lax.broadcasted_iota(jnp.int32, gate_sc.shape, 1)
    g_e = jnp.sum(jnp.where(lane == e, gate_sc[...], 0.0),
                  axis=-1, keepdims=True)                                 # [N, 1]

    # Expert e, hidden tile j: first Linear + ReLU on this tile of hidden units,
    # then this tile's contribution through the second Linear, gated + accumulated.
    h = jnp.dot(feat, wa_ref[0], preferred_element_type=jnp.float32) + ba_ref[0]
    h = jnp.maximum(h, 0.0)                                               # [N, TILE_J]
    contrib = jnp.dot(h.astype(jnp.bfloat16), wb_ref[0],
                      preferred_element_type=jnp.float32)                 # [N, D1P]
    acc_sc[...] += g_e * contrib

    @pl.when(j == 0)
    def _():
        acc_sc[...] += g_e * bb_ref[0]         # second-Linear bias, once per expert

    @pl.when(is_last)
    def _():
        go = jnp.maximum(acc_sc[...], 0.0)     # classifier: (Dropout=id) -> ReLU -> Linear
        out = jnp.dot(go.astype(jnp.bfloat16), wc_ref[...],
                      preferred_element_type=jnp.float32) + bc_ref[...]
        out_ref[...] = out.astype(out_ref.dtype)


def prepare_params(raw):
    """raw: f32 [in,out] weights / [out] biases at the PyTorch sizes.
    Zero-pads to lane-dense sizes, stacks the 3 experts, casts weights to bf16
    (biases stay f32)."""
    def padw(w, rows, cols):
        return jnp.pad(w, ((0, rows - w.shape[0]), (0, cols - w.shape[1])))

    def padb(b, n):
        return jnp.pad(b, (0, n - b.shape[0]))

    wa = jnp.stack([padw(w, C_IN, D1P) for w in raw["wa"]]).astype(jnp.bfloat16)
    ba = jnp.stack([padb(b, D1P) for b in raw["ba"]]).reshape(N_EXPERTS, 1, D1P)
    wb = jnp.stack([padw(w, D1P, D1P) for w in raw["wb"]]).astype(jnp.bfloat16)
    bb = jnp.stack([padb(b, D1P) for b in raw["bb"]]).reshape(N_EXPERTS, 1, D1P)
    wg1 = padw(raw["wg1"], C_IN, GATE_HP).astype(jnp.bfloat16)
    bg1 = padb(raw["bg1"], GATE_HP).reshape(1, GATE_HP)
    wg2 = padw(raw["wg2"], GATE_HP, N_EXPERTS).astype(jnp.bfloat16)
    bg2 = raw["bg2"].reshape(1, N_EXPERTS)
    wc = padw(raw["wc"], D1P, N_CLASSES).astype(jnp.bfloat16)
    bc = raw["bc"].reshape(1, N_CLASSES)
    return dict(wa=wa, ba=ba, wb=wb, bb=bb, wg1=wg1, bg1=bg1,
                wg2=wg2, bg2=bg2, wc=wc, bc=bc)


def gate_model_forward(x_nchw, p):
    """x_nchw: backbone feature map [N, 2048, H, W]. Returns eval logits [N, 61]."""
    n = x_nchw.shape[0]
    # Spatial pooling in the wrapper -> lane-dense [N, 2048] feature for the kernel.
    feature = jnp.mean(x_nchw, axis=(2, 3))
    feat = feature.astype(jnp.bfloat16)

    grid = (N_EXPERTS, D1P // TILE_J)
    return pl.pallas_call(
        _gate_head_kernel,
        out_shape=jax.ShapeDtypeStruct((n, N_CLASSES), jnp.float32),
        grid_spec=pltpu.PrefetchScalarGridSpec(
            num_scalar_prefetch=0,
            grid=grid,
            in_specs=[
                pl.BlockSpec((n, C_IN), lambda e, j: (0, 0)),              # feature (resident)
                pl.BlockSpec((C_IN, GATE_HP), lambda e, j: (0, 0)),        # wg1 (resident)
                pl.BlockSpec((1, GATE_HP), lambda e, j: (0, 0)),           # bg1
                pl.BlockSpec((GATE_HP, N_EXPERTS), lambda e, j: (0, 0)),   # wg2
                pl.BlockSpec((1, N_EXPERTS), lambda e, j: (0, 0)),         # bg2
                pl.BlockSpec((1, C_IN, TILE_J), lambda e, j: (e, 0, j)),   # wa tile (streamed)
                pl.BlockSpec((1, 1, TILE_J), lambda e, j: (e, 0, j)),      # ba tile
                pl.BlockSpec((1, TILE_J, D1P), lambda e, j: (e, j, 0)),    # wb tile (streamed)
                pl.BlockSpec((1, 1, D1P), lambda e, j: (e, 0, 0)),         # bb (per expert)
                pl.BlockSpec((D1P, N_CLASSES), lambda e, j: (0, 0)),       # wc (resident)
                pl.BlockSpec((1, N_CLASSES), lambda e, j: (0, 0)),         # bc
            ],
            out_specs=pl.BlockSpec((n, N_CLASSES), lambda e, j: (0, 0)),
            scratch_shapes=[
                pltpu.VMEM((n, N_EXPERTS), jnp.float32),   # gate probabilities
                pltpu.VMEM((n, D1P), jnp.float32),         # gated-sum accumulator
            ],
        ),
        compiler_params=pltpu.CompilerParams(
            dimension_semantics=("arbitrary", "arbitrary"),
            vmem_limit_bytes=16 << 20,
        ),
    )(feat, p["wg1"], p["bg1"], p["wg2"], p["bg2"],
      p["wa"], p["ba"], p["wb"], p["bb"], p["wc"], p["bc"])


def _ref_forward(x_nchw, raw, quantize_weights=True):
    """Pure-JAX eval-mode reference (dropout = identity). With quantize_weights,
    mirrors the kernel's bf16 weight/feature storage (math stays f32)."""
    def q(a):
        return a.astype(jnp.bfloat16).astype(jnp.float32) if quantize_weights else a

    feature = q(jnp.mean(x_nchw, axis=(2, 3)))
    g = jnp.maximum(feature @ q(raw["wg1"]) + raw["bg1"], 0.0)
    g = jax.nn.softmax(g @ q(raw["wg2"]) + raw["bg2"], axis=-1)            # [N, 3]
    fcs = []
    for i in range(N_EXPERTS):
        h = jnp.maximum(feature @ q(raw["wa"][i]) + raw["ba"][i], 0.0)
        fcs.append(h @ q(raw["wb"][i]) + raw["bb"][i])
    fc = jnp.stack(fcs, axis=-1)                                           # [N, 1000, 3]
    gate_output = jnp.sum(fc * g[:, None, :], axis=-1)                     # [N, 1000]
    return jnp.maximum(gate_output, 0.0) @ q(raw["wc"]) + raw["bc"]


if __name__ == "__main__":
    key = jax.random.PRNGKey(0)
    keys = iter(jax.random.split(key, 32))

    # ResNet-101 pre-pool feature map for a 224x224 image: [N, 2048, 7, 7].
    N, H, W = 2, 7, 7
    x = jax.random.normal(next(keys), (N, C_IN, H, W), dtype=jnp.float32)

    def linear_init(kw, kb, fan_in, fan_out):
        lim = 1.0 / jnp.sqrt(jnp.float32(fan_in))
        w = jax.random.uniform(kw, (fan_in, fan_out), jnp.float32, -lim, lim)
        b = jax.random.uniform(kb, (fan_out,), jnp.float32, -lim, lim)
        return w, b

    raw = {"wa": [], "ba": [], "wb": [], "bb": []}
    for _ in range(N_EXPERTS):
        w, b = linear_init(next(keys), next(keys), C_IN, D1)
        raw["wa"].append(w); raw["ba"].append(b)
        w, b = linear_init(next(keys), next(keys), D1, D1)
        raw["wb"].append(w); raw["bb"].append(b)
    raw["wg1"], raw["bg1"] = linear_init(next(keys), next(keys), C_IN, GATE_H)
    raw["wg2"], raw["bg2"] = linear_init(next(keys), next(keys), GATE_H, N_EXPERTS)
    raw["wc"], raw["bc"] = linear_init(next(keys), next(keys), D1, N_CLASSES)

    params = prepare_params(raw)
    forward = jax.jit(gate_model_forward)
    out = forward(x, params)
    jax.block_until_ready(out)
    assert out.shape == (N, N_CLASSES), out.shape

    # Check against a reference that mirrors the bf16 weight storage (tight) ...
    ref_q = _ref_forward(x, raw, quantize_weights=True)
    assert jnp.allclose(out, ref_q, atol=5e-3, rtol=2e-2), (
        float(jnp.max(jnp.abs(out - ref_q))))
    # ... and against the full-f32 reference with a loosened tolerance.
    ref_f32 = _ref_forward(x, raw, quantize_weights=False)
    assert jnp.allclose(out, ref_f32, atol=3e-2, rtol=5e-2), (
        float(jnp.max(jnp.abs(out - ref_f32))))

    print("KERNEL_OK")
</pallas_src>

<mosaic_0001>
module attributes {stable_mosaic.version = 11 : i64} {
  func.func @_gate_head_kernel(%arg0: i32, %arg1: i32, %arg2: memref<2x2048xbf16, #tpu.memory_space<vmem>>, %arg3: memref<2048x128xbf16, #tpu.memory_space<vmem>>, %arg4: memref<1x128xf32, #tpu.memory_space<vmem>>, %arg5: memref<128x3xbf16, #tpu.memory_space<vmem>>, %arg6: memref<1x3xf32, #tpu.memory_space<vmem>>, %arg7: memref<1x2048x512xbf16, #tpu.memory_space<vmem>>, %arg8: memref<1x1x512xf32, #tpu.memory_space<vmem>>, %arg9: memref<1x512x1024xbf16, #tpu.memory_space<vmem>>, %arg10: memref<1x1x1024xf32, #tpu.memory_space<vmem>>, %arg11: memref<1024x61xbf16, #tpu.memory_space<vmem>>, %arg12: memref<1x61xf32, #tpu.memory_space<vmem>>, %arg13: memref<2x61xf32, #tpu.memory_space<vmem>>, %arg14: memref<2x3xf32, #tpu.memory_space<vmem>>, %arg15: memref<2x1024xf32, #tpu.memory_space<vmem>>) attributes {dimension_semantics = [#tpu.dimension_semantics<arbitrary>, #tpu.dimension_semantics<arbitrary>], iteration_bounds = array<i64: 3, 2>, scalar_prefetch = 0 : i64, scratch_operands = 2 : i64, tpu.core_type = #tpu.core_type<tc>, window_params = [{pipeline_mode = #tpu.pipeline_mode<synchronous>, transform_indices = @transform_0, window_bounds = array<i64: 2, 2048>}, {pipeline_mode = #tpu.pipeline_mode<synchronous>, transform_indices = @transform_1, window_bounds = array<i64: 2048, 128>}, {pipeline_mode = #tpu.pipeline_mode<synchronous>, transform_indices = @transform_2, window_bounds = array<i64: 1, 128>}, {pipeline_mode = #tpu.pipeline_mode<synchronous>, transform_indices = @transform_3, window_bounds = array<i64: 128, 3>}, {pipeline_mode = #tpu.pipeline_mode<synchronous>, transform_indices = @transform_4, window_bounds = array<i64: 1, 3>}, {transform_indices = @transform_5, window_bounds = array<i64: 1, 2048, 512>}, {transform_indices = @transform_6, window_bounds = array<i64: 1, 1, 512>}, {transform_indices = @transform_7, window_bounds = array<i64: 1, 512, 1024>}, {transform_indices = @transform_8, window_bounds = array<i64: 1, 1, 1024>}, {pipeline_mode = #tpu.pipeline_mode<synchronous>, transform_indices = @transform_9, window_bounds = array<i64: 1024, 61>}, {pipeline_mode = #tpu.pipeline_mode<synchronous>, transform_indices = @transform_10, window_bounds = array<i64: 1, 61>}, {pipeline_mode = #tpu.pipeline_mode<synchronous>, transform_indices = @transform_11, window_bounds = array<i64: 2, 61>}]} {
    %c0_i32 = arith.constant 0 : i32
    %0 = arith.cmpi eq, %arg0, %c0_i32 : i32
    %c0_i32_0 = arith.constant 0 : i32
    %1 = arith.cmpi eq, %arg1, %c0_i32_0 : i32
    %2 = arith.andi %0, %1 : i1
    %c2_i32 = arith.constant 2 : i32
    %3 = arith.cmpi eq, %arg0, %c2_i32 : i32
    %c1_i32 = arith.constant 1 : i32
    %4 = arith.cmpi eq, %arg1, %c1_i32 : i32
    %5 = arith.andi %3, %4 : i1
    %c0 = arith.constant 0 : index
    %c0_1 = arith.constant 0 : index
    %6 = vector.load %arg2[%c0, %c0_1] : memref<2x2048xbf16, #tpu.memory_space<vmem>>, vector<2x2048xbf16>
    %7 = arith.extui %2 : i1 to i32
    %c0_i32_2 = arith.constant 0 : i32
    %8 = arith.cmpi ne, %7, %c0_i32_2 : i32
    scf.if %8 {
      %c0_25 = arith.constant 0 : index
      %c0_26 = arith.constant 0 : index
      %40 = vector.load %arg3[%c0_25, %c0_26] : memref<2048x128xbf16, #tpu.memory_space<vmem>>, vector<2048x128xbf16>
      %cst_27 = arith.constant dense<0.000000e+00> : vector<2x128xf32>
      %41 = tpu.matmul %6, %40, %cst_27 {dimension_numbers = #tpu.dot_dimension_numbers<[1], [0], [0], [1], [0, 0, 1, 1], [], []>} : vector<2x2048xbf16>, vector<2048x128xbf16>, vector<2x128xf32> -> vector<2x128xf32>
      %c0_28 = arith.constant 0 : index
      %c0_29 = arith.constant 0 : index
      %42 = vector.load %arg4[%c0_28, %c0_29] : memref<1x128xf32, #tpu.memory_space<vmem>>, vector<1x128xf32>
      %43 = vector.broadcast %42 : vector<1x128xf32> to vector<2x128xf32>
      %44 = arith.addf %41, %43 : vector<2x128xf32>
      %cst_30 = arith.constant 0.000000e+00 : f32
      %45 = vector.broadcast %cst_30 : f32 to vector<2x128xf32>
      %46 = arith.maximumf %44, %45 : vector<2x128xf32>
      %47 = arith.truncf %46 : vector<2x128xf32> to vector<2x128xbf16>
      %c0_31 = arith.constant 0 : index
      %c0_32 = arith.constant 0 : index
      %48 = vector.load %arg5[%c0_31, %c0_32] : memref<128x3xbf16, #tpu.memory_space<vmem>>, vector<128x3xbf16>
      %cst_33 = arith.constant dense<0.000000e+00> : vector<2x3xf32>
      %49 = tpu.matmul %47, %48, %cst_33 {dimension_numbers = #tpu.dot_dimension_numbers<[1], [0], [0], [1], [0, 0, 1, 1], [], []>} : vector<2x128xbf16>, vector<128x3xbf16>, vector<2x3xf32> -> vector<2x3xf32>
      %c0_34 = arith.constant 0 : index
      %c0_35 = arith.constant 0 : index
      %50 = vector.load %arg6[%c0_34, %c0_35] : memref<1x3xf32, #tpu.memory_space<vmem>>, vector<1x3xf32>
      %51 = vector.broadcast %50 : vector<1x3xf32> to vector<2x3xf32>
      %52 = arith.addf %49, %51 : vector<2x3xf32>
      %cst_36 = arith.constant dense<0xFF800000> : vector<2xf32>
      %53 = vector.multi_reduction <maximumf>, %52, %cst_36 [1] : vector<2x3xf32> to vector<2xf32>
      %54 = vector.shape_cast %53 : vector<2xf32> to vector<2x1xf32>
      %55 = vector.broadcast %54 : vector<2x1xf32> to vector<2x3xf32>
      %56 = arith.subf %52, %55 : vector<2x3xf32>
      %57 = math.exp %56 : vector<2x3xf32>
      %cst_37 = arith.constant dense<0.000000e+00> : vector<2xf32>
      %58 = vector.multi_reduction <add>, %57, %cst_37 [1] : vector<2x3xf32> to vector<2xf32>
      %59 = vector.shape_cast %58 : vector<2xf32> to vector<2x1xf32>
      %60 = vector.broadcast %59 : vector<2x1xf32> to vector<2x3xf32>
      %61 = arith.divf %57, %60 : vector<2x3xf32>
      %c0_38 = arith.constant 0 : index
      %c0_39 = arith.constant 0 : index
      %62 = vector.load %arg14[%c0_38, %c0_39] : memref<2x3xf32, #tpu.memory_space<vmem>>, vector<2x3xf32>
      tpu.vector_store %arg14[%c0_38, %c0_39], %61 {strides = array<i32>} : memref<2x3xf32, #tpu.memory_space<vmem>>, vector<2x3xf32>,
      %cst_40 = arith.constant 0.000000e+00 : f32
      %63 = vector.broadcast %cst_40 : f32 to vector<2x1024xf32>
      %c0_41 = arith.constant 0 : index
      %c0_42 = arith.constant 0 : index
      %64 = vector.load %arg15[%c0_41, %c0_42] : memref<2x1024xf32, #tpu.memory_space<vmem>>, vector<2x1024xf32>
      tpu.vector_store %arg15[%c0_41, %c0_42], %63 {strides = array<i32>} : memref<2x1024xf32, #tpu.memory_space<vmem>>, vector<2x1024xf32>,
    } else {
    }
    %9 = tpu.iota {dimensions = array<i32: 1>} : vector<2x3xi32>
    %10 = vector.broadcast %arg0 : i32 to vector<2x3xi32>
    %11 = arith.cmpi eq, %9, %10 : vector<2x3xi32>
    %c0_3 = arith.constant 0 : index
    %c0_4 = arith.constant 0 : index
    %12 = vector.load %arg14[%c0_3, %c0_4] : memref<2x3xf32, #tpu.memory_space<vmem>>, vector<2x3xf32>
    %cst = arith.constant 0.000000e+00 : f32
    %13 = vector.broadcast %cst : f32 to vector<2x3xf32>
    %14 = arith.select %11, %12, %13 : vector<2x3xi1>, vector<2x3xf32>
    %cst_5 = arith.constant dense<0.000000e+00> : vector<2xf32>
    %15 = vector.multi_reduction <add>, %14, %cst_5 [1] : vector<2x3xf32> to vector<2xf32>
    %16 = vector.shape_cast %15 : vector<2xf32> to vector<2x1xf32>
    %c0_6 = arith.constant 0 : index
    %c0_7 = arith.constant 0 : index
    %c0_8 = arith.constant 0 : index
    %17 = vector.load %arg7[%c0_6, %c0_7, %c0_8] : memref<1x2048x512xbf16, #tpu.memory_space<vmem>>, vector<1x2048x512xbf16>
    %18 = vector.shape_cast %17 : vector<1x2048x512xbf16> to vector<2048x512xbf16>
    %cst_9 = arith.constant dense<0.000000e+00> : vector<2x512xf32>
    %19 = tpu.matmul %6, %18, %cst_9 {dimension_numbers = #tpu.dot_dimension_numbers<[1], [0], [0], [1], [0, 0, 1, 1], [], []>} : vector<2x2048xbf16>, vector<2048x512xbf16>, vector<2x512xf32> -> vector<2x512xf32>
    %c0_10 = arith.constant 0 : index
    %c0_11 = arith.constant 0 : index
    %c0_12 = arith.constant 0 : index
    %20 = vector.load %arg8[%c0_10, %c0_11, %c0_12] : memref<1x1x512xf32, #tpu.memory_space<vmem>>, vector<1x1x512xf32>
    %21 = vector.shape_cast %20 : vector<1x1x512xf32> to vector<1x512xf32>
    %22 = vector.broadcast %21 : vector<1x512xf32> to vector<2x512xf32>
    %23 = arith.addf %19, %22 : vector<2x512xf32>
    %cst_13 = arith.constant 0.000000e+00 : f32
    %24 = vector.broadcast %cst_13 : f32 to vector<2x512xf32>
    %25 = arith.maximumf %23, %24 : vector<2x512xf32>
    %26 = arith.truncf %25 : vector<2x512xf32> to vector<2x512xbf16>
    %c0_14 = arith.constant 0 : index
    %c0_15 = arith.constant 0 : index
    %c0_16 = arith.constant 0 : index
    %27 = vector.load %arg9[%c0_14, %c0_15, %c0_16] : memref<1x512x1024xbf16, #tpu.memory_space<vmem>>, vector<1x512x1024xbf16>
    %28 = vector.shape_cast %27 : vector<1x512x1024xbf16> to vector<512x1024xbf16>
    %cst_17 = arith.constant dense<0.000000e+00> : vector<2x1024xf32>
    %29 = tpu.matmul %26, %28, %cst_17 {dimension_numbers = #tpu.dot_dimension_numbers<[1], [0], [0], [1], [0, 0, 1, 1], [], []>} : vector<2x512xbf16>, vector<512x1024xbf16>, vector<2x1024xf32> -> vector<2x1024xf32>
    %c0_18 = arith.constant 0 : index
    %c0_19 = arith.constant 0 : index
    %30 = vector.load %arg15[%c0_18, %c0_19] : memref<2x1024xf32, #tpu.memory_space<vmem>>, vector<2x1024xf32>
    %31 = vector.broadcast %16 : vector<2x1xf32> to vector<2x1024xf32>
    %32 = arith.mulf %31, %29 : vector<2x1024xf32>
    %33 = arith.addf %30, %32 : vector<2x1024xf32>
    %c0_20 = arith.constant 0 : index
    %c0_21 = arith.constant 0 : index
    %34 = vector.load %arg15[%c0_20, %c0_21] : memref<2x1024xf32, #tpu.memory_space<vmem>>, vector<2x1024xf32>
    tpu.vector_store %arg15[%c0_20, %c0_21], %33 {strides = array<i32>} : memref<2x1024xf32, #tpu.memory_space<vmem>>, vector<2x1024xf32>,
    %c0_i32_22 = arith.constant 0 : i32
    %35 = arith.cmpi eq, %arg1, %c0_i32_22 : i32
    %36 = arith.extui %35 : i1 to i32
    %c0_i32_23 = arith.constant 0 : i32
    %37 = arith.cmpi ne, %36, %c0_i32_23 : i32
    scf.if %37 {
      %c0_25 = arith.constant 0 : index
      %c0_26 = arith.constant 0 : index
      %40 = vector.load %arg15[%c0_25, %c0_26] : memref<2x1024xf32, #tpu.memory_space<vmem>>, vector<2x1024xf32>
      %c0_27 = arith.constant 0 : index
      %c0_28 = arith.constant 0 : index
      %c0_29 = arith.constant 0 : index
      %41 = vector.load %arg10[%c0_27, %c0_28, %c0_29] : memref<1x1x1024xf32, #tpu.memory_space<vmem>>, vector<1x1x1024xf32>
      %42 = vector.shape_cast %41 : vector<1x1x1024xf32> to vector<1x1024xf32>
      %43 = vector.broadcast %16 : vector<2x1xf32> to vector<2x1024xf32>
      %44 = vector.broadcast %42 : vector<1x1024xf32> to vector<2x1024xf32>
      %45 = arith.mulf %43, %44 : vector<2x1024xf32>
      %46 = arith.addf %40, %45 : vector<2x1024xf32>
      %c0_30 = arith.constant 0 : index
      %c0_31 = arith.constant 0 : index
      %47 = vector.load %arg15[%c0_30, %c0_31] : memref<2x1024xf32, #tpu.memory_space<vmem>>, vector<2x1024xf32>
      tpu.vector_store %arg15[%c0_30, %c0_31], %46 {strides = array<i32>} : memref<2x1024xf32, #tpu.memory_space<vmem>>, vector<2x1024xf32>,
    } else {
    }
    %38 = arith.extui %5 : i1 to i32
    %c0_i32_24 = arith.constant 0 : i32
    %39 = arith.cmpi ne, %38, %c0_i32_24 : i32
    scf.if %39 {
      %c0_25 = arith.constant 0 : index
      %c0_26 = arith.constant 0 : index
      %40 = vector.load %arg15[%c0_25, %c0_26] : memref<2x1024xf32, #tpu.memory_space<vmem>>, vector<2x1024xf32>
      %cst_27 = arith.constant 0.000000e+00 : f32
      %41 = vector.broadcast %cst_27 : f32 to vector<2x1024xf32>
      %42 = arith.maximumf %40, %41 : vector<2x1024xf32>
      %43 = arith.truncf %42 : vector<2x1024xf32> to vector<2x1024xbf16>
      %c0_28 = arith.constant 0 : index
      %c0_29 = arith.constant 0 : index
      %44 = vector.load %arg11[%c0_28, %c0_29] : memref<1024x61xbf16, #tpu.memory_space<vmem>>, vector<1024x61xbf16>
      %cst_30 = arith.constant dense<0.000000e+00> : vector<2x61xf32>
      %45 = tpu.matmul %43, %44, %cst_30 {dimension_numbers = #tpu.dot_dimension_numbers<[1], [0], [0], [1], [0, 0, 1, 1], [], []>} : vector<2x1024xbf16>, vector<1024x61xbf16>, vector<2x61xf32> -> vector<2x61xf32>
      %c0_31 = arith.constant 0 : index
      %c0_32 = arith.constant 0 : index
      %46 = vector.load %arg12[%c0_31, %c0_32] : memref<1x61xf32, #tpu.memory_space<vmem>>, vector<1x61xf32>
      %47 = vector.broadcast %46 : vector<1x61xf32> to vector<2x61xf32>
      %48 = arith.addf %45, %47 : vector<2x61xf32>
      %c0_33 = arith.constant 0 : index
      %c0_34 = arith.constant 0 : index
      %49 = vector.load %arg13[%c0_33, %c0_34] : memref<2x61xf32, #tpu.memory_space<vmem>>, vector<2x61xf32>
      tpu.vector_store %arg13[%c0_33, %c0_34], %48 {strides = array<i32>} : memref<2x61xf32, #tpu.memory_space<vmem>>, vector<2x61xf32>,
    } else {
    }
    return
  }
  func.func @transform_0(%arg0: i32, %arg1: i32) -> (i32, i32) {
    %c0_i32 = arith.constant 0 : i32
    %c0_i32_0 = arith.constant 0 : i32
    %c0_i32_1 = arith.constant 0 : i32
    return %c0_i32, %c0_i32_0 : i32, i32
  }
  func.func @transform_1(%arg0: i32, %arg1: i32) -> (i32, i32) {
    %c0_i32 = arith.constant 0 : i32
    %c0_i32_0 = arith.constant 0 : i32
    %c0_i32_1 = arith.constant 0 : i32
    return %c0_i32, %c0_i32_0 : i32, i32
  }
  func.func @transform_2(%arg0: i32, %arg1: i32) -> (i32, i32) {
    %c0_i32 = arith.constant 0 : i32
    %c0_i32_0 = arith.constant 0 : i32
    %c0_i32_1 = arith.constant 0 : i32
    return %c0_i32, %c0_i32_0 : i32, i32
  }
  func.func @transform_3(%arg0: i32, %arg1: i32) -> (i32, i32) {
    %c0_i32 = arith.constant 0 : i32
    %c0_i32_0 = arith.constant 0 : i32
    %c0_i32_1 = arith.constant 0 : i32
    return %c0_i32, %c0_i32_0 : i32, i32
  }
  func.func @transform_4(%arg0: i32, %arg1: i32) -> (i32, i32) {
    %c0_i32 = arith.constant 0 : i32
    %c0_i32_0 = arith.constant 0 : i32
    %c0_i32_1 = arith.constant 0 : i32
    return %c0_i32, %c0_i32_0 : i32, i32
  }
  func.func @transform_5(%arg0: i32, %arg1: i32) -> (i32, i32, i32) {
    %c0_i32 = arith.constant 0 : i32
    %c0_i32_0 = arith.constant 0 : i32
    return %arg0, %c0_i32, %arg1 : i32, i32, i32
  }
  func.func @transform_6(%arg0: i32, %arg1: i32) -> (i32, i32, i32) {
    %c0_i32 = arith.constant 0 : i32
    %c0_i32_0 = arith.constant 0 : i32
    return %arg0, %c0_i32, %arg1 : i32, i32, i32
  }
  func.func @transform_7(%arg0: i32, %arg1: i32) -> (i32, i32, i32) {
    %c0_i32 = arith.constant 0 : i32
    %c0_i32_0 = arith.constant 0 : i32
    return %arg0, %arg1, %c0_i32 : i32, i32, i32
  }
  func.func @transform_8(%arg0: i32, %arg1: i32) -> (i32, i32, i32) {
    %c0_i32 = arith.constant 0 : i32
    %c0_i32_0 = arith.constant 0 : i32
    %c0_i32_1 = arith.constant 0 : i32
    return %arg0, %c0_i32, %c0_i32_0 : i32, i32, i32
  }
  func.func @transform_9(%arg0: i32, %arg1: i32) -> (i32, i32) {
    %c0_i32 = arith.constant 0 : i32
    %c0_i32_0 = arith.constant 0 : i32
    %c0_i32_1 = arith.constant 0 : i32
    return %c0_i32, %c0_i32_0 : i32, i32
  }
  func.func @transform_10(%arg0: i32, %arg1: i32) -> (i32, i32) {
    %c0_i32 = arith.constant 0 : i32
    %c0_i32_0 = arith.constant 0 : i32
    %c0_i32_1 = arith.constant 0 : i32
    return %c0_i32, %c0_i32_0 : i32, i32
  }
  func.func @transform_11(%arg0: i32, %arg1: i32) -> (i32, i32) {
    %c0_i32 = arith.constant 0 : i32
    %c0_i32_0 = arith.constant 0 : i32
    %c0_i32_1 = arith.constant 0 : i32
    return %c0_i32, %c0_i32_0 : i32, i32
  }
}

</mosaic_0001>

<llo_original>
// kernel: gate_model_forward.1
$region0: #{gate_model_forward.1}
  #allocation0 [shape = 'u32[]', space=smem, size = 0x4, offset = 0x4, fixed_abs, tag = 'smem constant byte address 0x4 - core index']
  #allocation1 [shape = 'u32[144,128]{1,0:T(1,128)}', space=vmem, size = 0x12000, scoped, tag = 'internal scratch']
  #allocation2 [shape = 'f32[2,3]{1,0:T(2,128)}', space=vmem, size = 0x400, scoped, tag = 'scratch operand']
  #allocation3 [shape = 'f32[2,1024]{1,0:T(2,128)}', space=vmem, size = 0x2000, scoped, tag = 'scratch operand']
  %s0 = inlined_call_operand.vmem [shape: bf16[2,2048], index: 0, kind: input, shape index: {}]
  %s1 = inlined_call_operand.hbm [shape: bf16[2048,128], index: 1, kind: input, shape index: {}]
  %s2 = inlined_call_operand.hbm [shape: f32[1,128], index: 2, kind: input, shape index: {}]
  %s3 = inlined_call_operand.vmem [shape: bf16[128,3], index: 3, kind: input, shape index: {}]
  %s4 = inlined_call_operand.hbm [shape: f32[1,3], index: 4, kind: input, shape index: {}]
  %s5 = inlined_call_operand.hbm [shape: bf16[3,2048,1024], index: 5, kind: input, shape index: {}]
  %s6 = inlined_call_operand.hbm [shape: f32[3,1,1024], index: 6, kind: input, shape index: {}]
  %s7 = inlined_call_operand.hbm [shape: bf16[3,1024,1024], index: 7, kind: input, shape index: {}]
  %s8 = inlined_call_operand.hbm [shape: f32[3,1,1024], index: 8, kind: input, shape index: {}]
  %s9 = inlined_call_operand.vmem [shape: bf16[1024,61], index: 9, kind: input, shape index: {}]
  %s10 = inlined_call_operand.hbm [shape: f32[1,61], index: 10, kind: input, shape index: {}]
  %s11 = inlined_call_operand.hbm [shape: f32[2,61], index: 11, kind: output, shape index: {}]
  %s12 = sld [smem:[#allocation0]]
  $region121: #{gate_model_forward.1} parent=0
    _
  %s14 = ssub.s32 1, %s12
  %s15 = scalar_select 0, %s14, %s12
  $region1: #{gate_model_forward.1} parent=0
    #allocation4 [shape = 'u8[524288]{0}', space=vmem, size = 0x80000, scoped, tag = 'input window, operand 1, single buffered']
    #allocation5 [shape = 's32[2]{0}', space=sflag, size = 0x8, scoped, tag = 'scoped memory for gate_model_forward.1']
    #allocation6 [shape = 's32[2]{0}', space=sflag, size = 0x8, scoped, tag = 'scoped memory for gate_model_forward.1']
    #allocation7 [shape = 'u8[512]{0}', space=vmem, size = 0x400, scoped, tag = 'input window, operand 2, single buffered']
    #allocation8 [shape = 's32[1]{0}', space=sflag, size = 0x4, scoped, tag = 'scoped memory for gate_model_forward.1']
    #allocation9 [shape = 'u8[512]{0}', space=vmem, size = 0x400, scoped, tag = 'input window, operand 4, single buffered']
    #allocation10 [shape = 'u8[4194304]{0}', space=vmem, size = 0x400000, scoped, tag = 'input window, operand 5']
    #allocation11 [shape = 's32[2]{0}', space=sflag, size = 0x8, scoped, tag = 'scoped memory for gate_model_forward.1']
    #allocation12 [shape = 'u8[4096]{0}', space=vmem, size = 0x1000, scoped, tag = 'input window, operand 6']
    #allocation13 [shape = 'u8[2097152]{0}', space=vmem, size = 0x200000, scoped, tag = 'input window, operand 7']
    #allocation14 [shape = 's32[2]{0}', space=sflag, size = 0x8, scoped, tag = 'scoped memory for gate_model_forward.1']
    #allocation15 [shape = 'u8[8192]{0}', space=vmem, size = 0x2000, scoped, tag = 'input window, operand 8']
    #allocation16 [shape = 'u8[512]{0}', space=vmem, size = 0x400, scoped, tag = 'input window, operand 10, single buffered']
    #allocation17 [shape = 's32[1]{0}', space=sflag, size = 0x4, scoped, tag = 'scoped memory for gate_model_forward.1']
    #allocation18 [shape = 'u8[1024]{0}', space=vmem, size = 0x400, scoped, tag = 'output window, operand 0, single buffered']
    %16 = vsyncpa [#allocation5], 0
    %17 = vsyncpa [#allocation8], 0
    %18 = vsyncpa [#allocation11], 0
    %s19 = scalar_lea.sflag [#allocation11], 1
    %20 = vsyncpa %s19, 0
    %21 = vsyncpa [#allocation14], 0
    %s22 = scalar_lea.sflag [#allocation14], 1
    %23 = vsyncpa %s22, 0
    %24 = vsyncpa [#allocation17], 0
    %25 = vsyncpa [#allocation6], 0
    loop: start=0, step=1, limit=8
    $region2: #{gate_model_forward.1} parent=1 // loop_pre_header
      _
    $region3: #{gate_model_forward.1} parent=1 // loop_header
      %s27 = sphi 0, %s31
      %p28 = scmp.ge.s32.totalorder %s27, 8
      %s34 = sphi 0, %s46
      %s35 = sphi 0, %s42
      %s36 = sphi 0, %s34
      %s37 = sphi 0, %s35
      %s38 = sphi 0, %s36
      %s39 = sphi 0, %s37
      %s47 = sphi 0, %s47
      %s49 = sphi 0, %s47
      %s50 = sphi 0, %s49
      %s64 = sphi 0, %s50
      %s68 = sphi 0, %s68
      %s70 = sphi 0, %s68
      %s71 = sphi 0, %s70
      %s85 = sphi 0, %s71
      %s89 = sphi 0, %s89
      %s91 = sphi 0, %s89
      %s92 = sphi 0, %s91
      %s106 = sphi 0, %s92
      %s110 = sphi 0, %s110
      %s112 = sphi 0, %s110
      %s113 = sphi 0, %s112
      %s127 = sphi 0, %s113
      %s131 = sphi 0, %s131
      %s133 = sphi 0, %s131
      %s134 = sphi 0, %s133
      %s148 = sphi 0, %s134
      %s156 = sphi 0, %s158
      %s159 = sphi 0, %s156
      %s160 = sphi 0, %s159
      %s176 = sphi 0, %s160
      %s184 = sphi 0, %s186
      %s187 = sphi 0, %s184
      %s188 = sphi 0, %s187
      %s204 = sphi 0, %s188
      %s212 = sphi 0, %s214
      %s215 = sphi 0, %s212
      %s216 = sphi 0, %s215
      %s232 = sphi 0, %s216
      %s238 = sphi 0, %s240
      %s241 = sphi 0, %s238
      %s242 = sphi 0, %s241
      %s258 = sphi 0, %s242
      %s262 = sphi 0, %s262
      %s264 = sphi 0, %s262
      %s265 = sphi 0, %s264
      %s279 = sphi 0, %s265
      %s283 = sphi 0, %s283
      %s285 = sphi 0, %s283
      %s286 = sphi 0, %s285
      %s300 = sphi 0, %s286
      %s304 = sphi 0, %s304
      %s306 = sphi 0, %s304
      %s307 = sphi 0, %s306
      %s321 = sphi 0, %s307
    $region4: #{gate_model_forward.1} parent=1 // loop_header_branch
      %30 = sbr.rel (%p28) target = $region8
    $region5: #{gate_model_forward.1} parent=1 // loop_body
      %s32 = ssub.s32 %s27, 1
      %s33 = ssub.s32 %s27, 2
      %s40 = sadd.s32 1, %s35
      %p41 = scmp.ge.s32.totalorder %s40, 2
      %s42 = scalar_select %p41, 0, %s40
      %s43 = sadd.s32 1, %s34
      %s44 = scalar_select %p41, %s43, %s34
      %p45 = scmp.ge.s32.totalorder %s44, 3
      %s46 = scalar_select %p45, 0, %s44
      %s48 = sadd.s32 %s47, 1
      %p51 = scmp.eq.s32.totalorder %s27, 5
      %p52 = scmp.ne.s32.totalorder %s47, %s49
      %p53 = scmp.eq.s32.totalorder %s27, 0
      %p54 = por %p52, %p53
      %p55 = scmp.ne.s32.totalorder %s47, %s49
      %p56 = scmp.eq.s32.totalorder %s32, 5
      %p57 = por %p55, %p56
      %p58 = scmp.ne.s32.totalorder %s49, %s50
      %p59 = scmp.eq.s32.totalorder %s32, 0
      %p60 = por %p58, %p59
      %p61 = scmp.ne.s32.totalorder %s49, %s50
      %p62 = scmp.eq.s32.totalorder %s33, 5
      %p63 = por %p61, %p62
      %p65 = scmp.ne.s32.totalorder %s50, %s64
      %p66 = scmp.eq.s32.totalorder %s33, 0
      %p67 = por %p65, %p66
      %s69 = sadd.s32 %s68, 1
      %p72 = scmp.eq.s32.totalorder %s27, 5
      %p73 = scmp.ne.s32.totalorder %s68, %s70
      %p74 = scmp.eq.s32.totalorder %s27, 0
      %p75 = por %p73, %p74
      %p76 = scmp.ne.s32.totalorder %s68, %s70
      %p77 = scmp.eq.s32.totalorder %s32, 5
      %p78 = por %p76, %p77
      %p79 = scmp.ne.s32.totalorder %s70, %s71
      %p80 = scmp.eq.s32.totalorder %s32, 0
      %p81 = por %p79, %p80
      %p82 = scmp.ne.s32.totalorder %s70, %s71
      %p83 = scmp.eq.s32.totalorder %s33, 5
      %p84 = por %p82, %p83
      %p86 = scmp.ne.s32.totalorder %s71, %s85
      %p87 = scmp.eq.s32.totalorder %s33, 0
      %p88 = por %p86, %p87
      %s90 = sadd.s32 %s89, 1
      %p93 = scmp.eq.s32.totalorder %s27, 5
      %p94 = scmp.ne.s32.totalorder %s89, %s91
      %p95 = scmp.eq.s32.totalorder %s27, 0
      %p96 = por %p94, %p95
      %p97 = scmp.ne.s32.totalorder %s89, %s91
      %p98 = scmp.eq.s32.totalorder %s32, 5
      %p99 = por %p97, %p98
      %p100 = scmp.ne.s32.totalorder %s91, %s92
      %p101 = scmp.eq.s32.totalorder %s32, 0
      %p102 = por %p100, %p101
      %p103 = scmp.ne.s32.totalorder %s91, %s92
      %p104 = scmp.eq.s32.totalorder %s33, 5
      %p105 = por %p103, %p104
      %p107 = scmp.ne.s32.totalorder %s92, %s106
      %p108 = scmp.eq.s32.totalorder %s33, 0
      %p109 = por %p107, %p108
      %s111 = sadd.s32 %s110, 1
      %p114 = scmp.eq.s32.totalorder %s27, 5
      %p115 = scmp.ne.s32.totalorder %s110, %s112
      %p116 = scmp.eq.s32.totalorder %s27, 0
      %p117 = por %p115, %p116
      %p118 = scmp.ne.s32.totalorder %s110, %s112
      %p119 = scmp.eq.s32.totalorder %s32, 5
      %p120 = por %p118, %p119
      %p121 = scmp.ne.s32.totalorder %s112, %s113
      %p122 = scmp.eq.s32.totalorder %s32, 0
      %p123 = por %p121, %p122
      %p124 = scmp.ne.s32.totalorder %s112, %s113
      %p125 = scmp.eq.s32.totalorder %s33, 5
      %p126 = por %p124, %p125
      %p128 = scmp.ne.s32.totalorder %s113, %s127
      %p129 = scmp.eq.s32.totalorder %s33, 0
      %p130 = por %p128, %p129
      %s132 = sadd.s32 %s131, 1
      %p135 = scmp.eq.s32.totalorder %s27, 5
      %p136 = scmp.ne.s32.totalorder %s131, %s133
      %p137 = scmp.eq.s32.totalorder %s27, 0
      %p138 = por %p136, %p137
      %p139 = scmp.ne.s32.totalorder %s131, %s133
      %p140 = scmp.eq.s32.totalorder %s32, 5
      %p141 = por %p139, %p140
      %p142 = scmp.ne.s32.totalorder %s133, %s134
      %p143 = scmp.eq.s32.totalorder %s32, 0
      %p144 = por %p142, %p143
      %p145 = scmp.ne.s32.totalorder %s133, %s134
      %p146 = scmp.eq.s32.totalorder %s33, 5
      %p147 = por %p145, %p146
      %p149 = scmp.ne.s32.totalorder %s134, %s148
      %p150 = scmp.eq.s32.totalorder %s33, 0
      %p151 = por %p149, %p150
      %s152 = ssub.s32 %s34, %s46
      %s153 = ssub.s32 %s35, %s42
      %s154 = sor.u32 %s152, %s153
      %p155 = scmp.eq.s32.totalorder %s154, 0
      %s157 = sadd.s32 %s156, 1
      %s158 = scalar_select %p155, %s156, %s157
      %p161 = pneg %p155
      %p162 = scmp.eq.s32.totalorder %s27, 5
      %p163 = por %p161, %p162
      %p164 = scmp.ne.s32.totalorder %s156, %s159
      %p165 = scmp.eq.s32.totalorder %s27, 0
      %p166 = por %p164, %p165
      %p167 = scmp.ne.s32.totalorder %s156, %s159
      %p168 = scmp.eq.s32.totalorder %s32, 5
      %p169 = por %p167, %p168
      %p170 = scmp.ne.s32.totalorder %s159, %s160
      %p171 = scmp.eq.s32.totalorder %s32, 0
      %p172 = por %p170, %p171
      %p173 = scmp.ne.s32.totalorder %s159, %s160
      %p174 = scmp.eq.s32.totalorder %s33, 5
      %p175 = por %p173, %p174
      %p177 = scmp.ne.s32.totalorder %s160, %s176
      %p178 = scmp.eq.s32.totalorder %s33, 0
      %p179 = por %p177, %p178
      %s180 = ssub.s32 %s34, %s46
      %s181 = ssub.s32 %s35, %s42
      %s182 = sor.u32 %s180, %s181
      %p183 = scmp.eq.s32.totalorder %s182, 0
      %s185 = sadd.s32 %s184, 1
      %s186 = scalar_select %p183, %s184, %s185
      %p189 = pneg %p183
      %p190 = scmp.eq.s32.totalorder %s27, 5
      %p191 = por %p189, %p190
      %p192 = scmp.ne.s32.totalorder %s184, %s187
      %p193 = scmp.eq.s32.totalorder %s27, 0
      %p194 = por %p192, %p193
      %p195 = scmp.ne.s32.totalorder %s184, %s187
      %p196 = scmp.eq.s32.totalorder %s32, 5
      %p197 = por %p195, %p196
      %p198 = scmp.ne.s32.totalorder %s187, %s188
      %p199 = scmp.eq.s32.totalorder %s32, 0
      %p200 = por %p198, %p199
      %p201 = scmp.ne.s32.totalorder %s187, %s188
      %p202 = scmp.eq.s32.totalorder %s33, 5
      %p203 = por %p201, %p202
      %p205 = scmp.ne.s32.totalorder %s188, %s204
      %p206 = scmp.eq.s32.totalorder %s33, 0
      %p207 = por %p205, %p206
      %s208 = ssub.s32 %s34, %s46
      %s209 = ssub.s32 %s35, %s42
      %s210 = sor.u32 %s208, %s209
      %p211 = scmp.eq.s32.totalorder %s210, 0
      %s213 = sadd.s32 %s212, 1
      %s214 = scalar_select %p211, %s212, %s213
      %p217 = pneg %p211
      %p218 = scmp.eq.s32.totalorder %s27, 5
      %p219 = por %p217, %p218
      %p220 = scmp.ne.s32.totalorder %s212, %s215
      %p221 = scmp.eq.s32.totalorder %s27, 0
      %p222 = por %p220, %p221
      %p223 = scmp.ne.s32.totalorder %s212, %s215
      %p224 = scmp.eq.s32.totalorder %s32, 5
      %p225 = por %p223, %p224
      %p226 = scmp.ne.s32.totalorder %s215, %s216
      %p227 = scmp.eq.s32.totalorder %s32, 0
      %p228 = por %p226, %p227
      %p229 = scmp.ne.s32.totalorder %s215, %s216
      %p230 = scmp.eq.s32.totalorder %s33, 5
      %p231 = por %p229, %p230
      %p233 = scmp.ne.s32.totalorder %s216, %s232
      %p234 = scmp.eq.s32.totalorder %s33, 0
      %p235 = por %p233, %p234
      %s236 = ssub.s32 %s34, %s46
      %p237 = scmp.eq.s32.totalorder %s236, 0
      %s239 = sadd.s32 %s238, 1
      %s240 = scalar_select %p237, %s238, %s239
      %p243 = pneg %p237
      %p244 = scmp.eq.s32.totalorder %s27, 5
      %p245 = por %p243, %p244
      %p246 = scmp.ne.s32.totalorder %s238, %s241
      %p247 = scmp.eq.s32.totalorder %s27, 0
      %p248 = por %p246, %p247
      %p249 = scmp.ne.s32.totalorder %s238, %s241
      %p250 = scmp.eq.s32.totalorder %s32, 5
      %p251 = por %p249, %p250
      %p252 = scmp.ne.s32.totalorder %s241, %s242
      %p253 = scmp.eq.s32.totalorder %s32, 0
      %p254 = por %p252, %p253
      %p255 = scmp.ne.s32.totalorder %s241, %s242
      %p256 = scmp.eq.s32.totalorder %s33, 5
      %p257 = por %p255, %p256
      %p259 = scmp.ne.s32.totalorder %s242, %s258
      %p260 = scmp.eq.s32.totalorder %s33, 0
      %p261 = por %p259, %p260
      %s263 = sadd.s32 %s262, 1
      %p266 = scmp.eq.s32.totalorder %s27, 5
      %p267 = scmp.ne.s32.totalorder %s262, %s264
      %p268 = scmp.eq.s32.totalorder %s27, 0
      %p269 = por %p267, %p268
      %p270 = scmp.ne.s32.totalorder %s262, %s264
      %p271 = scmp.eq.s32.totalorder %s32, 5
      %p272 = por %p270, %p271
      %p273 = scmp.ne.s32.totalorder %s264, %s265
      %p274 = scmp.eq.s32.totalorder %s32, 0
      %p275 = por %p273, %p274
      %p276 = scmp.ne.s32.totalorder %s264, %s265
      %p277 = scmp.eq.s32.totalorder %s33, 5
      %p278 = por %p276, %p277
      %p280 = scmp.ne.s32.totalorder %s265, %s279
      %p281 = scmp.eq.s32.totalorder %s33, 0
      %p282 = por %p280, %p281
      %s284 = sadd.s32 %s283, 1
      %p287 = scmp.eq.s32.totalorder %s27, 5
      %p288 = scmp.ne.s32.totalorder %s283, %s285
      %p289 = scmp.eq.s32.totalorder %s27, 0
      %p290 = por %p288, %p289
      %p291 = scmp.ne.s32.totalorder %s283, %s285
      %p292 = scmp.eq.s32.totalorder %s32, 5
      %p293 = por %p291, %p292
      %p294 = scmp.ne.s32.totalorder %s285, %s286
      %p295 = scmp.eq.s32.totalorder %s32, 0
      %p296 = por %p294, %p295
      %p297 = scmp.ne.s32.totalorder %s285, %s286
      %p298 = scmp.eq.s32.totalorder %s33, 5
      %p299 = por %p297, %p298
      %p301 = scmp.ne.s32.totalorder %s286, %s300
      %p302 = scmp.eq.s32.totalorder %s33, 0
      %p303 = por %p301, %p302
      %s305 = sadd.s32 %s304, 1
      %p308 = scmp.eq.s32.totalorder %s27, 5
      %p309 = scmp.ne.s32.totalorder %s304, %s306
      %p310 = scmp.eq.s32.totalorder %s27, 0
      %p311 = por %p309, %p310
      %p312 = scmp.ne.s32.totalorder %s304, %s306
      %p313 = scmp.eq.s32.totalorder %s32, 5
      %p314 = por %p312, %p313
      %p315 = scmp.ne.s32.totalorder %s306, %s307
      %p316 = scmp.eq.s32.totalorder %s32, 0
      %p317 = por %p315, %p316
      %p318 = scmp.ne.s32.totalorder %s306, %s307
      %p319 = scmp.eq.s32.totalorder %s33, 5
      %p320 = por %p318, %p319
      %p322 = scmp.ne.s32.totalorder %s307, %s321
      %p323 = scmp.eq.s32.totalorder %s33, 0
      %p324 = por %p322, %p323
      %p325 = scmp.le.s32.totalorder 1, %s27
      %p326 = scmp.lt.s32.totalorder %s27, 7
      %p327 = pnand %p325, %p326
      %p328 = pneg %p327
      // Predicated region
      $region9: #{gate_model_forward.1} parent=5 // pred_check
        _
      $region10: #{gate_model_forward.1} parent=5 // pred_check_branch
        %330 = sbr.rel (%p327) target = $region12
      $region11: #{gate_model_forward.1} parent=5 // pred_region
        %s331 = ssub.s32 %s27, 1
        // Predicated region
        $region13: #{gate_model_forward.1} parent=11 // pred_check
          %p332 = pneg %p60
        $region14: #{gate_model_forward.1} parent=11 // pred_check_branch
          %334 = sbr.rel (%p332) target = $region16
        $region15: #{gate_model_forward.1} parent=11 // pred_region
          _
        $region16: #{gate_model_forward.1} parent=11 // pred_fallthru
          _
        // Predicated region
        $region17: #{gate_model_forward.1} parent=11 // pred_check
          %p335 = pneg %p81
        $region18: #{gate_model_forward.1} parent=11 // pred_check_branch
          %337 = sbr.rel (%p335) target = $region20
        $region19: #{gate_model_forward.1} parent=11 // pred_region
          %s339 = ssub.s32 16384, 16384
          %340 = vsyncadd [#allocation5], %s339
          %s341 = sshll.u32 [#allocation4], 4
          %s342 = int_to_ptr.vmem [resolvable:$true] %s341
          %347 = dma.hbm_to_vmem [thread:$0]  %s1, 16384, %s342, [#allocation5], 64, 64, 4
        $region20: #{gate_model_forward.1} parent=11 // pred_fallthru
          _
        // Predicated region
        $region21: #{gate_model_forward.1} parent=11 // pred_check
          %p348 = pneg %p102
        $region22: #{gate_model_forward.1} parent=11 // pred_check_branch
          %350 = sbr.rel (%p348) target = $region24
        $region23: #{gate_model_forward.1} parent=11 // pred_region
          %s352 = ssub.s32 16, 16
          %353 = vsyncadd [#allocation8], %s352
          %s355 = sshll.u32 [#allocation7], 4
          %s356 = int_to_ptr.vmem [resolvable:$true] %s355
          %358 = dma.hbm_to_vmem [thread:$0]  %s2, 16, %s356, [#allocation8]
        $region24: #{gate_model_forward.1} parent=11 // pred_fallthru
          _
        // Predicated region
        $region25: #{gate_model_forward.1} parent=11 // pred_check
          %p359 = pneg %p123
        $region26: #{gate_model_forward.1} parent=11 // pred_check_branch
          %361 = sbr.rel (%p359) target = $region28
        $region27: #{gate_model_forward.1} parent=11 // pred_region
          _
        $region28: #{gate_model_forward.1} parent=11 // pred_fallthru
          _
        // Predicated region
        $region29: #{gate_model_forward.1} parent=11 // pred_check
          %p362 = pneg %p144
        $region30: #{gate_model_forward.1} parent=11 // pred_check_branch
          %364 = sbr.rel (%p362) target = $region32
        $region31: #{gate_model_forward.1} parent=11 // pred_region
          %s366 = ssub.s32 16, 16
          %367 = vsyncadd [#allocation8], %s366
          %s369 = sshll.u32 [#allocation9], 4
          %s370 = int_to_ptr.vmem [resolvable:$true] %s369
          %372 = dma.hbm_to_vmem [thread:$0]  %s4, 16, %s370, [#allocation8]
        $region32: #{gate_model_forward.1} parent=11 // pred_fallthru
          _
        // Predicated region
        $region33: #{gate_model_forward.1} parent=11 // pred_check
          %p373 = pneg %p275
        $region34: #{gate_model_forward.1} parent=11 // pred_check_branch
          %375 = sbr.rel (%p373) target = $region36
        $region35: #{gate_model_forward.1} parent=11 // pred_region
          _
        $region36: #{gate_model_forward.1} parent=11 // pred_fallthru
          _
        // Predicated region
        $region37: #{gate_model_forward.1} parent=11 // pred_check
          %p376 = pneg %p296
        $region38: #{gate_model_forward.1} parent=11 // pred_check_branch
          %378 = sbr.rel (%p376) target = $region40
        $region39: #{gate_model_forward.1} parent=11 // pred_region
          %s380 = ssub.s32 16, 16
          %381 = vsyncadd [#allocation17], %s380
          %s383 = sshll.u32 [#allocation16], 4
          %s384 = int_to_ptr.vmem [resolvable:$true] %s383
          %386 = dma.hbm_to_vmem [thread:$0]  %s10, 16, %s384, [#allocation17]
        $region40: #{gate_model_forward.1} parent=11 // pred_fallthru
          _
      $region12: #{gate_model_forward.1} parent=5 // pred_fallthru
        _
      %p387 = scmp.lt.s32.totalorder %s27, 6
      // Predicated region
      $region41: #{gate_model_forward.1} parent=5 // pred_check
        %p388 = pneg %p387
      $region42: #{gate_model_forward.1} parent=5 // pred_check_branch
        %390 = sbr.rel (%p388) target = $region44
      $region43: #{gate_model_forward.1} parent=5 // pred_region
        // Predicated region
        $region45: #{gate_model_forward.1} parent=43 // pred_check
          %p391 = pneg %p166
        $region46: #{gate_model_forward.1} parent=43 // pred_check_branch
          %393 = sbr.rel (%p391) target = $region48
        $region47: #{gate_model_forward.1} parent=43 // pred_region
          %s394 = sand.u32 %s27, 1
          %s395 = scalar_lea.sflag [#allocation11], %s394
          %s396 = sand.u32 %s156, 1
          %s397 = smul.addr %s396, 4096
          %s398 = scalar_lea.vmem [#allocation10], %s397
          %s399 = smul.u32 4, %s35
          %s401 = ssub.s32 65536, 65536
          %402 = vsyncadd %s395, %s401
          %s403 = smul.addr %s34, 2048
          %s404 = sadd.s32 %s399, %s403
          %s405 = smul.addr %s404, 64
          %s406 = scalar_lea.hbm %s5, %s405
          %s407 = sshll.u32 %s398, 4
          %s408 = int_to_ptr.vmem [resolvable:$true] %s407
          %413 = dma.hbm_to_vmem [thread:$0]  %s406, 65536, %s408, %s395, 512, 256, 16
        $region48: #{gate_model_forward.1} parent=43 // pred_fallthru
          _
        // Predicated region
        $region49: #{gate_model_forward.1} parent=43 // pred_check
          %p414 = pneg %p194
        $region50: #{gate_model_forward.1} parent=43 // pred_check_branch
          %416 = sbr.rel (%p414) target = $region52
        $region51: #{gate_model_forward.1} parent=43 // pred_region
          %s417 = sand.u32 %s27, 1
          %s418 = scalar_lea.sflag [#allocation11], %s417
          %s419 = sand.u32 %s184, 1
          %s420 = smul.addr %s419, 4
          %s421 = scalar_lea.vmem [#allocation12], %s420
          %s422 = smul.u32 4, %s35
          %s424 = ssub.s32 64, 64
          %425 = vsyncadd %s418, %s424
          %s426 = smul.addr %s34, 8
          %s427 = sadd.s32 %s422, %s426
          %s428 = smul.addr %s427, 16
          %s429 = scalar_lea.hbm %s6, %s428
          %s431 = sshll.u32 %s421, 4
          %s432 = int_to_ptr.vmem [resolvable:$true] %s431
          %434 = dma.hbm_to_vmem [thread:$0]  %s429, 64, %s432, %s418
        $region52: #{gate_model_forward.1} parent=43 // pred_fallthru
          _
        // Predicated region
        $region53: #{gate_model_forward.1} parent=43 // pred_check
          %p435 = pneg %p222
        $region54: #{gate_model_forward.1} parent=43 // pred_check_branch
          %437 = sbr.rel (%p435) target = $region56
        $region55: #{gate_model_forward.1} parent=43 // pred_region
          %s438 = sand.u32 %s27, 1
          %s439 = scalar_lea.sflag [#allocation14], %s438
          %s440 = sand.u32 %s212, 1
          %s441 = smul.addr %s440, 2048
          %s442 = scalar_lea.vmem [#allocation13], %s441
          %s443 = smul.u32 64, %s35
          %s445 = ssub.s32 32768, 32768
          %446 = vsyncadd %s439, %s445
          %s447 = smul.addr %s443, 8
          %s448 = smul.addr %s34, 1024
          %s449 = sadd.s32 %s447, %s448
          %s450 = smul.addr %s449, 64
          %s451 = scalar_lea.hbm %s7, %s450
          %s452 = sshll.u32 %s442, 4
          %s453 = int_to_ptr.vmem [resolvable:$true] %s452
          %458 = dma.hbm_to_vmem [thread:$0]  %s451, 32768, %s453, %s439, 512, 512, 32
        $region56: #{gate_model_forward.1} parent=43 // pred_fallthru
          _
        // Predicated region
        $region57: #{gate_model_forward.1} parent=43 // pred_check
          %p459 = pneg %p248
        $region58: #{gate_model_forward.1} parent=43 // pred_check_branch
          %461 = sbr.rel (%p459) target = $region60
        $region59: #{gate_model_forward.1} parent=43 // pred_region
          %s462 = sand.u32 %s27, 1
          %s463 = scalar_lea.sflag [#allocation14], %s462
          %s464 = sand.u32 %s238, 1
          %s465 = smul.addr %s464, 8
          %s466 = scalar_lea.vmem [#allocation15], %s465
          %s468 = ssub.s32 128, 128
          %469 = vsyncadd %s463, %s468
          %s470 = smul.addr %s34, 8
          %s471 = smul.addr %s470, 16
          %s472 = scalar_lea.hbm %s8, %s471
          %s474 = sshll.u32 %s466, 4
          %s475 = int_to_ptr.vmem [resolvable:$true] %s474
          %477 = dma.hbm_to_vmem [thread:$0]  %s472, 128, %s475, %s463
        $region60: #{gate_model_forward.1} parent=43 // pred_fallthru
          _
      $region44: #{gate_model_forward.1} parent=5 // pred_fallthru
        _
      %p478 = scmp.le.s32.totalorder 1, %s27
      %p479 = scmp.lt.s32.totalorder %s27, 7
      %p480 = pnand %p478, %p479
      %p481 = pneg %p480
      // Predicated region
      $region61: #{gate_model_forward.1} parent=5 // pred_check
        _
      $region62: #{gate_model_forward.1} parent=5 // pred_check_branch
        %483 = sbr.rel (%p480) target = $region64
      $region63: #{gate_model_forward.1} parent=5 // pred_region
        %s484 = ssub.s32 %s27, 1
        // Predicated region
        $region65: #{gate_model_forward.1} parent=63 // pred_check
          %p485 = pneg %p81
        $region66: #{gate_model_forward.1} parent=63 // pred_check_branch
          %487 = sbr.rel (%p485) target = $region68
        $region67: #{gate_model_forward.1} parent=63 // pred_region
          %488 = dma.done [#allocation5], 16384
        $region68: #{gate_model_forward.1} parent=63 // pred_fallthru
          _
        // Predicated region
        $region69: #{gate_model_forward.1} parent=63 // pred_check
          %p489 = pneg %p102
        $region70: #{gate_model_forward.1} parent=63 // pred_check_branch
          %491 = sbr.rel (%p489) target = $region72
        $region71: #{gate_model_forward.1} parent=63 // pred_region
          %492 = dma.done [#allocation8], 16
        $region72: #{gate_model_forward.1} parent=63 // pred_fallthru
          _
        // Predicated region
        $region73: #{gate_model_forward.1} parent=63 // pred_check
          %p493 = pneg %p144
        $region74: #{gate_model_forward.1} parent=63 // pred_check_branch
          %495 = sbr.rel (%p493) target = $region76
        $region75: #{gate_model_forward.1} parent=63 // pred_region
          %496 = dma.done [#allocation8], 16
        $region76: #{gate_model_forward.1} parent=63 // pred_fallthru
          _
        %s497 = sand.u32 %s32, 1
        %s498 = scalar_lea.sflag [#allocation11], %s497
        %s499 = sand.u32 %s159, 1
        %s500 = smul.addr %s499, 4096
        %s501 = scalar_lea.vmem [#allocation10], %s500
        // Predicated region
        $region77: #{gate_model_forward.1} parent=63 // pred_check
          %p502 = pneg %p172
        $region78: #{gate_model_forward.1} parent=63 // pred_check_branch
          %504 = sbr.rel (%p502) target = $region80
        $region79: #{gate_model_forward.1} parent=63 // pred_region
          %505 = dma.done %s498, 65536
        $region80: #{gate_model_forward.1} parent=63 // pred_fallthru
          _
        %s506 = sand.u32 %s32, 1
        %s507 = scalar_lea.sflag [#allocation11], %s506
        %s508 = sand.u32 %s187, 1
        %s509 = smul.addr %s508, 4
        %s510 = scalar_lea.vmem [#allocation12], %s509
        // Predicated region
        $region81: #{gate_model_forward.1} parent=63 // pred_check
          %p511 = pneg %p200
        $region82: #{gate_model_forward.1} parent=63 // pred_check_branch
          %513 = sbr.rel (%p511) target = $region84
        $region83: #{gate_model_forward.1} parent=63 // pred_region
          %514 = dma.done %s507, 64
        $region84: #{gate_model_forward.1} parent=63 // pred_fallthru
          _
        %s515 = sand.u32 %s32, 1
        %s516 = scalar_lea.sflag [#allocation14], %s515
        %s517 = sand.u32 %s215, 1
        %s518 = smul.addr %s517, 2048
        %s519 = scalar_lea.vmem [#allocation13], %s518
        // Predicated region
        $region85: #{gate_model_forward.1} parent=63 // pred_check
          %p520 = pneg %p228
        $region86: #{gate_model_forward.1} parent=63 // pred_check_branch
          %522 = sbr.rel (%p520) target = $region88
        $region87: #{gate_model_forward.1} parent=63 // pred_region
          %523 = dma.done %s516, 32768
        $region88: #{gate_model_forward.1} parent=63 // pred_fallthru
          _
        %s524 = sand.u32 %s32, 1
        %s525 = scalar_lea.sflag [#allocation14], %s524
        %s526 = sand.u32 %s241, 1
        %s527 = smul.addr %s526, 8
        %s528 = scalar_lea.vmem [#allocation15], %s527
        // Predicated region
        $region89: #{gate_model_forward.1} parent=63 // pred_check
          %p529 = pneg %p254
        $region90: #{gate_model_forward.1} parent=63 // pred_check_branch
          %531 = sbr.rel (%p529) target = $region92
        $region91: #{gate_model_forward.1} parent=63 // pred_region
          %532 = dma.done %s525, 128
        $region92: #{gate_model_forward.1} parent=63 // pred_fallthru
          _
        // Predicated region
        $region93: #{gate_model_forward.1} parent=63 // pred_check
          %p533 = pneg %p296
        $region94: #{gate_model_forward.1} parent=63 // pred_check_branch
          %535 = sbr.rel (%p533) target = $region96
        $region95: #{gate_model_forward.1} parent=63 // pred_region
          %536 = dma.done [#allocation17], 16
        $region96: #{gate_model_forward.1} parent=63 // pred_fallthru
          _
        %p537 = pneg %p60
        %p538 = pneg %p57
        %p539 = pneg %p81
        %p540 = pneg %p78
        %p541 = pneg %p102
        %p542 = pneg %p99
        %p543 = pneg %p123
        %p544 = pneg %p120
        %p545 = pneg %p144
        %p546 = pneg %p141
        %s547 = sand.u32 %s32, 1
        %s548 = scalar_lea.sflag [#allocation11], %s547
        %s549 = sand.u32 %s159, 1
        %s550 = smul.addr %s549, 4096
        %s551 = scalar_lea.vmem [#allocation10], %s550
        %p552 = pneg %p172
        %p553 = pneg %p169
        %s554 = sand.u32 %s32, 1
        %s555 = scalar_lea.sflag [#allocation11], %s554
        %s556 = sand.u32 %s187, 1
        %s557 = smul.addr %s556, 4
        %s558 = scalar_lea.vmem [#allocation12], %s557
        %p559 = pneg %p200
        %p560 = pneg %p197
        %s561 = sand.u32 %s32, 1
        %s562 = scalar_lea.sflag [#allocation14], %s561
        %s563 = sand.u32 %s215, 1
        %s564 = smul.addr %s563, 2048
        %s565 = scalar_lea.vmem [#allocation13], %s564
        %p566 = pneg %p228
        %p567 = pneg %p225
        %s568 = sand.u32 %s32, 1
        %s569 = scalar_lea.sflag [#allocation14], %s568
        %s570 = sand.u32 %s241, 1
        %s571 = smul.addr %s570, 8
        %s572 = scalar_lea.vmem [#allocation15], %s571
        %p573 = pneg %p254
        %p574 = pneg %p251
        %p575 = pneg %p275
        %p576 = pneg %p272
        %p577 = pneg %p296
        %p578 = pneg %p293
        %p579 = pneg %p317
        %p580 = pneg %p314
        %s581 = smul.u32 4, %s37
        %s582 = smul.u32 4, %s37
        %s583 = smul.u32 64, %s37
        %p585 = scmp.eq.s32.totalorder %s36, 0
        %p586 = scmp.eq.s32.totalorder %s37, 0
        %p587 = pnand %p585, %p586
        %p588 = pneg %p587
        %p589 = scmp.eq.s32.totalorder %s36, 2
        %p590 = scmp.eq.s32.totalorder %s37, 1
        %p591 = pnand %p589, %p590
        %p592 = pneg %p591
        %v593 = vld [vmem:[%s0] sm:$0xff]
        %v594 = vld [vmem:[%s0 + $0x8] sm:$0xff]
        // Predicated region
        $region97: #{gate_model_forward.1} parent=63 // pred_check
          _
        $region98: #{gate_model_forward.1} parent=63 // pred_check_branch
          %596 = sbr.rel (%p587) target = $region100
        $region99: #{gate_model_forward.1} parent=63 // pred_region
          %v597 = vld [vmem:[#allocation4] sm:$0xf]
          %v598 = vld [vmem:[#allocation4 + $0x4] sm:$0xf]
          %v599 = vld [vmem:[#allocation4 + $0x8] sm:$0xf]
          %v600 = vld [vmem:[#allocation4 + $0xc] sm:$0xf]
          %v601 = vld [vmem:[#allocation4 + $0x10] sm:$0xf]
          %v602 = vld [vmem:[#allocation4 + $0x14] sm:$0xf]
          %v603 = vld [vmem:[#allocation4 + $0x18] sm:$0xf]
          %v604 = vld [vmem:[#allocation4 + $0x1c] sm:$0xf]
          %v605 = vld [vmem:[#allocation4 + $0x20] sm:$0xf]
          %v606 = vld [vmem:[#allocation4 + $0x24] sm:$0xf]
          %v607 = vld [vmem:[#allocation4 + $0x28] sm:$0xf]
          %v608 = vld [vmem:[#allocation4 + $0x2c] sm:$0xf]
          %v609 = vld [vmem:[#allocation4 + $0x30] sm:$0xf]
          %v610 = vld [vmem:[#allocation4 + $0x34] sm:$0xf]
          %v611 = vld [vmem:[#allocation4 + $0x38] sm:$0xf]
          %v612 = vld [vmem:[#allocation4 + $0x3c] sm:$0xf]
          %v613 = vld [vmem:[#allocation4 + $0x40] sm:$0xf]
          %v614 = vld [vmem:[#allocation4 + $0x44] sm:$0xf]
          %v615 = vld [vmem:[#allocation4 + $0x48] sm:$0xf]
          %v616 = vld [vmem:[#allocation4 + $0x4c] sm:$0xf]
          %v617 = vld [vmem:[#allocation4 + $0x50] sm:$0xf]
          %v618 = vld [vmem:[#allocation4 + $0x54] sm:$0xf]
          %v619 = vld [vmem:[#allocation4 + $0x58] sm:$0xf]
          %v620 = vld [vmem:[#allocation4 + $0x5c] sm:$0xf]
          %v621 = vld [vmem:[#allocation4 + $0x60] sm:$0xf]
          %v622 = vld [vmem:[#allocation4 + $0x64] sm:$0xf]
          %v623 = vld [vmem:[#allocation4 + $0x68] sm:$0xf]
          %v624 = vld [vmem:[#allocation4 + $0x6c] sm:$0xf]
          %v625 = vld [vmem:[#allocation4 + $0x70] sm:$0xf]
          %v626 = vld [vmem:[#allocation4 + $0x74] sm:$0xf]
          %v627 = vld [vmem:[#allocation4 + $0x78] sm:$0xf]
          %v628 = vld [vmem:[#allocation4 + $0x7c] sm:$0xf]
          %v629 = vld [vmem:[#allocation4 + $0x80] sm:$0xf]
          %v630 = vld [vmem:[#allocation4 + $0x84] sm:$0xf]
          %v631 = vld [vmem:[#allocation4 + $0x88] sm:$0xf]
          %v632 = vld [vmem:[#allocation4 + $0x8c] sm:$0xf]
          %v633 = vld [vmem:[#allocation4 + $0x90] sm:$0xf]
          %v634 = vld [vmem:[#allocation4 + $0x94] sm:$0xf]
          %v635 = vld [vmem:[#allocation4 + $0x98] sm:$0xf]
          %v636 = vld [vmem:[#allocation4 + $0x9c] sm:$0xf]
          %v637 = vld [vmem:[#allocation4 + $0xa0] sm:$0xf]
          %v638 = vld [vmem:[#allocation4 + $0xa4] sm:$0xf]
          %v639 = vld [vmem:[#allocation4 + $0xa8] sm:$0xf]
          %v640 = vld [vmem:[#allocation4 + $0xac] sm:$0xf]
          %v641 = vld [vmem:[#allocation4 + $0xb0] sm:$0xf]
          %v642 = vld [vmem:[#allocation4 + $0xb4] sm:$0xf]
          %v643 = vld [vmem:[#allocation4 + $0xb8] sm:$0xf]
          %v644 = vld [vmem:[#allocation4 + $0xbc] sm:$0xf]
          %v645 = vld [vmem:[#allocation4 + $0xc0] sm:$0xf]
          %v646 = vld [vmem:[#allocation4 + $0xc4] sm:$0xf]
          %v647 = vld [vmem:[#allocation4 + $0xc8] sm:$0xf]
          %v648 = vld [vmem:[#allocation4 + $0xcc] sm:$0xf]
          %v649 = vld [vmem:[#allocation4 + $0xd0] sm:$0xf]
          %v650 = vld [vmem:[#allocation4 + $0xd4] sm:$0xf]
          %v651 = vld [vmem:[#allocation4 + $0xd8] sm:$0xf]
          %v652 = vld [vmem:[#allocation4 + $0xdc] sm:$0xf]
          %v653 = vld [vmem:[#allocation4 + $0xe0] sm:$0xf]
          %v654 = vld [vmem:[#allocation4 + $0xe4] sm:$0xf]
          %v655 = vld [vmem:[#allocation4 + $0xe8] sm:$0xf]
          %v656 = vld [vmem:[#allocation4 + $0xec] sm:$0xf]
          %v657 = vld [vmem:[#allocation4 + $0xf0] sm:$0xf]
          %v658 = vld [vmem:[#allocation4 + $0xf4] sm:$0xf]
          %v659 = vld [vmem:[#allocation4 + $0xf8] sm:$0xf]
          %v660 = vld [vmem:[#allocation4 + $0xfc] sm:$0xf]
          %v661 = vld [vmem:[#allocation4 + $0x100] sm:$0xf]
          %v662 = vld [vmem:[#allocation4 + $0x104] sm:$0xf]
          %v663 = vld [vmem:[#allocation4 + $0x108] sm:$0xf]
          %v664 = vld [vmem:[#allocation4 + $0x10c] sm:$0xf]
          %v665 = vld [vmem:[#allocation4 + $0x110] sm:$0xf]
          %v666 = vld [vmem:[#allocation4 + $0x114] sm:$0xf]
          %v667 = vld [vmem:[#allocation4 + $0x118] sm:$0xf]
          %v668 = vld [vmem:[#allocation4 + $0x11c] sm:$0xf]
          %v669 = vld [vmem:[#allocation4 + $0x120] sm:$0xf]
          %v670 = vld [vmem:[#allocation4 + $0x124] sm:$0xf]
          %v671 = vld [vmem:[#allocation4 + $0x128] sm:$0xf]
          %v672 = vld [vmem:[#allocation4 + $0x12c] sm:$0xf]
          %v673 = vld [vmem:[#allocation4 + $0x130] sm:$0xf]
          %v674 = vld [vmem:[#allocation4 + $0x134] sm:$0xf]
          %v675 = vld [vmem:[#allocation4 + $0x138] sm:$0xf]
          %v676 = vld [vmem:[#allocation4 + $0x13c] sm:$0xf]
          %v677 = vld [vmem:[#allocation4 + $0x140] sm:$0xf]
          %v678 = vld [vmem:[#allocation4 + $0x144] sm:$0xf]
          %v679 = vld [vmem:[#allocation4 + $0x148] sm:$0xf]
          %v680 = vld [vmem:[#allocation4 + $0x14c] sm:$0xf]
          %v681 = vld [vmem:[#allocation4 + $0x150] sm:$0xf]
          %v682 = vld [vmem:[#allocation4 + $0x154] sm:$0xf]
          %v683 = vld [vmem:[#allocation4 + $0x158] sm:$0xf]
          %v684 = vld [vmem:[#allocation4 + $0x15c] sm:$0xf]
          %v685 = vld [vmem:[#allocation4 + $0x160] sm:$0xf]
          %v686 = vld [vmem:[#allocation4 + $0x164] sm:$0xf]
          %v687 = vld [vmem:[#allocation4 + $0x168] sm:$0xf]
          %v688 = vld [vmem:[#allocation4 + $0x16c] sm:$0xf]
          %v689 = vld [vmem:[#allocation4 + $0x170] sm:$0xf]
          %v690 = vld [vmem:[#allocation4 + $0x174] sm:$0xf]
          %v691 = vld [vmem:[#allocation4 + $0x178] sm:$0xf]
          %v692 = vld [vmem:[#allocation4 + $0x17c] sm:$0xf]
          %v693 = vld [vmem:[#allocation4 + $0x180] sm:$0xf]
          %v694 = vld [vmem:[#allocation4 + $0x184] sm:$0xf]
          %v695 = vld [vmem:[#allocation4 + $0x188] sm:$0xf]
          %v696 = vld [vmem:[#allocation4 + $0x18c] sm:$0xf]
          %v697 = vld [vmem:[#allocation4 + $0x190] sm:$0xf]
          %v698 = vld [vmem:[#allocation4 + $0x194] sm:$0xf]
          %v699 = vld [vmem:[#allocation4 + $0x198] sm:$0xf]
          %v700 = vld [vmem:[#allocation4 + $0x19c] sm:$0xf]
          %v701 = vld [vmem:[#allocation4 + $0x1a0] sm:$0xf]
          %v702 = vld [vmem:[#allocation4 + $0x1a4] sm:$0xf]
          %v703 = vld [vmem:[#allocation4 + $0x1a8] sm:$0xf]
          %v704 = vld [vmem:[#allocation4 + $0x1ac] sm:$0xf]
          %v705 = vld [vmem:[#allocation4 + $0x1b0] sm:$0xf]
          %v706 = vld [vmem:[#allocation4 + $0x1b4] sm:$0xf]
          %v707 = vld [vmem:[#allocation4 + $0x1b8] sm:$0xf]
          %v708 = vld [vmem:[#allocation4 + $0x1bc] sm:$0xf]
          %v709 = vld [vmem:[#allocation4 + $0x1c0] sm:$0xf]
          %v710 = vld [vmem:[#allocation4 + $0x1c4] sm:$0xf]
          %v711 = vld [vmem:[#allocation4 + $0x1c8] sm:$0xf]
          %v712 = vld [vmem:[#allocation4 + $0x1cc] sm:$0xf]
          %v713 = vld [vmem:[#allocation4 + $0x1d0] sm:$0xf]
          %v714 = vld [vmem:[#allocation4 + $0x1d4] sm:$0xf]
          %v715 = vld [vmem:[#allocation4 + $0x1d8] sm:$0xf]
          %v716 = vld [vmem:[#allocation4 + $0x1dc] sm:$0xf]
          %v717 = vld [vmem:[#allocation4 + $0x1e0] sm:$0xf]
          %v718 = vld [vmem:[#allocation4 + $0x1e4] sm:$0xf]
          %v719 = vld [vmem:[#allocation4 + $0x1e8] sm:$0xf]
          %v720 = vld [vmem:[#allocation4 + $0x1ec] sm:$0xf]
          %v721 = vld [vmem:[#allocation4 + $0x1f0] sm:$0xf]
          %v722 = vld [vmem:[#allocation4 + $0x1f4] sm:$0xf]
          %v723 = vld [vmem:[#allocation4 + $0x1f8] sm:$0xf]
          %v724 = vld [vmem:[#allocation4 + $0x1fc] sm:$0xf]
          %v725 = vld [vmem:[#allocation4 + $0x200] sm:$0xf]
          %v726 = vld [vmem:[#allocation4 + $0x204] sm:$0xf]
          %v727 = vld [vmem:[#allocation4 + $0x208] sm:$0xf]
          %v728 = vld [vmem:[#allocation4 + $0x20c] sm:$0xf]
          %v729 = vld [vmem:[#allocation4 + $0x210] sm:$0xf]
          %v730 = vld [vmem:[#allocation4 + $0x214] sm:$0xf]
          %v731 = vld [vmem:[#allocation4 + $0x218] sm:$0xf]
          %v732 = vld [vmem:[#allocation4 + $0x21c] sm:$0xf]
          %v733 = vld [vmem:[#allocation4 + $0x220] sm:$0xf]
          %v734 = vld [vmem:[#allocation4 + $0x224] sm:$0xf]
          %v735 = vld [vmem:[#allocation4 + $0x228] sm:$0xf]
          %v736 = vld [vmem:[#allocation4 + $0x22c] sm:$0xf]
          %v737 = vld [vmem:[#allocation4 + $0x230] sm:$0xf]
          %v738 = vld [vmem:[#allocation4 + $0x234] sm:$0xf]
          %v739 = vld [vmem:[#allocation4 + $0x238] sm:$0xf]
          %v740 = vld [vmem:[#allocation4 + $0x23c] sm:$0xf]
          %v741 = vld [vmem:[#allocation4 + $0x240] sm:$0xf]
          %v742 = vld [vmem:[#allocation4 + $0x244] sm:$0xf]
          %v743 = vld [vmem:[#allocation4 + $0x248] sm:$0xf]
          %v744 = vld [vmem:[#allocation4 + $0x24c] sm:$0xf]
          %v745 = vld [vmem:[#allocation4 + $0x250] sm:$0xf]
          %v746 = vld [vmem:[#allocation4 + $0x254] sm:$0xf]
          %v747 = vld [vmem:[#allocation4 + $0x258] sm:$0xf]
          %v748 = vld [vmem:[#allocation4 + $0x25c] sm:$0xf]
          %v749 = vld [vmem:[#allocation4 + $0x260] sm:$0xf]
          %v750 = vld [vmem:[#allocation4 + $0x264] sm:$0xf]
          %v751 = vld [vmem:[#allocation4 + $0x268] sm:$0xf]
          %v752 = vld [vmem:[#allocation4 + $0x26c] sm:$0xf]
          %v753 = vld [vmem:[#allocation4 + $0x270] sm:$0xf]
          %v754 = vld [vmem:[#allocation4 + $0x274] sm:$0xf]
          %v755 = vld [vmem:[#allocation4 + $0x278] sm:$0xf]
          %v756 = vld [vmem:[#allocation4 + $0x27c] sm:$0xf]
          %v757 = vld [vmem:[#allocation4 + $0x280] sm:$0xf]
          %v758 = vld [vmem:[#allocation4 + $0x284] sm:$0xf]
          %v759 = vld [vmem:[#allocation4 + $0x288] sm:$0xf]
          %v760 = vld [vmem:[#allocation4 + $0x28c] sm:$0xf]
          %v761 = vld [vmem:[#allocation4 + $0x290] sm:$0xf]
          %v762 = vld [vmem:[#allocation4 + $0x294] sm:$0xf]
          %v763 = vld [vmem:[#allocation4 + $0x298] sm:$0xf]
          %v764 = vld [vmem:[#allocation4 + $0x29c] sm:$0xf]
          %v765 = vld [vmem:[#allocation4 + $0x2a0] sm:$0xf]
          %v766 = vld [vmem:[#allocation4 + $0x2a4] sm:$0xf]
          %v767 = vld [vmem:[#allocation4 + $0x2a8] sm:$0xf]
          %v768 = vld [vmem:[#allocation4 + $0x2ac] sm:$0xf]
          %v769 = vld [vmem:[#allocation4 + $0x2b0] sm:$0xf]
          %v770 = vld [vmem:[#allocation4 + $0x2b4] sm:$0xf]
          %v771 = vld [vmem:[#allocation4 + $0x2b8] sm:$0xf]
          %v772 = vld [vmem:[#allocation4 + $0x2bc] sm:$0xf]
          %v773 = vld [vmem:[#allocation4 + $0x2c0] sm:$0xf]
          %v774 = vld [vmem:[#allocation4 + $0x2c4] sm:$0xf]
          %v775 = vld [vmem:[#allocation4 + $0x2c8] sm:$0xf]
          %v776 = vld [vmem:[#allocation4 + $0x2cc] sm:$0xf]
          %v777 = vld [vmem:[#allocation4 + $0x2d0] sm:$0xf]
          %v778 = vld [vmem:[#allocation4 + $0x2d4] sm:$0xf]
          %v779 = vld [vmem:[#allocation4 + $0x2d8] sm:$0xf]
          %v780 = vld [vmem:[#allocation4 + $0x2dc] sm:$0xf]
          %v781 = vld [vmem:[#allocation4 + $0x2e0] sm:$0xf]
          %v782 = vld [vmem:[#allocation4 + $0x2e4] sm:$0xf]
          %v783 = vld [vmem:[#allocation4 + $0x2e8] sm:$0xf]
          %v784 = vld [vmem:[#allocation4 + $0x2ec] sm:$0xf]
          %v785 = vld [vmem:[#allocation4 + $0x2f0] sm:$0xf]
          %v786 = vld [vmem:[#allocation4 + $0x2f4] sm:$0xf]
          %v787 = vld [vmem:[#allocation4 + $0x2f8] sm:$0xf]
          %v788 = vld [vmem:[#allocation4 + $0x2fc] sm:$0xf]
          %v789 = vld [vmem:[#allocation4 + $0x300] sm:$0xf]
          %v790 = vld [vmem:[#allocation4 + $0x304] sm:$0xf]
          %v791 = vld [vmem:[#allocation4 + $0x308] sm:$0xf]
          %v792 = vld [vmem:[#allocation4 + $0x30c] sm:$0xf]
          %v793 = vld [vmem:[#allocation4 + $0x310] sm:$0xf]
          %v794 = vld [vmem:[#allocation4 + $0x314] sm:$0xf]
          %v795 = vld [vmem:[#allocation4 + $0x318] sm:$0xf]
          %v796 = vld [vmem:[#allocation4 + $0x31c] sm:$0xf]
          %v797 = vld [vmem:[#allocation4 + $0x320] sm:$0xf]
          %v798 = vld [vmem:[#allocation4 + $0x324] sm:$0xf]
          %v799 = vld [vmem:[#allocation4 + $0x328] sm:$0xf]
          %v800 = vld [vmem:[#allocation4 + $0x32c] sm:$0xf]
          %v801 = vld [vmem:[#allocation4 + $0x330] sm:$0xf]
          %v802 = vld [vmem:[#allocation4 + $0x334] sm:$0xf]
          %v803 = vld [vmem:[#allocation4 + $0x338] sm:$0xf]
          %v804 = vld [vmem:[#allocation4 + $0x33c] sm:$0xf]
          %v805 = vld [vmem:[#allocation4 + $0x340] sm:$0xf]
          %v806 = vld [vmem:[#allocation4 + $0x344] sm:$0xf]
          %v807 = vld [vmem:[#allocation4 + $0x348] sm:$0xf]
          %v808 = vld [vmem:[#allocation4 + $0x34c] sm:$0xf]
          %v809 = vld [vmem:[#allocation4 + $0x350] sm:$0xf]
          %v810 = vld [vmem:[#allocation4 + $0x354] sm:$0xf]
          %v811 = vld [vmem:[#allocation4 + $0x358] sm:$0xf]
          %v812 = vld [vmem:[#allocation4 + $0x35c] sm:$0xf]
          %v813 = vld [vmem:[#allocation4 + $0x360] sm:$0xf]
          %v814 = vld [vmem:[#allocation4 + $0x364] sm:$0xf]
          %v815 = vld [vmem:[#allocation4 + $0x368] sm:$0xf]
          %v816 = vld [vmem:[#allocation4 + $0x36c] sm:$0xf]
          %v817 = vld [vmem:[#allocation4 + $0x370] sm:$0xf]
          %v818 = vld [vmem:[#allocation4 + $0x374] sm:$0xf]
          %v819 = vld [vmem:[#allocation4 + $0x378] sm:$0xf]
          %v820 = vld [vmem:[#allocation4 + $0x37c] sm:$0xf]
          %v821 = vld [vmem:[#allocation4 + $0x380] sm:$0xf]
          %v822 = vld [vmem:[#allocation4 + $0x384] sm:$0xf]
          %v823 = vld [vmem:[#allocation4 + $0x388] sm:$0xf]
          %v824 = vld [vmem:[#allocation4 + $0x38c] sm:$0xf]
          %v825 = vld [vmem:[#allocation4 + $0x390] sm:$0xf]
          %v826 = vld [vmem:[#allocation4 + $0x394] sm:$0xf]
          %v827 = vld [vmem:[#allocation4 + $0x398] sm:$0xf]
          %v828 = vld [vmem:[#allocation4 + $0x39c] sm:$0xf]
          %v829 = vld [vmem:[#allocation4 + $0x3a0] sm:$0xf]
          %v830 = vld [vmem:[#allocation4 + $0x3a4] sm:$0xf]
          %v831 = vld [vmem:[#allocation4 + $0x3a8] sm:$0xf]
          %v832 = vld [vmem:[#allocation4 + $0x3ac] sm:$0xf]
          %v833 = vld [vmem:[#allocation4 + $0x3b0] sm:$0xf]
          %v834 = vld [vmem:[#allocation4 + $0x3b4] sm:$0xf]
          %v835 = vld [vmem:[#allocation4 + $0x3b8] sm:$0xf]
          %v836 = vld [vmem:[#allocation4 + $0x3bc] sm:$0xf]
          %v837 = vld [vmem:[#allocation4 + $0x3c0] sm:$0xf]
          %v838 = vld [vmem:[#allocation4 + $0x3c4] sm:$0xf]
          %v839 = vld [vmem:[#allocation4 + $0x3c8] sm:$0xf]
          %v840 = vld [vmem:[#allocation4 + $0x3cc] sm:$0xf]
          %v841 = vld [vmem:[#allocation4 + $0x3d0] sm:$0xf]
          %v842 = vld [vmem:[#allocation4 + $0x3d4] sm:$0xf]
          %v843 = vld [vmem:[#allocation4 + $0x3d8] sm:$0xf]
          %v844 = vld [vmem:[#allocation4 + $0x3dc] sm:$0xf]
          %v845 = vld [vmem:[#allocation4 + $0x3e0] sm:$0xf]
          %v846 = vld [vmem:[#allocation4 + $0x3e4] sm:$0xf]
          %v847 = vld [vmem:[#allocation4 + $0x3e8] sm:$0xf]
          %v848 = vld [vmem:[#allocation4 + $0x3ec] sm:$0xf]
          %v849 = vld [vmem:[#allocation4 + $0x3f0] sm:$0xf]
          %v850 = vld [vmem:[#allocation4 + $0x3f4] sm:$0xf]
          %v851 = vld [vmem:[#allocation4 + $0x3f8] sm:$0xf]
          %v852 = vld [vmem:[#allocation4 + $0x3fc] sm:$0xf]
          %v853 = vld [vmem:[#allocation7] sm:$0x1]
          %v855 = vlaneseq
          %v856 = vshrl.u32 %v855, 7
          %v857 = vsub.s32 0, %v856
          %v858 = vrot.slane %v853, %v857
          %v862 = vcombine.high %v593, %v593
          %v864 = vunpack.c.l.s4 1966171168
          %v865 = vunpack.c.0.s8 %v864
          %v866 = vlaneseq
          %v867 = vshrl.u32 %v866, 7
          %v868 = vsub.s32 %v865, %v867
          %v869 = vrot.slane %v593, %v868
          %v871 = vunpack.c.l.s4 1966171168
          %v872 = vunpack.c.0.s8 %v871
          %v873 = vlaneseq
          %v874 = vshrl.u32 %v873, 7
          %v875 = vsub.s32 %v872, %v874
          %v876 = vrot.slane %v862, %v875
          %v877 = vcombine.high %v869, %v869
          %v878 = vcombine.high %v876, %v876
          %v880 = vunpack.c.l.s4 1966171168
          %v881 = vunpack.c.0.s8 %v880
          %v882 = vlaneseq
          %v883 = vshrl.u32 %v882, 7
          %v884 = vsub.s32 %v881, %v883
          %v885 = vrot.slane %v869, %v884
          %v887 = vunpack.c.l.s4 1966171168
          %v888 = vunpack.c.0.s8 %v887
          %v889 = vlaneseq
          %v890 = vshrl.u32 %v889, 7
          %v891 = vsub.s32 %v888, %v890
          %v892 = vrot.slane %v876, %v891
          %v894 = vunpack.c.l.s4 1966171168
          %v895 = vunpack.c.0.s8 %v894
          %v896 = vlaneseq
          %v897 = vshrl.u32 %v896, 7
          %v898 = vsub.s32 %v895, %v897
          %v899 = vrot.slane %v877, %v898
          %v901 = vunpack.c.l.s4 1966171168
          %v902 = vunpack.c.0.s8 %v901
          %v903 = vlaneseq
          %v904 = vshrl.u32 %v903, 7
          %v905 = vsub.s32 %v902, %v904
          %v906 = vrot.slane %v878, %v905
          %v907 = vcombine.high %v885, %v885
          %v908 = vcombine.high %v892, %v892
          %v909 = vcombine.high %v899, %v899
          %v910 = vcombine.high %v906, %v906
          %v911 = vcombine.high %v594, %v594
          %v913 = vunpack.c.l.s4 1966171168
          %v914 = vunpack.c.0.s8 %v913
          %v915 = vlaneseq
          %v916 = vshrl.u32 %v915, 7
          %v917 = vsub.s32 %v914, %v916
          %v918 = vrot.slane %v594, %v917
          %v920 = vunpack.c.l.s4 1966171168
          %v921 = vunpack.c.0.s8 %v920
          %v922 = vlaneseq
          %v923 = vshrl.u32 %v922, 7
          %v924 = vsub.s32 %v921, %v923
          %v925 = vrot.slane %v911, %v924
          %v926 = vcombine.high %v918, %v918
          %v927 = vcombine.high %v925, %v925
          %v929 = vunpack.c.l.s4 1966171168
          %v930 = vunpack.c.0.s8 %v929
          %v931 = vlaneseq
          %v932 = vshrl.u32 %v931, 7
          %v933 = vsub.s32 %v930, %v932
          %v934 = vrot.slane %v918, %v933
          %v936 = vunpack.c.l.s4 1966171168
          %v937 = vunpack.c.0.s8 %v936
          %v938 = vlaneseq
          %v939 = vshrl.u32 %v938, 7
          %v940 = vsub.s32 %v937, %v939
          %v941 = vrot.slane %v925, %v940
          %v943 = vunpack.c.l.s4 1966171168
          %v944 = vunpack.c.0.s8 %v943
          %v945 = vlaneseq
          %v946 = vshrl.u32 %v945, 7
          %v947 = vsub.s32 %v944, %v946
          %v948 = vrot.slane %v926, %v947
          %v950 = vunpack.c.l.s4 1966171168
          %v951 = vunpack.c.0.s8 %v950
          %v952 = vlaneseq
          %v953 = vshrl.u32 %v952, 7
          %v954 = vsub.s32 %v951, %v953
          %v955 = vrot.slane %v927, %v954
          %v956 = vcombine.high %v934, %v934
          %v957 = vcombine.high %v941, %v941
          %v958 = vcombine.high %v948, %v948
          %v959 = vcombine.high %v955, %v955
          %v1232 = vunpack.c.l.b16 %v597
          %v1233 = vunpack.c.l.b16 %v598
          %v1234 = vunpack.c.l.b16 %v599
          %v1235 = vunpack.c.l.b16 %v600
          %v1236 = vunpack.c.l.b16 %v601
          %v1237 = vunpack.c.l.b16 %v602
          %v1238 = vunpack.c.l.b16 %v603
          %v1239 = vunpack.c.l.b16 %v604
          %v1240 = vunpack.c.l.b16 %v605
          %v1241 = vunpack.c.l.b16 %v606
          %v1242 = vunpack.c.l.b16 %v607
          %v1243 = vunpack.c.l.b16 %v608
          %v1244 = vunpack.c.l.b16 %v609
          %v1245 = vunpack.c.l.b16 %v610
          %v1246 = vunpack.c.l.b16 %v611
          %v1247 = vunpack.c.l.b16 %v612
          %v1248 = vunpack.c.l.b16 %v613
          %v1249 = vunpack.c.l.b16 %v614
          %v1250 = vunpack.c.l.b16 %v615
          %v1251 = vunpack.c.l.b16 %v616
          %v1252 = vunpack.c.l.b16 %v617
          %v1253 = vunpack.c.l.b16 %v618
          %v1254 = vunpack.c.l.b16 %v619
          %v1255 = vunpack.c.l.b16 %v620
          %v1256 = vunpack.c.l.b16 %v621
          %v1257 = vunpack.c.l.b16 %v622
          %v1258 = vunpack.c.l.b16 %v623
          %v1259 = vunpack.c.l.b16 %v624
          %v1260 = vunpack.c.l.b16 %v625
          %v1261 = vunpack.c.l.b16 %v626
          %v1262 = vunpack.c.l.b16 %v627
          %v1263 = vunpack.c.l.b16 %v628
          %v1264 = vunpack.c.l.b16 %v629
          %v1265 = vunpack.c.l.b16 %v630
          %v1266 = vunpack.c.l.b16 %v631
          %v1267 = vunpack.c.l.b16 %v632
          %v1268 = vunpack.c.l.b16 %v633
          %v1269 = vunpack.c.l.b16 %v634
          %v1270 = vunpack.c.l.b16 %v635
          %v1271 = vunpack.c.l.b16 %v636
          %v1272 = vunpack.c.l.b16 %v637
          %v1273 = vunpack.c.l.b16 %v638
          %v1274 = vunpack.c.l.b16 %v639
          %v1275 = vunpack.c.l.b16 %v640
          %v1276 = vunpack.c.l.b16 %v641
          %v1277 = vunpack.c.l.b16 %v642
          %v1278 = vunpack.c.l.b16 %v643
          %v1279 = vunpack.c.l.b16 %v644
          %v1280 = vunpack.c.l.b16 %v645
          %v1281 = vunpack.c.l.b16 %v646
          %v1282 = vunpack.c.l.b16 %v647
          %v1283 = vunpack.c.l.b16 %v648
          %v1284 = vunpack.c.l.b16 %v649
          %v1285 = vunpack.c.l.b16 %v650
          %v1286 = vunpack.c.l.b16 %v651
          %v1287 = vunpack.c.l.b16 %v652
          %v1288 = vunpack.c.l.b16 %v653
          %v1289 = vunpack.c.l.b16 %v654
          %v1290 = vunpack.c.l.b16 %v655
          %v1291 = vunpack.c.l.b16 %v656
          %v1292 = vunpack.c.l.b16 %v657
          %v1293 = vunpack.c.l.b16 %v658
          %v1294 = vunpack.c.l.b16 %v659
          %v1295 = vunpack.c.l.b16 %v660
          %v1296 = vunpack.c.l.b16 %v661
          %v1297 = vunpack.c.l.b16 %v662
          %v1298 = vunpack.c.l.b16 %v663
          %v1299 = vunpack.c.l.b16 %v664
          %v1300 = vunpack.c.l.b16 %v665
          %v1301 = vunpack.c.l.b16 %v666
          %v1302 = vunpack.c.l.b16 %v667
          %v1303 = vunpack.c.l.b16 %v668
          %v1304 = vunpack.c.l.b16 %v669
          %v1305 = vunpack.c.l.b16 %v670
          %v1306 = vunpack.c.l.b16 %v671
          %v1307 = vunpack.c.l.b16 %v672
          %v1308 = vunpack.c.l.b16 %v673
          %v1309 = vunpack.c.l.b16 %v674
          %v1310 = vunpack.c.l.b16 %v675
          %v1311 = vunpack.c.l.b16 %v676
          %v1312 = vunpack.c.l.b16 %v677
          %v1313 = vunpack.c.l.b16 %v678
          %v1314 = vunpack.c.l.b16 %v679
          %v1315 = vunpack.c.l.b16 %v680
          %v1316 = vunpack.c.l.b16 %v681
          %v1317 = vunpack.c.l.b16 %v682
          %v1318 = vunpack.c.l.b16 %v683
          %v1319 = vunpack.c.l.b16 %v684
          %v1320 = vunpack.c.l.b16 %v685
          %v1321 = vunpack.c.l.b16 %v686
          %v1322 = vunpack.c.l.b16 %v687
          %v1323 = vunpack.c.l.b16 %v688
          %v1324 = vunpack.c.l.b16 %v689
          %v1325 = vunpack.c.l.b16 %v690
          %v1326 = vunpack.c.l.b16 %v691
          %v1327 = vunpack.c.l.b16 %v692
          %v1328 = vunpack.c.l.b16 %v693
          %v1329 = vunpack.c.l.b16 %v694
          %v1330 = vunpack.c.l.b16 %v695
          %v1331 = vunpack.c.l.b16 %v696
          %v1332 = vunpack.c.l.b16 %v697
          %v1333 = vunpack.c.l.b16 %v698
          %v1334 = vunpack.c.l.b16 %v699
          %v1335 = vunpack.c.l.b16 %v700
          %v1336 = vunpack.c.l.b16 %v701
          %v1337 = vunpack.c.l.b16 %v702
          %v1338 = vunpack.c.l.b16 %v703
          %v1339 = vunpack.c.l.b16 %v704
          %v1340 = vunpack.c.l.b16 %v705
          %v1341 = vunpack.c.l.b16 %v706
          %v1342 = vunpack.c.l.b16 %v707
          %v1343 = vunpack.c.l.b16 %v708
          %v1344 = vunpack.c.l.b16 %v709
          %v1345 = vunpack.c.l.b16 %v710
          %v1346 = vunpack.c.l.b16 %v711
          %v1347 = vunpack.c.l.b16 %v712
          %v1348 = vunpack.c.l.b16 %v713
          %v1349 = vunpack.c.l.b16 %v714
          %v1350 = vunpack.c.l.b16 %v715
          %v1351 = vunpack.c.l.b16 %v716
          %v1352 = vunpack.c.l.b16 %v717
          %v1353 = vunpack.c.l.b16 %v718
          %v1354 = vunpack.c.l.b16 %v719
          %v1355 = vunpack.c.l.b16 %v720
          %v1356 = vunpack.c.l.b16 %v721
          %v1357 = vunpack.c.l.b16 %v722
          %v1358 = vunpack.c.l.b16 %v723
          %v1359 = vunpack.c.l.b16 %v724
          %v1360 = vunpack.c.l.b16 %v725
          %v1361 = vunpack.c.l.b16 %v726
          %v1362 = vunpack.c.l.b16 %v727
          %v1363 = vunpack.c.l.b16 %v728
          %v1364 = vunpack.c.l.b16 %v729
          %v1365 = vunpack.c.l.b16 %v730
          %v1366 = vunpack.c.l.b16 %v731
          %v1367 = vunpack.c.l.b16 %v732
          %v1368 = vunpack.c.l.b16 %v733
          %v1369 = vunpack.c.l.b16 %v734
          %v1370 = vunpack.c.l.b16 %v735
          %v1371 = vunpack.c.l.b16 %v736
          %v1372 = vunpack.c.l.b16 %v737
          %v1373 = vunpack.c.l.b16 %v738
          %v1374 = vunpack.c.l.b16 %v739
          %v1375 = vunpack.c.l.b16 %v740
          %v1376 = vunpack.c.l.b16 %v741
          %v1377 = vunpack.c.l.b16 %v742
          %v1378 = vunpack.c.l.b16 %v743
          %v1379 = vunpack.c.l.b16 %v744
          %v1380 = vunpack.c.l.b16 %v745
          %v1381 = vunpack.c.l.b16 %v746
          %v1382 = vunpack.c.l.b16 %v747
          %v1383 = vunpack.c.l.b16 %v748
          %v1384 = vunpack.c.l.b16 %v749
          %v1385 = vunpack.c.l.b16 %v750
          %v1386 = vunpack.c.l.b16 %v751
          %v1387 = vunpack.c.l.b16 %v752
          %v1388 = vunpack.c.l.b16 %v753
          %v1389 = vunpack.c.l.b16 %v754
          %v1390 = vunpack.c.l.b16 %v755
          %v1391 = vunpack.c.l.b16 %v756
          %v1392 = vunpack.c.l.b16 %v757
          %v1393 = vunpack.c.l.b16 %v758
          %v1394 = vunpack.c.l.b16 %v759
          %v1395 = vunpack.c.l.b16 %v760
          %v1396 = vunpack.c.l.b16 %v761
          %v1397 = vunpack.c.l.b16 %v762
          %v1398 = vunpack.c.l.b16 %v763
          %v1399 = vunpack.c.l.b16 %v764
          %v1400 = vunpack.c.l.b16 %v765
          %v1401 = vunpack.c.l.b16 %v766
          %v1402 = vunpack.c.l.b16 %v767
          %v1403 = vunpack.c.l.b16 %v768
          %v1404 = vunpack.c.l.b16 %v769
          %v1405 = vunpack.c.l.b16 %v770
          %v1406 = vunpack.c.l.b16 %v771
          %v1407 = vunpack.c.l.b16 %v772
          %v1408 = vunpack.c.l.b16 %v773
          %v1409 = vunpack.c.l.b16 %v774
          %v1410 = vunpack.c.l.b16 %v775
          %v1411 = vunpack.c.l.b16 %v776
          %v1412 = vunpack.c.l.b16 %v777
          %v1413 = vunpack.c.l.b16 %v778
          %v1414 = vunpack.c.l.b16 %v779
          %v1415 = vunpack.c.l.b16 %v780
          %v1416 = vunpack.c.l.b16 %v781
          %v1417 = vunpack.c.l.b16 %v782
          %v1418 = vunpack.c.l.b16 %v783
          %v1419 = vunpack.c.l.b16 %v784
          %v1420 = vunpack.c.l.b16 %v785
          %v1421 = vunpack.c.l.b16 %v786
          %v1422 = vunpack.c.l.b16 %v787
          %v1423 = vunpack.c.l.b16 %v788
          %v1424 = vunpack.c.l.b16 %v789
          %v1425 = vunpack.c.l.b16 %v790
          %v1426 = vunpack.c.l.b16 %v791
          %v1427 = vunpack.c.l.b16 %v792
          %v1428 = vunpack.c.l.b16 %v793
          %v1429 = vunpack.c.l.b16 %v794
          %v1430 = vunpack.c.l.b16 %v795
          %v1431 = vunpack.c.l.b16 %v796
          %v1432 = vunpack.c.l.b16 %v797
          %v1433 = vunpack.c.l.b16 %v798
          %v1434 = vunpack.c.l.b16 %v799
          %v1435 = vunpack.c.l.b16 %v800
          %v1436 = vunpack.c.l.b16 %v801
          %v1437 = vunpack.c.l.b16 %v802
          %v1438 = vunpack.c.l.b16 %v803
          %v1439 = vunpack.c.l.b16 %v804
          %v1440 = vunpack.c.l.b16 %v805
          %v1441 = vunpack.c.l.b16 %v806
          %v1442 = vunpack.c.l.b16 %v807
          %v1443 = vunpack.c.l.b16 %v808
          %v1444 = vunpack.c.l.b16 %v809
          %v1445 = vunpack.c.l.b16 %v810
          %v1446 = vunpack.c.l.b16 %v811
          %v1447 = vunpack.c.l.b16 %v812
          %v1448 = vunpack.c.l.b16 %v813
          %v1449 = vunpack.c.l.b16 %v814
          %v1450 = vunpack.c.l.b16 %v815
          %v1451 = vunpack.c.l.b16 %v816
          %v1452 = vunpack.c.l.b16 %v817
          %v1453 = vunpack.c.l.b16 %v818
          %v1454 = vunpack.c.l.b16 %v819
          %v1455 = vunpack.c.l.b16 %v820
          %v1456 = vunpack.c.l.b16 %v821
          %v1457 = vunpack.c.l.b16 %v822
          %v1458 = vunpack.c.l.b16 %v823
          %v1459 = vunpack.c.l.b16 %v824
          %v1460 = vunpack.c.l.b16 %v825
          %v1461 = vunpack.c.l.b16 %v826
          %v1462 = vunpack.c.l.b16 %v827
          %v1463 = vunpack.c.l.b16 %v828
          %v1464 = vunpack.c.l.b16 %v829
          %v1465 = vunpack.c.l.b16 %v830
          %v1466 = vunpack.c.l.b16 %v831
          %v1467 = vunpack.c.l.b16 %v832
          %v1468 = vunpack.c.l.b16 %v833
          %v1469 = vunpack.c.l.b16 %v834
          %v1470 = vunpack.c.l.b16 %v835
          %v1471 = vunpack.c.l.b16 %v836
          %v1472 = vunpack.c.l.b16 %v837
          %v1473 = vunpack.c.l.b16 %v838
          %v1474 = vunpack.c.l.b16 %v839
          %v1475 = vunpack.c.l.b16 %v840
          %v1476 = vunpack.c.l.b16 %v841
          %v1477 = vunpack.c.l.b16 %v842
          %v1478 = vunpack.c.l.b16 %v843
          %v1479 = vunpack.c.l.b16 %v844
          %v1480 = vunpack.c.l.b16 %v845
          %v1481 = vunpack.c.l.b16 %v846
          %v1482 = vunpack.c.l.b16 %v847
          %v1483 = vunpack.c.l.b16 %v848
          %v1484 = vunpack.c.l.b16 %v849
          %v1485 = vunpack.c.l.b16 %v850
          %v1486 = vunpack.c.l.b16 %v851
          %v1487 = vunpack.c.l.b16 %v852
          %v1488 = vpack.c.b16 %v1233, %v1232
          %v1489 = vpack.c.b16 %v1235, %v1234
          %v1490 = vpack.c.b16 %v1237, %v1236
          %v1491 = vpack.c.b16 %v1239, %v1238
          %v1492 = vpack.c.b16 %v1241, %v1240
          %v1493 = vpack.c.b16 %v1243, %v1242
          %v1494 = vpack.c.b16 %v1245, %v1244
          %v1495 = vpack.c.b16 %v1247, %v1246
          %v1496 = vpack.c.b16 %v1249, %v1248
          %v1497 = vpack.c.b16 %v1251, %v1250
          %v1498 = vpack.c.b16 %v1253, %v1252
          %v1499 = vpack.c.b16 %v1255, %v1254
          %v1500 = vpack.c.b16 %v1257, %v1256
          %v1501 = vpack.c.b16 %v1259, %v1258
          %v1502 = vpack.c.b16 %v1261, %v1260
          %v1503 = vpack.c.b16 %v1263, %v1262
          %v1504 = vpack.c.b16 %v1265, %v1264
          %v1505 = vpack.c.b16 %v1267, %v1266
          %v1506 = vpack.c.b16 %v1269, %v1268
          %v1507 = vpack.c.b16 %v1271, %v1270
          %v1508 = vpack.c.b16 %v1273, %v1272
          %v1509 = vpack.c.b16 %v1275, %v1274
          %v1510 = vpack.c.b16 %v1277, %v1276
          %v1511 = vpack.c.b16 %v1279, %v1278
          %v1512 = vpack.c.b16 %v1281, %v1280
          %v1513 = vpack.c.b16 %v1283, %v1282
          %v1514 = vpack.c.b16 %v1285, %v1284
          %v1515 = vpack.c.b16 %v1287, %v1286
          %v1516 = vpack.c.b16 %v1289, %v1288
          %v1517 = vpack.c.b16 %v1291, %v1290
          %v1518 = vpack.c.b16 %v1293, %v1292
          %v1519 = vpack.c.b16 %v1295, %v1294
          %v1520 = vpack.c.b16 %v1297, %v1296
          %v1521 = vpack.c.b16 %v1299, %v1298
          %v1522 = vpack.c.b16 %v1301, %v1300
          %v1523 = vpack.c.b16 %v1303, %v1302
          %v1524 = vpack.c.b16 %v1305, %v1304
          %v1525 = vpack.c.b16 %v1307, %v1306
          %v1526 = vpack.c.b16 %v1309, %v1308
          %v1527 = vpack.c.b16 %v1311, %v1310
          %v1528 = vpack.c.b16 %v1313, %v1312
          %v1529 = vpack.c.b16 %v1315, %v1314
          %v1530 = vpack.c.b16 %v1317, %v1316
          %v1531 = vpack.c.b16 %v1319, %v1318
          %v1532 = vpack.c.b16 %v1321, %v1320
          %v1533 = vpack.c.b16 %v1323, %v1322
          %v1534 = vpack.c.b16 %v1325, %v1324
          %v1535 = vpack.c.b16 %v1327, %v1326
          %v1536 = vpack.c.b16 %v1329, %v1328
          %v1537 = vpack.c.b16 %v1331, %v1330
          %v1538 = vpack.c.b16 %v1333, %v1332
          %v1539 = vpack.c.b16 %v1335, %v1334
          %v1540 = vpack.c.b16 %v1337, %v1336
          %v1541 = vpack.c.b16 %v1339, %v1338
          %v1542 = vpack.c.b16 %v1341, %v1340
          %v1543 = vpack.c.b16 %v1343, %v1342
          %v1544 = vpack.c.b16 %v1345, %v1344
          %v1545 = vpack.c.b16 %v1347, %v1346
          %v1546 = vpack.c.b16 %v1349, %v1348
          %v1547 = vpack.c.b16 %v1351, %v1350
          %v1548 = vpack.c.b16 %v1353, %v1352
          %v1549 = vpack.c.b16 %v1355, %v1354
          %v1550 = vpack.c.b16 %v1357, %v1356
          %v1551 = vpack.c.b16 %v1359, %v1358
          %v1552 = vpack.c.b16 %v1361, %v1360
          %v1553 = vpack.c.b16 %v1363, %v1362
          %v1554 = vpack.c.b16 %v1365, %v1364
          %v1555 = vpack.c.b16 %v1367, %v1366
          %v1556 = vpack.c.b16 %v1369, %v1368
          %v1557 = vpack.c.b16 %v1371, %v1370
          %v1558 = vpack.c.b16 %v1373, %v1372
          %v1559 = vpack.c.b16 %v1375, %v1374
          %v1560 = vpack.c.b16 %v1377, %v1376
          %v1561 = vpack.c.b16 %v1379, %v1378
          %v1562 = vpack.c.b16 %v1381, %v1380
          %v1563 = vpack.c.b16 %v1383, %v1382
          %v1564 = vpack.c.b16 %v1385, %v1384
          %v1565 = vpack.c.b16 %v1387, %v1386
          %v1566 = vpack.c.b16 %v1389, %v1388
          %v1567 = vpack.c.b16 %v1391, %v1390
          %v1568 = vpack.c.b16 %v1393, %v1392
          %v1569 = vpack.c.b16 %v1395, %v1394
          %v1570 = vpack.c.b16 %v1397, %v1396
          %v1571 = vpack.c.b16 %v1399, %v1398
          %v1572 = vpack.c.b16 %v1401, %v1400
          %v1573 = vpack.c.b16 %v1403, %v1402
          %v1574 = vpack.c.b16 %v1405, %v1404
          %v1575 = vpack.c.b16 %v1407, %v1406
          %v1576 = vpack.c.b16 %v1409, %v1408
          %v1577 = vpack.c.b16 %v1411, %v1410
          %v1578 = vpack.c.b16 %v1413, %v1412
          %v1579 = vpack.c.b16 %v1415, %v1414
          %v1580 = vpack.c.b16 %v1417, %v1416
          %v1581 = vpack.c.b16 %v1419, %v1418
          %v1582 = vpack.c.b16 %v1421, %v1420
          %v1583 = vpack.c.b16 %v1423, %v1422
          %v1584 = vpack.c.b16 %v1425, %v1424
          %v1585 = vpack.c.b16 %v1427, %v1426
          %v1586 = vpack.c.b16 %v1429, %v1428
          %v1587 = vpack.c.b16 %v1431, %v1430
          %v1588 = vpack.c.b16 %v1433, %v1432
          %v1589 = vpack.c.b16 %v1435, %v1434
          %v1590 = vpack.c.b16 %v1437, %v1436
          %v1591 = vpack.c.b16 %v1439, %v1438
          %v1592 = vpack.c.b16 %v1441, %v1440
          %v1593 = vpack.c.b16 %v1443, %v1442
          %v1594 = vpack.c.b16 %v1445, %v1444
          %v1595 = vpack.c.b16 %v1447, %v1446
          %v1596 = vpack.c.b16 %v1449, %v1448
          %v1597 = vpack.c.b16 %v1451, %v1450
          %v1598 = vpack.c.b16 %v1453, %v1452
          %v1599 = vpack.c.b16 %v1455, %v1454
          %v1600 = vpack.c.b16 %v1457, %v1456
          %v1601 = vpack.c.b16 %v1459, %v1458
          %v1602 = vpack.c.b16 %v1461, %v1460
          %v1603 = vpack.c.b16 %v1463, %v1462
          %v1604 = vpack.c.b16 %v1465, %v1464
          %v1605 = vpack.c.b16 %v1467, %v1466
          %v1606 = vpack.c.b16 %v1469, %v1468
          %v1607 = vpack.c.b16 %v1471, %v1470
          %v1608 = vpack.c.b16 %v1473, %v1472
          %v1609 = vpack.c.b16 %v1475, %v1474
          %v1610 = vpack.c.b16 %v1477, %v1476
          %v1611 = vpack.c.b16 %v1479, %v1478
          %v1612 = vpack.c.b16 %v1481, %v1480
          %v1613 = vpack.c.b16 %v1483, %v1482
          %v1614 = vpack.c.b16 %v1485, %v1484
          %v1615 = vpack.c.b16 %v1487, %v1486
          %1744 = vmatprep.subr.bf16.mxu0 0
          %1745 = vmatpush1.bf16.msra.mxu0 %v1495
          %1746 = vmatprep.subr.bf16.mxu0 0
          %1747 = vmatpush1.bf16.msra.mxu0 %v1494
          %1748 = vmatprep.subr.bf16.mxu0 0
          %1749 = vmatpush1.bf16.msra.mxu0 %v1493
          %1750 = vmatprep.subr.bf16.mxu0 0
          %1751 = vmatpush1.bf16.msra.mxu0 %v1492
          %1752 = vmatprep.subr.bf16.mxu0 0
          %1753 = vmatpush1.bf16.msra.mxu0 %v1491
          %1754 = vmatprep.subr.bf16.mxu0 0
          %1755 = vmatpush1.bf16.msra.mxu0 %v1490
          %1756 = vmatprep.subr.bf16.mxu0 0
          %1757 = vmatpush1.bf16.msra.mxu0 %v1489
          %1758 = vmatprep.subr.bf16.mxu0 0
          %1759 = vmatpush1.bf16.msra.mxu0 %v1488
          %1760 = vmatprep.subr.bf16.mxu0 0
          %1761 = vmatpush2.bf16.msra.mxu0 %v1503
          %1762 = vmatprep.subr.bf16.mxu0 0
          %1763 = vmatpush2.bf16.msra.mxu0 %v1502
          %1764 = vmatprep.subr.bf16.mxu0 0
          %1765 = vmatpush2.bf16.msra.mxu0 %v1501
          %1766 = vmatprep.subr.bf16.mxu0 0
          %1767 = vmatpush2.bf16.msra.mxu0 %v1500
          %1768 = vmatprep.subr.bf16.mxu0 0
          %1769 = vmatpush2.bf16.msra.mxu0 %v1499
          %1770 = vmatprep.subr.bf16.mxu0 0
          %1771 = vmatpush2.bf16.msra.mxu0 %v1498
          %1772 = vmatprep.subr.bf16.mxu0 0
          %1773 = vmatpush2.bf16.msra.mxu0 %v1497
          %1774 = vmatprep.subr.bf16.mxu0 0
          %1775 = vmatpush2.bf16.msra.mxu0 %v1496
          %1776 = vmatprep.mubr.bf16.mxu0 %v899
          %1777 = vmatmul.mubr.bf16.gmra.mxu0 %v885
          %v1778 = vpop.f32.mrf.mxu0
          %v1779 = vadd.f32 %v858, %v1778
          %v1780 = vpop.f32.mrf.mxu0
          %v1781 = vpop.f32.mrf.mxu0
          %v1782 = vpop.f32.mrf.mxu0
          %1783 = vdwg.mxu0
          %1784 = vmatprep.subr.bf16.mxu0 0
          %1785 = vmatpush1.bf16.msra.mxu0 %v1511
          %1786 = vmatprep.subr.bf16.mxu0 0
          %1787 = vmatpush1.bf16.msra.mxu0 %v1510
          %1788 = vmatprep.subr.bf16.mxu0 0
          %1789 = vmatpush1.bf16.msra.mxu0 %v1509
          %1790 = vmatprep.subr.bf16.mxu0 0
          %1791 = vmatpush1.bf16.msra.mxu0 %v1508
          %1792 = vmatprep.subr.bf16.mxu0 0
          %1793 = vmatpush1.bf16.msra.mxu0 %v1507
          %1794 = vmatprep.subr.bf16.mxu0 0
          %1795 = vmatpush1.bf16.msra.mxu0 %v1506
          %1796 = vmatprep.subr.bf16.mxu0 0
          %1797 = vmatpush1.bf16.msra.mxu0 %v1505
          %1798 = vmatprep.subr.bf16.mxu0 0
          %1799 = vmatpush1.bf16.msra.mxu0 %v1504
          %1800 = vmatprep.subr.bf16.mxu0 0
          %1801 = vmatpush2.bf16.msra.mxu0 %v1519
          %1802 = vmatprep.subr.bf16.mxu0 0
          %1803 = vmatpush2.bf16.msra.mxu0 %v1518
          %1804 = vmatprep.subr.bf16.mxu0 0
          %1805 = vmatpush2.bf16.msra.mxu0 %v1517
          %1806 = vmatprep.subr.bf16.mxu0 0
          %1807 = vmatpush2.bf16.msra.mxu0 %v1516
          %1808 = vmatprep.subr.bf16.mxu0 0
          %1809 = vmatpush2.bf16.msra.mxu0 %v1515
          %1810 = vmatprep.subr.bf16.mxu0 0
          %1811 = vmatpush2.bf16.msra.mxu0 %v1514
          %1812 = vmatprep.subr.bf16.mxu0 0
          %1813 = vmatpush2.bf16.msra.mxu0 %v1513
          %1814 = vmatprep.subr.bf16.mxu0 0
          %1815 = vmatpush2.bf16.msra.mxu0 %v1512
          %1816 = vmatprep.mubr.bf16.mxu0 %v909
          %1817 = vmatmul.mubr.bf16.gmra.mxu0 %v907
          %v1818 = vpop.f32.mrf.mxu0
          %v1819 = vadd.f32 %v1779, %v1818
          %v1820 = vpop.f32.mrf.mxu0
          %v1821 = vpop.f32.mrf.mxu0
          %v1822 = vpop.f32.mrf.mxu0
          %1823 = vdwg.mxu0
          %1824 = vmatprep.subr.bf16.mxu0 0
          %1825 = vmatpush1.bf16.msra.mxu0 %v1527
          %1826 = vmatprep.subr.bf16.mxu0 0
          %1827 = vmatpush1.bf16.msra.mxu0 %v1526
          %1828 = vmatprep.subr.bf16.mxu0 0
          %1829 = vmatpush1.bf16.msra.mxu0 %v1525
          %1830 = vmatprep.subr.bf16.mxu0 0
          %1831 = vmatpush1.bf16.msra.mxu0 %v1524
          %1832 = vmatprep.subr.bf16.mxu0 0
          %1833 = vmatpush1.bf16.msra.mxu0 %v1523
          %1834 = vmatprep.subr.bf16.mxu0 0
          %1835 = vmatpush1.bf16.msra.mxu0 %v1522
          %1836 = vmatprep.subr.bf16.mxu0 0
          %1837 = vmatpush1.bf16.msra.mxu0 %v1521
          %1838 = vmatprep.subr.bf16.mxu0 0
          %1839 = vmatpush1.bf16.msra.mxu0 %v1520
          %1840 = vmatprep.subr.bf16.mxu0 0
          %1841 = vmatpush2.bf16.msra.mxu0 %v1535
          %1842 = vmatprep.subr.bf16.mxu0 0
          %1843 = vmatpush2.bf16.msra.mxu0 %v1534
          %1844 = vmatprep.subr.bf16.mxu0 0
          %1845 = vmatpush2.bf16.msra.mxu0 %v1533
          %1846 = vmatprep.subr.bf16.mxu0 0
          %1847 = vmatpush2.bf16.msra.mxu0 %v1532
          %1848 = vmatprep.subr.bf16.mxu0 0
          %1849 = vmatpush2.bf16.msra.mxu0 %v1531
          %1850 = vmatprep.subr.bf16.mxu0 0
          %1851 = vmatpush2.bf16.msra.mxu0 %v1530
          %1852 = vmatprep.subr.bf16.mxu0 0
          %1853 = vmatpush2.bf16.msra.mxu0 %v1529
          %1854 = vmatprep.subr.bf16.mxu0 0
          %1855 = vmatpush2.bf16.msra.mxu0 %v1528
          %1856 = vmatprep.mubr.bf16.mxu0 %v906
          %1857 = vmatmul.mubr.bf16.gmra.mxu0 %v892
          %v1858 = vpop.f32.mrf.mxu0
          %v1859 = vadd.f32 %v1819, %v1858
          %v1860 = vpop.f32.mrf.mxu0
          %v1861 = vpop.f32.mrf.mxu0
          %v1862 = vpop.f32.mrf.mxu0
          %1863 = vdwg.mxu0
          %1864 = vmatprep.subr.bf16.mxu0 0
          %1865 = vmatpush1.bf16.msra.mxu0 %v1543
          %1866 = vmatprep.subr.bf16.mxu0 0
          %1867 = vmatpush1.bf16.msra.mxu0 %v1542
          %1868 = vmatprep.subr.bf16.mxu0 0
          %1869 = vmatpush1.bf16.msra.mxu0 %v1541
          %1870 = vmatprep.subr.bf16.mxu0 0
          %1871 = vmatpush1.bf16.msra.mxu0 %v1540
          %1872 = vmatprep.subr.bf16.mxu0 0
          %1873 = vmatpush1.bf16.msra.mxu0 %v1539
          %1874 = vmatprep.subr.bf16.mxu0 0
          %1875 = vmatpush1.bf16.msra.mxu0 %v1538
          %1876 = vmatprep.subr.bf16.mxu0 0
          %1877 = vmatpush1.bf16.msra.mxu0 %v1537
          %1878 = vmatprep.subr.bf16.mxu0 0
          %1879 = vmatpush1.bf16.msra.mxu0 %v1536
          %1880 = vmatprep.subr.bf16.mxu0 0
          %1881 = vmatpush2.bf16.msra.mxu0 %v1551
          %1882 = vmatprep.subr.bf16.mxu0 0
          %1883 = vmatpush2.bf16.msra.mxu0 %v1550
          %1884 = vmatprep.subr.bf16.mxu0 0
          %1885 = vmatpush2.bf16.msra.mxu0 %v1549
          %1886 = vmatprep.subr.bf16.mxu0 0
          %1887 = vmatpush2.bf16.msra.mxu0 %v1548
          %1888 = vmatprep.subr.bf16.mxu0 0
          %1889 = vmatpush2.bf16.msra.mxu0 %v1547
          %1890 = vmatprep.subr.bf16.mxu0 0
          %1891 = vmatpush2.bf16.msra.mxu0 %v1546
          %1892 = vmatprep.subr.bf16.mxu0 0
          %1893 = vmatpush2.bf16.msra.mxu0 %v1545
          %1894 = vmatprep.subr.bf16.mxu0 0
          %1895 = vmatpush2.bf16.msra.mxu0 %v1544
          %1896 = vmatprep.mubr.bf16.mxu0 %v910
          %1897 = vmatmul.mubr.bf16.gmra.mxu0 %v908
          %v1898 = vpop.f32.mrf.mxu0
          %v1899 = vadd.f32 %v1859, %v1898
          %v1900 = vpop.f32.mrf.mxu0
          %v1901 = vpop.f32.mrf.mxu0
          %v1902 = vpop.f32.mrf.mxu0
          %1903 = vdwg.mxu0
          %1904 = vmatprep.subr.bf16.mxu0 0
          %1905 = vmatpush1.bf16.msra.mxu0 %v1559
          %1906 = vmatprep.subr.bf16.mxu0 0
          %1907 = vmatpush1.bf16.msra.mxu0 %v1558
          %1908 = vmatprep.subr.bf16.mxu0 0
          %1909 = vmatpush1.bf16.msra.mxu0 %v1557
          %1910 = vmatprep.subr.bf16.mxu0 0
          %1911 = vmatpush1.bf16.msra.mxu0 %v1556
          %1912 = vmatprep.subr.bf16.mxu0 0
          %1913 = vmatpush1.bf16.msra.mxu0 %v1555
          %1914 = vmatprep.subr.bf16.mxu0 0
          %1915 = vmatpush1.bf16.msra.mxu0 %v1554
          %1916 = vmatprep.subr.bf16.mxu0 0
          %1917 = vmatpush1.bf16.msra.mxu0 %v1553
          %1918 = vmatprep.subr.bf16.mxu0 0
          %1919 = vmatpush1.bf16.msra.mxu0 %v1552
          %1920 = vmatprep.subr.bf16.mxu0 0
          %1921 = vmatpush2.bf16.msra.mxu0 %v1567
          %1922 = vmatprep.subr.bf16.mxu0 0
          %1923 = vmatpush2.bf16.msra.mxu0 %v1566
          %1924 = vmatprep.subr.bf16.mxu0 0
          %1925 = vmatpush2.bf16.msra.mxu0 %v1565
          %1926 = vmatprep.subr.bf16.mxu0 0
          %1927 = vmatpush2.bf16.msra.mxu0 %v1564
          %1928 = vmatprep.subr.bf16.mxu0 0
          %1929 = vmatpush2.bf16.msra.mxu0 %v1563
          %1930 = vmatprep.subr.bf16.mxu0 0
          %1931 = vmatpush2.bf16.msra.mxu0 %v1562
          %1932 = vmatprep.subr.bf16.mxu0 0
          %1933 = vmatpush2.bf16.msra.mxu0 %v1561
          %1934 = vmatprep.subr.bf16.mxu0 0
          %1935 = vmatpush2.bf16.msra.mxu0 %v1560
          %1936 = vmatprep.mubr.bf16.mxu0 %v948
          %1937 = vmatmul.mubr.bf16.gmra.mxu0 %v934
          %v1938 = vpop.f32.mrf.mxu0
          %v1939 = vadd.f32 %v1899, %v1938
          %v1940 = vpop.f32.mrf.mxu0
          %v1941 = vpop.f32.mrf.mxu0
          %v1942 = vpop.f32.mrf.mxu0
          %1943 = vdwg.mxu0
          %1944 = vmatprep.subr.bf16.mxu0 0
          %1945 = vmatpush1.bf16.msra.mxu0 %v1575
          %1946 = vmatprep.subr.bf16.mxu0 0
          %1947 = vmatpush1.bf16.msra.mxu0 %v1574
          %1948 = vmatprep.subr.bf16.mxu0 0
          %1949 = vmatpush1.bf16.msra.mxu0 %v1573
          %1950 = vmatprep.subr.bf16.mxu0 0
          %1951 = vmatpush1.bf16.msra.mxu0 %v1572
          %1952 = vmatprep.subr.bf16.mxu0 0
          %1953 = vmatpush1.bf16.msra.mxu0 %v1571
          %1954 = vmatprep.subr.bf16.mxu0 0
          %1955 = vmatpush1.bf16.msra.mxu0 %v1570
          %1956 = vmatprep.subr.bf16.mxu0 0
          %1957 = vmatpush1.bf16.msra.mxu0 %v1569
          %1958 = vmatprep.subr.bf16.mxu0 0
          %1959 = vmatpush1.bf16.msra.mxu0 %v1568
          %1960 = vmatprep.subr.bf16.mxu0 0
          %1961 = vmatpush2.bf16.msra.mxu0 %v1583
          %1962 = vmatprep.subr.bf16.mxu0 0
          %1963 = vmatpush2.bf16.msra.mxu0 %v1582
          %1964 = vmatprep.subr.bf16.mxu0 0
          %1965 = vmatpush2.bf16.msra.mxu0 %v1581
          %1966 = vmatprep.subr.bf16.mxu0 0
          %1967 = vmatpush2.bf16.msra.mxu0 %v1580
          %1968 = vmatprep.subr.bf16.mxu0 0
          %1969 = vmatpush2.bf16.msra.mxu0 %v1579
          %1970 = vmatprep.subr.bf16.mxu0 0
          %1971 = vmatpush2.bf16.msra.mxu0 %v1578
          %1972 = vmatprep.subr.bf16.mxu0 0
          %1973 = vmatpush2.bf16.msra.mxu0 %v1577
          %1974 = vmatprep.subr.bf16.mxu0 0
          %1975 = vmatpush2.bf16.msra.mxu0 %v1576
          %1976 = vmatprep.mubr.bf16.mxu0 %v958
          %1977 = vmatmul.mubr.bf16.gmra.mxu0 %v956
          %v1978 = vpop.f32.mrf.mxu0
          %v1979 = vadd.f32 %v1939, %v1978
          %v1980 = vpop.f32.mrf.mxu0
          %v1981 = vpop.f32.mrf.mxu0
          %v1982 = vpop.f32.mrf.mxu0
          %1983 = vdwg.mxu0
          %1984 = vmatprep.subr.bf16.mxu0 0
          %1985 = vmatpush1.bf16.msra.mxu0 %v1591
          %1986 = vmatprep.subr.bf16.mxu0 0
          %1987 = vmatpush1.bf16.msra.mxu0 %v1590
          %1988 = vmatprep.subr.bf16.mxu0 0
          %1989 = vmatpush1.bf16.msra.mxu0 %v1589
          %1990 = vmatprep.subr.bf16.mxu0 0
          %1991 = vmatpush1.bf16.msra.mxu0 %v1588
          %1992 = vmatprep.subr.bf16.mxu0 0
          %1993 = vmatpush1.bf16.msra.mxu0 %v1587
          %1994 = vmatprep.subr.bf16.mxu0 0
          %1995 = vmatpush1.bf16.msra.mxu0 %v1586
          %1996 = vmatprep.subr.bf16.mxu0 0
          %1997 = vmatpush1.bf16.msra.mxu0 %v1585
          %1998 = vmatprep.subr.bf16.mxu0 0
          %1999 = vmatpush1.bf16.msra.mxu0 %v1584
          %2000 = vmatprep.subr.bf16.mxu0 0
          %2001 = vmatpush2.bf16.msra.mxu0 %v1599
          %2002 = vmatprep.subr.bf16.mxu0 0
          %2003 = vmatpush2.bf16.msra.mxu0 %v1598
          %2004 = vmatprep.subr.bf16.mxu0 0
          %2005 = vmatpush2.bf16.msra.mxu0 %v1597
          %2006 = vmatprep.subr.bf16.mxu0 0
          %2007 = vmatpush2.bf16.msra.mxu0 %v1596
          %2008 = vmatprep.subr.bf16.mxu0 0
          %2009 = vmatpush2.bf16.msra.mxu0 %v1595
          %2010 = vmatprep.subr.bf16.mxu0 0
          %2011 = vmatpush2.bf16.msra.mxu0 %v1594
          %2012 = vmatprep.subr.bf16.mxu0 0
          %2013 = vmatpush2.bf16.msra.mxu0 %v1593
          %2014 = vmatprep.subr.bf16.mxu0 0
          %2015 = vmatpush2.bf16.msra.mxu0 %v1592
          %2016 = vmatprep.mubr.bf16.mxu0 %v955
          %2017 = vmatmul.mubr.bf16.gmra.mxu0 %v941
          %v2018 = vpop.f32.mrf.mxu0
          %v2019 = vadd.f32 %v1979, %v2018
          %v2020 = vpop.f32.mrf.mxu0
          %v2021 = vpop.f32.mrf.mxu0
          %v2022 = vpop.f32.mrf.mxu0
          %2023 = vdwg.mxu0
          %2024 = vmatprep.subr.bf16.mxu0 0
          %2025 = vmatpush1.bf16.msra.mxu0 %v1607
          %2026 = vmatprep.subr.bf16.mxu0 0
          %2027 = vmatpush1.bf16.msra.mxu0 %v1606
          %2028 = vmatprep.subr.bf16.mxu0 0
          %2029 = vmatpush1.bf16.msra.mxu0 %v1605
          %2030 = vmatprep.subr.bf16.mxu0 0
          %2031 = vmatpush1.bf16.msra.mxu0 %v1604
          %2032 = vmatprep.subr.bf16.mxu0 0
          %2033 = vmatpush1.bf16.msra.mxu0 %v1603
          %2034 = vmatprep.subr.bf16.mxu0 0
          %2035 = vmatpush1.bf16.msra.mxu0 %v1602
          %2036 = vmatprep.subr.bf16.mxu0 0
          %2037 = vmatpush1.bf16.msra.mxu0 %v1601
          %2038 = vmatprep.subr.bf16.mxu0 0
          %2039 = vmatpush1.bf16.msra.mxu0 %v1600
          %2040 = vmatprep.subr.bf16.mxu0 0
          %2041 = vmatpush2.bf16.msra.mxu0 %v1615
          %2042 = vmatprep.subr.bf16.mxu0 0
          %2043 = vmatpush2.bf16.msra.mxu0 %v1614
          %2044 = vmatprep.subr.bf16.mxu0 0
          %2045 = vmatpush2.bf16.msra.mxu0 %v1613
          %2046 = vmatprep.subr.bf16.mxu0 0
          %2047 = vmatpush2.bf16.msra.mxu0 %v1612
          %2048 = vmatprep.subr.bf16.mxu0 0
          %2049 = vmatpush2.bf16.msra.mxu0 %v1611
          %2050 = vmatprep.subr.bf16.mxu0 0
          %2051 = vmatpush2.bf16.msra.mxu0 %v1610
          %2052 = vmatprep.subr.bf16.mxu0 0
          %2053 = vmatpush2.bf16.msra.mxu0 %v1609
          %2054 = vmatprep.subr.bf16.mxu0 0
          %2055 = vmatpush2.bf16.msra.mxu0 %v1608
          %2056 = vmatprep.mubr.bf16.mxu0 %v959
          %2057 = vmatmul.mubr.bf16.gmra.mxu0 %v957
          %v2058 = vpop.f32.mrf.mxu0
          %v2059 = vadd.f32 %v2019, %v2058
          %v2060 = vpop.f32.mrf.mxu0
          %v2061 = vpop.f32.mrf.mxu0
          %v2062 = vpop.f32.mrf.mxu0
          %2063 = vdwg.mxu0
          %v2064 = vmax.f32 %v2059, 0.0
          %v2065 = vpack.c.bf16 %v2064, %v2064
          %v2066 = vld [vmem:[%s3] sm:$0xf]
          %v2067 = vld [vmem:[%s3 + $0x4] sm:$0xf]
          %v2068 = vld [vmem:[%s3 + $0x8] sm:$0xf]
          %v2069 = vld [vmem:[%s3 + $0xc] sm:$0xf]
          %v2070 = vld [vmem:[%s3 + $0x10] sm:$0xf]
          %v2071 = vld [vmem:[%s3 + $0x14] sm:$0xf]
          %v2072 = vld [vmem:[%s3 + $0x18] sm:$0xf]
          %v2073 = vld [vmem:[%s3 + $0x1c] sm:$0xf]
          %v2074 = vld [vmem:[%s3 + $0x20] sm:$0xf]
          %v2075 = vld [vmem:[%s3 + $0x24] sm:$0xf]
          %v2076 = vld [vmem:[%s3 + $0x28] sm:$0xf]
          %v2077 = vld [vmem:[%s3 + $0x2c] sm:$0xf]
          %v2078 = vld [vmem:[%s3 + $0x30] sm:$0xf]
          %v2079 = vld [vmem:[%s3 + $0x34] sm:$0xf]
          %v2080 = vld [vmem:[%s3 + $0x38] sm:$0xf]
          %v2081 = vld [vmem:[%s3 + $0x3c] sm:$0xf]
          %v2082 = vld [vmem:[#allocation9] sm:$0x1]
          %v2084 = vlaneseq
          %v2085 = vshrl.u32 %v2084, 7
          %v2086 = vsub.s32 0, %v2085
          %v2087 = vrot.slane %v2082, %v2086
          %v2105 = vunpack.c.l.b16 %v2066
          %v2106 = vunpack.c.l.b16 %v2067
          %v2107 = vunpack.c.l.b16 %v2068
          %v2108 = vunpack.c.l.b16 %v2069
          %v2109 = vunpack.c.l.b16 %v2070
          %v2110 = vunpack.c.l.b16 %v2071
          %v2111 = vunpack.c.l.b16 %v2072
          %v2112 = vunpack.c.l.b16 %v2073
          %v2113 = vunpack.c.l.b16 %v2074
          %v2114 = vunpack.c.l.b16 %v2075
          %v2115 = vunpack.c.l.b16 %v2076
          %v2116 = vunpack.c.l.b16 %v2077
          %v2117 = vunpack.c.l.b16 %v2078
          %v2118 = vunpack.c.l.b16 %v2079
          %v2119 = vunpack.c.l.b16 %v2080
          %v2120 = vunpack.c.l.b16 %v2081
          %v2121 = vpack.c.b16 %v2106, %v2105
          %v2122 = vpack.c.b16 %v2108, %v2107
          %v2123 = vpack.c.b16 %v2110, %v2109
          %v2124 = vpack.c.b16 %v2112, %v2111
          %v2125 = vpack.c.b16 %v2114, %v2113
          %v2126 = vpack.c.b16 %v2116, %v2115
          %v2127 = vpack.c.b16 %v2118, %v2117
          %v2128 = vpack.c.b16 %v2120, %v2119
          %2137 = vmatprep.subr.bf16.mxu0 0
          %2138 = vmatpush1.bf16.msra.mxu0 %v2128
          %2139 = vmatprep.subr.bf16.mxu0 0
          %2140 = vmatpush1.bf16.msra.mxu0 %v2127
          %2141 = vmatprep.subr.bf16.mxu0 0
          %2142 = vmatpush1.bf16.msra.mxu0 %v2126
          %2143 = vmatprep.subr.bf16.mxu0 0
          %2144 = vmatpush1.bf16.msra.mxu0 %v2125
          %2145 = vmatprep.subr.bf16.mxu0 0
          %2146 = vmatpush1.bf16.msra.mxu0 %v2124
          %2147 = vmatprep.subr.bf16.mxu0 0
          %2148 = vmatpush1.bf16.msra.mxu0 %v2123
          %2149 = vmatprep.subr.bf16.mxu0 0
          %2150 = vmatpush1.bf16.msra.mxu0 %v2122
          %2151 = vmatprep.subr.bf16.mxu0 0
          %2152 = vmatpush1.bf16.msra.mxu0 %v2121
          %2153 = vmatprep.subr.bf16.mxu0 0
          %2154 = vmatpush2.bf16.msra.mxu0 0
          %2155 = vmatprep.subr.bf16.mxu0 0
          %2156 = vmatpush2.bf16.msra.mxu0 0
          %2157 = vmatprep.subr.bf16.mxu0 0
          %2158 = vmatpush2.bf16.msra.mxu0 0
          %2159 = vmatprep.subr.bf16.mxu0 0
          %2160 = vmatpush2.bf16.msra.mxu0 0
          %2161 = vmatprep.subr.bf16.mxu0 0
          %2162 = vmatpush2.bf16.msra.mxu0 0
          %2163 = vmatprep.subr.bf16.mxu0 0
          %2164 = vmatpush2.bf16.msra.mxu0 0
          %2165 = vmatprep.subr.bf16.mxu0 0
          %2166 = vmatpush2.bf16.msra.mxu0 0
          %2167 = vmatprep.subr.bf16.mxu0 0
          %2168 = vmatpush2.bf16.msra.mxu0 0
          %2169 = vmatprep.mubr.bf16.mxu0 0
          %2170 = vmatmul.mubr.bf16.gmra.mxu0 %v2065
          %v2171 = vpop.f32.mrf.mxu0
          %v2172 = vadd.f32 %v2087, %v2171
          %v2173 = vpop.f32.mrf.mxu0
          %v2174 = vpop.f32.mrf.mxu0
          %v2175 = vpop.f32.mrf.mxu0
          %2176 = vdwg.mxu0
          %vm2177 = vcmask 17408
          %v2178 = vsel %vm2177, %v2172, -inf
          %2179 = vmax.xlane.f32.xlu0 %v2178
          %v2180 = vpop.xlane.xlu0 %2179
          %v2181 = vsub.f32 %v2172, %v2180
          %v2182 = vmul.f32 %v2181, 1.442695
          %v2183 = vpow.pop %v2182
          %v2184 = vsel %vm2177, %v2183, 0.0
          %2185 = vadd.xlane.f32.xlu0 %v2184
          %v2186 = vpop.xlane.xlu0 %2185
          %v2187 = vrcp.pop %v2186
          %v2188 = vmul.f32 %v2183, %v2187
          %2189 = vst.msk [vmem:[#allocation2] sm:$0x3] %vm2177, %v2188
          %2190 = vst [vmem:[#allocation3] sm:$0xff] 0.0
          %2191 = vst [vmem:[#allocation3 + $0x8] sm:$0xff] 0.0
        $region100: #{gate_model_forward.1} parent=63 // pred_fallthru
          _
        %v2192 = vlaneseq
        %v2193 = vand.u32 %v2192, 127
        %v2194 = vstv %s36
        %vm2195 = vcmp.eq.s32.totalorder %v2193, %v2194
        %v2196 = vld [vmem:[#allocation2] sm:$0x3]
        %v2197 = vsel %vm2195, %v2196, 0.0
        %vm2198 = vcmask 17408
        %v2199 = vsel %vm2198, %v2197, 0.0
        %2200 = vadd.xlane.f32.xlu0 %v2199
        %v2201 = vpop.xlane.xlu0 %2200
        %v2202 = vld [vmem:[%s501] sm:$0xff]
        %v2203 = vld [vmem:[%s501 + $0x8] sm:$0xff]
        %v2204 = vld [vmem:[%s501 + $0x10] sm:$0xff]
        %v2205 = vld [vmem:[%s501 + $0x18] sm:$0xff]
        %v2206 = vld [vmem:[%s501 + $0x20] sm:$0xff]
        %v2207 = vld [vmem:[%s501 + $0x28] sm:$0xff]
        %v2208 = vld [vmem:[%s501 + $0x30] sm:$0xff]
        %v2209 = vld [vmem:[%s501 + $0x38] sm:$0xff]
        %v2210 = vld [vmem:[%s501 + $0x40] sm:$0xff]
        %v2211 = vld [vmem:[%s501 + $0x48] sm:$0xff]
        %v2212 = vld [vmem:[%s501 + $0x50] sm:$0xff]
        %v2213 = vld [vmem:[%s501 + $0x58] sm:$0xff]
        %v2214 = vld [vmem:[%s501 + $0x60] sm:$0xff]
        %v2215 = vld [vmem:[%s501 + $0x68] sm:$0xff]
        %v2216 = vld [vmem:[%s501 + $0x70] sm:$0xff]
        %v2217 = vld [vmem:[%s501 + $0x78] sm:$0xff]
        %v2218 = vld [vmem:[%s501 + $0x80] sm:$0xff]
        %v2219 = vld [vmem:[%s501 + $0x88] sm:$0xff]
        %v2220 = vld [vmem:[%s501 + $0x90] sm:$0xff]
        %v2221 = vld [vmem:[%s501 + $0x98] sm:$0xff]
        %v2222 = vld [vmem:[%s501 + $0xa0] sm:$0xff]
        %v2223 = vld [vmem:[%s501 + $0xa8] sm:$0xff]
        %v2224 = vld [vmem:[%s501 + $0xb0] sm:$0xff]
        %v2225 = vld [vmem:[%s501 + $0xb8] sm:$0xff]
        %v2226 = vld [vmem:[%s501 + $0xc0] sm:$0xff]
        %v2227 = vld [vmem:[%s501 + $0xc8] sm:$0xff]
        %v2228 = vld [vmem:[%s501 + $0xd0] sm:$0xff]
        %v2229 = vld [vmem:[%s501 + $0xd8] sm:$0xff]
        %v2230 = vld [vmem:[%s501 + $0xe0] sm:$0xff]
        %v2231 = vld [vmem:[%s501 + $0xe8] sm:$0xff]
        %v2232 = vld [vmem:[%s501 + $0xf0] sm:$0xff]
        %v2233 = vld [vmem:[%s501 + $0xf8] sm:$0xff]
        %v2234 = vld [vmem:[%s501 + $0x100] sm:$0xff]
        %v2235 = vld [vmem:[%s501 + $0x108] sm:$0xff]
        %v2236 = vld [vmem:[%s501 + $0x110] sm:$0xff]
        %v2237 = vld [vmem:[%s501 + $0x118] sm:$0xff]
        %v2238 = vld [vmem:[%s501 + $0x120] sm:$0xff]
        %v2239 = vld [vmem:[%s501 + $0x128] sm:$0xff]
        %v2240 = vld [vmem:[%s501 + $0x130] sm:$0xff]
        %v2241 = vld [vmem:[%s501 + $0x138] sm:$0xff]
        %v2242 = vld [vmem:[%s501 + $0x140] sm:$0xff]
        %v2243 = vld [vmem:[%s501 + $0x148] sm:$0xff]
        %v2244 = vld [vmem:[%s501 + $0x150] sm:$0xff]
        %v2245 = vld [vmem:[%s501 + $0x158] sm:$0xff]
        %v2246 = vld [vmem:[%s501 + $0x160] sm:$0xff]
        %v2247 = vld [vmem:[%s501 + $0x168] sm:$0xff]
        %v2248 = vld [vmem:[%s501 + $0x170] sm:$0xff]
        %v2249 = vld [vmem:[%s501 + $0x178] sm:$0xff]
        %v2250 = vld [vmem:[%s501 + $0x180] sm:$0xff]
        %v2251 = vld [vmem:[%s501 + $0x188] sm:$0xff]
        %v2252 = vld [vmem:[%s501 + $0x190] sm:$0xff]
        %v2253 = vld [vmem:[%s501 + $0x198] sm:$0xff]
        %v2254 = vld [vmem:[%s501 + $0x1a0] sm:$0xff]
        %v2255 = vld [vmem:[%s501 + $0x1a8] sm:$0xff]
        %v2256 = vld [vmem:[%s501 + $0x1b0] sm:$0xff]
        %v2257 = vld [vmem:[%s501 + $0x1b8] sm:$0xff]
        %v2258 = vld [vmem:[%s501 + $0x1c0] sm:$0xff]
        %v2259 = vld [vmem:[%s501 + $0x1c8] sm:$0xff]
        %v2260 = vld [vmem:[%s501 + $0x1d0] sm:$0xff]
        %v2261 = vld [vmem:[%s501 + $0x1d8] sm:$0xff]
        %v2262 = vld [vmem:[%s501 + $0x1e0] sm:$0xff]
        %v2263 = vld [vmem:[%s501 + $0x1e8] sm:$0xff]
        %v2264 = vld [vmem:[%s501 + $0x1f0] sm:$0xff]
        %v2265 = vld [vmem:[%s501 + $0x1f8] sm:$0xff]
        %v2266 = vld [vmem:[%s501 + $0x200] sm:$0xff]
        %v2267 = vld [vmem:[%s501 + $0x208] sm:$0xff]
        %v2268 = vld [vmem:[%s501 + $0x210] sm:$0xff]
        %v2269 = vld [vmem:[%s501 + $0x218] sm:$0xff]
        %v2270 = vld [vmem:[%s501 + $0x220] sm:$0xff]
        %v2271 = vld [vmem:[%s501 + $0x228] sm:$0xff]
        %v2272 = vld [vmem:[%s501 + $0x230] sm:$0xff]
        %v2273 = vld [vmem:[%s501 + $0x238] sm:$0xff]
        %v2274 = vld [vmem:[%s501 + $0x240] sm:$0xff]
        %v2275 = vld [vmem:[%s501 + $0x248] sm:$0xff]
        %v2276 = vld [vmem:[%s501 + $0x250] sm:$0xff]
        %v2277 = vld [vmem:[%s501 + $0x258] sm:$0xff]
        %v2278 = vld [vmem:[%s501 + $0x260] sm:$0xff]
        %v2279 = vld [vmem:[%s501 + $0x268] sm:$0xff]
        %v2280 = vld [vmem:[%s501 + $0x270] sm:$0xff]
        %v2281 = vld [vmem:[%s501 + $0x278] sm:$0xff]
        %v2282 = vld [vmem:[%s501 + $0x280] sm:$0xff]
        %v2283 = vld [vmem:[%s501 + $0x288] sm:$0xff]
        %v2284 = vld [vmem:[%s501 + $0x290] sm:$0xff]
        %v2285 = vld [vmem:[%s501 + $0x298] sm:$0xff]
        %v2286 = vld [vmem:[%s501 + $0x2a0] sm:$0xff]
        %v2287 = vld [vmem:[%s501 + $0x2a8] sm:$0xff]
        %v2288 = vld [vmem:[%s501 + $0x2b0] sm:$0xff]
        %v2289 = vld [vmem:[%s501 + $0x2b8] sm:$0xff]
        %v2290 = vld [vmem:[%s501 + $0x2c0] sm:$0xff]
        %v2291 = vld [vmem:[%s501 + $0x2c8] sm:$0xff]
        %v2292 = vld [vmem:[%s501 + $0x2d0] sm:$0xff]
        %v2293 = vld [vmem:[%s501 + $0x2d8] sm:$0xff]
        %v2294 = vld [vmem:[%s501 + $0x2e0] sm:$0xff]
        %v2295 = vld [vmem:[%s501 + $0x2e8] sm:$0xff]
        %v2296 = vld [vmem:[%s501 + $0x2f0] sm:$0xff]
        %v2297 = vld [vmem:[%s501 + $0x2f8] sm:$0xff]
        %v2298 = vld [vmem:[%s501 + $0x300] sm:$0xff]
        %v2299 = vld [vmem:[%s501 + $0x308] sm:$0xff]
        %v2300 = vld [vmem:[%s501 + $0x310] sm:$0xff]
        %v2301 = vld [vmem:[%s501 + $0x318] sm:$0xff]
        %v2302 = vld [vmem:[%s501 + $0x320] sm:$0xff]
        %v2303 = vld [vmem:[%s501 + $0x328] sm:$0xff]
        %v2304 = vld [vmem:[%s501 + $0x330] sm:$0xff]
        %v2305 = vld [vmem:[%s501 + $0x338] sm:$0xff]
        %v2306 = vld [vmem:[%s501 + $0x340] sm:$0xff]
        %v2307 = vld [vmem:[%s501 + $0x348] sm:$0xff]
        %v2308 = vld [vmem:[%s501 + $0x350] sm:$0xff]
        %v2309 = vld [vmem:[%s501 + $0x358] sm:$0xff]
        %v2310 = vld [vmem:[%s501 + $0x360] sm:$0xff]
        %v2311 = vld [vmem:[%s501 + $0x368] sm:$0xff]
        %v2312 = vld [vmem:[%s501 + $0x370] sm:$0xff]
        %v2313 = vld [vmem:[%s501 + $0x378] sm:$0xff]
        %v2314 = vld [vmem:[%s501 + $0x380] sm:$0xff]
        %v2315 = vld [vmem:[%s501 + $0x388] sm:$0xff]
        %v2316 = vld [vmem:[%s501 + $0x390] sm:$0xff]
        %v2317 = vld [vmem:[%s501 + $0x398] sm:$0xff]
        %v2318 = vld [vmem:[%s501 + $0x3a0] sm:$0xff]
        %v2319 = vld [vmem:[%s501 + $0x3a8] sm:$0xff]
        %v2320 = vld [vmem:[%s501 + $0x3b0] sm:$0xff]
        %v2321 = vld [vmem:[%s501 + $0x3b8] sm:$0xff]
        %v2322 = vld [vmem:[%s501 + $0x3c0] sm:$0xff]
        %v2323 = vld [vmem:[%s501 + $0x3c8] sm:$0xff]
        %v2324 = vld [vmem:[%s501 + $0x3d0] sm:$0xff]
        %v2325 = vld [vmem:[%s501 + $0x3d8] sm:$0xff]
        %v2326 = vld [vmem:[%s501 + $0x3e0] sm:$0xff]
        %v2327 = vld [vmem:[%s501 + $0x3e8] sm:$0xff]
        %v2328 = vld [vmem:[%s501 + $0x3f0] sm:$0xff]
        %v2329 = vld [vmem:[%s501 + $0x3f8] sm:$0xff]
        %v2330 = vld [vmem:[%s501 + $0x400] sm:$0xff]
        %v2331 = vld [vmem:[%s501 + $0x408] sm:$0xff]
        %v2332 = vld [vmem:[%s501 + $0x410] sm:$0xff]
        %v2333 = vld [vmem:[%s501 + $0x418] sm:$0xff]
        %v2334 = vld [vmem:[%s501 + $0x420] sm:$0xff]
        %v2335 = vld [vmem:[%s501 + $0x428] sm:$0xff]
        %v2336 = vld [vmem:[%s501 + $0x430] sm:$0xff]
        %v2337 = vld [vmem:[%s501 + $0x438] sm:$0xff]
        %v2338 = vld [vmem:[%s501 + $0x440] sm:$0xff]
        %v2339 = vld [vmem:[%s501 + $0x448] sm:$0xff]
        %v2340 = vld [vmem:[%s501 + $0x450] sm:$0xff]
        %v2341 = vld [vmem:[%s501 + $0x458] sm:$0xff]
        %v2342 = vld [vmem:[%s501 + $0x460] sm:$0xff]
        %v2343 = vld [vmem:[%s501 + $0x468] sm:$0xff]
        %v2344 = vld [vmem:[%s501 + $0x470] sm:$0xff]
        %v2345 = vld [vmem:[%s501 + $0x478] sm:$0xff]
        %v2346 = vld [vmem:[%s501 + $0x480] sm:$0xff]
        %v2347 = vld [vmem:[%s501 + $0x488] sm:$0xff]
        %v2348 = vld [vmem:[%s501 + $0x490] sm:$0xff]
        %v2349 = vld [vmem:[%s501 + $0x498] sm:$0xff]
        %v2350 = vld [vmem:[%s501 + $0x4a0] sm:$0xff]
        %v2351 = vld [vmem:[%s501 + $0x4a8] sm:$0xff]
        %v2352 = vld [vmem:[%s501 + $0x4b0] sm:$0xff]
        %v2353 = vld [vmem:[%s501 + $0x4b8] sm:$0xff]
        %v2354 = vld [vmem:[%s501 + $0x4c0] sm:$0xff]
        %v2355 = vld [vmem:[%s501 + $0x4c8] sm:$0xff]
        %v2356 = vld [vmem:[%s501 + $0x4d0] sm:$0xff]
        %v2357 = vld [vmem:[%s501 + $0x4d8] sm:$0xff]
        %v2358 = vld [vmem:[%s501 + $0x4e0] sm:$0xff]
        %v2359 = vld [vmem:[%s501 + $0x4e8] sm:$0xff]
        %v2360 = vld [vmem:[%s501 + $0x4f0] sm:$0xff]
        %v2361 = vld [vmem:[%s501 + $0x4f8] sm:$0xff]
        %v2362 = vld [vmem:[%s501 + $0x500] sm:$0xff]
        %v2363 = vld [vmem:[%s501 + $0x508] sm:$0xff]
        %v2364 = vld [vmem:[%s501 + $0x510] sm:$0xff]
        %v2365 = vld [vmem:[%s501 + $0x518] sm:$0xff]
        %v2366 = vld [vmem:[%s501 + $0x520] sm:$0xff]
        %v2367 = vld [vmem:[%s501 + $0x528] sm:$0xff]
        %v2368 = vld [vmem:[%s501 + $0x530] sm:$0xff]
        %v2369 = vld [vmem:[%s501 + $0x538] sm:$0xff]
        %v2370 = vld [vmem:[%s501 + $0x540] sm:$0xff]
        %v2371 = vld [vmem:[%s501 + $0x548] sm:$0xff]
        %v2372 = vld [vmem:[%s501 + $0x550] sm:$0xff]
        %v2373 = vld [vmem:[%s501 + $0x558] sm:$0xff]
        %v2374 = vld [vmem:[%s501 + $0x560] sm:$0xff]
        %v2375 = vld [vmem:[%s501 + $0x568] sm:$0xff]
        %v2376 = vld [vmem:[%s501 + $0x570] sm:$0xff]
        %v2377 = vld [vmem:[%s501 + $0x578] sm:$0xff]
        %v2378 = vld [vmem:[%s501 + $0x580] sm:$0xff]
        %v2379 = vld [vmem:[%s501 + $0x588] sm:$0xff]
        %v2380 = vld [vmem:[%s501 + $0x590] sm:$0xff]
        %v2381 = vld [vmem:[%s501 + $0x598] sm:$0xff]
        %v2382 = vld [vmem:[%s501 + $0x5a0] sm:$0xff]
        %v2383 = vld [vmem:[%s501 + $0x5a8] sm:$0xff]
        %v2384 = vld [vmem:[%s501 + $0x5b0] sm:$0xff]
        %v2385 = vld [vmem:[%s501 + $0x5b8] sm:$0xff]
        %v2386 = vld [vmem:[%s501 + $0x5c0] sm:$0xff]
        %v2387 = vld [vmem:[%s501 + $0x5c8] sm:$0xff]
        %v2388 = vld [vmem:[%s501 + $0x5d0] sm:$0xff]
        %v2389 = vld [vmem:[%s501 + $0x5d8] sm:$0xff]
        %v2390 = vld [vmem:[%s501 + $0x5e0] sm:$0xff]
        %v2391 = vld [vmem:[%s501 + $0x5e8] sm:$0xff]
        %v2392 = vld [vmem:[%s501 + $0x5f0] sm:$0xff]
        %v2393 = vld [vmem:[%s501 + $0x5f8] sm:$0xff]
        %v2394 = vld [vmem:[%s501 + $0x600] sm:$0xff]
        %v2395 = vld [vmem:[%s501 + $0x608] sm:$0xff]
        %v2396 = vld [vmem:[%s501 + $0x610] sm:$0xff]
        %v2397 = vld [vmem:[%s501 + $0x618] sm:$0xff]
        %v2398 = vld [vmem:[%s501 + $0x620] sm:$0xff]
        %v2399 = vld [vmem:[%s501 + $0x628] sm:$0xff]
        %v2400 = vld [vmem:[%s501 + $0x630] sm:$0xff]
        %v2401 = vld [vmem:[%s501 + $0x638] sm:$0xff]
        %v2402 = vld [vmem:[%s501 + $0x640] sm:$0xff]
        %v2403 = vld [vmem:[%s501 + $0x648] sm:$0xff]
        %v2404 = vld [vmem:[%s501 + $0x650] sm:$0xff]
        %v2405 = vld [vmem:[%s501 + $0x658] sm:$0xff]
        %v2406 = vld [vmem:[%s501 + $0x660] sm:$0xff]
        %v2407 = vld [vmem:[%s501 + $0x668] sm:$0xff]
        %v2408 = vld [vmem:[%s501 + $0x670] sm:$0xff]
        %v2409 = vld [vmem:[%s501 + $0x678] sm:$0xff]
        %v2410 = vld [vmem:[%s501 + $0x680] sm:$0xff]
        %v2411 = vld [vmem:[%s501 + $0x688] sm:$0xff]
        %v2412 = vld [vmem:[%s501 + $0x690] sm:$0xff]
        %v2413 = vld [vmem:[%s501 + $0x698] sm:$0xff]
        %v2414 = vld [vmem:[%s501 + $0x6a0] sm:$0xff]
        %v2415 = vld [vmem:[%s501 + $0x6a8] sm:$0xff]
        %v2416 = vld [vmem:[%s501 + $0x6b0] sm:$0xff]
        %v2417 = vld [vmem:[%s501 + $0x6b8] sm:$0xff]
        %v2418 = vld [vmem:[%s501 + $0x6c0] sm:$0xff]
        %v2419 = vld [vmem:[%s501 + $0x6c8] sm:$0xff]
        %v2420 = vld [vmem:[%s501 + $0x6d0] sm:$0xff]
        %v2421 = vld [vmem:[%s501 + $0x6d8] sm:$0xff]
        %v2422 = vld [vmem:[%s501 + $0x6e0] sm:$0xff]
        %v2423 = vld [vmem:[%s501 + $0x6e8] sm:$0xff]
        %v2424 = vld [vmem:[%s501 + $0x6f0] sm:$0xff]
        %v2425 = vld [vmem:[%s501 + $0x6f8] sm:$0xff]
        %v2426 = vld [vmem:[%s501 + $0x700] sm:$0xff]
        %v2427 = vld [vmem:[%s501 + $0x708] sm:$0xff]
        %v2428 = vld [vmem:[%s501 + $0x710] sm:$0xff]
        %v2429 = vld [vmem:[%s501 + $0x718] sm:$0xff]
        %v2430 = vld [vmem:[%s501 + $0x720] sm:$0xff]
        %v2431 = vld [vmem:[%s501 + $0x728] sm:$0xff]
        %v2432 = vld [vmem:[%s501 + $0x730] sm:$0xff]
        %v2433 = vld [vmem:[%s501 + $0x738] sm:$0xff]
        %v2434 = vld [vmem:[%s501 + $0x740] sm:$0xff]
        %v2435 = vld [vmem:[%s501 + $0x748] sm:$0xff]
        %v2436 = vld [vmem:[%s501 + $0x750] sm:$0xff]
        %v2437 = vld [vmem:[%s501 + $0x758] sm:$0xff]
        %v2438 = vld [vmem:[%s501 + $0x760] sm:$0xff]
        %v2439 = vld [vmem:[%s501 + $0x768] sm:$0xff]
        %v2440 = vld [vmem:[%s501 + $0x770] sm:$0xff]
        %v2441 = vld [vmem:[%s501 + $0x778] sm:$0xff]
        %v2442 = vld [vmem:[%s501 + $0x780] sm:$0xff]
        %v2443 = vld [vmem:[%s501 + $0x788] sm:$0xff]
        %v2444 = vld [vmem:[%s501 + $0x790] sm:$0xff]
        %v2445 = vld [vmem:[%s501 + $0x798] sm:$0xff]
        %v2446 = vld [vmem:[%s501 + $0x7a0] sm:$0xff]
        %v2447 = vld [vmem:[%s501 + $0x7a8] sm:$0xff]
        %v2448 = vld [vmem:[%s501 + $0x7b0] sm:$0xff]
        %v2449 = vld [vmem:[%s501 + $0x7b8] sm:$0xff]
        %v2450 = vld [vmem:[%s501 + $0x7c0] sm:$0xff]
        %v2451 = vld [vmem:[%s501 + $0x7c8] sm:$0xff]
        %v2452 = vld [vmem:[%s501 + $0x7d0] sm:$0xff]
        %v2453 = vld [vmem:[%s501 + $0x7d8] sm:$0xff]
        %v2454 = vld [vmem:[%s501 + $0x7e0] sm:$0xff]
        %v2455 = vld [vmem:[%s501 + $0x7e8] sm:$0xff]
        %v2456 = vld [vmem:[%s501 + $0x7f0] sm:$0xff]
        %v2457 = vld [vmem:[%s501 + $0x7f8] sm:$0xff]
        %v2458 = vld [vmem:[%s501 + $0x800] sm:$0xff]
        %v2459 = vld [vmem:[%s501 + $0x808] sm:$0xff]
        %v2460 = vld [vmem:[%s501 + $0x810] sm:$0xff]
        %v2461 = vld [vmem:[%s501 + $0x818] sm:$0xff]
        %v2462 = vld [vmem:[%s501 + $0x820] sm:$0xff]
        %v2463 = vld [vmem:[%s501 + $0x828] sm:$0xff]
        %v2464 = vld [vmem:[%s501 + $0x830] sm:$0xff]
        %v2465 = vld [vmem:[%s501 + $0x838] sm:$0xff]
        %v2466 = vld [vmem:[%s501 + $0x840] sm:$0xff]
        %v2467 = vld [vmem:[%s501 + $0x848] sm:$0xff]
        %v2468 = vld [vmem:[%s501 + $0x850] sm:$0xff]
        %v2469 = vld [vmem:[%s501 + $0x858] sm:$0xff]
        %v2470 = vld [vmem:[%s501 + $0x860] sm:$0xff]
        %v2471 = vld [vmem:[%s501 + $0x868] sm:$0xff]
        %v2472 = vld [vmem:[%s501 + $0x870] sm:$0xff]
        %v2473 = vld [vmem:[%s501 + $0x878] sm:$0xff]
        %v2474 = vld [vmem:[%s501 + $0x880] sm:$0xff]
        %v2475 = vld [vmem:[%s501 + $0x888] sm:$0xff]
        %v2476 = vld [vmem:[%s501 + $0x890] sm:$0xff]
        %v2477 = vld [vmem:[%s501 + $0x898] sm:$0xff]
        %v2478 = vld [vmem:[%s501 + $0x8a0] sm:$0xff]
        %v2479 = vld [vmem:[%s501 + $0x8a8] sm:$0xff]
        %v2480 = vld [vmem:[%s501 + $0x8b0] sm:$0xff]
        %v2481 = vld [vmem:[%s501 + $0x8b8] sm:$0xff]
        %v2482 = vld [vmem:[%s501 + $0x8c0] sm:$0xff]
        %v2483 = vld [vmem:[%s501 + $0x8c8] sm:$0xff]
        %v2484 = vld [vmem:[%s501 + $0x8d0] sm:$0xff]
        %v2485 = vld [vmem:[%s501 + $0x8d8] sm:$0xff]
        %v2486 = vld [vmem:[%s501 + $0x8e0] sm:$0xff]
        %v2487 = vld [vmem:[%s501 + $0x8e8] sm:$0xff]
        %v2488 = vld [vmem:[%s501 + $0x8f0] sm:$0xff]
        %v2489 = vld [vmem:[%s501 + $0x8f8] sm:$0xff]
        %v2490 = vld [vmem:[%s501 + $0x900] sm:$0xff]
        %v2491 = vld [vmem:[%s501 + $0x908] sm:$0xff]
        %v2492 = vld [vmem:[%s501 + $0x910] sm:$0xff]
        %v2493 = vld [vmem:[%s501 + $0x918] sm:$0xff]
        %v2494 = vld [vmem:[%s501 + $0x920] sm:$0xff]
        %v2495 = vld [vmem:[%s501 + $0x928] sm:$0xff]
        %v2496 = vld [vmem:[%s501 + $0x930] sm:$0xff]
        %v2497 = vld [vmem:[%s501 + $0x938] sm:$0xff]
        %v2498 = vld [vmem:[%s501 + $0x940] sm:$0xff]
        %v2499 = vld [vmem:[%s501 + $0x948] sm:$0xff]
        %v2500 = vld [vmem:[%s501 + $0x950] sm:$0xff]
        %v2501 = vld [vmem:[%s501 + $0x958] sm:$0xff]
        %v2502 = vld [vmem:[%s501 + $0x960] sm:$0xff]
        %v2503 = vld [vmem:[%s501 + $0x968] sm:$0xff]
        %v2504 = vld [vmem:[%s501 + $0x970] sm:$0xff]
        %v2505 = vld [vmem:[%s501 + $0x978] sm:$0xff]
        %v2506 = vld [vmem:[%s501 + $0x980] sm:$0xff]
        %v2507 = vld [vmem:[%s501 + $0x988] sm:$0xff]
        %v2508 = vld [vmem:[%s501 + $0x990] sm:$0xff]
        %v2509 = vld [vmem:[%s501 + $0x998] sm:$0xff]
        %v2510 = vld [vmem:[%s501 + $0x9a0] sm:$0xff]
        %v2511 = vld [vmem:[%s501 + $0x9a8] sm:$0xff]
        %v2512 = vld [vmem:[%s501 + $0x9b0] sm:$0xff]
        %v2513 = vld [vmem:[%s501 + $0x9b8] sm:$0xff]
        %v2514 = vld [vmem:[%s501 + $0x9c0] sm:$0xff]
        %v2515 = vld [vmem:[%s501 + $0x9c8] sm:$0xff]
        %v2516 = vld [vmem:[%s501 + $0x9d0] sm:$0xff]
        %v2517 = vld [vmem:[%s501 + $0x9d8] sm:$0xff]
        %v2518 = vld [vmem:[%s501 + $0x9e0] sm:$0xff]
        %v2519 = vld [vmem:[%s501 + $0x9e8] sm:$0xff]
        %v2520 = vld [vmem:[%s501 + $0x9f0] sm:$0xff]
        %v2521 = vld [vmem:[%s501 + $0x9f8] sm:$0xff]
        %v2522 = vld [vmem:[%s501 + $0xa00] sm:$0xff]
        %v2523 = vld [vmem:[%s501 + $0xa08] sm:$0xff]
        %v2524 = vld [vmem:[%s501 + $0xa10] sm:$0xff]
        %v2525 = vld [vmem:[%s501 + $0xa18] sm:$0xff]
        %v2526 = vld [vmem:[%s501 + $0xa20] sm:$0xff]
        %v2527 = vld [vmem:[%s501 + $0xa28] sm:$0xff]
        %v2528 = vld [vmem:[%s501 + $0xa30] sm:$0xff]
        %v2529 = vld [vmem:[%s501 + $0xa38] sm:$0xff]
        %v2530 = vld [vmem:[%s501 + $0xa40] sm:$0xff]
        %v2531 = vld [vmem:[%s501 + $0xa48] sm:$0xff]
        %v2532 = vld [vmem:[%s501 + $0xa50] sm:$0xff]
        %v2533 = vld [vmem:[%s501 + $0xa58] sm:$0xff]
        %v2534 = vld [vmem:[%s501 + $0xa60] sm:$0xff]
        %v2535 = vld [vmem:[%s501 + $0xa68] sm:$0xff]
        %v2536 = vld [vmem:[%s501 + $0xa70] sm:$0xff]
        %v2537 = vld [vmem:[%s501 + $0xa78] sm:$0xff]
        %v2538 = vld [vmem:[%s501 + $0xa80] sm:$0xff]
        %v2539 = vld [vmem:[%s501 + $0xa88] sm:$0xff]
        %v2540 = vld [vmem:[%s501 + $0xa90] sm:$0xff]
        %v2541 = vld [vmem:[%s501 + $0xa98] sm:$0xff]
        %v2542 = vld [vmem:[%s501 + $0xaa0] sm:$0xff]
        %v2543 = vld [vmem:[%s501 + $0xaa8] sm:$0xff]
        %v2544 = vld [vmem:[%s501 + $0xab0] sm:$0xff]
        %v2545 = vld [vmem:[%s501 + $0xab8] sm:$0xff]
        %v2546 = vld [vmem:[%s501 + $0xac0] sm:$0xff]
        %v2547 = vld [vmem:[%s501 + $0xac8] sm:$0xff]
        %v2548 = vld [vmem:[%s501 + $0xad0] sm:$0xff]
        %v2549 = vld [vmem:[%s501 + $0xad8] sm:$0xff]
        %v2550 = vld [vmem:[%s501 + $0xae0] sm:$0xff]
        %v2551 = vld [vmem:[%s501 + $0xae8] sm:$0xff]
        %v2552 = vld [vmem:[%s501 + $0xaf0] sm:$0xff]
        %v2553 = vld [vmem:[%s501 + $0xaf8] sm:$0xff]
        %v2554 = vld [vmem:[%s501 + $0xb00] sm:$0xff]
        %v2555 = vld [vmem:[%s501 + $0xb08] sm:$0xff]
        %v2556 = vld [vmem:[%s501 + $0xb10] sm:$0xff]
        %v2557 = vld [vmem:[%s501 + $0xb18] sm:$0xff]
        %v2558 = vld [vmem:[%s501 + $0xb20] sm:$0xff]
        %v2559 = vld [vmem:[%s501 + $0xb28] sm:$0xff]
        %v2560 = vld [vmem:[%s501 + $0xb30] sm:$0xff]
        %v2561 = vld [vmem:[%s501 + $0xb38] sm:$0xff]
        %v2562 = vld [vmem:[%s501 + $0xb40] sm:$0xff]
        %v2563 = vld [vmem:[%s501 + $0xb48] sm:$0xff]
        %v2564 = vld [vmem:[%s501 + $0xb50] sm:$0xff]
        %v2565 = vld [vmem:[%s501 + $0xb58] sm:$0xff]
        %v2566 = vld [vmem:[%s501 + $0xb60] sm:$0xff]
        %v2567 = vld [vmem:[%s501 + $0xb68] sm:$0xff]
        %v2568 = vld [vmem:[%s501 + $0xb70] sm:$0xff]
        %v2569 = vld [vmem:[%s501 + $0xb78] sm:$0xff]
        %v2570 = vld [vmem:[%s501 + $0xb80] sm:$0xff]
        %v2571 = vld [vmem:[%s501 + $0xb88] sm:$0xff]
        %v2572 = vld [vmem:[%s501 + $0xb90] sm:$0xff]
        %v2573 = vld [vmem:[%s501 + $0xb98] sm:$0xff]
        %v2574 = vld [vmem:[%s501 + $0xba0] sm:$0xff]
        %v2575 = vld [vmem:[%s501 + $0xba8] sm:$0xff]
        %v2576 = vld [vmem:[%s501 + $0xbb0] sm:$0xff]
        %v2577 = vld [vmem:[%s501 + $0xbb8] sm:$0xff]
        %v2578 = vld [vmem:[%s501 + $0xbc0] sm:$0xff]
        %v2579 = vld [vmem:[%s501 + $0xbc8] sm:$0xff]
        %v2580 = vld [vmem:[%s501 + $0xbd0] sm:$0xff]
        %v2581 = vld [vmem:[%s501 + $0xbd8] sm:$0xff]
        %v2582 = vld [vmem:[%s501 + $0xbe0] sm:$0xff]
        %v2583 = vld [vmem:[%s501 + $0xbe8] sm:$0xff]
        %v2584 = vld [vmem:[%s501 + $0xbf0] sm:$0xff]
        %v2585 = vld [vmem:[%s501 + $0xbf8] sm:$0xff]
        %v2586 = vld [vmem:[%s501 + $0xc00] sm:$0xff]
        %v2587 = vld [vmem:[%s501 + $0xc08] sm:$0xff]
        %v2588 = vld [vmem:[%s501 + $0xc10] sm:$0xff]
        %v2589 = vld [vmem:[%s501 + $0xc18] sm:$0xff]
        %v2590 = vld [vmem:[%s501 + $0xc20] sm:$0xff]
        %v2591 = vld [vmem:[%s501 + $0xc28] sm:$0xff]
        %v2592 = vld [vmem:[%s501 + $0xc30] sm:$0xff]
        %v2593 = vld [vmem:[%s501 + $0xc38] sm:$0xff]
        %v2594 = vld [vmem:[%s501 + $0xc40] sm:$0xff]
        %v2595 = vld [vmem:[%s501 + $0xc48] sm:$0xff]
        %v2596 = vld [vmem:[%s501 + $0xc50] sm:$0xff]
        %v2597 = vld [vmem:[%s501 + $0xc58] sm:$0xff]
        %v2598 = vld [vmem:[%s501 + $0xc60] sm:$0xff]
        %v2599 = vld [vmem:[%s501 + $0xc68] sm:$0xff]
        %v2600 = vld [vmem:[%s501 + $0xc70] sm:$0xff]
        %v2601 = vld [vmem:[%s501 + $0xc78] sm:$0xff]
        %v2602 = vld [vmem:[%s501 + $0xc80] sm:$0xff]
        %v2603 = vld [vmem:[%s501 + $0xc88] sm:$0xff]
        %v2604 = vld [vmem:[%s501 + $0xc90] sm:$0xff]
        %v2605 = vld [vmem:[%s501 + $0xc98] sm:$0xff]
        %v2606 = vld [vmem:[%s501 + $0xca0] sm:$0xff]
        %v2607 = vld [vmem:[%s501 + $0xca8] sm:$0xff]
        %v2608 = vld [vmem:[%s501 + $0xcb0] sm:$0xff]
        %v2609 = vld [vmem:[%s501 + $0xcb8] sm:$0xff]
        %v2610 = vld [vmem:[%s501 + $0xcc0] sm:$0xff]
        %v2611 = vld [vmem:[%s501 + $0xcc8] sm:$0xff]
        %v2612 = vld [vmem:[%s501 + $0xcd0] sm:$0xff]
        %v2613 = vld [vmem:[%s501 + $0xcd8] sm:$0xff]
        %v2614 = vld [vmem:[%s501 + $0xce0] sm:$0xff]
        %v2615 = vld [vmem:[%s501 + $0xce8] sm:$0xff]
        %v2616 = vld [vmem:[%s501 + $0xcf0] sm:$0xff]
        %v2617 = vld [vmem:[%s501 + $0xcf8] sm:$0xff]
        %v2618 = vld [vmem:[%s501 + $0xd00] sm:$0xff]
        %v2619 = vld [vmem:[%s501 + $0xd08] sm:$0xff]
        %v2620 = vld [vmem:[%s501 + $0xd10] sm:$0xff]
        %v2621 = vld [vmem:[%s501 + $0xd18] sm:$0xff]
        %v2622 = vld [vmem:[%s501 + $0xd20] sm:$0xff]
        %v2623 = vld [vmem:[%s501 + $0xd28] sm:$0xff]
        %v2624 = vld [vmem:[%s501 + $0xd30] sm:$0xff]
        %v2625 = vld [vmem:[%s501 + $0xd38] sm:$0xff]
        %v2626 = vld [vmem:[%s501 + $0xd40] sm:$0xff]
        %v2627 = vld [vmem:[%s501 + $0xd48] sm:$0xff]
        %v2628 = vld [vmem:[%s501 + $0xd50] sm:$0xff]
        %v2629 = vld [vmem:[%s501 + $0xd58] sm:$0xff]
        %v2630 = vld [vmem:[%s501 + $0xd60] sm:$0xff]
        %v2631 = vld [vmem:[%s501 + $0xd68] sm:$0xff]
        %v2632 = vld [vmem:[%s501 + $0xd70] sm:$0xff]
        %v2633 = vld [vmem:[%s501 + $0xd78] sm:$0xff]
        %v2634 = vld [vmem:[%s501 + $0xd80] sm:$0xff]
        %v2635 = vld [vmem:[%s501 + $0xd88] sm:$0xff]
        %v2636 = vld [vmem:[%s501 + $0xd90] sm:$0xff]
        %v2637 = vld [vmem:[%s501 + $0xd98] sm:$0xff]
        %v2638 = vld [vmem:[%s501 + $0xda0] sm:$0xff]
        %v2639 = vld [vmem:[%s501 + $0xda8] sm:$0xff]
        %v2640 = vld [vmem:[%s501 + $0xdb0] sm:$0xff]
        %v2641 = vld [vmem:[%s501 + $0xdb8] sm:$0xff]
        %v2642 = vld [vmem:[%s501 + $0xdc0] sm:$0xff]
        %v2643 = vld [vmem:[%s501 + $0xdc8] sm:$0xff]
        %v2644 = vld [vmem:[%s501 + $0xdd0] sm:$0xff]
        %v2645 = vld [vmem:[%s501 + $0xdd8] sm:$0xff]
        %v2646 = vld [vmem:[%s501 + $0xde0] sm:$0xff]
        %v2647 = vld [vmem:[%s501 + $0xde8] sm:$0xff]
        %v2648 = vld [vmem:[%s501 + $0xdf0] sm:$0xff]
        %v2649 = vld [vmem:[%s501 + $0xdf8] sm:$0xff]
        %v2650 = vld [vmem:[%s501 + $0xe00] sm:$0xff]
        %v2651 = vld [vmem:[%s501 + $0xe08] sm:$0xff]
        %v2652 = vld [vmem:[%s501 + $0xe10] sm:$0xff]
        %v2653 = vld [vmem:[%s501 + $0xe18] sm:$0xff]
        %v2654 = vld [vmem:[%s501 + $0xe20] sm:$0xff]
        %v2655 = vld [vmem:[%s501 + $0xe28] sm:$0xff]
        %v2656 = vld [vmem:[%s501 + $0xe30] sm:$0xff]
        %v2657 = vld [vmem:[%s501 + $0xe38] sm:$0xff]
        %v2658 = vld [vmem:[%s501 + $0xe40] sm:$0xff]
        %v2659 = vld [vmem:[%s501 + $0xe48] sm:$0xff]
        %v2660 = vld [vmem:[%s501 + $0xe50] sm:$0xff]
        %v2661 = vld [vmem:[%s501 + $0xe58] sm:$0xff]
        %v2662 = vld [vmem:[%s501 + $0xe60] sm:$0xff]
        %v2663 = vld [vmem:[%s501 + $0xe68] sm:$0xff]
        %v2664 = vld [vmem:[%s501 + $0xe70] sm:$0xff]
        %v2665 = vld [vmem:[%s501 + $0xe78] sm:$0xff]
        %v2666 = vld [vmem:[%s501 + $0xe80] sm:$0xff]
        %v2667 = vld [vmem:[%s501 + $0xe88] sm:$0xff]
        %v2668 = vld [vmem:[%s501 + $0xe90] sm:$0xff]
        %v2669 = vld [vmem:[%s501 + $0xe98] sm:$0xff]
        %v2670 = vld [vmem:[%s501 + $0xea0] sm:$0xff]
        %v2671 = vld [vmem:[%s501 + $0xea8] sm:$0xff]
        %v2672 = vld [vmem:[%s501 + $0xeb0] sm:$0xff]
        %v2673 = vld [vmem:[%s501 + $0xeb8] sm:$0xff]
        %v2674 = vld [vmem:[%s501 + $0xec0] sm:$0xff]
        %v2675 = vld [vmem:[%s501 + $0xec8] sm:$0xff]
        %v2676 = vld [vmem:[%s501 + $0xed0] sm:$0xff]
        %v2677 = vld [vmem:[%s501 + $0xed8] sm:$0xff]
        %v2678 = vld [vmem:[%s501 + $0xee0] sm:$0xff]
        %v2679 = vld [vmem:[%s501 + $0xee8] sm:$0xff]
        %v2680 = vld [vmem:[%s501 + $0xef0] sm:$0xff]
        %v2681 = vld [vmem:[%s501 + $0xef8] sm:$0xff]
        %v2682 = vld [vmem:[%s501 + $0xf00] sm:$0xff]
        %v2683 = vld [vmem:[%s501 + $0xf08] sm:$0xff]
        %v2684 = vld [vmem:[%s501 + $0xf10] sm:$0xff]
        %v2685 = vld [vmem:[%s501 + $0xf18] sm:$0xff]
        %v2686 = vld [vmem:[%s501 + $0xf20] sm:$0xff]
        %v2687 = vld [vmem:[%s501 + $0xf28] sm:$0xff]
        %v2688 = vld [vmem:[%s501 + $0xf30] sm:$0xff]
        %v2689 = vld [vmem:[%s501 + $0xf38] sm:$0xff]
        %v2690 = vld [vmem:[%s501 + $0xf40] sm:$0xff]
        %v2691 = vld [vmem:[%s501 + $0xf48] sm:$0xff]
        %v2692 = vld [vmem:[%s501 + $0xf50] sm:$0xff]
        %v2693 = vld [vmem:[%s501 + $0xf58] sm:$0xff]
        %v2694 = vld [vmem:[%s501 + $0xf60] sm:$0xff]
        %v2695 = vld [vmem:[%s501 + $0xf68] sm:$0xff]
        %v2696 = vld [vmem:[%s501 + $0xf70] sm:$0xff]
        %v2697 = vld [vmem:[%s501 + $0xf78] sm:$0xff]
        %v2698 = vld [vmem:[%s501 + $0xf80] sm:$0xff]
        %v2699 = vld [vmem:[%s501 + $0xf88] sm:$0xff]
        %v2700 = vld [vmem:[%s501 + $0xf90] sm:$0xff]
        %v2701 = vld [vmem:[%s501 + $0xf98] sm:$0xff]
        %v2702 = vld [vmem:[%s501 + $0xfa0] sm:$0xff]
        %v2703 = vld [vmem:[%s501 + $0xfa8] sm:$0xff]
        %v2704 = vld [vmem:[%s501 + $0xfb0] sm:$0xff]
        %v2705 = vld [vmem:[%s501 + $0xfb8] sm:$0xff]
        %v2706 = vld [vmem:[%s501 + $0xfc0] sm:$0xff]
        %v2707 = vld [vmem:[%s501 + $0xfc8] sm:$0xff]
        %v2708 = vld [vmem:[%s501 + $0xfd0] sm:$0xff]
        %v2709 = vld [vmem:[%s501 + $0xfd8] sm:$0xff]
        %v2710 = vld [vmem:[%s501 + $0xfe0] sm:$0xff]
        %v2711 = vld [vmem:[%s501 + $0xfe8] sm:$0xff]
        %v2712 = vld [vmem:[%s501 + $0xff0] sm:$0xff]
        %v2713 = vld [vmem:[%s501 + $0xff8] sm:$0xff]
        %v2714 = vld [vmem:[%s510] sm:$0xf]
        %v2716 = vlaneseq
        %v2717 = vshrl.u32 %v2716, 7
        %v2718 = vsub.s32 0, %v2717
        %v2719 = vrot.slane %v2714, %v2718
        %v2720 = vlaneseq
        %v2721 = vshrl.u32 %v2720, 7
        %v2722 = vsub.s32 1, %v2721
        %v2723 = vrot.slane %v2714, %v2722
        %v2724 = vlaneseq
        %v2725 = vshrl.u32 %v2724, 7
        %v2726 = vsub.s32 2, %v2725
        %v2727 = vrot.slane %v2714, %v2726
        %v2728 = vlaneseq
        %v2729 = vshrl.u32 %v2728, 7
        %v2730 = vsub.s32 3, %v2729
        %v2731 = vrot.slane %v2714, %v2730
        %v2738 = vcombine.high %v593, %v593
        %v2740 = vunpack.c.l.s4 1966171168
        %v2741 = vunpack.c.0.s8 %v2740
        %v2742 = vlaneseq
        %v2743 = vshrl.u32 %v2742, 7
        %v2744 = vsub.s32 %v2741, %v2743
        %v2745 = vrot.slane %v593, %v2744
        %v2747 = vunpack.c.l.s4 1966171168
        %v2748 = vunpack.c.0.s8 %v2747
        %v2749 = vlaneseq
        %v2750 = vshrl.u32 %v2749, 7
        %v2751 = vsub.s32 %v2748, %v2750
        %v2752 = vrot.slane %v2738, %v2751
        %v2753 = vcombine.high %v2745, %v2745
        %v2754 = vcombine.high %v2752, %v2752
        %v2756 = vunpack.c.l.s4 1966171168
        %v2757 = vunpack.c.0.s8 %v2756
        %v2758 = vlaneseq
        %v2759 = vshrl.u32 %v2758, 7
        %v2760 = vsub.s32 %v2757, %v2759
        %v2761 = vrot.slane %v2745, %v2760
        %v2763 = vunpack.c.l.s4 1966171168
        %v2764 = vunpack.c.0.s8 %v2763
        %v2765 = vlaneseq
        %v2766 = vshrl.u32 %v2765, 7
        %v2767 = vsub.s32 %v2764, %v2766
        %v2768 = vrot.slane %v2752, %v2767
        %v2770 = vunpack.c.l.s4 1966171168
        %v2771 = vunpack.c.0.s8 %v2770
        %v2772 = vlaneseq
        %v2773 = vshrl.u32 %v2772, 7
        %v2774 = vsub.s32 %v2771, %v2773
        %v2775 = vrot.slane %v2753, %v2774
        %v2777 = vunpack.c.l.s4 1966171168
        %v2778 = vunpack.c.0.s8 %v2777
        %v2779 = vlaneseq
        %v2780 = vshrl.u32 %v2779, 7
        %v2781 = vsub.s32 %v2778, %v2780
        %v2782 = vrot.slane %v2754, %v2781
        %v2783 = vcombine.high %v2761, %v2761
        %v2784 = vcombine.high %v2768, %v2768
        %v2785 = vcombine.high %v2775, %v2775
        %v2786 = vcombine.high %v2782, %v2782
        %v2787 = vcombine.high %v594, %v594
        %v2789 = vunpack.c.l.s4 1966171168
        %v2790 = vunpack.c.0.s8 %v2789
        %v2791 = vlaneseq
        %v2792 = vshrl.u32 %v2791, 7
        %v2793 = vsub.s32 %v2790, %v2792
        %v2794 = vrot.slane %v594, %v2793
        %v2796 = vunpack.c.l.s4 1966171168
        %v2797 = vunpack.c.0.s8 %v2796
        %v2798 = vlaneseq
        %v2799 = vshrl.u32 %v2798, 7
        %v2800 = vsub.s32 %v2797, %v2799
        %v2801 = vrot.slane %v2787, %v2800
        %v2802 = vcombine.high %v2794, %v2794
        %v2803 = vcombine.high %v2801, %v2801
        %v2805 = vunpack.c.l.s4 1966171168
        %v2806 = vunpack.c.0.s8 %v2805
        %v2807 = vlaneseq
        %v2808 = vshrl.u32 %v2807, 7
        %v2809 = vsub.s32 %v2806, %v2808
        %v2810 = vrot.slane %v2794, %v2809
        %v2812 = vunpack.c.l.s4 1966171168
        %v2813 = vunpack.c.0.s8 %v2812
        %v2814 = vlaneseq
        %v2815 = vshrl.u32 %v2814, 7
        %v2816 = vsub.s32 %v2813, %v2815
        %v2817 = vrot.slane %v2801, %v2816
        %v2819 = vunpack.c.l.s4 1966171168
        %v2820 = vunpack.c.0.s8 %v2819
        %v2821 = vlaneseq
        %v2822 = vshrl.u32 %v2821, 7
        %v2823 = vsub.s32 %v2820, %v2822
        %v2824 = vrot.slane %v2802, %v2823
        %v2826 = vunpack.c.l.s4 1966171168
        %v2827 = vunpack.c.0.s8 %v2826
        %v2828 = vlaneseq
        %v2829 = vshrl.u32 %v2828, 7
        %v2830 = vsub.s32 %v2827, %v2829
        %v2831 = vrot.slane %v2803, %v2830
        %v2832 = vcombine.high %v2810, %v2810
        %v2833 = vcombine.high %v2817, %v2817
        %v2834 = vcombine.high %v2824, %v2824
        %v2835 = vcombine.high %v2831, %v2831
        %v3364 = vunpack.c.l.b16 %v2202
        %v3365 = vunpack.c.h.b16 %v2202
        %v3366 = vunpack.c.l.b16 %v2203
        %v3367 = vunpack.c.h.b16 %v2203
        %v3368 = vunpack.c.l.b16 %v2204
        %v3369 = vunpack.c.h.b16 %v2204
        %v3370 = vunpack.c.l.b16 %v2205
        %v3371 = vunpack.c.h.b16 %v2205
        %v3372 = vunpack.c.l.b16 %v2206
        %v3373 = vunpack.c.h.b16 %v2206
        %v3374 = vunpack.c.l.b16 %v2207
        %v3375 = vunpack.c.h.b16 %v2207
        %v3376 = vunpack.c.l.b16 %v2208
        %v3377 = vunpack.c.h.b16 %v2208
        %v3378 = vunpack.c.l.b16 %v2209
        %v3379 = vunpack.c.h.b16 %v2209
        %v3380 = vunpack.c.l.b16 %v2210
        %v3381 = vunpack.c.h.b16 %v2210
        %v3382 = vunpack.c.l.b16 %v2211
        %v3383 = vunpack.c.h.b16 %v2211
        %v3384 = vunpack.c.l.b16 %v2212
        %v3385 = vunpack.c.h.b16 %v2212
        %v3386 = vunpack.c.l.b16 %v2213
        %v3387 = vunpack.c.h.b16 %v2213
        %v3388 = vunpack.c.l.b16 %v2214
        %v3389 = vunpack.c.h.b16 %v2214
        %v3390 = vunpack.c.l.b16 %v2215
        %v3391 = vunpack.c.h.b16 %v2215
        %v3392 = vunpack.c.l.b16 %v2216
        %v3393 = vunpack.c.h.b16 %v2216
        %v3394 = vunpack.c.l.b16 %v2217
        %v3395 = vunpack.c.h.b16 %v2217
        %v3396 = vunpack.c.l.b16 %v2218
        %v3397 = vunpack.c.h.b16 %v2218
        %v3398 = vunpack.c.l.b16 %v2219
        %v3399 = vunpack.c.h.b16 %v2219
        %v3400 = vunpack.c.l.b16 %v2220
        %v3401 = vunpack.c.h.b16 %v2220
        %v3402 = vunpack.c.l.b16 %v2221
        %v3403 = vunpack.c.h.b16 %v2221
        %v3404 = vunpack.c.l.b16 %v2222
        %v3405 = vunpack.c.h.b16 %v2222
        %v3406 = vunpack.c.l.b16 %v2223
        %v3407 = vunpack.c.h.b16 %v2223
        %v3408 = vunpack.c.l.b16 %v2224
        %v3409 = vunpack.c.h.b16 %v2224
        %v3410 = vunpack.c.l.b16 %v2225
        %v3411 = vunpack.c.h.b16 %v2225
        %v3412 = vunpack.c.l.b16 %v2226
        %v3413 = vunpack.c.h.b16 %v2226
        %v3414 = vunpack.c.l.b16 %v2227
        %v3415 = vunpack.c.h.b16 %v2227
        %v3416 = vunpack.c.l.b16 %v2228
        %v3417 = vunpack.c.h.b16 %v2228
        %v3418 = vunpack.c.l.b16 %v2229
        %v3419 = vunpack.c.h.b16 %v2229
        %v3420 = vunpack.c.l.b16 %v2230
        %v3421 = vunpack.c.h.b16 %v2230
        %v3422 = vunpack.c.l.b16 %v2231
        %v3423 = vunpack.c.h.b16 %v2231
        %v3424 = vunpack.c.l.b16 %v2232
        %v3425 = vunpack.c.h.b16 %v2232
        %v3426 = vunpack.c.l.b16 %v2233
        %v3427 = vunpack.c.h.b16 %v2233
        %v3428 = vunpack.c.l.b16 %v2234
        %v3429 = vunpack.c.h.b16 %v2234
        %v3430 = vunpack.c.l.b16 %v2235
        %v3431 = vunpack.c.h.b16 %v2235
        %v3432 = vunpack.c.l.b16 %v2236
        %v3433 = vunpack.c.h.b16 %v2236
        %v3434 = vunpack.c.l.b16 %v2237
        %v3435 = vunpack.c.h.b16 %v2237
        %v3436 = vunpack.c.l.b16 %v2238
        %v3437 = vunpack.c.h.b16 %v2238
        %v3438 = vunpack.c.l.b16 %v2239
        %v3439 = vunpack.c.h.b16 %v2239
        %v3440 = vunpack.c.l.b16 %v2240
        %v3441 = vunpack.c.h.b16 %v2240
        %v3442 = vunpack.c.l.b16 %v2241
        %v3443 = vunpack.c.h.b16 %v2241
        %v3444 = vunpack.c.l.b16 %v2242
        %v3445 = vunpack.c.h.b16 %v2242
        %v3446 = vunpack.c.l.b16 %v2243
        %v3447 = vunpack.c.h.b16 %v2243
        %v3448 = vunpack.c.l.b16 %v2244
        %v3449 = vunpack.c.h.b16 %v2244
        %v3450 = vunpack.c.l.b16 %v2245
        %v3451 = vunpack.c.h.b16 %v2245
        %v3452 = vunpack.c.l.b16 %v2246
        %v3453 = vunpack.c.h.b16 %v2246
        %v3454 = vunpack.c.l.b16 %v2247
        %v3455 = vunpack.c.h.b16 %v2247
        %v3456 = vunpack.c.l.b16 %v2248
        %v3457 = vunpack.c.h.b16 %v2248
        %v3458 = vunpack.c.l.b16 %v2249
        %v3459 = vunpack.c.h.b16 %v2249
        %v3460 = vunpack.c.l.b16 %v2250
        %v3461 = vunpack.c.h.b16 %v2250
        %v3462 = vunpack.c.l.b16 %v2251
        %v3463 = vunpack.c.h.b16 %v2251
        %v3464 = vunpack.c.l.b16 %v2252
        %v3465 = vunpack.c.h.b16 %v2252
        %v3466 = vunpack.c.l.b16 %v2253
        %v3467 = vunpack.c.h.b16 %v2253
        %v3468 = vunpack.c.l.b16 %v2254
        %v3469 = vunpack.c.h.b16 %v2254
        %v3470 = vunpack.c.l.b16 %v2255
        %v3471 = vunpack.c.h.b16 %v2255
        %v3472 = vunpack.c.l.b16 %v2256
        %v3473 = vunpack.c.h.b16 %v2256
        %v3474 = vunpack.c.l.b16 %v2257
        %v3475 = vunpack.c.h.b16 %v2257
        %v3476 = vunpack.c.l.b16 %v2258
        %v3477 = vunpack.c.h.b16 %v2258
        %v3478 = vunpack.c.l.b16 %v2259
        %v3479 = vunpack.c.h.b16 %v2259
        %v3480 = vunpack.c.l.b16 %v2260
        %v3481 = vunpack.c.h.b16 %v2260
        %v3482 = vunpack.c.l.b16 %v2261
        %v3483 = vunpack.c.h.b16 %v2261
        %v3484 = vunpack.c.l.b16 %v2262
        %v3485 = vunpack.c.h.b16 %v2262
        %v3486 = vunpack.c.l.b16 %v2263
        %v3487 = vunpack.c.h.b16 %v2263
        %v3488 = vunpack.c.l.b16 %v2264
        %v3489 = vunpack.c.h.b16 %v2264
        %v3490 = vunpack.c.l.b16 %v2265
        %v3491 = vunpack.c.h.b16 %v2265
        %v3492 = vunpack.c.l.b16 %v2266
        %v3493 = vunpack.c.h.b16 %v2266
        %v3494 = vunpack.c.l.b16 %v2267
        %v3495 = vunpack.c.h.b16 %v2267
        %v3496 = vunpack.c.l.b16 %v2268
        %v3497 = vunpack.c.h.b16 %v2268
        %v3498 = vunpack.c.l.b16 %v2269
        %v3499 = vunpack.c.h.b16 %v2269
        %v3500 = vunpack.c.l.b16 %v2270
        %v3501 = vunpack.c.h.b16 %v2270
        %v3502 = vunpack.c.l.b16 %v2271
        %v3503 = vunpack.c.h.b16 %v2271
        %v3504 = vunpack.c.l.b16 %v2272
        %v3505 = vunpack.c.h.b16 %v2272
        %v3506 = vunpack.c.l.b16 %v2273
        %v3507 = vunpack.c.h.b16 %v2273
        %v3508 = vunpack.c.l.b16 %v2274
        %v3509 = vunpack.c.h.b16 %v2274
        %v3510 = vunpack.c.l.b16 %v2275
        %v3511 = vunpack.c.h.b16 %v2275
        %v3512 = vunpack.c.l.b16 %v2276
        %v3513 = vunpack.c.h.b16 %v2276
        %v3514 = vunpack.c.l.b16 %v2277
        %v3515 = vunpack.c.h.b16 %v2277
        %v3516 = vunpack.c.l.b16 %v2278
        %v3517 = vunpack.c.h.b16 %v2278
        %v3518 = vunpack.c.l.b16 %v2279
        %v3519 = vunpack.c.h.b16 %v2279
        %v3520 = vunpack.c.l.b16 %v2280
        %v3521 = vunpack.c.h.b16 %v2280
        %v3522 = vunpack.c.l.b16 %v2281
        %v3523 = vunpack.c.h.b16 %v2281
        %v3524 = vunpack.c.l.b16 %v2282
        %v3525 = vunpack.c.h.b16 %v2282
        %v3526 = vunpack.c.l.b16 %v2283
        %v3527 = vunpack.c.h.b16 %v2283
        %v3528 = vunpack.c.l.b16 %v2284
        %v3529 = vunpack.c.h.b16 %v2284
        %v3530 = vunpack.c.l.b16 %v2285
        %v3531 = vunpack.c.h.b16 %v2285
        %v3532 = vunpack.c.l.b16 %v2286
        %v3533 = vunpack.c.h.b16 %v2286
        %v3534 = vunpack.c.l.b16 %v2287
        %v3535 = vunpack.c.h.b16 %v2287
        %v3536 = vunpack.c.l.b16 %v2288
        %v3537 = vunpack.c.h.b16 %v2288
        %v3538 = vunpack.c.l.b16 %v2289
        %v3539 = vunpack.c.h.b16 %v2289
        %v3540 = vunpack.c.l.b16 %v2290
        %v3541 = vunpack.c.h.b16 %v2290
        %v3542 = vunpack.c.l.b16 %v2291
        %v3543 = vunpack.c.h.b16 %v2291
        %v3544 = vunpack.c.l.b16 %v2292
        %v3545 = vunpack.c.h.b16 %v2292
        %v3546 = vunpack.c.l.b16 %v2293
        %v3547 = vunpack.c.h.b16 %v2293
        %v3548 = vunpack.c.l.b16 %v2294
        %v3549 = vunpack.c.h.b16 %v2294
        %v3550 = vunpack.c.l.b16 %v2295
        %v3551 = vunpack.c.h.b16 %v2295
        %v3552 = vunpack.c.l.b16 %v2296
        %v3553 = vunpack.c.h.b16 %v2296
        %v3554 = vunpack.c.l.b16 %v2297
        %v3555 = vunpack.c.h.b16 %v2297
        %v3556 = vunpack.c.l.b16 %v2298
        %v3557 = vunpack.c.h.b16 %v2298
        %v3558 = vunpack.c.l.b16 %v2299
        %v3559 = vunpack.c.h.b16 %v2299
        %v3560 = vunpack.c.l.b16 %v2300
        %v3561 = vunpack.c.h.b16 %v2300
        %v3562 = vunpack.c.l.b16 %v2301
        %v3563 = vunpack.c.h.b16 %v2301
        %v3564 = vunpack.c.l.b16 %v2302
        %v3565 = vunpack.c.h.b16 %v2302
        %v3566 = vunpack.c.l.b16 %v2303
        %v3567 = vunpack.c.h.b16 %v2303
        %v3568 = vunpack.c.l.b16 %v2304
        %v3569 = vunpack.c.h.b16 %v2304
        %v3570 = vunpack.c.l.b16 %v2305
        %v3571 = vunpack.c.h.b16 %v2305
        %v3572 = vunpack.c.l.b16 %v2306
        %v3573 = vunpack.c.h.b16 %v2306
        %v3574 = vunpack.c.l.b16 %v2307
        %v3575 = vunpack.c.h.b16 %v2307
        %v3576 = vunpack.c.l.b16 %v2308
        %v3577 = vunpack.c.h.b16 %v2308
        %v3578 = vunpack.c.l.b16 %v2309
        %v3579 = vunpack.c.h.b16 %v2309
        %v3580 = vunpack.c.l.b16 %v2310
        %v3581 = vunpack.c.h.b16 %v2310
        %v3582 = vunpack.c.l.b16 %v2311
        %v3583 = vunpack.c.h.b16 %v2311
        %v3584 = vunpack.c.l.b16 %v2312
        %v3585 = vunpack.c.h.b16 %v2312
        %v3586 = vunpack.c.l.b16 %v2313
        %v3587 = vunpack.c.h.b16 %v2313
        %v3588 = vunpack.c.l.b16 %v2314
        %v3589 = vunpack.c.h.b16 %v2314
        %v3590 = vunpack.c.l.b16 %v2315
        %v3591 = vunpack.c.h.b16 %v2315
        %v3592 = vunpack.c.l.b16 %v2316
        %v3593 = vunpack.c.h.b16 %v2316
        %v3594 = vunpack.c.l.b16 %v2317
        %v3595 = vunpack.c.h.b16 %v2317
        %v3596 = vunpack.c.l.b16 %v2318
        %v3597 = vunpack.c.h.b16 %v2318
        %v3598 = vunpack.c.l.b16 %v2319
        %v3599 = vunpack.c.h.b16 %v2319
        %v3600 = vunpack.c.l.b16 %v2320
        %v3601 = vunpack.c.h.b16 %v2320
        %v3602 = vunpack.c.l.b16 %v2321
        %v3603 = vunpack.c.h.b16 %v2321
        %v3604 = vunpack.c.l.b16 %v2322
        %v3605 = vunpack.c.h.b16 %v2322
        %v3606 = vunpack.c.l.b16 %v2323
        %v3607 = vunpack.c.h.b16 %v2323
        %v3608 = vunpack.c.l.b16 %v2324
        %v3609 = vunpack.c.h.b16 %v2324
        %v3610 = vunpack.c.l.b16 %v2325
        %v3611 = vunpack.c.h.b16 %v2325
        %v3612 = vunpack.c.l.b16 %v2326
        %v3613 = vunpack.c.h.b16 %v2326
        %v3614 = vunpack.c.l.b16 %v2327
        %v3615 = vunpack.c.h.b16 %v2327
        %v3616 = vunpack.c.l.b16 %v2328
        %v3617 = vunpack.c.h.b16 %v2328
        %v3618 = vunpack.c.l.b16 %v2329
        %v3619 = vunpack.c.h.b16 %v2329
        %v3620 = vunpack.c.l.b16 %v2330
        %v3621 = vunpack.c.h.b16 %v2330
        %v3622 = vunpack.c.l.b16 %v2331
        %v3623 = vunpack.c.h.b16 %v2331
        %v3624 = vunpack.c.l.b16 %v2332
        %v3625 = vunpack.c.h.b16 %v2332
        %v3626 = vunpack.c.l.b16 %v2333
        %v3627 = vunpack.c.h.b16 %v2333
        %v3628 = vunpack.c.l.b16 %v2334
        %v3629 = vunpack.c.h.b16 %v2334
        %v3630 = vunpack.c.l.b16 %v2335
        %v3631 = vunpack.c.h.b16 %v2335
        %v3632 = vunpack.c.l.b16 %v2336
        %v3633 = vunpack.c.h.b16 %v2336
        %v3634 = vunpack.c.l.b16 %v2337
        %v3635 = vunpack.c.h.b16 %v2337
        %v3636 = vunpack.c.l.b16 %v2338
        %v3637 = vunpack.c.h.b16 %v2338
        %v3638 = vunpack.c.l.b16 %v2339
        %v3639 = vunpack.c.h.b16 %v2339
        %v3640 = vunpack.c.l.b16 %v2340
        %v3641 = vunpack.c.h.b16 %v2340
        %v3642 = vunpack.c.l.b16 %v2341
        %v3643 = vunpack.c.h.b16 %v2341
        %v3644 = vunpack.c.l.b16 %v2342
        %v3645 = vunpack.c.h.b16 %v2342
        %v3646 = vunpack.c.l.b16 %v2343
        %v3647 = vunpack.c.h.b16 %v2343
        %v3648 = vunpack.c.l.b16 %v2344
        %v3649 = vunpack.c.h.b16 %v2344
        %v3650 = vunpack.c.l.b16 %v2345
        %v3651 = vunpack.c.h.b16 %v2345
        %v3652 = vunpack.c.l.b16 %v2346
        %v3653 = vunpack.c.h.b16 %v2346
        %v3654 = vunpack.c.l.b16 %v2347
        %v3655 = vunpack.c.h.b16 %v2347
        %v3656 = vunpack.c.l.b16 %v2348
        %v3657 = vunpack.c.h.b16 %v2348
        %v3658 = vunpack.c.l.b16 %v2349
        %v3659 = vunpack.c.h.b16 %v2349
        %v3660 = vunpack.c.l.b16 %v2350
        %v3661 = vunpack.c.h.b16 %v2350
        %v3662 = vunpack.c.l.b16 %v2351
        %v3663 = vunpack.c.h.b16 %v2351
        %v3664 = vunpack.c.l.b16 %v2352
        %v3665 = vunpack.c.h.b16 %v2352
        %v3666 = vunpack.c.l.b16 %v2353
        %v3667 = vunpack.c.h.b16 %v2353
        %v3668 = vunpack.c.l.b16 %v2354
        %v3669 = vunpack.c.h.b16 %v2354
        %v3670 = vunpack.c.l.b16 %v2355
        %v3671 = vunpack.c.h.b16 %v2355
        %v3672 = vunpack.c.l.b16 %v2356
        %v3673 = vunpack.c.h.b16 %v2356
        %v3674 = vunpack.c.l.b16 %v2357
        %v3675 = vunpack.c.h.b16 %v2357
        %v3676 = vunpack.c.l.b16 %v2358
        %v3677 = vunpack.c.h.b16 %v2358
        %v3678 = vunpack.c.l.b16 %v2359
        %v3679 = vunpack.c.h.b16 %v2359
        %v3680 = vunpack.c.l.b16 %v2360
        %v3681 = vunpack.c.h.b16 %v2360
        %v3682 = vunpack.c.l.b16 %v2361
        %v3683 = vunpack.c.h.b16 %v2361
        %v3684 = vunpack.c.l.b16 %v2362
        %v3685 = vunpack.c.h.b16 %v2362
        %v3686 = vunpack.c.l.b16 %v2363
        %v3687 = vunpack.c.h.b16 %v2363
        %v3688 = vunpack.c.l.b16 %v2364
        %v3689 = vunpack.c.h.b16 %v2364
        %v3690 = vunpack.c.l.b16 %v2365
        %v3691 = vunpack.c.h.b16 %v2365
        %v3692 = vunpack.c.l.b16 %v2366
        %v3693 = vunpack.c.h.b16 %v2366
        %v3694 = vunpack.c.l.b16 %v2367
        %v3695 = vunpack.c.h.b16 %v2367
        %v3696 = vunpack.c.l.b16 %v2368
        %v3697 = vunpack.c.h.b16 %v2368
        %v3698 = vunpack.c.l.b16 %v2369
        %v3699 = vunpack.c.h.b16 %v2369
        %v3700 = vunpack.c.l.b16 %v2370
        %v3701 = vunpack.c.h.b16 %v2370
        %v3702 = vunpack.c.l.b16 %v2371
        %v3703 = vunpack.c.h.b16 %v2371
        %v3704 = vunpack.c.l.b16 %v2372
        %v3705 = vunpack.c.h.b16 %v2372
        %v3706 = vunpack.c.l.b16 %v2373
        %v3707 = vunpack.c.h.b16 %v2373
        %v3708 = vunpack.c.l.b16 %v2374
        %v3709 = vunpack.c.h.b16 %v2374
        %v3710 = vunpack.c.l.b16 %v2375
        %v3711 = vunpack.c.h.b16 %v2375
        %v3712 = vunpack.c.l.b16 %v2376
        %v3713 = vunpack.c.h.b16 %v2376
        %v3714 = vunpack.c.l.b16 %v2377
        %v3715 = vunpack.c.h.b16 %v2377
        %v3716 = vunpack.c.l.b16 %v2378
        %v3717 = vunpack.c.h.b16 %v2378
        %v3718 = vunpack.c.l.b16 %v2379
        %v3719 = vunpack.c.h.b16 %v2379
        %v3720 = vunpack.c.l.b16 %v2380
        %v3721 = vunpack.c.h.b16 %v2380
        %v3722 = vunpack.c.l.b16 %v2381
        %v3723 = vunpack.c.h.b16 %v2381
        %v3724 = vunpack.c.l.b16 %v2382
        %v3725 = vunpack.c.h.b16 %v2382
        %v3726 = vunpack.c.l.b16 %v2383
        %v3727 = vunpack.c.h.b16 %v2383
        %v3728 = vunpack.c.l.b16 %v2384
        %v3729 = vunpack.c.h.b16 %v2384
        %v3730 = vunpack.c.l.b16 %v2385
        %v3731 = vunpack.c.h.b16 %v2385
        %v3732 = vunpack.c.l.b16 %v2386
        %v3733 = vunpack.c.h.b16 %v2386
        %v3734 = vunpack.c.l.b16 %v2387
        %v3735 = vunpack.c.h.b16 %v2387
        %v3736 = vunpack.c.l.b16 %v2388
        %v3737 = vunpack.c.h.b16 %v2388
        %v3738 = vunpack.c.l.b16 %v2389
        %v3739 = vunpack.c.h.b16 %v2389
        %v3740 = vunpack.c.l.b16 %v2390
        %v3741 = vunpack.c.h.b16 %v2390
        %v3742 = vunpack.c.l.b16 %v2391
        %v3743 = vunpack.c.h.b16 %v2391
        %v3744 = vunpack.c.l.b16 %v2392
        %v3745 = vunpack.c.h.b16 %v2392
        %v3746 = vunpack.c.l.b16 %v2393
        %v3747 = vunpack.c.h.b16 %v2393
        %v3748 = vunpack.c.l.b16 %v2394
        %v3749 = vunpack.c.h.b16 %v2394
        %v3750 = vunpack.c.l.b16 %v2395
        %v3751 = vunpack.c.h.b16 %v2395
        %v3752 = vunpack.c.l.b16 %v2396
        %v3753 = vunpack.c.h.b16 %v2396
        %v3754 = vunpack.c.l.b16 %v2397
        %v3755 = vunpack.c.h.b16 %v2397
        %v3756 = vunpack.c.l.b16 %v2398
        %v3757 = vunpack.c.h.b16 %v2398
        %v3758 = vunpack.c.l.b16 %v2399
        %v3759 = vunpack.c.h.b16 %v2399
        %v3760 = vunpack.c.l.b16 %v2400
        %v3761 = vunpack.c.h.b16 %v2400
        %v3762 = vunpack.c.l.b16 %v2401
        %v3763 = vunpack.c.h.b16 %v2401
        %v3764 = vunpack.c.l.b16 %v2402
        %v3765 = vunpack.c.h.b16 %v2402
        %v3766 = vunpack.c.l.b16 %v2403
        %v3767 = vunpack.c.h.b16 %v2403
        %v3768 = vunpack.c.l.b16 %v2404
        %v3769 = vunpack.c.h.b16 %v2404
        %v3770 = vunpack.c.l.b16 %v2405
        %v3771 = vunpack.c.h.b16 %v2405
        %v3772 = vunpack.c.l.b16 %v2406
        %v3773 = vunpack.c.h.b16 %v2406
        %v3774 = vunpack.c.l.b16 %v2407
        %v3775 = vunpack.c.h.b16 %v2407
        %v3776 = vunpack.c.l.b16 %v2408
        %v3777 = vunpack.c.h.b16 %v2408
        %v3778 = vunpack.c.l.b16 %v2409
        %v3779 = vunpack.c.h.b16 %v2409
        %v3780 = vunpack.c.l.b16 %v2410
        %v3781 = vunpack.c.h.b16 %v2410
        %v3782 = vunpack.c.l.b16 %v2411
        %v3783 = vunpack.c.h.b16 %v2411
        %v3784 = vunpack.c.l.b16 %v2412
        %v3785 = vunpack.c.h.b16 %v2412
        %v3786 = vunpack.c.l.b16 %v2413
        %v3787 = vunpack.c.h.b16 %v2413
        %v3788 = vunpack.c.l.b16 %v2414
        %v3789 = vunpack.c.h.b16 %v2414
        %v3790 = vunpack.c.l.b16 %v2415
        %v3791 = vunpack.c.h.b16 %v2415
        %v3792 = vunpack.c.l.b16 %v2416
        %v3793 = vunpack.c.h.b16 %v2416
        %v3794 = vunpack.c.l.b16 %v2417
        %v3795 = vunpack.c.h.b16 %v2417
        %v3796 = vunpack.c.l.b16 %v2418
        %v3797 = vunpack.c.h.b16 %v2418
        %v3798 = vunpack.c.l.b16 %v2419
        %v3799 = vunpack.c.h.b16 %v2419
        %v3800 = vunpack.c.l.b16 %v2420
        %v3801 = vunpack.c.h.b16 %v2420
        %v3802 = vunpack.c.l.b16 %v2421
        %v3803 = vunpack.c.h.b16 %v2421
        %v3804 = vunpack.c.l.b16 %v2422
        %v3805 = vunpack.c.h.b16 %v2422
        %v3806 = vunpack.c.l.b16 %v2423
        %v3807 = vunpack.c.h.b16 %v2423
        %v3808 = vunpack.c.l.b16 %v2424
        %v3809 = vunpack.c.h.b16 %v2424
        %v3810 = vunpack.c.l.b16 %v2425
        %v3811 = vunpack.c.h.b16 %v2425
        %v3812 = vunpack.c.l.b16 %v2426
        %v3813 = vunpack.c.h.b16 %v2426
        %v3814 = vunpack.c.l.b16 %v2427
        %v3815 = vunpack.c.h.b16 %v2427
        %v3816 = vunpack.c.l.b16 %v2428
        %v3817 = vunpack.c.h.b16 %v2428
        %v3818 = vunpack.c.l.b16 %v2429
        %v3819 = vunpack.c.h.b16 %v2429
        %v3820 = vunpack.c.l.b16 %v2430
        %v3821 = vunpack.c.h.b16 %v2430
        %v3822 = vunpack.c.l.b16 %v2431
        %v3823 = vunpack.c.h.b16 %v2431
        %v3824 = vunpack.c.l.b16 %v2432
        %v3825 = vunpack.c.h.b16 %v2432
        %v3826 = vunpack.c.l.b16 %v2433
        %v3827 = vunpack.c.h.b16 %v2433
        %v3828 = vunpack.c.l.b16 %v2434
        %v3829 = vunpack.c.h.b16 %v2434
        %v3830 = vunpack.c.l.b16 %v2435
        %v3831 = vunpack.c.h.b16 %v2435
        %v3832 = vunpack.c.l.b16 %v2436
        %v3833 = vunpack.c.h.b16 %v2436
        %v3834 = vunpack.c.l.b16 %v2437
        %v3835 = vunpack.c.h.b16 %v2437
        %v3836 = vunpack.c.l.b16 %v2438
        %v3837 = vunpack.c.h.b16 %v2438
        %v3838 = vunpack.c.l.b16 %v2439
        %v3839 = vunpack.c.h.b16 %v2439
        %v3840 = vunpack.c.l.b16 %v2440
        %v3841 = vunpack.c.h.b16 %v2440
        %v3842 = vunpack.c.l.b16 %v2441
        %v3843 = vunpack.c.h.b16 %v2441
        %v3844 = vunpack.c.l.b16 %v2442
        %v3845 = vunpack.c.h.b16 %v2442
        %v3846 = vunpack.c.l.b16 %v2443
        %v3847 = vunpack.c.h.b16 %v2443
        %v3848 = vunpack.c.l.b16 %v2444
        %v3849 = vunpack.c.h.b16 %v2444
        %v3850 = vunpack.c.l.b16 %v2445
        %v3851 = vunpack.c.h.b16 %v2445
        %v3852 = vunpack.c.l.b16 %v2446
        %v3853 = vunpack.c.h.b16 %v2446
        %v3854 = vunpack.c.l.b16 %v2447
        %v3855 = vunpack.c.h.b16 %v2447
        %v3856 = vunpack.c.l.b16 %v2448
        %v3857 = vunpack.c.h.b16 %v2448
        %v3858 = vunpack.c.l.b16 %v2449
        %v3859 = vunpack.c.h.b16 %v2449
        %v3860 = vunpack.c.l.b16 %v2450
        %v3861 = vunpack.c.h.b16 %v2450
        %v3862 = vunpack.c.l.b16 %v2451
        %v3863 = vunpack.c.h.b16 %v2451
        %v3864 = vunpack.c.l.b16 %v2452
        %v3865 = vunpack.c.h.b16 %v2452
        %v3866 = vunpack.c.l.b16 %v2453
        %v3867 = vunpack.c.h.b16 %v2453
        %v3868 = vunpack.c.l.b16 %v2454
        %v3869 = vunpack.c.h.b16 %v2454
        %v3870 = vunpack.c.l.b16 %v2455
        %v3871 = vunpack.c.h.b16 %v2455
        %v3872 = vunpack.c.l.b16 %v2456
        %v3873 = vunpack.c.h.b16 %v2456
        %v3874 = vunpack.c.l.b16 %v2457
        %v3875 = vunpack.c.h.b16 %v2457
        %v3876 = vunpack.c.l.b16 %v2458
        %v3877 = vunpack.c.h.b16 %v2458
        %v3878 = vunpack.c.l.b16 %v2459
        %v3879 = vunpack.c.h.b16 %v2459
        %v3880 = vunpack.c.l.b16 %v2460
        %v3881 = vunpack.c.h.b16 %v2460
        %v3882 = vunpack.c.l.b16 %v2461
        %v3883 = vunpack.c.h.b16 %v2461
        %v3884 = vunpack.c.l.b16 %v2462
        %v3885 = vunpack.c.h.b16 %v2462
        %v3886 = vunpack.c.l.b16 %v2463
        %v3887 = vunpack.c.h.b16 %v2463
        %v3888 = vunpack.c.l.b16 %v2464
        %v3889 = vunpack.c.h.b16 %v2464
        %v3890 = vunpack.c.l.b16 %v2465
        %v3891 = vunpack.c.h.b16 %v2465
        %v3892 = vunpack.c.l.b16 %v2466
        %v3893 = vunpack.c.h.b16 %v2466
        %v3894 = vunpack.c.l.b16 %v2467
        %v3895 = vunpack.c.h.b16 %v2467
        %v3896 = vunpack.c.l.b16 %v2468
        %v3897 = vunpack.c.h.b16 %v2468
        %v3898 = vunpack.c.l.b16 %v2469
        %v3899 = vunpack.c.h.b16 %v2469
        %v3900 = vunpack.c.l.b16 %v2470
        %v3901 = vunpack.c.h.b16 %v2470
        %v3902 = vunpack.c.l.b16 %v2471
        %v3903 = vunpack.c.h.b16 %v2471
        %v3904 = vunpack.c.l.b16 %v2472
        %v3905 = vunpack.c.h.b16 %v2472
        %v3906 = vunpack.c.l.b16 %v2473
        %v3907 = vunpack.c.h.b16 %v2473
        %v3908 = vunpack.c.l.b16 %v2474
        %v3909 = vunpack.c.h.b16 %v2474
        %v3910 = vunpack.c.l.b16 %v2475
        %v3911 = vunpack.c.h.b16 %v2475
        %v3912 = vunpack.c.l.b16 %v2476
        %v3913 = vunpack.c.h.b16 %v2476
        %v3914 = vunpack.c.l.b16 %v2477
        %v3915 = vunpack.c.h.b16 %v2477
        %v3916 = vunpack.c.l.b16 %v2478
        %v3917 = vunpack.c.h.b16 %v2478
        %v3918 = vunpack.c.l.b16 %v2479
        %v3919 = vunpack.c.h.b16 %v2479
        %v3920 = vunpack.c.l.b16 %v2480
        %v3921 = vunpack.c.h.b16 %v2480
        %v3922 = vunpack.c.l.b16 %v2481
        %v3923 = vunpack.c.h.b16 %v2481
        %v3924 = vunpack.c.l.b16 %v2482
        %v3925 = vunpack.c.h.b16 %v2482
        %v3926 = vunpack.c.l.b16 %v2483
        %v3927 = vunpack.c.h.b16 %v2483
        %v3928 = vunpack.c.l.b16 %v2484
        %v3929 = vunpack.c.h.b16 %v2484
        %v3930 = vunpack.c.l.b16 %v2485
        %v3931 = vunpack.c.h.b16 %v2485
        %v3932 = vunpack.c.l.b16 %v2486
        %v3933 = vunpack.c.h.b16 %v2486
        %v3934 = vunpack.c.l.b16 %v2487
        %v3935 = vunpack.c.h.b16 %v2487
        %v3936 = vunpack.c.l.b16 %v2488
        %v3937 = vunpack.c.h.b16 %v2488
        %v3938 = vunpack.c.l.b16 %v2489
        %v3939 = vunpack.c.h.b16 %v2489
        %v3940 = vunpack.c.l.b16 %v2490
        %v3941 = vunpack.c.h.b16 %v2490
        %v3942 = vunpack.c.l.b16 %v2491
        %v3943 = vunpack.c.h.b16 %v2491
        %v3944 = vunpack.c.l.b16 %v2492
        %v3945 = vunpack.c.h.b16 %v2492
        %v3946 = vunpack.c.l.b16 %v2493
        %v3947 = vunpack.c.h.b16 %v2493
        %v3948 = vunpack.c.l.b16 %v2494
        %v3949 = vunpack.c.h.b16 %v2494
        %v3950 = vunpack.c.l.b16 %v2495
        %v3951 = vunpack.c.h.b16 %v2495
        %v3952 = vunpack.c.l.b16 %v2496
        %v3953 = vunpack.c.h.b16 %v2496
        %v3954 = vunpack.c.l.b16 %v2497
        %v3955 = vunpack.c.h.b16 %v2497
        %v3956 = vunpack.c.l.b16 %v2498
        %v3957 = vunpack.c.h.b16 %v2498
        %v3958 = vunpack.c.l.b16 %v2499
        %v3959 = vunpack.c.h.b16 %v2499
        %v3960 = vunpack.c.l.b16 %v2500
        %v3961 = vunpack.c.h.b16 %v2500
        %v3962 = vunpack.c.l.b16 %v2501
        %v3963 = vunpack.c.h.b16 %v2501
        %v3964 = vunpack.c.l.b16 %v2502
        %v3965 = vunpack.c.h.b16 %v2502
        %v3966 = vunpack.c.l.b16 %v2503
        %v3967 = vunpack.c.h.b16 %v2503
        %v3968 = vunpack.c.l.b16 %v2504
        %v3969 = vunpack.c.h.b16 %v2504
        %v3970 = vunpack.c.l.b16 %v2505
        %v3971 = vunpack.c.h.b16 %v2505
        %v3972 = vunpack.c.l.b16 %v2506
        %v3973 = vunpack.c.h.b16 %v2506
        %v3974 = vunpack.c.l.b16 %v2507
        %v3975 = vunpack.c.h.b16 %v2507
        %v3976 = vunpack.c.l.b16 %v2508
        %v3977 = vunpack.c.h.b16 %v2508
        %v3978 = vunpack.c.l.b16 %v2509
        %v3979 = vunpack.c.h.b16 %v2509
        %v3980 = vunpack.c.l.b16 %v2510
        %v3981 = vunpack.c.h.b16 %v2510
        %v3982 = vunpack.c.l.b16 %v2511
        %v3983 = vunpack.c.h.b16 %v2511
        %v3984 = vunpack.c.l.b16 %v2512
        %v3985 = vunpack.c.h.b16 %v2512
        %v3986 = vunpack.c.l.b16 %v2513
        %v3987 = vunpack.c.h.b16 %v2513
        %v3988 = vunpack.c.l.b16 %v2514
        %v3989 = vunpack.c.h.b16 %v2514
        %v3990 = vunpack.c.l.b16 %v2515
        %v3991 = vunpack.c.h.b16 %v2515
        %v3992 = vunpack.c.l.b16 %v2516
        %v3993 = vunpack.c.h.b16 %v2516
        %v3994 = vunpack.c.l.b16 %v2517
        %v3995 = vunpack.c.h.b16 %v2517
        %v3996 = vunpack.c.l.b16 %v2518
        %v3997 = vunpack.c.h.b16 %v2518
        %v3998 = vunpack.c.l.b16 %v2519
        %v3999 = vunpack.c.h.b16 %v2519
        %v4000 = vunpack.c.l.b16 %v2520
        %v4001 = vunpack.c.h.b16 %v2520
        %v4002 = vunpack.c.l.b16 %v2521
        %v4003 = vunpack.c.h.b16 %v2521
        %v4004 = vunpack.c.l.b16 %v2522
        %v4005 = vunpack.c.h.b16 %v2522
        %v4006 = vunpack.c.l.b16 %v2523
        %v4007 = vunpack.c.h.b16 %v2523
        %v4008 = vunpack.c.l.b16 %v2524
        %v4009 = vunpack.c.h.b16 %v2524
        %v4010 = vunpack.c.l.b16 %v2525
        %v4011 = vunpack.c.h.b16 %v2525
        %v4012 = vunpack.c.l.b16 %v2526
        %v4013 = vunpack.c.h.b16 %v2526
        %v4014 = vunpack.c.l.b16 %v2527
        %v4015 = vunpack.c.h.b16 %v2527
        %v4016 = vunpack.c.l.b16 %v2528
        %v4017 = vunpack.c.h.b16 %v2528
        %v4018 = vunpack.c.l.b16 %v2529
        %v4019 = vunpack.c.h.b16 %v2529
        %v4020 = vunpack.c.l.b16 %v2530
        %v4021 = vunpack.c.h.b16 %v2530
        %v4022 = vunpack.c.l.b16 %v2531
        %v4023 = vunpack.c.h.b16 %v2531
        %v4024 = vunpack.c.l.b16 %v2532
        %v4025 = vunpack.c.h.b16 %v2532
        %v4026 = vunpack.c.l.b16 %v2533
        %v4027 = vunpack.c.h.b16 %v2533
        %v4028 = vunpack.c.l.b16 %v2534
        %v4029 = vunpack.c.h.b16 %v2534
        %v4030 = vunpack.c.l.b16 %v2535
        %v4031 = vunpack.c.h.b16 %v2535
        %v4032 = vunpack.c.l.b16 %v2536
        %v4033 = vunpack.c.h.b16 %v2536
        %v4034 = vunpack.c.l.b16 %v2537
        %v4035 = vunpack.c.h.b16 %v2537
        %v4036 = vunpack.c.l.b16 %v2538
        %v4037 = vunpack.c.h.b16 %v2538
        %v4038 = vunpack.c.l.b16 %v2539
        %v4039 = vunpack.c.h.b16 %v2539
        %v4040 = vunpack.c.l.b16 %v2540
        %v4041 = vunpack.c.h.b16 %v2540
        %v4042 = vunpack.c.l.b16 %v2541
        %v4043 = vunpack.c.h.b16 %v2541
        %v4044 = vunpack.c.l.b16 %v2542
        %v4045 = vunpack.c.h.b16 %v2542
        %v4046 = vunpack.c.l.b16 %v2543
        %v4047 = vunpack.c.h.b16 %v2543
        %v4048 = vunpack.c.l.b16 %v2544
        %v4049 = vunpack.c.h.b16 %v2544
        %v4050 = vunpack.c.l.b16 %v2545
        %v4051 = vunpack.c.h.b16 %v2545
        %v4052 = vunpack.c.l.b16 %v2546
        %v4053 = vunpack.c.h.b16 %v2546
        %v4054 = vunpack.c.l.b16 %v2547
        %v4055 = vunpack.c.h.b16 %v2547
        %v4056 = vunpack.c.l.b16 %v2548
        %v4057 = vunpack.c.h.b16 %v2548
        %v4058 = vunpack.c.l.b16 %v2549
        %v4059 = vunpack.c.h.b16 %v2549
        %v4060 = vunpack.c.l.b16 %v2550
        %v4061 = vunpack.c.h.b16 %v2550
        %v4062 = vunpack.c.l.b16 %v2551
        %v4063 = vunpack.c.h.b16 %v2551
        %v4064 = vunpack.c.l.b16 %v2552
        %v4065 = vunpack.c.h.b16 %v2552
        %v4066 = vunpack.c.l.b16 %v2553
        %v4067 = vunpack.c.h.b16 %v2553
        %v4068 = vunpack.c.l.b16 %v2554
        %v4069 = vunpack.c.h.b16 %v2554
        %v4070 = vunpack.c.l.b16 %v2555
        %v4071 = vunpack.c.h.b16 %v2555
        %v4072 = vunpack.c.l.b16 %v2556
        %v4073 = vunpack.c.h.b16 %v2556
        %v4074 = vunpack.c.l.b16 %v2557
        %v4075 = vunpack.c.h.b16 %v2557
        %v4076 = vunpack.c.l.b16 %v2558
        %v4077 = vunpack.c.h.b16 %v2558
        %v4078 = vunpack.c.l.b16 %v2559
        %v4079 = vunpack.c.h.b16 %v2559
        %v4080 = vunpack.c.l.b16 %v2560
        %v4081 = vunpack.c.h.b16 %v2560
        %v4082 = vunpack.c.l.b16 %v2561
        %v4083 = vunpack.c.h.b16 %v2561
        %v4084 = vunpack.c.l.b16 %v2562
        %v4085 = vunpack.c.h.b16 %v2562
        %v4086 = vunpack.c.l.b16 %v2563
        %v4087 = vunpack.c.h.b16 %v2563
        %v4088 = vunpack.c.l.b16 %v2564
        %v4089 = vunpack.c.h.b16 %v2564
        %v4090 = vunpack.c.l.b16 %v2565
        %v4091 = vunpack.c.h.b16 %v2565
        %v4092 = vunpack.c.l.b16 %v2566
        %v4093 = vunpack.c.h.b16 %v2566
        %v4094 = vunpack.c.l.b16 %v2567
        %v4095 = vunpack.c.h.b16 %v2567
        %v4096 = vunpack.c.l.b16 %v2568
        %v4097 = vunpack.c.h.b16 %v2568
        %v4098 = vunpack.c.l.b16 %v2569
        %v4099 = vunpack.c.h.b16 %v2569
        %v4100 = vunpack.c.l.b16 %v2570
        %v4101 = vunpack.c.h.b16 %v2570
        %v4102 = vunpack.c.l.b16 %v2571
        %v4103 = vunpack.c.h.b16 %v2571
        %v4104 = vunpack.c.l.b16 %v2572
        %v4105 = vunpack.c.h.b16 %v2572
        %v4106 = vunpack.c.l.b16 %v2573
        %v4107 = vunpack.c.h.b16 %v2573
        %v4108 = vunpack.c.l.b16 %v2574
        %v4109 = vunpack.c.h.b16 %v2574
        %v4110 = vunpack.c.l.b16 %v2575
        %v4111 = vunpack.c.h.b16 %v2575
        %v4112 = vunpack.c.l.b16 %v2576
        %v4113 = vunpack.c.h.b16 %v2576
        %v4114 = vunpack.c.l.b16 %v2577
        %v4115 = vunpack.c.h.b16 %v2577
        %v4116 = vunpack.c.l.b16 %v2578
        %v4117 = vunpack.c.h.b16 %v2578
        %v4118 = vunpack.c.l.b16 %v2579
        %v4119 = vunpack.c.h.b16 %v2579
        %v4120 = vunpack.c.l.b16 %v2580
        %v4121 = vunpack.c.h.b16 %v2580
        %v4122 = vunpack.c.l.b16 %v2581
        %v4123 = vunpack.c.h.b16 %v2581
        %v4124 = vunpack.c.l.b16 %v2582
        %v4125 = vunpack.c.h.b16 %v2582
        %v4126 = vunpack.c.l.b16 %v2583
        %v4127 = vunpack.c.h.b16 %v2583
        %v4128 = vunpack.c.l.b16 %v2584
        %v4129 = vunpack.c.h.b16 %v2584
        %v4130 = vunpack.c.l.b16 %v2585
        %v4131 = vunpack.c.h.b16 %v2585
        %v4132 = vunpack.c.l.b16 %v2586
        %v4133 = vunpack.c.h.b16 %v2586
        %v4134 = vunpack.c.l.b16 %v2587
        %v4135 = vunpack.c.h.b16 %v2587
        %v4136 = vunpack.c.l.b16 %v2588
        %v4137 = vunpack.c.h.b16 %v2588
        %v4138 = vunpack.c.l.b16 %v2589
        %v4139 = vunpack.c.h.b16 %v2589
        %v4140 = vunpack.c.l.b16 %v2590
        %v4141 = vunpack.c.h.b16 %v2590
        %v4142 = vunpack.c.l.b16 %v2591
        %v4143 = vunpack.c.h.b16 %v2591
        %v4144 = vunpack.c.l.b16 %v2592
        %v4145 = vunpack.c.h.b16 %v2592
        %v4146 = vunpack.c.l.b16 %v2593
        %v4147 = vunpack.c.h.b16 %v2593
        %v4148 = vunpack.c.l.b16 %v2594
        %v4149 = vunpack.c.h.b16 %v2594
        %v4150 = vunpack.c.l.b16 %v2595
        %v4151 = vunpack.c.h.b16 %v2595
        %v4152 = vunpack.c.l.b16 %v2596
        %v4153 = vunpack.c.h.b16 %v2596
        %v4154 = vunpack.c.l.b16 %v2597
        %v4155 = vunpack.c.h.b16 %v2597
        %v4156 = vunpack.c.l.b16 %v2598
        %v4157 = vunpack.c.h.b16 %v2598
        %v4158 = vunpack.c.l.b16 %v2599
        %v4159 = vunpack.c.h.b16 %v2599
        %v4160 = vunpack.c.l.b16 %v2600
        %v4161 = vunpack.c.h.b16 %v2600
        %v4162 = vunpack.c.l.b16 %v2601
        %v4163 = vunpack.c.h.b16 %v2601
        %v4164 = vunpack.c.l.b16 %v2602
        %v4165 = vunpack.c.h.b16 %v2602
        %v4166 = vunpack.c.l.b16 %v2603
        %v4167 = vunpack.c.h.b16 %v2603
        %v4168 = vunpack.c.l.b16 %v2604
        %v4169 = vunpack.c.h.b16 %v2604
        %v4170 = vunpack.c.l.b16 %v2605
        %v4171 = vunpack.c.h.b16 %v2605
        %v4172 = vunpack.c.l.b16 %v2606
        %v4173 = vunpack.c.h.b16 %v2606
        %v4174 = vunpack.c.l.b16 %v2607
        %v4175 = vunpack.c.h.b16 %v2607
        %v4176 = vunpack.c.l.b16 %v2608
        %v4177 = vunpack.c.h.b16 %v2608
        %v4178 = vunpack.c.l.b16 %v2609
        %v4179 = vunpack.c.h.b16 %v2609
        %v4180 = vunpack.c.l.b16 %v2610
        %v4181 = vunpack.c.h.b16 %v2610
        %v4182 = vunpack.c.l.b16 %v2611
        %v4183 = vunpack.c.h.b16 %v2611
        %v4184 = vunpack.c.l.b16 %v2612
        %v4185 = vunpack.c.h.b16 %v2612
        %v4186 = vunpack.c.l.b16 %v2613
        %v4187 = vunpack.c.h.b16 %v2613
        %v4188 = vunpack.c.l.b16 %v2614
        %v4189 = vunpack.c.h.b16 %v2614
        %v4190 = vunpack.c.l.b16 %v2615
        %v4191 = vunpack.c.h.b16 %v2615
        %v4192 = vunpack.c.l.b16 %v2616
        %v4193 = vunpack.c.h.b16 %v2616
        %v4194 = vunpack.c.l.b16 %v2617
        %v4195 = vunpack.c.h.b16 %v2617
        %v4196 = vunpack.c.l.b16 %v2618
        %v4197 = vunpack.c.h.b16 %v2618
        %v4198 = vunpack.c.l.b16 %v2619
        %v4199 = vunpack.c.h.b16 %v2619
        %v4200 = vunpack.c.l.b16 %v2620
        %v4201 = vunpack.c.h.b16 %v2620
        %v4202 = vunpack.c.l.b16 %v2621
        %v4203 = vunpack.c.h.b16 %v2621
        %v4204 = vunpack.c.l.b16 %v2622
        %v4205 = vunpack.c.h.b16 %v2622
        %v4206 = vunpack.c.l.b16 %v2623
        %v4207 = vunpack.c.h.b16 %v2623
        %v4208 = vunpack.c.l.b16 %v2624
        %v4209 = vunpack.c.h.b16 %v2624
        %v4210 = vunpack.c.l.b16 %v2625
        %v4211 = vunpack.c.h.b16 %v2625
        %v4212 = vunpack.c.l.b16 %v2626
        %v4213 = vunpack.c.h.b16 %v2626
        %v4214 = vunpack.c.l.b16 %v2627
        %v4215 = vunpack.c.h.b16 %v2627
        %v4216 = vunpack.c.l.b16 %v2628
        %v4217 = vunpack.c.h.b16 %v2628
        %v4218 = vunpack.c.l.b16 %v2629
        %v4219 = vunpack.c.h.b16 %v2629
        %v4220 = vunpack.c.l.b16 %v2630
        %v4221 = vunpack.c.h.b16 %v2630
        %v4222 = vunpack.c.l.b16 %v2631
        %v4223 = vunpack.c.h.b16 %v2631
        %v4224 = vunpack.c.l.b16 %v2632
        %v4225 = vunpack.c.h.b16 %v2632
        %v4226 = vunpack.c.l.b16 %v2633
        %v4227 = vunpack.c.h.b16 %v2633
        %v4228 = vunpack.c.l.b16 %v2634
        %v4229 = vunpack.c.h.b16 %v2634
        %v4230 = vunpack.c.l.b16 %v2635
        %v4231 = vunpack.c.h.b16 %v2635
        %v4232 = vunpack.c.l.b16 %v2636
        %v4233 = vunpack.c.h.b16 %v2636
        %v4234 = vunpack.c.l.b16 %v2637
        %v4235 = vunpack.c.h.b16 %v2637
        %v4236 = vunpack.c.l.b16 %v2638
        %v4237 = vunpack.c.h.b16 %v2638
        %v4238 = vunpack.c.l.b16 %v2639
        %v4239 = vunpack.c.h.b16 %v2639
        %v4240 = vunpack.c.l.b16 %v2640
        %v4241 = vunpack.c.h.b16 %v2640
        %v4242 = vunpack.c.l.b16 %v2641
        %v4243 = vunpack.c.h.b16 %v2641
        %v4244 = vunpack.c.l.b16 %v2642
        %v4245 = vunpack.c.h.b16 %v2642
        %v4246 = vunpack.c.l.b16 %v2643
        %v4247 = vunpack.c.h.b16 %v2643
        %v4248 = vunpack.c.l.b16 %v2644
        %v4249 = vunpack.c.h.b16 %v2644
        %v4250 = vunpack.c.l.b16 %v2645
        %v4251 = vunpack.c.h.b16 %v2645
        %v4252 = vunpack.c.l.b16 %v2646
        %v4253 = vunpack.c.h.b16 %v2646
        %v4254 = vunpack.c.l.b16 %v2647
        %v4255 = vunpack.c.h.b16 %v2647
        %v4256 = vunpack.c.l.b16 %v2648
        %v4257 = vunpack.c.h.b16 %v2648
        %v4258 = vunpack.c.l.b16 %v2649
        %v4259 = vunpack.c.h.b16 %v2649
        %v4260 = vunpack.c.l.b16 %v2650
        %v4261 = vunpack.c.h.b16 %v2650
        %v4262 = vunpack.c.l.b16 %v2651
        %v4263 = vunpack.c.h.b16 %v2651
        %v4264 = vunpack.c.l.b16 %v2652
        %v4265 = vunpack.c.h.b16 %v2652
        %v4266 = vunpack.c.l.b16 %v2653
        %v4267 = vunpack.c.h.b16 %v2653
        %v4268 = vunpack.c.l.b16 %v2654
        %v4269 = vunpack.c.h.b16 %v2654
        %v4270 = vunpack.c.l.b16 %v2655
        %v4271 = vunpack.c.h.b16 %v2655
        %v4272 = vunpack.c.l.b16 %v2656
        %v4273 = vunpack.c.h.b16 %v2656
        %v4274 = vunpack.c.l.b16 %v2657
        %v4275 = vunpack.c.h.b16 %v2657
        %v4276 = vunpack.c.l.b16 %v2658
        %v4277 = vunpack.c.h.b16 %v2658
        %v4278 = vunpack.c.l.b16 %v2659
        %v4279 = vunpack.c.h.b16 %v2659
        %v4280 = vunpack.c.l.b16 %v2660
        %v4281 = vunpack.c.h.b16 %v2660
        %v4282 = vunpack.c.l.b16 %v2661
        %v4283 = vunpack.c.h.b16 %v2661
        %v4284 = vunpack.c.l.b16 %v2662
        %v4285 = vunpack.c.h.b16 %v2662
        %v4286 = vunpack.c.l.b16 %v2663
        %v4287 = vunpack.c.h.b16 %v2663
        %v4288 = vunpack.c.l.b16 %v2664
        %v4289 = vunpack.c.h.b16 %v2664
        %v4290 = vunpack.c.l.b16 %v2665
        %v4291 = vunpack.c.h.b16 %v2665
        %v4292 = vunpack.c.l.b16 %v2666
        %v4293 = vunpack.c.h.b16 %v2666
        %v4294 = vunpack.c.l.b16 %v2667
        %v4295 = vunpack.c.h.b16 %v2667
        %v4296 = vunpack.c.l.b16 %v2668
        %v4297 = vunpack.c.h.b16 %v2668
        %v4298 = vunpack.c.l.b16 %v2669
        %v4299 = vunpack.c.h.b16 %v2669
        %v4300 = vunpack.c.l.b16 %v2670
        %v4301 = vunpack.c.h.b16 %v2670
        %v4302 = vunpack.c.l.b16 %v2671
        %v4303 = vunpack.c.h.b16 %v2671
        %v4304 = vunpack.c.l.b16 %v2672
        %v4305 = vunpack.c.h.b16 %v2672
        %v4306 = vunpack.c.l.b16 %v2673
        %v4307 = vunpack.c.h.b16 %v2673
        %v4308 = vunpack.c.l.b16 %v2674
        %v4309 = vunpack.c.h.b16 %v2674
        %v4310 = vunpack.c.l.b16 %v2675
        %v4311 = vunpack.c.h.b16 %v2675
        %v4312 = vunpack.c.l.b16 %v2676
        %v4313 = vunpack.c.h.b16 %v2676
        %v4314 = vunpack.c.l.b16 %v2677
        %v4315 = vunpack.c.h.b16 %v2677
        %v4316 = vunpack.c.l.b16 %v2678
        %v4317 = vunpack.c.h.b16 %v2678
        %v4318 = vunpack.c.l.b16 %v2679
        %v4319 = vunpack.c.h.b16 %v2679
        %v4320 = vunpack.c.l.b16 %v2680
        %v4321 = vunpack.c.h.b16 %v2680
        %v4322 = vunpack.c.l.b16 %v2681
        %v4323 = vunpack.c.h.b16 %v2681
        %v4324 = vunpack.c.l.b16 %v2682
        %v4325 = vunpack.c.h.b16 %v2682
        %v4326 = vunpack.c.l.b16 %v2683
        %v4327 = vunpack.c.h.b16 %v2683
        %v4328 = vunpack.c.l.b16 %v2684
        %v4329 = vunpack.c.h.b16 %v2684
        %v4330 = vunpack.c.l.b16 %v2685
        %v4331 = vunpack.c.h.b16 %v2685
        %v4332 = vunpack.c.l.b16 %v2686
        %v4333 = vunpack.c.h.b16 %v2686
        %v4334 = vunpack.c.l.b16 %v2687
        %v4335 = vunpack.c.h.b16 %v2687
        %v4336 = vunpack.c.l.b16 %v2688
        %v4337 = vunpack.c.h.b16 %v2688
        %v4338 = vunpack.c.l.b16 %v2689
        %v4339 = vunpack.c.h.b16 %v2689
        %v4340 = vunpack.c.l.b16 %v2690
        %v4341 = vunpack.c.h.b16 %v2690
        %v4342 = vunpack.c.l.b16 %v2691
        %v4343 = vunpack.c.h.b16 %v2691
        %v4344 = vunpack.c.l.b16 %v2692
        %v4345 = vunpack.c.h.b16 %v2692
        %v4346 = vunpack.c.l.b16 %v2693
        %v4347 = vunpack.c.h.b16 %v2693
        %v4348 = vunpack.c.l.b16 %v2694
        %v4349 = vunpack.c.h.b16 %v2694
        %v4350 = vunpack.c.l.b16 %v2695
        %v4351 = vunpack.c.h.b16 %v2695
        %v4352 = vunpack.c.l.b16 %v2696
        %v4353 = vunpack.c.h.b16 %v2696
        %v4354 = vunpack.c.l.b16 %v2697
        %v4355 = vunpack.c.h.b16 %v2697
        %v4356 = vunpack.c.l.b16 %v2698
        %v4357 = vunpack.c.h.b16 %v2698
        %v4358 = vunpack.c.l.b16 %v2699
        %v4359 = vunpack.c.h.b16 %v2699
        %v4360 = vunpack.c.l.b16 %v2700
        %v4361 = vunpack.c.h.b16 %v2700
        %v4362 = vunpack.c.l.b16 %v2701
        %v4363 = vunpack.c.h.b16 %v2701
        %v4364 = vunpack.c.l.b16 %v2702
        %v4365 = vunpack.c.h.b16 %v2702
        %v4366 = vunpack.c.l.b16 %v2703
        %v4367 = vunpack.c.h.b16 %v2703
        %v4368 = vunpack.c.l.b16 %v2704
        %v4369 = vunpack.c.h.b16 %v2704
        %v4370 = vunpack.c.l.b16 %v2705
        %v4371 = vunpack.c.h.b16 %v2705
        %v4372 = vunpack.c.l.b16 %v2706
        %v4373 = vunpack.c.h.b16 %v2706
        %v4374 = vunpack.c.l.b16 %v2707
        %v4375 = vunpack.c.h.b16 %v2707
        %v4376 = vunpack.c.l.b16 %v2708
        %v4377 = vunpack.c.h.b16 %v2708
        %v4378 = vunpack.c.l.b16 %v2709
        %v4379 = vunpack.c.h.b16 %v2709
        %v4380 = vunpack.c.l.b16 %v2710
        %v4381 = vunpack.c.h.b16 %v2710
        %v4382 = vunpack.c.l.b16 %v2711
        %v4383 = vunpack.c.h.b16 %v2711
        %v4384 = vunpack.c.l.b16 %v2712
        %v4385 = vunpack.c.h.b16 %v2712
        %v4386 = vunpack.c.l.b16 %v2713
        %v4387 = vunpack.c.h.b16 %v2713
        %v4388 = vpack.c.b16 %v3368, %v3364
        %v4389 = vpack.c.b16 %v3369, %v3365
        %v4390 = vpack.c.b16 %v3370, %v3366
        %v4391 = vpack.c.b16 %v3371, %v3367
        %v4392 = vpack.c.b16 %v3376, %v3372
        %v4393 = vpack.c.b16 %v3377, %v3373
        %v4394 = vpack.c.b16 %v3378, %v3374
        %v4395 = vpack.c.b16 %v3379, %v3375
        %v4396 = vpack.c.b16 %v3384, %v3380
        %v4397 = vpack.c.b16 %v3385, %v3381
        %v4398 = vpack.c.b16 %v3386, %v3382
        %v4399 = vpack.c.b16 %v3387, %v3383
        %v4400 = vpack.c.b16 %v3392, %v3388
        %v4401 = vpack.c.b16 %v3393, %v3389
        %v4402 = vpack.c.b16 %v3394, %v3390
        %v4403 = vpack.c.b16 %v3395, %v3391
        %v4404 = vpack.c.b16 %v3400, %v3396
        %v4405 = vpack.c.b16 %v3401, %v3397
        %v4406 = vpack.c.b16 %v3402, %v3398
        %v4407 = vpack.c.b16 %v3403, %v3399
        %v4408 = vpack.c.b16 %v3408, %v3404
        %v4409 = vpack.c.b16 %v3409, %v3405
        %v4410 = vpack.c.b16 %v3410, %v3406
        %v4411 = vpack.c.b16 %v3411, %v3407
        %v4412 = vpack.c.b16 %v3416, %v3412
        %v4413 = vpack.c.b16 %v3417, %v3413
        %v4414 = vpack.c.b16 %v3418, %v3414
        %v4415 = vpack.c.b16 %v3419, %v3415
        %v4416 = vpack.c.b16 %v3424, %v3420
        %v4417 = vpack.c.b16 %v3425, %v3421
        %v4418 = vpack.c.b16 %v3426, %v3422
        %v4419 = vpack.c.b16 %v3427, %v3423
        %v4420 = vpack.c.b16 %v3432, %v3428
        %v4421 = vpack.c.b16 %v3433, %v3429
        %v4422 = vpack.c.b16 %v3434, %v3430
        %v4423 = vpack.c.b16 %v3435, %v3431
        %v4424 = vpack.c.b16 %v3440, %v3436
        %v4425 = vpack.c.b16 %v3441, %v3437
        %v4426 = vpack.c.b16 %v3442, %v3438
        %v4427 = vpack.c.b16 %v3443, %v3439
        %v4428 = vpack.c.b16 %v3448, %v3444
        %v4429 = vpack.c.b16 %v3449, %v3445
        %v4430 = vpack.c.b16 %v3450, %v3446
        %v4431 = vpack.c.b16 %v3451, %v3447
        %v4432 = vpack.c.b16 %v3456, %v3452
        %v4433 = vpack.c.b16 %v3457, %v3453
        %v4434 = vpack.c.b16 %v3458, %v3454
        %v4435 = vpack.c.b16 %v3459, %v3455
        %v4436 = vpack.c.b16 %v3464, %v3460
        %v4437 = vpack.c.b16 %v3465, %v3461
        %v4438 = vpack.c.b16 %v3466, %v3462
        %v4439 = vpack.c.b16 %v3467, %v3463
        %v4440 = vpack.c.b16 %v3472, %v3468
        %v4441 = vpack.c.b16 %v3473, %v3469
        %v4442 = vpack.c.b16 %v3474, %v3470
        %v4443 = vpack.c.b16 %v3475, %v3471
        %v4444 = vpack.c.b16 %v3480, %v3476
        %v4445 = vpack.c.b16 %v3481, %v3477
        %v4446 = vpack.c.b16 %v3482, %v3478
        %v4447 = vpack.c.b16 %v3483, %v3479
        %v4448 = vpack.c.b16 %v3488, %v3484
        %v4449 = vpack.c.b16 %v3489, %v3485
        %v4450 = vpack.c.b16 %v3490, %v3486
        %v4451 = vpack.c.b16 %v3491, %v3487
        %v4452 = vpack.c.b16 %v3496, %v3492
        %v4453 = vpack.c.b16 %v3497, %v3493
        %v4454 = vpack.c.b16 %v3498, %v3494
        %v4455 = vpack.c.b16 %v3499, %v3495
        %v4456 = vpack.c.b16 %v3504, %v3500
        %v4457 = vpack.c.b16 %v3505, %v3501
        %v4458 = vpack.c.b16 %v3506, %v3502
        %v4459 = vpack.c.b16 %v3507, %v3503
        %v4460 = vpack.c.b16 %v3512, %v3508
        %v4461 = vpack.c.b16 %v3513, %v3509
        %v4462 = vpack.c.b16 %v3514, %v3510
        %v4463 = vpack.c.b16 %v3515, %v3511
        %v4464 = vpack.c.b16 %v3520, %v3516
        %v4465 = vpack.c.b16 %v3521, %v3517
        %v4466 = vpack.c.b16 %v3522, %v3518
        %v4467 = vpack.c.b16 %v3523, %v3519
        %v4468 = vpack.c.b16 %v3528, %v3524
        %v4469 = vpack.c.b16 %v3529, %v3525
        %v4470 = vpack.c.b16 %v3530, %v3526
        %v4471 = vpack.c.b16 %v3531, %v3527
        %v4472 = vpack.c.b16 %v3536, %v3532
        %v4473 = vpack.c.b16 %v3537, %v3533
        %v4474 = vpack.c.b16 %v3538, %v3534
        %v4475 = vpack.c.b16 %v3539, %v3535
        %v4476 = vpack.c.b16 %v3544, %v3540
        %v4477 = vpack.c.b16 %v3545, %v3541
        %v4478 = vpack.c.b16 %v3546, %v3542
        %v4479 = vpack.c.b16 %v3547, %v3543
        %v4480 = vpack.c.b16 %v3552, %v3548
        %v4481 = vpack.c.b16 %v3553, %v3549
        %v4482 = vpack.c.b16 %v3554, %v3550
        %v4483 = vpack.c.b16 %v3555, %v3551
        %v4484 = vpack.c.b16 %v3560, %v3556
        %v4485 = vpack.c.b16 %v3561, %v3557
        %v4486 = vpack.c.b16 %v3562, %v3558
        %v4487 = vpack.c.b16 %v3563, %v3559
        %v4488 = vpack.c.b16 %v3568, %v3564
        %v4489 = vpack.c.b16 %v3569, %v3565
        %v4490 = vpack.c.b16 %v3570, %v3566
        %v4491 = vpack.c.b16 %v3571, %v3567
        %v4492 = vpack.c.b16 %v3576, %v3572
        %v4493 = vpack.c.b16 %v3577, %v3573
        %v4494 = vpack.c.b16 %v3578, %v3574
        %v4495 = vpack.c.b16 %v3579, %v3575
        %v4496 = vpack.c.b16 %v3584, %v3580
        %v4497 = vpack.c.b16 %v3585, %v3581
        %v4498 = vpack.c.b16 %v3586, %v3582
        %v4499 = vpack.c.b16 %v3587, %v3583
        %v4500 = vpack.c.b16 %v3592, %v3588
        %v4501 = vpack.c.b16 %v3593, %v3589
        %v4502 = vpack.c.b16 %v3594, %v3590
        %v4503 = vpack.c.b16 %v3595, %v3591
        %v4504 = vpack.c.b16 %v3600, %v3596
        %v4505 = vpack.c.b16 %v3601, %v3597
        %v4506 = vpack.c.b16 %v3602, %v3598
        %v4507 = vpack.c.b16 %v3603, %v3599
        %v4508 = vpack.c.b16 %v3608, %v3604
        %v4509 = vpack.c.b16 %v3609, %v3605
        %v4510 = vpack.c.b16 %v3610, %v3606
        %v4511 = vpack.c.b16 %v3611, %v3607
        %v4512 = vpack.c.b16 %v3616, %v3612
        %v4513 = vpack.c.b16 %v3617, %v3613
        %v4514 = vpack.c.b16 %v3618, %v3614
        %v4515 = vpack.c.b16 %v3619, %v3615
        %v4516 = vpack.c.b16 %v3624, %v3620
        %v4517 = vpack.c.b16 %v3625, %v3621
        %v4518 = vpack.c.b16 %v3626, %v3622
        %v4519 = vpack.c.b16 %v3627, %v3623
        %v4520 = vpack.c.b16 %v3632, %v3628
        %v4521 = vpack.c.b16 %v3633, %v3629
        %v4522 = vpack.c.b16 %v3634, %v3630
        %v4523 = vpack.c.b16 %v3635, %v3631
        %v4524 = vpack.c.b16 %v3640, %v3636
        %v4525 = vpack.c.b16 %v3641, %v3637
        %v4526 = vpack.c.b16 %v3642, %v3638
        %v4527 = vpack.c.b16 %v3643, %v3639
        %v4528 = vpack.c.b16 %v3648, %v3644
        %v4529 = vpack.c.b16 %v3649, %v3645
        %v4530 = vpack.c.b16 %v3650, %v3646
        %v4531 = vpack.c.b16 %v3651, %v3647
        %v4532 = vpack.c.b16 %v3656, %v3652
        %v4533 = vpack.c.b16 %v3657, %v3653
        %v4534 = vpack.c.b16 %v3658, %v3654
        %v4535 = vpack.c.b16 %v3659, %v3655
        %v4536 = vpack.c.b16 %v3664, %v3660
        %v4537 = vpack.c.b16 %v3665, %v3661
        %v4538 = vpack.c.b16 %v3666, %v3662
        %v4539 = vpack.c.b16 %v3667, %v3663
        %v4540 = vpack.c.b16 %v3672, %v3668
        %v4541 = vpack.c.b16 %v3673, %v3669
        %v4542 = vpack.c.b16 %v3674, %v3670
        %v4543 = vpack.c.b16 %v3675, %v3671
        %v4544 = vpack.c.b16 %v3680, %v3676
        %v4545 = vpack.c.b16 %v3681, %v3677
        %v4546 = vpack.c.b16 %v3682, %v3678
        %v4547 = vpack.c.b16 %v3683, %v3679
        %v4548 = vpack.c.b16 %v3688, %v3684
        %v4549 = vpack.c.b16 %v3689, %v3685
        %v4550 = vpack.c.b16 %v3690, %v3686
        %v4551 = vpack.c.b16 %v3691, %v3687
        %v4552 = vpack.c.b16 %v3696, %v3692
        %v4553 = vpack.c.b16 %v3697, %v3693
        %v4554 = vpack.c.b16 %v3698, %v3694
        %v4555 = vpack.c.b16 %v3699, %v3695
        %v4556 = vpack.c.b16 %v3704, %v3700
        %v4557 = vpack.c.b16 %v3705, %v3701
        %v4558 = vpack.c.b16 %v3706, %v3702
        %v4559 = vpack.c.b16 %v3707, %v3703
        %v4560 = vpack.c.b16 %v3712, %v3708
        %v4561 = vpack.c.b16 %v3713, %v3709
        %v4562 = vpack.c.b16 %v3714, %v3710
        %v4563 = vpack.c.b16 %v3715, %v3711
        %v4564 = vpack.c.b16 %v3720, %v3716
        %v4565 = vpack.c.b16 %v3721, %v3717
        %v4566 = vpack.c.b16 %v3722, %v3718
        %v4567 = vpack.c.b16 %v3723, %v3719
        %v4568 = vpack.c.b16 %v3728, %v3724
        %v4569 = vpack.c.b16 %v3729, %v3725
        %v4570 = vpack.c.b16 %v3730, %v3726
        %v4571 = vpack.c.b16 %v3731, %v3727
        %v4572 = vpack.c.b16 %v3736, %v3732
        %v4573 = vpack.c.b16 %v3737, %v3733
        %v4574 = vpack.c.b16 %v3738, %v3734
        %v4575 = vpack.c.b16 %v3739, %v3735
        %v4576 = vpack.c.b16 %v3744, %v3740
        %v4577 = vpack.c.b16 %v3745, %v3741
        %v4578 = vpack.c.b16 %v3746, %v3742
        %v4579 = vpack.c.b16 %v3747, %v3743
        %v4580 = vpack.c.b16 %v3752, %v3748
        %v4581 = vpack.c.b16 %v3753, %v3749
        %v4582 = vpack.c.b16 %v3754, %v3750
        %v4583 = vpack.c.b16 %v3755, %v3751
        %v4584 = vpack.c.b16 %v3760, %v3756
        %v4585 = vpack.c.b16 %v3761, %v3757
        %v4586 = vpack.c.b16 %v3762, %v3758
        %v4587 = vpack.c.b16 %v3763, %v3759
        %v4588 = vpack.c.b16 %v3768, %v3764
        %v4589 = vpack.c.b16 %v3769, %v3765
        %v4590 = vpack.c.b16 %v3770, %v3766
        %v4591 = vpack.c.b16 %v3771, %v3767
        %v4592 = vpack.c.b16 %v3776, %v3772
        %v4593 = vpack.c.b16 %v3777, %v3773
        %v4594 = vpack.c.b16 %v3778, %v3774
        %v4595 = vpack.c.b16 %v3779, %v3775
        %v4596 = vpack.c.b16 %v3784, %v3780
        %v4597 = vpack.c.b16 %v3785, %v3781
        %v4598 = vpack.c.b16 %v3786, %v3782
        %v4599 = vpack.c.b16 %v3787, %v3783
        %v4600 = vpack.c.b16 %v3792, %v3788
        %v4601 = vpack.c.b16 %v3793, %v3789
        %v4602 = vpack.c.b16 %v3794, %v3790
        %v4603 = vpack.c.b16 %v3795, %v3791
        %v4604 = vpack.c.b16 %v3800, %v3796
        %v4605 = vpack.c.b16 %v3801, %v3797
        %v4606 = vpack.c.b16 %v3802, %v3798
        %v4607 = vpack.c.b16 %v3803, %v3799
        %v4608 = vpack.c.b16 %v3808, %v3804
        %v4609 = vpack.c.b16 %v3809, %v3805
        %v4610 = vpack.c.b16 %v3810, %v3806
        %v4611 = vpack.c.b16 %v3811, %v3807
        %v4612 = vpack.c.b16 %v3816, %v3812
        %v4613 = vpack.c.b16 %v3817, %v3813
        %v4614 = vpack.c.b16 %v3818, %v3814
        %v4615 = vpack.c.b16 %v3819, %v3815
        %v4616 = vpack.c.b16 %v3824, %v3820
        %v4617 = vpack.c.b16 %v3825, %v3821
        %v4618 = vpack.c.b16 %v3826, %v3822
        %v4619 = vpack.c.b16 %v3827, %v3823
        %v4620 = vpack.c.b16 %v3832, %v3828
        %v4621 = vpack.c.b16 %v3833, %v3829
        %v4622 = vpack.c.b16 %v3834, %v3830
        %v4623 = vpack.c.b16 %v3835, %v3831
        %v4624 = vpack.c.b16 %v3840, %v3836
        %v4625 = vpack.c.b16 %v3841, %v3837
        %v4626 = vpack.c.b16 %v3842, %v3838
        %v4627 = vpack.c.b16 %v3843, %v3839
        %v4628 = vpack.c.b16 %v3848, %v3844
        %v4629 = vpack.c.b16 %v3849, %v3845
        %v4630 = vpack.c.b16 %v3850, %v3846
        %v4631 = vpack.c.b16 %v3851, %v3847
        %v4632 = vpack.c.b16 %v3856, %v3852
        %v4633 = vpack.c.b16 %v3857, %v3853
        %v4634 = vpack.c.b16 %v3858, %v3854
        %v4635 = vpack.c.b16 %v3859, %v3855
        %v4636 = vpack.c.b16 %v3864, %v3860
        %v4637 = vpack.c.b16 %v3865, %v3861
        %v4638 = vpack.c.b16 %v3866, %v3862
        %v4639 = vpack.c.b16 %v3867, %v3863
        %v4640 = vpack.c.b16 %v3872, %v3868
        %v4641 = vpack.c.b16 %v3873, %v3869
        %v4642 = vpack.c.b16 %v3874, %v3870
        %v4643 = vpack.c.b16 %v3875, %v3871
        %v4644 = vpack.c.b16 %v3880, %v3876
        %v4645 = vpack.c.b16 %v3881, %v3877
        %v4646 = vpack.c.b16 %v3882, %v3878
        %v4647 = vpack.c.b16 %v3883, %v3879
        %v4648 = vpack.c.b16 %v3888, %v3884
        %v4649 = vpack.c.b16 %v3889, %v3885
        %v4650 = vpack.c.b16 %v3890, %v3886
        %v4651 = vpack.c.b16 %v3891, %v3887
        %v4652 = vpack.c.b16 %v3896, %v3892
        %v4653 = vpack.c.b16 %v3897, %v3893
        %v4654 = vpack.c.b16 %v3898, %v3894
        %v4655 = vpack.c.b16 %v3899, %v3895
        %v4656 = vpack.c.b16 %v3904, %v3900
        %v4657 = vpack.c.b16 %v3905, %v3901
        %v4658 = vpack.c.b16 %v3906, %v3902
        %v4659 = vpack.c.b16 %v3907, %v3903
        %v4660 = vpack.c.b16 %v3912, %v3908
        %v4661 = vpack.c.b16 %v3913, %v3909
        %v4662 = vpack.c.b16 %v3914, %v3910
        %v4663 = vpack.c.b16 %v3915, %v3911
        %v4664 = vpack.c.b16 %v3920, %v3916
        %v4665 = vpack.c.b16 %v3921, %v3917
        %v4666 = vpack.c.b16 %v3922, %v3918
        %v4667 = vpack.c.b16 %v3923, %v3919
        %v4668 = vpack.c.b16 %v3928, %v3924
        %v4669 = vpack.c.b16 %v3929, %v3925
        %v4670 = vpack.c.b16 %v3930, %v3926
        %v4671 = vpack.c.b16 %v3931, %v3927
        %v4672 = vpack.c.b16 %v3936, %v3932
        %v4673 = vpack.c.b16 %v3937, %v3933
        %v4674 = vpack.c.b16 %v3938, %v3934
        %v4675 = vpack.c.b16 %v3939, %v3935
        %v4676 = vpack.c.b16 %v3944, %v3940
        %v4677 = vpack.c.b16 %v3945, %v3941
        %v4678 = vpack.c.b16 %v3946, %v3942
        %v4679 = vpack.c.b16 %v3947, %v3943
        %v4680 = vpack.c.b16 %v3952, %v3948
        %v4681 = vpack.c.b16 %v3953, %v3949
        %v4682 = vpack.c.b16 %v3954, %v3950
        %v4683 = vpack.c.b16 %v3955, %v3951
        %v4684 = vpack.c.b16 %v3960, %v3956
        %v4685 = vpack.c.b16 %v3961, %v3957
        %v4686 = vpack.c.b16 %v3962, %v3958
        %v4687 = vpack.c.b16 %v3963, %v3959
        %v4688 = vpack.c.b16 %v3968, %v3964
        %v4689 = vpack.c.b16 %v3969, %v3965
        %v4690 = vpack.c.b16 %v3970, %v3966
        %v4691 = vpack.c.b16 %v3971, %v3967
        %v4692 = vpack.c.b16 %v3976, %v3972
        %v4693 = vpack.c.b16 %v3977, %v3973
        %v4694 = vpack.c.b16 %v3978, %v3974
        %v4695 = vpack.c.b16 %v3979, %v3975
        %v4696 = vpack.c.b16 %v3984, %v3980
        %v4697 = vpack.c.b16 %v3985, %v3981
        %v4698 = vpack.c.b16 %v3986, %v3982
        %v4699 = vpack.c.b16 %v3987, %v3983
        %v4700 = vpack.c.b16 %v3992, %v3988
        %v4701 = vpack.c.b16 %v3993, %v3989
        %v4702 = vpack.c.b16 %v3994, %v3990
        %v4703 = vpack.c.b16 %v3995, %v3991
        %v4704 = vpack.c.b16 %v4000, %v3996
        %v4705 = vpack.c.b16 %v4001, %v3997
        %v4706 = vpack.c.b16 %v4002, %v3998
        %v4707 = vpack.c.b16 %v4003, %v3999
        %v4708 = vpack.c.b16 %v4008, %v4004
        %v4709 = vpack.c.b16 %v4009, %v4005
        %v4710 = vpack.c.b16 %v4010, %v4006
        %v4711 = vpack.c.b16 %v4011, %v4007
        %v4712 = vpack.c.b16 %v4016, %v4012
        %v4713 = vpack.c.b16 %v4017, %v4013
        %v4714 = vpack.c.b16 %v4018, %v4014
        %v4715 = vpack.c.b16 %v4019, %v4015
        %v4716 = vpack.c.b16 %v4024, %v4020
        %v4717 = vpack.c.b16 %v4025, %v4021
        %v4718 = vpack.c.b16 %v4026, %v4022
        %v4719 = vpack.c.b16 %v4027, %v4023
        %v4720 = vpack.c.b16 %v4032, %v4028
        %v4721 = vpack.c.b16 %v4033, %v4029
        %v4722 = vpack.c.b16 %v4034, %v4030
        %v4723 = vpack.c.b16 %v4035, %v4031
        %v4724 = vpack.c.b16 %v4040, %v4036
        %v4725 = vpack.c.b16 %v4041, %v4037
        %v4726 = vpack.c.b16 %v4042, %v4038
        %v4727 = vpack.c.b16 %v4043, %v4039
        %v4728 = vpack.c.b16 %v4048, %v4044
        %v4729 = vpack.c.b16 %v4049, %v4045
        %v4730 = vpack.c.b16 %v4050, %v4046
        %v4731 = vpack.c.b16 %v4051, %v4047
        %v4732 = vpack.c.b16 %v4056, %v4052
        %v4733 = vpack.c.b16 %v4057, %v4053
        %v4734 = vpack.c.b16 %v4058, %v4054
        %v4735 = vpack.c.b16 %v4059, %v4055
        %v4736 = vpack.c.b16 %v4064, %v4060
        %v4737 = vpack.c.b16 %v4065, %v4061
        %v4738 = vpack.c.b16 %v4066, %v4062
        %v4739 = vpack.c.b16 %v4067, %v4063
        %v4740 = vpack.c.b16 %v4072, %v4068
        %v4741 = vpack.c.b16 %v4073, %v4069
        %v4742 = vpack.c.b16 %v4074, %v4070
        %v4743 = vpack.c.b16 %v4075, %v4071
        %v4744 = vpack.c.b16 %v4080, %v4076
        %v4745 = vpack.c.b16 %v4081, %v4077
        %v4746 = vpack.c.b16 %v4082, %v4078
        %v4747 = vpack.c.b16 %v4083, %v4079
        %v4748 = vpack.c.b16 %v4088, %v4084
        %v4749 = vpack.c.b16 %v4089, %v4085
        %v4750 = vpack.c.b16 %v4090, %v4086
        %v4751 = vpack.c.b16 %v4091, %v4087
        %v4752 = vpack.c.b16 %v4096, %v4092
        %v4753 = vpack.c.b16 %v4097, %v4093
        %v4754 = vpack.c.b16 %v4098, %v4094
        %v4755 = vpack.c.b16 %v4099, %v4095
        %v4756 = vpack.c.b16 %v4104, %v4100
        %v4757 = vpack.c.b16 %v4105, %v4101
        %v4758 = vpack.c.b16 %v4106, %v4102
        %v4759 = vpack.c.b16 %v4107, %v4103
        %v4760 = vpack.c.b16 %v4112, %v4108
        %v4761 = vpack.c.b16 %v4113, %v4109
        %v4762 = vpack.c.b16 %v4114, %v4110
        %v4763 = vpack.c.b16 %v4115, %v4111
        %v4764 = vpack.c.b16 %v4120, %v4116
        %v4765 = vpack.c.b16 %v4121, %v4117
        %v4766 = vpack.c.b16 %v4122, %v4118
        %v4767 = vpack.c.b16 %v4123, %v4119
        %v4768 = vpack.c.b16 %v4128, %v4124
        %v4769 = vpack.c.b16 %v4129, %v4125
        %v4770 = vpack.c.b16 %v4130, %v4126
        %v4771 = vpack.c.b16 %v4131, %v4127
        %v4772 = vpack.c.b16 %v4136, %v4132
        %v4773 = vpack.c.b16 %v4137, %v4133
        %v4774 = vpack.c.b16 %v4138, %v4134
        %v4775 = vpack.c.b16 %v4139, %v4135
        %v4776 = vpack.c.b16 %v4144, %v4140
        %v4777 = vpack.c.b16 %v4145, %v4141
        %v4778 = vpack.c.b16 %v4146, %v4142
        %v4779 = vpack.c.b16 %v4147, %v4143
        %v4780 = vpack.c.b16 %v4152, %v4148
        %v4781 = vpack.c.b16 %v4153, %v4149
        %v4782 = vpack.c.b16 %v4154, %v4150
        %v4783 = vpack.c.b16 %v4155, %v4151
        %v4784 = vpack.c.b16 %v4160, %v4156
        %v4785 = vpack.c.b16 %v4161, %v4157
        %v4786 = vpack.c.b16 %v4162, %v4158
        %v4787 = vpack.c.b16 %v4163, %v4159
        %v4788 = vpack.c.b16 %v4168, %v4164
        %v4789 = vpack.c.b16 %v4169, %v4165
        %v4790 = vpack.c.b16 %v4170, %v4166
        %v4791 = vpack.c.b16 %v4171, %v4167
        %v4792 = vpack.c.b16 %v4176, %v4172
        %v4793 = vpack.c.b16 %v4177, %v4173
        %v4794 = vpack.c.b16 %v4178, %v4174
        %v4795 = vpack.c.b16 %v4179, %v4175
        %v4796 = vpack.c.b16 %v4184, %v4180
        %v4797 = vpack.c.b16 %v4185, %v4181
        %v4798 = vpack.c.b16 %v4186, %v4182
        %v4799 = vpack.c.b16 %v4187, %v4183
        %v4800 = vpack.c.b16 %v4192, %v4188
        %v4801 = vpack.c.b16 %v4193, %v4189
        %v4802 = vpack.c.b16 %v4194, %v4190
        %v4803 = vpack.c.b16 %v4195, %v4191
        %v4804 = vpack.c.b16 %v4200, %v4196
        %v4805 = vpack.c.b16 %v4201, %v4197
        %v4806 = vpack.c.b16 %v4202, %v4198
        %v4807 = vpack.c.b16 %v4203, %v4199
        %v4808 = vpack.c.b16 %v4208, %v4204
        %v4809 = vpack.c.b16 %v4209, %v4205
        %v4810 = vpack.c.b16 %v4210, %v4206
        %v4811 = vpack.c.b16 %v4211, %v4207
        %v4812 = vpack.c.b16 %v4216, %v4212
        %v4813 = vpack.c.b16 %v4217, %v4213
        %v4814 = vpack.c.b16 %v4218, %v4214
        %v4815 = vpack.c.b16 %v4219, %v4215
        %v4816 = vpack.c.b16 %v4224, %v4220
        %v4817 = vpack.c.b16 %v4225, %v4221
        %v4818 = vpack.c.b16 %v4226, %v4222
        %v4819 = vpack.c.b16 %v4227, %v4223
        %v4820 = vpack.c.b16 %v4232, %v4228
        %v4821 = vpack.c.b16 %v4233, %v4229
        %v4822 = vpack.c.b16 %v4234, %v4230
        %v4823 = vpack.c.b16 %v4235, %v4231
        %v4824 = vpack.c.b16 %v4240, %v4236
        %v4825 = vpack.c.b16 %v4241, %v4237
        %v4826 = vpack.c.b16 %v4242, %v4238
        %v4827 = vpack.c.b16 %v4243, %v4239
        %v4828 = vpack.c.b16 %v4248, %v4244
        %v4829 = vpack.c.b16 %v4249, %v4245
        %v4830 = vpack.c.b16 %v4250, %v4246
        %v4831 = vpack.c.b16 %v4251, %v4247
        %v4832 = vpack.c.b16 %v4256, %v4252
        %v4833 = vpack.c.b16 %v4257, %v4253
        %v4834 = vpack.c.b16 %v4258, %v4254
        %v4835 = vpack.c.b16 %v4259, %v4255
        %v4836 = vpack.c.b16 %v4264, %v4260
        %v4837 = vpack.c.b16 %v4265, %v4261
        %v4838 = vpack.c.b16 %v4266, %v4262
        %v4839 = vpack.c.b16 %v4267, %v4263
        %v4840 = vpack.c.b16 %v4272, %v4268
        %v4841 = vpack.c.b16 %v4273, %v4269
        %v4842 = vpack.c.b16 %v4274, %v4270
        %v4843 = vpack.c.b16 %v4275, %v4271
        %v4844 = vpack.c.b16 %v4280, %v4276
        %v4845 = vpack.c.b16 %v4281, %v4277
        %v4846 = vpack.c.b16 %v4282, %v4278
        %v4847 = vpack.c.b16 %v4283, %v4279
        %v4848 = vpack.c.b16 %v4288, %v4284
        %v4849 = vpack.c.b16 %v4289, %v4285
        %v4850 = vpack.c.b16 %v4290, %v4286
        %v4851 = vpack.c.b16 %v4291, %v4287
        %v4852 = vpack.c.b16 %v4296, %v4292
        %v4853 = vpack.c.b16 %v4297, %v4293
        %v4854 = vpack.c.b16 %v4298, %v4294
        %v4855 = vpack.c.b16 %v4299, %v4295
        %v4856 = vpack.c.b16 %v4304, %v4300
        %v4857 = vpack.c.b16 %v4305, %v4301
        %v4858 = vpack.c.b16 %v4306, %v4302
        %v4859 = vpack.c.b16 %v4307, %v4303
        %v4860 = vpack.c.b16 %v4312, %v4308
        %v4861 = vpack.c.b16 %v4313, %v4309
        %v4862 = vpack.c.b16 %v4314, %v4310
        %v4863 = vpack.c.b16 %v4315, %v4311
        %v4864 = vpack.c.b16 %v4320, %v4316
        %v4865 = vpack.c.b16 %v4321, %v4317
        %v4866 = vpack.c.b16 %v4322, %v4318
        %v4867 = vpack.c.b16 %v4323, %v4319
        %v4868 = vpack.c.b16 %v4328, %v4324
        %v4869 = vpack.c.b16 %v4329, %v4325
        %v4870 = vpack.c.b16 %v4330, %v4326
        %v4871 = vpack.c.b16 %v4331, %v4327
        %v4872 = vpack.c.b16 %v4336, %v4332
        %v4873 = vpack.c.b16 %v4337, %v4333
        %v4874 = vpack.c.b16 %v4338, %v4334
        %v4875 = vpack.c.b16 %v4339, %v4335
        %v4876 = vpack.c.b16 %v4344, %v4340
        %v4877 = vpack.c.b16 %v4345, %v4341
        %v4878 = vpack.c.b16 %v4346, %v4342
        %v4879 = vpack.c.b16 %v4347, %v4343
        %v4880 = vpack.c.b16 %v4352, %v4348
        %v4881 = vpack.c.b16 %v4353, %v4349
        %v4882 = vpack.c.b16 %v4354, %v4350
        %v4883 = vpack.c.b16 %v4355, %v4351
        %v4884 = vpack.c.b16 %v4360, %v4356
        %v4885 = vpack.c.b16 %v4361, %v4357
        %v4886 = vpack.c.b16 %v4362, %v4358
        %v4887 = vpack.c.b16 %v4363, %v4359
        %v4888 = vpack.c.b16 %v4368, %v4364
        %v4889 = vpack.c.b16 %v4369, %v4365
        %v4890 = vpack.c.b16 %v4370, %v4366
        %v4891 = vpack.c.b16 %v4371, %v4367
        %v4892 = vpack.c.b16 %v4376, %v4372
        %v4893 = vpack.c.b16 %v4377, %v4373
        %v4894 = vpack.c.b16 %v4378, %v4374
        %v4895 = vpack.c.b16 %v4379, %v4375
        %v4896 = vpack.c.b16 %v4384, %v4380
        %v4897 = vpack.c.b16 %v4385, %v4381
        %v4898 = vpack.c.b16 %v4386, %v4382
        %v4899 = vpack.c.b16 %v4387, %v4383
        %5412 = vmatprep.subr.bf16.mxu0 %v4417
        %5413 = vmatpush1.bf16.msra.mxu0 %v4416
        %5414 = vmatprep.subr.bf16.mxu0 %v4413
        %5415 = vmatpush1.bf16.msra.mxu0 %v4412
        %5416 = vmatprep.subr.bf16.mxu0 %v4409
        %5417 = vmatpush1.bf16.msra.mxu0 %v4408
        %5418 = vmatprep.subr.bf16.mxu0 %v4405
        %5419 = vmatpush1.bf16.msra.mxu0 %v4404
        %5420 = vmatprep.subr.bf16.mxu0 %v4401
        %5421 = vmatpush1.bf16.msra.mxu0 %v4400
        %5422 = vmatprep.subr.bf16.mxu0 %v4397
        %5423 = vmatpush1.bf16.msra.mxu0 %v4396
        %5424 = vmatprep.subr.bf16.mxu0 %v4393
        %5425 = vmatpush1.bf16.msra.mxu0 %v4392
        %5426 = vmatprep.subr.bf16.mxu0 %v4389
        %5427 = vmatpush1.bf16.msra.mxu0 %v4388
        %5428 = vmatprep.subr.bf16.mxu0 %v4449
        %5429 = vmatpush2.bf16.msra.mxu0 %v4448
        %5430 = vmatprep.subr.bf16.mxu0 %v4445
        %5431 = vmatpush2.bf16.msra.mxu0 %v4444
        %5432 = vmatprep.subr.bf16.mxu0 %v4441
        %5433 = vmatpush2.bf16.msra.mxu0 %v4440
        %5434 = vmatprep.subr.bf16.mxu0 %v4437
        %5435 = vmatpush2.bf16.msra.mxu0 %v4436
        %5436 = vmatprep.subr.bf16.mxu0 %v4433
        %5437 = vmatpush2.bf16.msra.mxu0 %v4432
        %5438 = vmatprep.subr.bf16.mxu0 %v4429
        %5439 = vmatpush2.bf16.msra.mxu0 %v4428
        %5440 = vmatprep.subr.bf16.mxu0 %v4425
        %5441 = vmatpush2.bf16.msra.mxu0 %v4424
        %5442 = vmatprep.subr.bf16.mxu0 %v4421
        %5443 = vmatpush2.bf16.msra.mxu0 %v4420
        %5444 = vmatprep.mubr.bf16.mxu0 %v2775
        %5445 = vmatmul.mubr.bf16.gmra.mxu0 %v2761
        %v5446 = vpop.f32.mrf.mxu0
        %v5447 = vadd.f32 %v2719, %v5446
        %v5448 = vpop.f32.mrf.mxu0
        %v5449 = vadd.f32 %v2723, %v5448
        %v5450 = vpop.f32.mrf.mxu0
        %v5451 = vpop.f32.mrf.mxu0
        %5452 = vdwg.mxu0
        %5453 = vmatprep.subr.bf16.mxu0 %v4481
        %5454 = vmatpush1.bf16.msra.mxu0 %v4480
        %5455 = vmatprep.subr.bf16.mxu0 %v4477
        %5456 = vmatpush1.bf16.msra.mxu0 %v4476
        %5457 = vmatprep.subr.bf16.mxu0 %v4473
        %5458 = vmatpush1.bf16.msra.mxu0 %v4472
        %5459 = vmatprep.subr.bf16.mxu0 %v4469
        %5460 = vmatpush1.bf16.msra.mxu0 %v4468
        %5461 = vmatprep.subr.bf16.mxu0 %v4465
        %5462 = vmatpush1.bf16.msra.mxu0 %v4464
        %5463 = vmatprep.subr.bf16.mxu0 %v4461
        %5464 = vmatpush1.bf16.msra.mxu0 %v4460
        %5465 = vmatprep.subr.bf16.mxu0 %v4457
        %5466 = vmatpush1.bf16.msra.mxu0 %v4456
        %5467 = vmatprep.subr.bf16.mxu0 %v4453
        %5468 = vmatpush1.bf16.msra.mxu0 %v4452
        %5469 = vmatprep.subr.bf16.mxu0 %v4513
        %5470 = vmatpush2.bf16.msra.mxu0 %v4512
        %5471 = vmatprep.subr.bf16.mxu0 %v4509
        %5472 = vmatpush2.bf16.msra.mxu0 %v4508
        %5473 = vmatprep.subr.bf16.mxu0 %v4505
        %5474 = vmatpush2.bf16.msra.mxu0 %v4504
        %5475 = vmatprep.subr.bf16.mxu0 %v4501
        %5476 = vmatpush2.bf16.msra.mxu0 %v4500
        %5477 = vmatprep.subr.bf16.mxu0 %v4497
        %5478 = vmatpush2.bf16.msra.mxu0 %v4496
        %5479 = vmatprep.subr.bf16.mxu0 %v4493
        %5480 = vmatpush2.bf16.msra.mxu0 %v4492
        %5481 = vmatprep.subr.bf16.mxu0 %v4489
        %5482 = vmatpush2.bf16.msra.mxu0 %v4488
        %5483 = vmatprep.subr.bf16.mxu0 %v4485
        %5484 = vmatpush2.bf16.msra.mxu0 %v4484
        %5485 = vmatprep.mubr.bf16.mxu0 %v2785
        %5486 = vmatmul.mubr.bf16.gmra.mxu0 %v2783
        %v5487 = vpop.f32.mrf.mxu0
        %v5488 = vadd.f32 %v5447, %v5487
        %v5489 = vpop.f32.mrf.mxu0
        %v5490 = vadd.f32 %v5449, %v5489
        %v5491 = vpop.f32.mrf.mxu0
        %v5492 = vpop.f32.mrf.mxu0
        %5493 = vdwg.mxu0
        %5494 = vmatprep.subr.bf16.mxu0 %v4545
        %5495 = vmatpush1.bf16.msra.mxu0 %v4544
        %5496 = vmatprep.subr.bf16.mxu0 %v4541
        %5497 = vmatpush1.bf16.msra.mxu0 %v4540
        %5498 = vmatprep.subr.bf16.mxu0 %v4537
        %5499 = vmatpush1.bf16.msra.mxu0 %v4536
        %5500 = vmatprep.subr.bf16.mxu0 %v4533
        %5501 = vmatpush1.bf16.msra.mxu0 %v4532
        %5502 = vmatprep.subr.bf16.mxu0 %v4529
        %5503 = vmatpush1.bf16.msra.mxu0 %v4528
        %5504 = vmatprep.subr.bf16.mxu0 %v4525
        %5505 = vmatpush1.bf16.msra.mxu0 %v4524
        %5506 = vmatprep.subr.bf16.mxu0 %v4521
        %5507 = vmatpush1.bf16.msra.mxu0 %v4520
        %5508 = vmatprep.subr.bf16.mxu0 %v4517
        %5509 = vmatpush1.bf16.msra.mxu0 %v4516
        %5510 = vmatprep.subr.bf16.mxu0 %v4577
        %5511 = vmatpush2.bf16.msra.mxu0 %v4576
        %5512 = vmatprep.subr.bf16.mxu0 %v4573
        %5513 = vmatpush2.bf16.msra.mxu0 %v4572
        %5514 = vmatprep.subr.bf16.mxu0 %v4569
        %5515 = vmatpush2.bf16.msra.mxu0 %v4568
        %5516 = vmatprep.subr.bf16.mxu0 %v4565
        %5517 = vmatpush2.bf16.msra.mxu0 %v4564
        %5518 = vmatprep.subr.bf16.mxu0 %v4561
        %5519 = vmatpush2.bf16.msra.mxu0 %v4560
        %5520 = vmatprep.subr.bf16.mxu0 %v4557
        %5521 = vmatpush2.bf16.msra.mxu0 %v4556
        %5522 = vmatprep.subr.bf16.mxu0 %v4553
        %5523 = vmatpush2.bf16.msra.mxu0 %v4552
        %5524 = vmatprep.subr.bf16.mxu0 %v4549
        %5525 = vmatpush2.bf16.msra.mxu0 %v4548
        %5526 = vmatprep.mubr.bf16.mxu0 %v2782
        %5527 = vmatmul.mubr.bf16.gmra.mxu0 %v2768
        %v5528 = vpop.f32.mrf.mxu0
        %v5529 = vadd.f32 %v5488, %v5528
        %v5530 = vpop.f32.mrf.mxu0
        %v5531 = vadd.f32 %v5490, %v5530
        %v5532 = vpop.f32.mrf.mxu0
        %v5533 = vpop.f32.mrf.mxu0
        %5534 = vdwg.mxu0
        %5535 = vmatprep.subr.bf16.mxu0 %v4609
        %5536 = vmatpush1.bf16.msra.mxu0 %v4608
        %5537 = vmatprep.subr.bf16.mxu0 %v4605
        %5538 = vmatpush1.bf16.msra.mxu0 %v4604
        %5539 = vmatprep.subr.bf16.mxu0 %v4601
        %5540 = vmatpush1.bf16.msra.mxu0 %v4600
        %5541 = vmatprep.subr.bf16.mxu0 %v4597
        %5542 = vmatpush1.bf16.msra.mxu0 %v4596
        %5543 = vmatprep.subr.bf16.mxu0 %v4593
        %5544 = vmatpush1.bf16.msra.mxu0 %v4592
        %5545 = vmatprep.subr.bf16.mxu0 %v4589
        %5546 = vmatpush1.bf16.msra.mxu0 %v4588
        %5547 = vmatprep.subr.bf16.mxu0 %v4585
        %5548 = vmatpush1.bf16.msra.mxu0 %v4584
        %5549 = vmatprep.subr.bf16.mxu0 %v4581
        %5550 = vmatpush1.bf16.msra.mxu0 %v4580
        %5551 = vmatprep.subr.bf16.mxu0 %v4641
        %5552 = vmatpush2.bf16.msra.mxu0 %v4640
        %5553 = vmatprep.subr.bf16.mxu0 %v4637
        %5554 = vmatpush2.bf16.msra.mxu0 %v4636
        %5555 = vmatprep.subr.bf16.mxu0 %v4633
        %5556 = vmatpush2.bf16.msra.mxu0 %v4632
        %5557 = vmatprep.subr.bf16.mxu0 %v4629
        %5558 = vmatpush2.bf16.msra.mxu0 %v4628
        %5559 = vmatprep.subr.bf16.mxu0 %v4625
        %5560 = vmatpush2.bf16.msra.mxu0 %v4624
        %5561 = vmatprep.subr.bf16.mxu0 %v4621
        %5562 = vmatpush2.bf16.msra.mxu0 %v4620
        %5563 = vmatprep.subr.bf16.mxu0 %v4617
        %5564 = vmatpush2.bf16.msra.mxu0 %v4616
        %5565 = vmatprep.subr.bf16.mxu0 %v4613
        %5566 = vmatpush2.bf16.msra.mxu0 %v4612
        %5567 = vmatprep.mubr.bf16.mxu0 %v2786
        %5568 = vmatmul.mubr.bf16.gmra.mxu0 %v2784
        %v5569 = vpop.f32.mrf.mxu0
        %v5570 = vadd.f32 %v5529, %v5569
        %v5571 = vpop.f32.mrf.mxu0
        %v5572 = vadd.f32 %v5531, %v5571
        %v5573 = vpop.f32.mrf.mxu0
        %v5574 = vpop.f32.mrf.mxu0
        %5575 = vdwg.mxu0
        %5576 = vmatprep.subr.bf16.mxu0 %v4673
        %5577 = vmatpush1.bf16.msra.mxu0 %v4672
        %5578 = vmatprep.subr.bf16.mxu0 %v4669
        %5579 = vmatpush1.bf16.msra.mxu0 %v4668
        %5580 = vmatprep.subr.bf16.mxu0 %v4665
        %5581 = vmatpush1.bf16.msra.mxu0 %v4664
        %5582 = vmatprep.subr.bf16.mxu0 %v4661
        %5583 = vmatpush1.bf16.msra.mxu0 %v4660
        %5584 = vmatprep.subr.bf16.mxu0 %v4657
        %5585 = vmatpush1.bf16.msra.mxu0 %v4656
        %5586 = vmatprep.subr.bf16.mxu0 %v4653
        %5587 = vmatpush1.bf16.msra.mxu0 %v4652
        %5588 = vmatprep.subr.bf16.mxu0 %v4649
        %5589 = vmatpush1.bf16.msra.mxu0 %v4648
        %5590 = vmatprep.subr.bf16.mxu0 %v4645
        %5591 = vmatpush1.bf16.msra.mxu0 %v4644
        %5592 = vmatprep.subr.bf16.mxu0 %v4705
        %5593 = vmatpush2.bf16.msra.mxu0 %v4704
        %5594 = vmatprep.subr.bf16.mxu0 %v4701
        %5595 = vmatpush2.bf16.msra.mxu0 %v4700
        %5596 = vmatprep.subr.bf16.mxu0 %v4697
        %5597 = vmatpush2.bf16.msra.mxu0 %v4696
        %5598 = vmatprep.subr.bf16.mxu0 %v4693
        %5599 = vmatpush2.bf16.msra.mxu0 %v4692
        %5600 = vmatprep.subr.bf16.mxu0 %v4689
        %5601 = vmatpush2.bf16.msra.mxu0 %v4688
        %5602 = vmatprep.subr.bf16.mxu0 %v4685
        %5603 = vmatpush2.bf16.msra.mxu0 %v4684
        %5604 = vmatprep.subr.bf16.mxu0 %v4681
        %5605 = vmatpush2.bf16.msra.mxu0 %v4680
        %5606 = vmatprep.subr.bf16.mxu0 %v4677
        %5607 = vmatpush2.bf16.msra.mxu0 %v4676
        %5608 = vmatprep.mubr.bf16.mxu0 %v2824
        %5609 = vmatmul.mubr.bf16.gmra.mxu0 %v2810
        %v5610 = vpop.f32.mrf.mxu0
        %v5611 = vadd.f32 %v5570, %v5610
        %v5612 = vpop.f32.mrf.mxu0
        %v5613 = vadd.f32 %v5572, %v5612
        %v5614 = vpop.f32.mrf.mxu0
        %v5615 = vpop.f32.mrf.mxu0
        %5616 = vdwg.mxu0
        %5617 = vmatprep.subr.bf16.mxu0 %v4737
        %5618 = vmatpush1.bf16.msra.mxu0 %v4736
        %5619 = vmatprep.subr.bf16.mxu0 %v4733
        %5620 = vmatpush1.bf16.msra.mxu0 %v4732
        %5621 = vmatprep.subr.bf16.mxu0 %v4729
        %5622 = vmatpush1.bf16.msra.mxu0 %v4728
        %5623 = vmatprep.subr.bf16.mxu0 %v4725
        %5624 = vmatpush1.bf16.msra.mxu0 %v4724
        %5625 = vmatprep.subr.bf16.mxu0 %v4721
        %5626 = vmatpush1.bf16.msra.mxu0 %v4720
        %5627 = vmatprep.subr.bf16.mxu0 %v4717
        %5628 = vmatpush1.bf16.msra.mxu0 %v4716
        %5629 = vmatprep.subr.bf16.mxu0 %v4713
        %5630 = vmatpush1.bf16.msra.mxu0 %v4712
        %5631 = vmatprep.subr.bf16.mxu0 %v4709
        %5632 = vmatpush1.bf16.msra.mxu0 %v4708
        %5633 = vmatprep.subr.bf16.mxu0 %v4769
        %5634 = vmatpush2.bf16.msra.mxu0 %v4768
        %5635 = vmatprep.subr.bf16.mxu0 %v4765
        %5636 = vmatpush2.bf16.msra.mxu0 %v4764
        %5637 = vmatprep.subr.bf16.mxu0 %v4761
        %5638 = vmatpush2.bf16.msra.mxu0 %v4760
        %5639 = vmatprep.subr.bf16.mxu0 %v4757
        %5640 = vmatpush2.bf16.msra.mxu0 %v4756
        %5641 = vmatprep.subr.bf16.mxu0 %v4753
        %5642 = vmatpush2.bf16.msra.mxu0 %v4752
        %5643 = vmatprep.subr.bf16.mxu0 %v4749
        %5644 = vmatpush2.bf16.msra.mxu0 %v4748
        %5645 = vmatprep.subr.bf16.mxu0 %v4745
        %5646 = vmatpush2.bf16.msra.mxu0 %v4744
        %5647 = vmatprep.subr.bf16.mxu0 %v4741
        %5648 = vmatpush2.bf16.msra.mxu0 %v4740
        %5649 = vmatprep.mubr.bf16.mxu0 %v2834
        %5650 = vmatmul.mubr.bf16.gmra.mxu0 %v2832
        %v5651 = vpop.f32.mrf.mxu0
        %v5652 = vadd.f32 %v5611, %v5651
        %v5653 = vpop.f32.mrf.mxu0
        %v5654 = vadd.f32 %v5613, %v5653
        %v5655 = vpop.f32.mrf.mxu0
        %v5656 = vpop.f32.mrf.mxu0
        %5657 = vdwg.mxu0
        %5658 = vmatprep.subr.bf16.mxu0 %v4801
        %5659 = vmatpush1.bf16.msra.mxu0 %v4800
        %5660 = vmatprep.subr.bf16.mxu0 %v4797
        %5661 = vmatpush1.bf16.msra.mxu0 %v4796
        %5662 = vmatprep.subr.bf16.mxu0 %v4793
        %5663 = vmatpush1.bf16.msra.mxu0 %v4792
        %5664 = vmatprep.subr.bf16.mxu0 %v4789
        %5665 = vmatpush1.bf16.msra.mxu0 %v4788
        %5666 = vmatprep.subr.bf16.mxu0 %v4785
        %5667 = vmatpush1.bf16.msra.mxu0 %v4784
        %5668 = vmatprep.subr.bf16.mxu0 %v4781
        %5669 = vmatpush1.bf16.msra.mxu0 %v4780
        %5670 = vmatprep.subr.bf16.mxu0 %v4777
        %5671 = vmatpush1.bf16.msra.mxu0 %v4776
        %5672 = vmatprep.subr.bf16.mxu0 %v4773
        %5673 = vmatpush1.bf16.msra.mxu0 %v4772
        %5674 = vmatprep.subr.bf16.mxu0 %v4833
        %5675 = vmatpush2.bf16.msra.mxu0 %v4832
        %5676 = vmatprep.subr.bf16.mxu0 %v4829
        %5677 = vmatpush2.bf16.msra.mxu0 %v4828
        %5678 = vmatprep.subr.bf16.mxu0 %v4825
        %5679 = vmatpush2.bf16.msra.mxu0 %v4824
        %5680 = vmatprep.subr.bf16.mxu0 %v4821
        %5681 = vmatpush2.bf16.msra.mxu0 %v4820
        %5682 = vmatprep.subr.bf16.mxu0 %v4817
        %5683 = vmatpush2.bf16.msra.mxu0 %v4816
        %5684 = vmatprep.subr.bf16.mxu0 %v4813
        %5685 = vmatpush2.bf16.msra.mxu0 %v4812
        %5686 = vmatprep.subr.bf16.mxu0 %v4809
        %5687 = vmatpush2.bf16.msra.mxu0 %v4808
        %5688 = vmatprep.subr.bf16.mxu0 %v4805
        %5689 = vmatpush2.bf16.msra.mxu0 %v4804
        %5690 = vmatprep.mubr.bf16.mxu0 %v2831
        %5691 = vmatmul.mubr.bf16.gmra.mxu0 %v2817
        %v5692 = vpop.f32.mrf.mxu0
        %v5693 = vadd.f32 %v5652, %v5692
        %v5694 = vpop.f32.mrf.mxu0
        %v5695 = vadd.f32 %v5654, %v5694
        %v5696 = vpop.f32.mrf.mxu0
        %v5697 = vpop.f32.mrf.mxu0
        %5698 = vdwg.mxu0
        %5699 = vmatprep.subr.bf16.mxu0 %v4865
        %5700 = vmatpush1.bf16.msra.mxu0 %v4864
        %5701 = vmatprep.subr.bf16.mxu0 %v4861
        %5702 = vmatpush1.bf16.msra.mxu0 %v4860
        %5703 = vmatprep.subr.bf16.mxu0 %v4857
        %5704 = vmatpush1.bf16.msra.mxu0 %v4856
        %5705 = vmatprep.subr.bf16.mxu0 %v4853
        %5706 = vmatpush1.bf16.msra.mxu0 %v4852
        %5707 = vmatprep.subr.bf16.mxu0 %v4849
        %5708 = vmatpush1.bf16.msra.mxu0 %v4848
        %5709 = vmatprep.subr.bf16.mxu0 %v4845
        %5710 = vmatpush1.bf16.msra.mxu0 %v4844
        %5711 = vmatprep.subr.bf16.mxu0 %v4841
        %5712 = vmatpush1.bf16.msra.mxu0 %v4840
        %5713 = vmatprep.subr.bf16.mxu0 %v4837
        %5714 = vmatpush1.bf16.msra.mxu0 %v4836
        %5715 = vmatprep.subr.bf16.mxu0 %v4897
        %5716 = vmatpush2.bf16.msra.mxu0 %v4896
        %5717 = vmatprep.subr.bf16.mxu0 %v4893
        %5718 = vmatpush2.bf16.msra.mxu0 %v4892
        %5719 = vmatprep.subr.bf16.mxu0 %v4889
        %5720 = vmatpush2.bf16.msra.mxu0 %v4888
        %5721 = vmatprep.subr.bf16.mxu0 %v4885
        %5722 = vmatpush2.bf16.msra.mxu0 %v4884
        %5723 = vmatprep.subr.bf16.mxu0 %v4881
        %5724 = vmatpush2.bf16.msra.mxu0 %v4880
        %5725 = vmatprep.subr.bf16.mxu0 %v4877
        %5726 = vmatpush2.bf16.msra.mxu0 %v4876
        %5727 = vmatprep.subr.bf16.mxu0 %v4873
        %5728 = vmatpush2.bf16.msra.mxu0 %v4872
        %5729 = vmatprep.subr.bf16.mxu0 %v4869
        %5730 = vmatpush2.bf16.msra.mxu0 %v4868
        %5731 = vmatprep.mubr.bf16.mxu0 %v2835
        %5732 = vmatmul.mubr.bf16.gmra.mxu0 %v2833
        %v5733 = vpop.f32.mrf.mxu0
        %v5734 = vadd.f32 %v5693, %v5733
        %v5735 = vpop.f32.mrf.mxu0
        %v5736 = vadd.f32 %v5695, %v5735
        %v5737 = vpop.f32.mrf.mxu0
        %v5738 = vpop.f32.mrf.mxu0
        %5739 = vdwg.mxu0
        %5740 = vmatprep.subr.bf16.mxu0 %v4419
        %5741 = vmatpush1.bf16.msra.mxu0 %v4418
        %5742 = vmatprep.subr.bf16.mxu0 %v4415
        %5743 = vmatpush1.bf16.msra.mxu0 %v4414
        %5744 = vmatprep.subr.bf16.mxu0 %v4411
        %5745 = vmatpush1.bf16.msra.mxu0 %v4410
        %5746 = vmatprep.subr.bf16.mxu0 %v4407
        %5747 = vmatpush1.bf16.msra.mxu0 %v4406
        %5748 = vmatprep.subr.bf16.mxu0 %v4403
        %5749 = vmatpush1.bf16.msra.mxu0 %v4402
        %5750 = vmatprep.subr.bf16.mxu0 %v4399
        %5751 = vmatpush1.bf16.msra.mxu0 %v4398
        %5752 = vmatprep.subr.bf16.mxu0 %v4395
        %5753 = vmatpush1.bf16.msra.mxu0 %v4394
        %5754 = vmatprep.subr.bf16.mxu0 %v4391
        %5755 = vmatpush1.bf16.msra.mxu0 %v4390
        %5756 = vmatprep.subr.bf16.mxu0 %v4451
        %5757 = vmatpush2.bf16.msra.mxu0 %v4450
        %5758 = vmatprep.subr.bf16.mxu0 %v4447
        %5759 = vmatpush2.bf16.msra.mxu0 %v4446
        %5760 = vmatprep.subr.bf16.mxu0 %v4443
        %5761 = vmatpush2.bf16.msra.mxu0 %v4442
        %5762 = vmatprep.subr.bf16.mxu0 %v4439
        %5763 = vmatpush2.bf16.msra.mxu0 %v4438
        %5764 = vmatprep.subr.bf16.mxu0 %v4435
        %5765 = vmatpush2.bf16.msra.mxu0 %v4434
        %5766 = vmatprep.subr.bf16.mxu0 %v4431
        %5767 = vmatpush2.bf16.msra.mxu0 %v4430
        %5768 = vmatprep.subr.bf16.mxu0 %v4427
        %5769 = vmatpush2.bf16.msra.mxu0 %v4426
        %5770 = vmatprep.subr.bf16.mxu0 %v4423
        %5771 = vmatpush2.bf16.msra.mxu0 %v4422
        %5772 = vmatprep.mubr.bf16.mxu0 %v2775
        %5773 = vmatmul.mubr.bf16.gmra.mxu0 %v2761
        %v5774 = vpop.f32.mrf.mxu0
        %v5775 = vadd.f32 %v2727, %v5774
        %v5776 = vpop.f32.mrf.mxu0
        %v5777 = vadd.f32 %v2731, %v5776
        %v5778 = vpop.f32.mrf.mxu0
        %v5779 = vpop.f32.mrf.mxu0
        %5780 = vdwg.mxu0
        %5781 = vmatprep.subr.bf16.mxu0 %v4483
        %5782 = vmatpush1.bf16.msra.mxu0 %v4482
        %5783 = vmatprep.subr.bf16.mxu0 %v4479
        %5784 = vmatpush1.bf16.msra.mxu0 %v4478
        %5785 = vmatprep.subr.bf16.mxu0 %v4475
        %5786 = vmatpush1.bf16.msra.mxu0 %v4474
        %5787 = vmatprep.subr.bf16.mxu0 %v4471
        %5788 = vmatpush1.bf16.msra.mxu0 %v4470
        %5789 = vmatprep.subr.bf16.mxu0 %v4467
        %5790 = vmatpush1.bf16.msra.mxu0 %v4466
        %5791 = vmatprep.subr.bf16.mxu0 %v4463
        %5792 = vmatpush1.bf16.msra.mxu0 %v4462
        %5793 = vmatprep.subr.bf16.mxu0 %v4459
        %5794 = vmatpush1.bf16.msra.mxu0 %v4458
        %5795 = vmatprep.subr.bf16.mxu0 %v4455
        %5796 = vmatpush1.bf16.msra.mxu0 %v4454
        %5797 = vmatprep.subr.bf16.mxu0 %v4515
        %5798 = vmatpush2.bf16.msra.mxu0 %v4514
        %5799 = vmatprep.subr.bf16.mxu0 %v4511
        %5800 = vmatpush2.bf16.msra.mxu0 %v4510
        %5801 = vmatprep.subr.bf16.mxu0 %v4507
        %5802 = vmatpush2.bf16.msra.mxu0 %v4506
        %5803 = vmatprep.subr.bf16.mxu0 %v4503
        %5804 = vmatpush2.bf16.msra.mxu0 %v4502
        %5805 = vmatprep.subr.bf16.mxu0 %v4499
        %5806 = vmatpush2.bf16.msra.mxu0 %v4498
        %5807 = vmatprep.subr.bf16.mxu0 %v4495
        %5808 = vmatpush2.bf16.msra.mxu0 %v4494
        %5809 = vmatprep.subr.bf16.mxu0 %v4491
        %5810 = vmatpush2.bf16.msra.mxu0 %v4490
        %5811 = vmatprep.subr.bf16.mxu0 %v4487
        %5812 = vmatpush2.bf16.msra.mxu0 %v4486
        %5813 = vmatprep.mubr.bf16.mxu0 %v2785
        %5814 = vmatmul.mubr.bf16.gmra.mxu0 %v2783
        %v5815 = vpop.f32.mrf.mxu0
        %v5816 = vadd.f32 %v5775, %v5815
        %v5817 = vpop.f32.mrf.mxu0
        %v5818 = vadd.f32 %v5777, %v5817
        %v5819 = vpop.f32.mrf.mxu0
        %v5820 = vpop.f32.mrf.mxu0
        %5821 = vdwg.mxu0
        %5822 = vmatprep.subr.bf16.mxu0 %v4547
        %5823 = vmatpush1.bf16.msra.mxu0 %v4546
        %5824 = vmatprep.subr.bf16.mxu0 %v4543
        %5825 = vmatpush1.bf16.msra.mxu0 %v4542
        %5826 = vmatprep.subr.bf16.mxu0 %v4539
        %5827 = vmatpush1.bf16.msra.mxu0 %v4538
        %5828 = vmatprep.subr.bf16.mxu0 %v4535
        %5829 = vmatpush1.bf16.msra.mxu0 %v4534
        %5830 = vmatprep.subr.bf16.mxu0 %v4531
        %5831 = vmatpush1.bf16.msra.mxu0 %v4530
        %5832 = vmatprep.subr.bf16.mxu0 %v4527
        %5833 = vmatpush1.bf16.msra.mxu0 %v4526
        %5834 = vmatprep.subr.bf16.mxu0 %v4523
        %5835 = vmatpush1.bf16.msra.mxu0 %v4522
        %5836 = vmatprep.subr.bf16.mxu0 %v4519
        %5837 = vmatpush1.bf16.msra.mxu0 %v4518
        %5838 = vmatprep.subr.bf16.mxu0 %v4579
        %5839 = vmatpush2.bf16.msra.mxu0 %v4578
        %5840 = vmatprep.subr.bf16.mxu0 %v4575
        %5841 = vmatpush2.bf16.msra.mxu0 %v4574
        %5842 = vmatprep.subr.bf16.mxu0 %v4571
        %5843 = vmatpush2.bf16.msra.mxu0 %v4570
        %5844 = vmatprep.subr.bf16.mxu0 %v4567
        %5845 = vmatpush2.bf16.msra.mxu0 %v4566
        %5846 = vmatprep.subr.bf16.mxu0 %v4563
        %5847 = vmatpush2.bf16.msra.mxu0 %v4562
        %5848 = vmatprep.subr.bf16.mxu0 %v4559
        %5849 = vmatpush2.bf16.msra.mxu0 %v4558
        %5850 = vmatprep.subr.bf16.mxu0 %v4555
        %5851 = vmatpush2.bf16.msra.mxu0 %v4554
        %5852 = vmatprep.subr.bf16.mxu0 %v4551
        %5853 = vmatpush2.bf16.msra.mxu0 %v4550
        %5854 = vmatprep.mubr.bf16.mxu0 %v2782
        %5855 = vmatmul.mubr.bf16.gmra.mxu0 %v2768
        %v5856 = vpop.f32.mrf.mxu0
        %v5857 = vadd.f32 %v5816, %v5856
        %v5858 = vpop.f32.mrf.mxu0
        %v5859 = vadd.f32 %v5818, %v5858
        %v5860 = vpop.f32.mrf.mxu0
        %v5861 = vpop.f32.mrf.mxu0
        %5862 = vdwg.mxu0
        %5863 = vmatprep.subr.bf16.mxu0 %v4611
        %5864 = vmatpush1.bf16.msra.mxu0 %v4610
        %5865 = vmatprep.subr.bf16.mxu0 %v4607
        %5866 = vmatpush1.bf16.msra.mxu0 %v4606
        %5867 = vmatprep.subr.bf16.mxu0 %v4603
        %5868 = vmatpush1.bf16.msra.mxu0 %v4602
        %5869 = vmatprep.subr.bf16.mxu0 %v4599
        %5870 = vmatpush1.bf16.msra.mxu0 %v4598
        %5871 = vmatprep.subr.bf16.mxu0 %v4595
        %5872 = vmatpush1.bf16.msra.mxu0 %v4594
        %5873 = vmatprep.subr.bf16.mxu0 %v4591
        %5874 = vmatpush1.bf16.msra.mxu0 %v4590
        %5875 = vmatprep.subr.bf16.mxu0 %v4587
        %5876 = vmatpush1.bf16.msra.mxu0 %v4586
        %5877 = vmatprep.subr.bf16.mxu0 %v4583
        %5878 = vmatpush1.bf16.msra.mxu0 %v4582
        %5879 = vmatprep.subr.bf16.mxu0 %v4643
        %5880 = vmatpush2.bf16.msra.mxu0 %v4642
        %5881 = vmatprep.subr.bf16.mxu0 %v4639
        %5882 = vmatpush2.bf16.msra.mxu0 %v4638
        %5883 = vmatprep.subr.bf16.mxu0 %v4635
        %5884 = vmatpush2.bf16.msra.mxu0 %v4634
        %5885 = vmatprep.subr.bf16.mxu0 %v4631
        %5886 = vmatpush2.bf16.msra.mxu0 %v4630
        %5887 = vmatprep.subr.bf16.mxu0 %v4627
        %5888 = vmatpush2.bf16.msra.mxu0 %v4626
        %5889 = vmatprep.subr.bf16.mxu0 %v4623
        %5890 = vmatpush2.bf16.msra.mxu0 %v4622
        %5891 = vmatprep.subr.bf16.mxu0 %v4619
        %5892 = vmatpush2.bf16.msra.mxu0 %v4618
        %5893 = vmatprep.subr.bf16.mxu0 %v4615
        %5894 = vmatpush2.bf16.msra.mxu0 %v4614
        %5895 = vmatprep.mubr.bf16.mxu0 %v2786
        %5896 = vmatmul.mubr.bf16.gmra.mxu0 %v2784
        %v5897 = vpop.f32.mrf.mxu0
        %v5898 = vadd.f32 %v5857, %v5897
        %v5899 = vpop.f32.mrf.mxu0
        %v5900 = vadd.f32 %v5859, %v5899
        %v5901 = vpop.f32.mrf.mxu0
        %v5902 = vpop.f32.mrf.mxu0
        %5903 = vdwg.mxu0
        %5904 = vmatprep.subr.bf16.mxu0 %v4675
        %5905 = vmatpush1.bf16.msra.mxu0 %v4674
        %5906 = vmatprep.subr.bf16.mxu0 %v4671
        %5907 = vmatpush1.bf16.msra.mxu0 %v4670
        %5908 = vmatprep.subr.bf16.mxu0 %v4667
        %5909 = vmatpush1.bf16.msra.mxu0 %v4666
        %5910 = vmatprep.subr.bf16.mxu0 %v4663
        %5911 = vmatpush1.bf16.msra.mxu0 %v4662
        %5912 = vmatprep.subr.bf16.mxu0 %v4659
        %5913 = vmatpush1.bf16.msra.mxu0 %v4658
        %5914 = vmatprep.subr.bf16.mxu0 %v4655
        %5915 = vmatpush1.bf16.msra.mxu0 %v4654
        %5916 = vmatprep.subr.bf16.mxu0 %v4651
        %5917 = vmatpush1.bf16.msra.mxu0 %v4650
        %5918 = vmatprep.subr.bf16.mxu0 %v4647
        %5919 = vmatpush1.bf16.msra.mxu0 %v4646
        %5920 = vmatprep.subr.bf16.mxu0 %v4707
        %5921 = vmatpush2.bf16.msra.mxu0 %v4706
        %5922 = vmatprep.subr.bf16.mxu0 %v4703
        %5923 = vmatpush2.bf16.msra.mxu0 %v4702
        %5924 = vmatprep.subr.bf16.mxu0 %v4699
        %5925 = vmatpush2.bf16.msra.mxu0 %v4698
        %5926 = vmatprep.subr.bf16.mxu0 %v4695
        %5927 = vmatpush2.bf16.msra.mxu0 %v4694
        %5928 = vmatprep.subr.bf16.mxu0 %v4691
        %5929 = vmatpush2.bf16.msra.mxu0 %v4690
        %5930 = vmatprep.subr.bf16.mxu0 %v4687
        %5931 = vmatpush2.bf16.msra.mxu0 %v4686
        %5932 = vmatprep.subr.bf16.mxu0 %v4683
        %5933 = vmatpush2.bf16.msra.mxu0 %v4682
        %5934 = vmatprep.subr.bf16.mxu0 %v4679
        %5935 = vmatpush2.bf16.msra.mxu0 %v4678
        %5936 = vmatprep.mubr.bf16.mxu0 %v2824
        %5937 = vmatmul.mubr.bf16.gmra.mxu0 %v2810
        %v5938 = vpop.f32.mrf.mxu0
        %v5939 = vadd.f32 %v5898, %v5938
        %v5940 = vpop.f32.mrf.mxu0
        %v5941 = vadd.f32 %v5900, %v5940
        %v5942 = vpop.f32.mrf.mxu0
        %v5943 = vpop.f32.mrf.mxu0
        %5944 = vdwg.mxu0
        %5945 = vmatprep.subr.bf16.mxu0 %v4739
        %5946 = vmatpush1.bf16.msra.mxu0 %v4738
        %5947 = vmatprep.subr.bf16.mxu0 %v4735
        %5948 = vmatpush1.bf16.msra.mxu0 %v4734
        %5949 = vmatprep.subr.bf16.mxu0 %v4731
        %5950 = vmatpush1.bf16.msra.mxu0 %v4730
        %5951 = vmatprep.subr.bf16.mxu0 %v4727
        %5952 = vmatpush1.bf16.msra.mxu0 %v4726
        %5953 = vmatprep.subr.bf16.mxu0 %v4723
        %5954 = vmatpush1.bf16.msra.mxu0 %v4722
        %5955 = vmatprep.subr.bf16.mxu0 %v4719
        %5956 = vmatpush1.bf16.msra.mxu0 %v4718
        %5957 = vmatprep.subr.bf16.mxu0 %v4715
        %5958 = vmatpush1.bf16.msra.mxu0 %v4714
        %5959 = vmatprep.subr.bf16.mxu0 %v4711
        %5960 = vmatpush1.bf16.msra.mxu0 %v4710
        %5961 = vmatprep.subr.bf16.mxu0 %v4771
        %5962 = vmatpush2.bf16.msra.mxu0 %v4770
        %5963 = vmatprep.subr.bf16.mxu0 %v4767
        %5964 = vmatpush2.bf16.msra.mxu0 %v4766
        %5965 = vmatprep.subr.bf16.mxu0 %v4763
        %5966 = vmatpush2.bf16.msra.mxu0 %v4762
        %5967 = vmatprep.subr.bf16.mxu0 %v4759
        %5968 = vmatpush2.bf16.msra.mxu0 %v4758
        %5969 = vmatprep.subr.bf16.mxu0 %v4755
        %5970 = vmatpush2.bf16.msra.mxu0 %v4754
        %5971 = vmatprep.subr.bf16.mxu0 %v4751
        %5972 = vmatpush2.bf16.msra.mxu0 %v4750
        %5973 = vmatprep.subr.bf16.mxu0 %v4747
        %5974 = vmatpush2.bf16.msra.mxu0 %v4746
        %5975 = vmatprep.subr.bf16.mxu0 %v4743
        %5976 = vmatpush2.bf16.msra.mxu0 %v4742
        %5977 = vmatprep.mubr.bf16.mxu0 %v2834
        %5978 = vmatmul.mubr.bf16.gmra.mxu0 %v2832
        %v5979 = vpop.f32.mrf.mxu0
        %v5980 = vadd.f32 %v5939, %v5979
        %v5981 = vpop.f32.mrf.mxu0
        %v5982 = vadd.f32 %v5941, %v5981
        %v5983 = vpop.f32.mrf.mxu0
        %v5984 = vpop.f32.mrf.mxu0
        %5985 = vdwg.mxu0
        %5986 = vmatprep.subr.bf16.mxu0 %v4803
        %5987 = vmatpush1.bf16.msra.mxu0 %v4802
        %5988 = vmatprep.subr.bf16.mxu0 %v4799
        %5989 = vmatpush1.bf16.msra.mxu0 %v4798
        %5990 = vmatprep.subr.bf16.mxu0 %v4795
        %5991 = vmatpush1.bf16.msra.mxu0 %v4794
        %5992 = vmatprep.subr.bf16.mxu0 %v4791
        %5993 = vmatpush1.bf16.msra.mxu0 %v4790
        %5994 = vmatprep.subr.bf16.mxu0 %v4787
        %5995 = vmatpush1.bf16.msra.mxu0 %v4786
        %5996 = vmatprep.subr.bf16.mxu0 %v4783
        %5997 = vmatpush1.bf16.msra.mxu0 %v4782
        %5998 = vmatprep.subr.bf16.mxu0 %v4779
        %5999 = vmatpush1.bf16.msra.mxu0 %v4778
        %6000 = vmatprep.subr.bf16.mxu0 %v4775
        %6001 = vmatpush1.bf16.msra.mxu0 %v4774
        %6002 = vmatprep.subr.bf16.mxu0 %v4835
        %6003 = vmatpush2.bf16.msra.mxu0 %v4834
        %6004 = vmatprep.subr.bf16.mxu0 %v4831
        %6005 = vmatpush2.bf16.msra.mxu0 %v4830
        %6006 = vmatprep.subr.bf16.mxu0 %v4827
        %6007 = vmatpush2.bf16.msra.mxu0 %v4826
        %6008 = vmatprep.subr.bf16.mxu0 %v4823
        %6009 = vmatpush2.bf16.msra.mxu0 %v4822
        %6010 = vmatprep.subr.bf16.mxu0 %v4819
        %6011 = vmatpush2.bf16.msra.mxu0 %v4818
        %6012 = vmatprep.subr.bf16.mxu0 %v4815
        %6013 = vmatpush2.bf16.msra.mxu0 %v4814
        %6014 = vmatprep.subr.bf16.mxu0 %v4811
        %6015 = vmatpush2.bf16.msra.mxu0 %v4810
        %6016 = vmatprep.subr.bf16.mxu0 %v4807
        %6017 = vmatpush2.bf16.msra.mxu0 %v4806
        %6018 = vmatprep.mubr.bf16.mxu0 %v2831
        %6019 = vmatmul.mubr.bf16.gmra.mxu0 %v2817
        %v6020 = vpop.f32.mrf.mxu0
        %v6021 = vadd.f32 %v5980, %v6020
        %v6022 = vpop.f32.mrf.mxu0
        %v6023 = vadd.f32 %v5982, %v6022
        %v6024 = vpop.f32.mrf.mxu0
        %v6025 = vpop.f32.mrf.mxu0
        %6026 = vdwg.mxu0
        %6027 = vmatprep.subr.bf16.mxu0 %v4867
        %6028 = vmatpush1.bf16.msra.mxu0 %v4866
        %6029 = vmatprep.subr.bf16.mxu0 %v4863
        %6030 = vmatpush1.bf16.msra.mxu0 %v4862
        %6031 = vmatprep.subr.bf16.mxu0 %v4859
        %6032 = vmatpush1.bf16.msra.mxu0 %v4858
        %6033 = vmatprep.subr.bf16.mxu0 %v4855
        %6034 = vmatpush1.bf16.msra.mxu0 %v4854
        %6035 = vmatprep.subr.bf16.mxu0 %v4851
        %6036 = vmatpush1.bf16.msra.mxu0 %v4850
        %6037 = vmatprep.subr.bf16.mxu0 %v4847
        %6038 = vmatpush1.bf16.msra.mxu0 %v4846
        %6039 = vmatprep.subr.bf16.mxu0 %v4843
        %6040 = vmatpush1.bf16.msra.mxu0 %v4842
        %6041 = vmatprep.subr.bf16.mxu0 %v4839
        %6042 = vmatpush1.bf16.msra.mxu0 %v4838
        %6043 = vmatprep.subr.bf16.mxu0 %v4899
        %6044 = vmatpush2.bf16.msra.mxu0 %v4898
        %6045 = vmatprep.subr.bf16.mxu0 %v4895
        %6046 = vmatpush2.bf16.msra.mxu0 %v4894
        %6047 = vmatprep.subr.bf16.mxu0 %v4891
        %6048 = vmatpush2.bf16.msra.mxu0 %v4890
        %6049 = vmatprep.subr.bf16.mxu0 %v4887
        %6050 = vmatpush2.bf16.msra.mxu0 %v4886
        %6051 = vmatprep.subr.bf16.mxu0 %v4883
        %6052 = vmatpush2.bf16.msra.mxu0 %v4882
        %6053 = vmatprep.subr.bf16.mxu0 %v4879
        %6054 = vmatpush2.bf16.msra.mxu0 %v4878
        %6055 = vmatprep.subr.bf16.mxu0 %v4875
        %6056 = vmatpush2.bf16.msra.mxu0 %v4874
        %6057 = vmatprep.subr.bf16.mxu0 %v4871
        %6058 = vmatpush2.bf16.msra.mxu0 %v4870
        %6059 = vmatprep.mubr.bf16.mxu0 %v2835
        %6060 = vmatmul.mubr.bf16.gmra.mxu0 %v2833
        %v6061 = vpop.f32.mrf.mxu0
        %v6062 = vadd.f32 %v6021, %v6061
        %v6063 = vpop.f32.mrf.mxu0
        %v6064 = vadd.f32 %v6023, %v6063
        %v6065 = vpop.f32.mrf.mxu0
        %v6066 = vpop.f32.mrf.mxu0
        %6067 = vdwg.mxu0
        %v6068 = vmax.f32 %v5734, 0.0
        %v6069 = vmax.f32 %v5736, 0.0
        %v6070 = vmax.f32 %v6062, 0.0
        %v6071 = vmax.f32 %v6064, 0.0
        %v6072 = vpack.c.bf16 %v6068, %v6068
        %v6073 = vpack.c.bf16 %v6069, %v6069
        %v6074 = vpack.c.bf16 %v6070, %v6070
        %v6075 = vpack.c.bf16 %v6071, %v6071
        %v6076 = vld [vmem:[%s519] sm:$0xff]
        %v6077 = vld [vmem:[%s519 + $0x8] sm:$0xff]
        %v6078 = vld [vmem:[%s519 + $0x10] sm:$0xff]
        %v6079 = vld [vmem:[%s519 + $0x18] sm:$0xff]
        %v6080 = vld [vmem:[%s519 + $0x20] sm:$0xff]
        %v6081 = vld [vmem:[%s519 + $0x28] sm:$0xff]
        %v6082 = vld [vmem:[%s519 + $0x30] sm:$0xff]
        %v6083 = vld [vmem:[%s519 + $0x38] sm:$0xff]
        %v6084 = vld [vmem:[%s519 + $0x40] sm:$0xff]
        %v6085 = vld [vmem:[%s519 + $0x48] sm:$0xff]
        %v6086 = vld [vmem:[%s519 + $0x50] sm:$0xff]
        %v6087 = vld [vmem:[%s519 + $0x58] sm:$0xff]
        %v6088 = vld [vmem:[%s519 + $0x60] sm:$0xff]
        %v6089 = vld [vmem:[%s519 + $0x68] sm:$0xff]
        %v6090 = vld [vmem:[%s519 + $0x70] sm:$0xff]
        %v6091 = vld [vmem:[%s519 + $0x78] sm:$0xff]
        %v6092 = vld [vmem:[%s519 + $0x80] sm:$0xff]
        %v6093 = vld [vmem:[%s519 + $0x88] sm:$0xff]
        %v6094 = vld [vmem:[%s519 + $0x90] sm:$0xff]
        %v6095 = vld [vmem:[%s519 + $0x98] sm:$0xff]
        %v6096 = vld [vmem:[%s519 + $0xa0] sm:$0xff]
        %v6097 = vld [vmem:[%s519 + $0xa8] sm:$0xff]
        %v6098 = vld [vmem:[%s519 + $0xb0] sm:$0xff]
        %v6099 = vld [vmem:[%s519 + $0xb8] sm:$0xff]
        %v6100 = vld [vmem:[%s519 + $0xc0] sm:$0xff]
        %v6101 = vld [vmem:[%s519 + $0xc8] sm:$0xff]
        %v6102 = vld [vmem:[%s519 + $0xd0] sm:$0xff]
        %v6103 = vld [vmem:[%s519 + $0xd8] sm:$0xff]
        %v6104 = vld [vmem:[%s519 + $0xe0] sm:$0xff]
        %v6105 = vld [vmem:[%s519 + $0xe8] sm:$0xff]
        %v6106 = vld [vmem:[%s519 + $0xf0] sm:$0xff]
        %v6107 = vld [vmem:[%s519 + $0xf8] sm:$0xff]
        %v6108 = vld [vmem:[%s519 + $0x100] sm:$0xff]
        %v6109 = vld [vmem:[%s519 + $0x108] sm:$0xff]
        %v6110 = vld [vmem:[%s519 + $0x110] sm:$0xff]
        %v6111 = vld [vmem:[%s519 + $0x118] sm:$0xff]
        %v6112 = vld [vmem:[%s519 + $0x120] sm:$0xff]
        %v6113 = vld [vmem:[%s519 + $0x128] sm:$0xff]
        %v6114 = vld [vmem:[%s519 + $0x130] sm:$0xff]
        %v6115 = vld [vmem:[%s519 + $0x138] sm:$0xff]
        %v6116 = vld [vmem:[%s519 + $0x140] sm:$0xff]
        %v6117 = vld [vmem:[%s519 + $0x148] sm:$0xff]
        %v6118 = vld [vmem:[%s519 + $0x150] sm:$0xff]
        %v6119 = vld [vmem:[%s519 + $0x158] sm:$0xff]
        %v6120 = vld [vmem:[%s519 + $0x160] sm:$0xff]
        %v6121 = vld [vmem:[%s519 + $0x168] sm:$0xff]
        %v6122 = vld [vmem:[%s519 + $0x170] sm:$0xff]
        %v6123 = vld [vmem:[%s519 + $0x178] sm:$0xff]
        %v6124 = vld [vmem:[%s519 + $0x180] sm:$0xff]
        %v6125 = vld [vmem:[%s519 + $0x188] sm:$0xff]
        %v6126 = vld [vmem:[%s519 + $0x190] sm:$0xff]
        %v6127 = vld [vmem:[%s519 + $0x198] sm:$0xff]
        %v6128 = vld [vmem:[%s519 + $0x1a0] sm:$0xff]
        %v6129 = vld [vmem:[%s519 + $0x1a8] sm:$0xff]
        %v6130 = vld [vmem:[%s519 + $0x1b0] sm:$0xff]
        %v6131 = vld [vmem:[%s519 + $0x1b8] sm:$0xff]
        %v6132 = vld [vmem:[%s519 + $0x1c0] sm:$0xff]
        %v6133 = vld [vmem:[%s519 + $0x1c8] sm:$0xff]
        %v6134 = vld [vmem:[%s519 + $0x1d0] sm:$0xff]
        %v6135 = vld [vmem:[%s519 + $0x1d8] sm:$0xff]
        %v6136 = vld [vmem:[%s519 + $0x1e0] sm:$0xff]
        %v6137 = vld [vmem:[%s519 + $0x1e8] sm:$0xff]
        %v6138 = vld [vmem:[%s519 + $0x1f0] sm:$0xff]
        %v6139 = vld [vmem:[%s519 + $0x1f8] sm:$0xff]
        %v6140 = vld [vmem:[%s519 + $0x200] sm:$0xff]
        %v6141 = vld [vmem:[%s519 + $0x208] sm:$0xff]
        %v6142 = vld [vmem:[%s519 + $0x210] sm:$0xff]
        %v6143 = vld [vmem:[%s519 + $0x218] sm:$0xff]
        %v6144 = vld [vmem:[%s519 + $0x220] sm:$0xff]
        %v6145 = vld [vmem:[%s519 + $0x228] sm:$0xff]
        %v6146 = vld [vmem:[%s519 + $0x230] sm:$0xff]
        %v6147 = vld [vmem:[%s519 + $0x238] sm:$0xff]
        %v6148 = vld [vmem:[%s519 + $0x240] sm:$0xff]
        %v6149 = vld [vmem:[%s519 + $0x248] sm:$0xff]
        %v6150 = vld [vmem:[%s519 + $0x250] sm:$0xff]
        %v6151 = vld [vmem:[%s519 + $0x258] sm:$0xff]
        %v6152 = vld [vmem:[%s519 + $0x260] sm:$0xff]
        %v6153 = vld [vmem:[%s519 + $0x268] sm:$0xff]
        %v6154 = vld [vmem:[%s519 + $0x270] sm:$0xff]
        %v6155 = vld [vmem:[%s519 + $0x278] sm:$0xff]
        %v6156 = vld [vmem:[%s519 + $0x280] sm:$0xff]
        %v6157 = vld [vmem:[%s519 + $0x288] sm:$0xff]
        %v6158 = vld [vmem:[%s519 + $0x290] sm:$0xff]
        %v6159 = vld [vmem:[%s519 + $0x298] sm:$0xff]
        %v6160 = vld [vmem:[%s519 + $0x2a0] sm:$0xff]
        %v6161 = vld [vmem:[%s519 + $0x2a8] sm:$0xff]
        %v6162 = vld [vmem:[%s519 + $0x2b0] sm:$0xff]
        %v6163 = vld [vmem:[%s519 + $0x2b8] sm:$0xff]
        %v6164 = vld [vmem:[%s519 + $0x2c0] sm:$0xff]
        %v6165 = vld [vmem:[%s519 + $0x2c8] sm:$0xff]
        %v6166 = vld [vmem:[%s519 + $0x2d0] sm:$0xff]
        %v6167 = vld [vmem:[%s519 + $0x2d8] sm:$0xff]
        %v6168 = vld [vmem:[%s519 + $0x2e0] sm:$0xff]
        %v6169 = vld [vmem:[%s519 + $0x2e8] sm:$0xff]
        %v6170 = vld [vmem:[%s519 + $0x2f0] sm:$0xff]
        %v6171 = vld [vmem:[%s519 + $0x2f8] sm:$0xff]
        %v6172 = vld [vmem:[%s519 + $0x300] sm:$0xff]
        %v6173 = vld [vmem:[%s519 + $0x308] sm:$0xff]
        %v6174 = vld [vmem:[%s519 + $0x310] sm:$0xff]
        %v6175 = vld [vmem:[%s519 + $0x318] sm:$0xff]
        %v6176 = vld [vmem:[%s519 + $0x320] sm:$0xff]
        %v6177 = vld [vmem:[%s519 + $0x328] sm:$0xff]
        %v6178 = vld [vmem:[%s519 + $0x330] sm:$0xff]
        %v6179 = vld [vmem:[%s519 + $0x338] sm:$0xff]
        %v6180 = vld [vmem:[%s519 + $0x340] sm:$0xff]
        %v6181 = vld [vmem:[%s519 + $0x348] sm:$0xff]
        %v6182 = vld [vmem:[%s519 + $0x350] sm:$0xff]
        %v6183 = vld [vmem:[%s519 + $0x358] sm:$0xff]
        %v6184 = vld [vmem:[%s519 + $0x360] sm:$0xff]
        %v6185 = vld [vmem:[%s519 + $0x368] sm:$0xff]
        %v6186 = vld [vmem:[%s519 + $0x370] sm:$0xff]
        %v6187 = vld [vmem:[%s519 + $0x378] sm:$0xff]
        %v6188 = vld [vmem:[%s519 + $0x380] sm:$0xff]
        %v6189 = vld [vmem:[%s519 + $0x388] sm:$0xff]
        %v6190 = vld [vmem:[%s519 + $0x390] sm:$0xff]
        %v6191 = vld [vmem:[%s519 + $0x398] sm:$0xff]
        %v6192 = vld [vmem:[%s519 + $0x3a0] sm:$0xff]
        %v6193 = vld [vmem:[%s519 + $0x3a8] sm:$0xff]
        %v6194 = vld [vmem:[%s519 + $0x3b0] sm:$0xff]
        %v6195 = vld [vmem:[%s519 + $0x3b8] sm:$0xff]
        %v6196 = vld [vmem:[%s519 + $0x3c0] sm:$0xff]
        %v6197 = vld [vmem:[%s519 + $0x3c8] sm:$0xff]
        %v6198 = vld [vmem:[%s519 + $0x3d0] sm:$0xff]
        %v6199 = vld [vmem:[%s519 + $0x3d8] sm:$0xff]
        %v6200 = vld [vmem:[%s519 + $0x3e0] sm:$0xff]
        %v6201 = vld [vmem:[%s519 + $0x3e8] sm:$0xff]
        %v6202 = vld [vmem:[%s519 + $0x3f0] sm:$0xff]
        %v6203 = vld [vmem:[%s519 + $0x3f8] sm:$0xff]
        %v6204 = vld [vmem:[%s519 + $0x400] sm:$0xff]
        %v6205 = vld [vmem:[%s519 + $0x408] sm:$0xff]
        %v6206 = vld [vmem:[%s519 + $0x410] sm:$0xff]
        %v6207 = vld [vmem:[%s519 + $0x418] sm:$0xff]
        %v6208 = vld [vmem:[%s519 + $0x420] sm:$0xff]
        %v6209 = vld [vmem:[%s519 + $0x428] sm:$0xff]
        %v6210 = vld [vmem:[%s519 + $0x430] sm:$0xff]
        %v6211 = vld [vmem:[%s519 + $0x438] sm:$0xff]
        %v6212 = vld [vmem:[%s519 + $0x440] sm:$0xff]
        %v6213 = vld [vmem:[%s519 + $0x448] sm:$0xff]
        %v6214 = vld [vmem:[%s519 + $0x450] sm:$0xff]
        %v6215 = vld [vmem:[%s519 + $0x458] sm:$0xff]
        %v6216 = vld [vmem:[%s519 + $0x460] sm:$0xff]
        %v6217 = vld [vmem:[%s519 + $0x468] sm:$0xff]
        %v6218 = vld [vmem:[%s519 + $0x470] sm:$0xff]
        %v6219 = vld [vmem:[%s519 + $0x478] sm:$0xff]
        %v6220 = vld [vmem:[%s519 + $0x480] sm:$0xff]
        %v6221 = vld [vmem:[%s519 + $0x488] sm:$0xff]
        %v6222 = vld [vmem:[%s519 + $0x490] sm:$0xff]
        %v6223 = vld [vmem:[%s519 + $0x498] sm:$0xff]
        %v6224 = vld [vmem:[%s519 + $0x4a0] sm:$0xff]
        %v6225 = vld [vmem:[%s519 + $0x4a8] sm:$0xff]
        %v6226 = vld [vmem:[%s519 + $0x4b0] sm:$0xff]
        %v6227 = vld [vmem:[%s519 + $0x4b8] sm:$0xff]
        %v6228 = vld [vmem:[%s519 + $0x4c0] sm:$0xff]
        %v6229 = vld [vmem:[%s519 + $0x4c8] sm:$0xff]
        %v6230 = vld [vmem:[%s519 + $0x4d0] sm:$0xff]
        %v6231 = vld [vmem:[%s519 + $0x4d8] sm:$0xff]
        %v6232 = vld [vmem:[%s519 + $0x4e0] sm:$0xff]
        %v6233 = vld [vmem:[%s519 + $0x4e8] sm:$0xff]
        %v6234 = vld [vmem:[%s519 + $0x4f0] sm:$0xff]
        %v6235 = vld [vmem:[%s519 + $0x4f8] sm:$0xff]
        %v6236 = vld [vmem:[%s519 + $0x500] sm:$0xff]
        %v6237 = vld [vmem:[%s519 + $0x508] sm:$0xff]
        %v6238 = vld [vmem:[%s519 + $0x510] sm:$0xff]
        %v6239 = vld [vmem:[%s519 + $0x518] sm:$0xff]
        %v6240 = vld [vmem:[%s519 + $0x520] sm:$0xff]
        %v6241 = vld [vmem:[%s519 + $0x528] sm:$0xff]
        %v6242 = vld [vmem:[%s519 + $0x530] sm:$0xff]
        %v6243 = vld [vmem:[%s519 + $0x538] sm:$0xff]
        %v6244 = vld [vmem:[%s519 + $0x540] sm:$0xff]
        %v6245 = vld [vmem:[%s519 + $0x548] sm:$0xff]
        %v6246 = vld [vmem:[%s519 + $0x550] sm:$0xff]
        %v6247 = vld [vmem:[%s519 + $0x558] sm:$0xff]
        %v6248 = vld [vmem:[%s519 + $0x560] sm:$0xff]
        %v6249 = vld [vmem:[%s519 + $0x568] sm:$0xff]
        %v6250 = vld [vmem:[%s519 + $0x570] sm:$0xff]
        %v6251 = vld [vmem:[%s519 + $0x578] sm:$0xff]
        %v6252 = vld [vmem:[%s519 + $0x580] sm:$0xff]
        %v6253 = vld [vmem:[%s519 + $0x588] sm:$0xff]
        %v6254 = vld [vmem:[%s519 + $0x590] sm:$0xff]
        %v6255 = vld [vmem:[%s519 + $0x598] sm:$0xff]
        %v6256 = vld [vmem:[%s519 + $0x5a0] sm:$0xff]
        %v6257 = vld [vmem:[%s519 + $0x5a8] sm:$0xff]
        %v6258 = vld [vmem:[%s519 + $0x5b0] sm:$0xff]
        %v6259 = vld [vmem:[%s519 + $0x5b8] sm:$0xff]
        %v6260 = vld [vmem:[%s519 + $0x5c0] sm:$0xff]
        %v6261 = vld [vmem:[%s519 + $0x5c8] sm:$0xff]
        %v6262 = vld [vmem:[%s519 + $0x5d0] sm:$0xff]
        %v6263 = vld [vmem:[%s519 + $0x5d8] sm:$0xff]
        %v6264 = vld [vmem:[%s519 + $0x5e0] sm:$0xff]
        %v6265 = vld [vmem:[%s519 + $0x5e8] sm:$0xff]
        %v6266 = vld [vmem:[%s519 + $0x5f0] sm:$0xff]
        %v6267 = vld [vmem:[%s519 + $0x5f8] sm:$0xff]
        %v6268 = vld [vmem:[%s519 + $0x600] sm:$0xff]
        %v6269 = vld [vmem:[%s519 + $0x608] sm:$0xff]
        %v6270 = vld [vmem:[%s519 + $0x610] sm:$0xff]
        %v6271 = vld [vmem:[%s519 + $0x618] sm:$0xff]
        %v6272 = vld [vmem:[%s519 + $0x620] sm:$0xff]
        %v6273 = vld [vmem:[%s519 + $0x628] sm:$0xff]
        %v6274 = vld [vmem:[%s519 + $0x630] sm:$0xff]
        %v6275 = vld [vmem:[%s519 + $0x638] sm:$0xff]
        %v6276 = vld [vmem:[%s519 + $0x640] sm:$0xff]
        %v6277 = vld [vmem:[%s519 + $0x648] sm:$0xff]
        %v6278 = vld [vmem:[%s519 + $0x650] sm:$0xff]
        %v6279 = vld [vmem:[%s519 + $0x658] sm:$0xff]
        %v6280 = vld [vmem:[%s519 + $0x660] sm:$0xff]
        %v6281 = vld [vmem:[%s519 + $0x668] sm:$0xff]
        %v6282 = vld [vmem:[%s519 + $0x670] sm:$0xff]
        %v6283 = vld [vmem:[%s519 + $0x678] sm:$0xff]
        %v6284 = vld [vmem:[%s519 + $0x680] sm:$0xff]
        %v6285 = vld [vmem:[%s519 + $0x688] sm:$0xff]
        %v6286 = vld [vmem:[%s519 + $0x690] sm:$0xff]
        %v6287 = vld [vmem:[%s519 + $0x698] sm:$0xff]
        %v6288 = vld [vmem:[%s519 + $0x6a0] sm:$0xff]
        %v6289 = vld [vmem:[%s519 + $0x6a8] sm:$0xff]
        %v6290 = vld [vmem:[%s519 + $0x6b0] sm:$0xff]
        %v6291 = vld [vmem:[%s519 + $0x6b8] sm:$0xff]
        %v6292 = vld [vmem:[%s519 + $0x6c0] sm:$0xff]
        %v6293 = vld [vmem:[%s519 + $0x6c8] sm:$0xff]
        %v6294 = vld [vmem:[%s519 + $0x6d0] sm:$0xff]
        %v6295 = vld [vmem:[%s519 + $0x6d8] sm:$0xff]
        %v6296 = vld [vmem:[%s519 + $0x6e0] sm:$0xff]
        %v6297 = vld [vmem:[%s519 + $0x6e8] sm:$0xff]
        %v6298 = vld [vmem:[%s519 + $0x6f0] sm:$0xff]
        %v6299 = vld [vmem:[%s519 + $0x6f8] sm:$0xff]
        %v6300 = vld [vmem:[%s519 + $0x700] sm:$0xff]
        %v6301 = vld [vmem:[%s519 + $0x708] sm:$0xff]
        %v6302 = vld [vmem:[%s519 + $0x710] sm:$0xff]
        %v6303 = vld [vmem:[%s519 + $0x718] sm:$0xff]
        %v6304 = vld [vmem:[%s519 + $0x720] sm:$0xff]
        %v6305 = vld [vmem:[%s519 + $0x728] sm:$0xff]
        %v6306 = vld [vmem:[%s519 + $0x730] sm:$0xff]
        %v6307 = vld [vmem:[%s519 + $0x738] sm:$0xff]
        %v6308 = vld [vmem:[%s519 + $0x740] sm:$0xff]
        %v6309 = vld [vmem:[%s519 + $0x748] sm:$0xff]
        %v6310 = vld [vmem:[%s519 + $0x750] sm:$0xff]
        %v6311 = vld [vmem:[%s519 + $0x758] sm:$0xff]
        %v6312 = vld [vmem:[%s519 + $0x760] sm:$0xff]
        %v6313 = vld [vmem:[%s519 + $0x768] sm:$0xff]
        %v6314 = vld [vmem:[%s519 + $0x770] sm:$0xff]
        %v6315 = vld [vmem:[%s519 + $0x778] sm:$0xff]
        %v6316 = vld [vmem:[%s519 + $0x780] sm:$0xff]
        %v6317 = vld [vmem:[%s519 + $0x788] sm:$0xff]
        %v6318 = vld [vmem:[%s519 + $0x790] sm:$0xff]
        %v6319 = vld [vmem:[%s519 + $0x798] sm:$0xff]
        %v6320 = vld [vmem:[%s519 + $0x7a0] sm:$0xff]
        %v6321 = vld [vmem:[%s519 + $0x7a8] sm:$0xff]
        %v6322 = vld [vmem:[%s519 + $0x7b0] sm:$0xff]
        %v6323 = vld [vmem:[%s519 + $0x7b8] sm:$0xff]
        %v6324 = vld [vmem:[%s519 + $0x7c0] sm:$0xff]
        %v6325 = vld [vmem:[%s519 + $0x7c8] sm:$0xff]
        %v6326 = vld [vmem:[%s519 + $0x7d0] sm:$0xff]
        %v6327 = vld [vmem:[%s519 + $0x7d8] sm:$0xff]
        %v6328 = vld [vmem:[%s519 + $0x7e0] sm:$0xff]
        %v6329 = vld [vmem:[%s519 + $0x7e8] sm:$0xff]
        %v6330 = vld [vmem:[%s519 + $0x7f0] sm:$0xff]
        %v6331 = vld [vmem:[%s519 + $0x7f8] sm:$0xff]
        %v6588 = vunpack.c.l.b16 %v6076
        %v6589 = vunpack.c.h.b16 %v6076
        %v6590 = vunpack.c.l.b16 %v6077
        %v6591 = vunpack.c.h.b16 %v6077
        %v6592 = vunpack.c.l.b16 %v6078
        %v6593 = vunpack.c.h.b16 %v6078
        %v6594 = vunpack.c.l.b16 %v6079
        %v6595 = vunpack.c.h.b16 %v6079
        %v6596 = vunpack.c.l.b16 %v6080
        %v6597 = vunpack.c.h.b16 %v6080
        %v6598 = vunpack.c.l.b16 %v6081
        %v6599 = vunpack.c.h.b16 %v6081
        %v6600 = vunpack.c.l.b16 %v6082
        %v6601 = vunpack.c.h.b16 %v6082
        %v6602 = vunpack.c.l.b16 %v6083
        %v6603 = vunpack.c.h.b16 %v6083
        %v6604 = vunpack.c.l.b16 %v6084
        %v6605 = vunpack.c.h.b16 %v6084
        %v6606 = vunpack.c.l.b16 %v6085
        %v6607 = vunpack.c.h.b16 %v6085
        %v6608 = vunpack.c.l.b16 %v6086
        %v6609 = vunpack.c.h.b16 %v6086
        %v6610 = vunpack.c.l.b16 %v6087
        %v6611 = vunpack.c.h.b16 %v6087
        %v6612 = vunpack.c.l.b16 %v6088
        %v6613 = vunpack.c.h.b16 %v6088
        %v6614 = vunpack.c.l.b16 %v6089
        %v6615 = vunpack.c.h.b16 %v6089
        %v6616 = vunpack.c.l.b16 %v6090
        %v6617 = vunpack.c.h.b16 %v6090
        %v6618 = vunpack.c.l.b16 %v6091
        %v6619 = vunpack.c.h.b16 %v6091
        %v6620 = vunpack.c.l.b16 %v6092
        %v6621 = vunpack.c.h.b16 %v6092
        %v6622 = vunpack.c.l.b16 %v6093
        %v6623 = vunpack.c.h.b16 %v6093
        %v6624 = vunpack.c.l.b16 %v6094
        %v6625 = vunpack.c.h.b16 %v6094
        %v6626 = vunpack.c.l.b16 %v6095
        %v6627 = vunpack.c.h.b16 %v6095
        %v6628 = vunpack.c.l.b16 %v6096
        %v6629 = vunpack.c.h.b16 %v6096
        %v6630 = vunpack.c.l.b16 %v6097
        %v6631 = vunpack.c.h.b16 %v6097
        %v6632 = vunpack.c.l.b16 %v6098
        %v6633 = vunpack.c.h.b16 %v6098
        %v6634 = vunpack.c.l.b16 %v6099
        %v6635 = vunpack.c.h.b16 %v6099
        %v6636 = vunpack.c.l.b16 %v6100
        %v6637 = vunpack.c.h.b16 %v6100
        %v6638 = vunpack.c.l.b16 %v6101
        %v6639 = vunpack.c.h.b16 %v6101
        %v6640 = vunpack.c.l.b16 %v6102
        %v6641 = vunpack.c.h.b16 %v6102
        %v6642 = vunpack.c.l.b16 %v6103
        %v6643 = vunpack.c.h.b16 %v6103
        %v6644 = vunpack.c.l.b16 %v6104
        %v6645 = vunpack.c.h.b16 %v6104
        %v6646 = vunpack.c.l.b16 %v6105
        %v6647 = vunpack.c.h.b16 %v6105
        %v6648 = vunpack.c.l.b16 %v6106
        %v6649 = vunpack.c.h.b16 %v6106
        %v6650 = vunpack.c.l.b16 %v6107
        %v6651 = vunpack.c.h.b16 %v6107
        %v6652 = vunpack.c.l.b16 %v6108
        %v6653 = vunpack.c.h.b16 %v6108
        %v6654 = vunpack.c.l.b16 %v6109
        %v6655 = vunpack.c.h.b16 %v6109
        %v6656 = vunpack.c.l.b16 %v6110
        %v6657 = vunpack.c.h.b16 %v6110
        %v6658 = vunpack.c.l.b16 %v6111
        %v6659 = vunpack.c.h.b16 %v6111
        %v6660 = vunpack.c.l.b16 %v6112
        %v6661 = vunpack.c.h.b16 %v6112
        %v6662 = vunpack.c.l.b16 %v6113
        %v6663 = vunpack.c.h.b16 %v6113
        %v6664 = vunpack.c.l.b16 %v6114
        %v6665 = vunpack.c.h.b16 %v6114
        %v6666 = vunpack.c.l.b16 %v6115
        %v6667 = vunpack.c.h.b16 %v6115
        %v6668 = vunpack.c.l.b16 %v6116
        %v6669 = vunpack.c.h.b16 %v6116
        %v6670 = vunpack.c.l.b16 %v6117
        %v6671 = vunpack.c.h.b16 %v6117
        %v6672 = vunpack.c.l.b16 %v6118
        %v6673 = vunpack.c.h.b16 %v6118
        %v6674 = vunpack.c.l.b16 %v6119
        %v6675 = vunpack.c.h.b16 %v6119
        %v6676 = vunpack.c.l.b16 %v6120
        %v6677 = vunpack.c.h.b16 %v6120
        %v6678 = vunpack.c.l.b16 %v6121
        %v6679 = vunpack.c.h.b16 %v6121
        %v6680 = vunpack.c.l.b16 %v6122
        %v6681 = vunpack.c.h.b16 %v6122
        %v6682 = vunpack.c.l.b16 %v6123
        %v6683 = vunpack.c.h.b16 %v6123
        %v6684 = vunpack.c.l.b16 %v6124
        %v6685 = vunpack.c.h.b16 %v6124
        %v6686 = vunpack.c.l.b16 %v6125
        %v6687 = vunpack.c.h.b16 %v6125
        %v6688 = vunpack.c.l.b16 %v6126
        %v6689 = vunpack.c.h.b16 %v6126
        %v6690 = vunpack.c.l.b16 %v6127
        %v6691 = vunpack.c.h.b16 %v6127
        %v6692 = vunpack.c.l.b16 %v6128
        %v6693 = vunpack.c.h.b16 %v6128
        %v6694 = vunpack.c.l.b16 %v6129
        %v6695 = vunpack.c.h.b16 %v6129
        %v6696 = vunpack.c.l.b16 %v6130
        %v6697 = vunpack.c.h.b16 %v6130
        %v6698 = vunpack.c.l.b16 %v6131
        %v6699 = vunpack.c.h.b16 %v6131
        %v6700 = vunpack.c.l.b16 %v6132
        %v6701 = vunpack.c.h.b16 %v6132
        %v6702 = vunpack.c.l.b16 %v6133
        %v6703 = vunpack.c.h.b16 %v6133
        %v6704 = vunpack.c.l.b16 %v6134
        %v6705 = vunpack.c.h.b16 %v6134
        %v6706 = vunpack.c.l.b16 %v6135
        %v6707 = vunpack.c.h.b16 %v6135
        %v6708 = vunpack.c.l.b16 %v6136
        %v6709 = vunpack.c.h.b16 %v6136
        %v6710 = vunpack.c.l.b16 %v6137
        %v6711 = vunpack.c.h.b16 %v6137
        %v6712 = vunpack.c.l.b16 %v6138
        %v6713 = vunpack.c.h.b16 %v6138
        %v6714 = vunpack.c.l.b16 %v6139
        %v6715 = vunpack.c.h.b16 %v6139
        %v6716 = vunpack.c.l.b16 %v6140
        %v6717 = vunpack.c.h.b16 %v6140
        %v6718 = vunpack.c.l.b16 %v6141
        %v6719 = vunpack.c.h.b16 %v6141
        %v6720 = vunpack.c.l.b16 %v6142
        %v6721 = vunpack.c.h.b16 %v6142
        %v6722 = vunpack.c.l.b16 %v6143
        %v6723 = vunpack.c.h.b16 %v6143
        %v6724 = vunpack.c.l.b16 %v6144
        %v6725 = vunpack.c.h.b16 %v6144
        %v6726 = vunpack.c.l.b16 %v6145
        %v6727 = vunpack.c.h.b16 %v6145
        %v6728 = vunpack.c.l.b16 %v6146
        %v6729 = vunpack.c.h.b16 %v6146
        %v6730 = vunpack.c.l.b16 %v6147
        %v6731 = vunpack.c.h.b16 %v6147
        %v6732 = vunpack.c.l.b16 %v6148
        %v6733 = vunpack.c.h.b16 %v6148
        %v6734 = vunpack.c.l.b16 %v6149
        %v6735 = vunpack.c.h.b16 %v6149
        %v6736 = vunpack.c.l.b16 %v6150
        %v6737 = vunpack.c.h.b16 %v6150
        %v6738 = vunpack.c.l.b16 %v6151
        %v6739 = vunpack.c.h.b16 %v6151
        %v6740 = vunpack.c.l.b16 %v6152
        %v6741 = vunpack.c.h.b16 %v6152
        %v6742 = vunpack.c.l.b16 %v6153
        %v6743 = vunpack.c.h.b16 %v6153
        %v6744 = vunpack.c.l.b16 %v6154
        %v6745 = vunpack.c.h.b16 %v6154
        %v6746 = vunpack.c.l.b16 %v6155
        %v6747 = vunpack.c.h.b16 %v6155
        %v6748 = vunpack.c.l.b16 %v6156
        %v6749 = vunpack.c.h.b16 %v6156
        %v6750 = vunpack.c.l.b16 %v6157
        %v6751 = vunpack.c.h.b16 %v6157
        %v6752 = vunpack.c.l.b16 %v6158
        %v6753 = vunpack.c.h.b16 %v6158
        %v6754 = vunpack.c.l.b16 %v6159
        %v6755 = vunpack.c.h.b16 %v6159
        %v6756 = vunpack.c.l.b16 %v6160
        %v6757 = vunpack.c.h.b16 %v6160
        %v6758 = vunpack.c.l.b16 %v6161
        %v6759 = vunpack.c.h.b16 %v6161
        %v6760 = vunpack.c.l.b16 %v6162
        %v6761 = vunpack.c.h.b16 %v6162
        %v6762 = vunpack.c.l.b16 %v6163
        %v6763 = vunpack.c.h.b16 %v6163
        %v6764 = vunpack.c.l.b16 %v6164
        %v6765 = vunpack.c.h.b16 %v6164
        %v6766 = vunpack.c.l.b16 %v6165
        %v6767 = vunpack.c.h.b16 %v6165
        %v6768 = vunpack.c.l.b16 %v6166
        %v6769 = vunpack.c.h.b16 %v6166
        %v6770 = vunpack.c.l.b16 %v6167
        %v6771 = vunpack.c.h.b16 %v6167
        %v6772 = vunpack.c.l.b16 %v6168
        %v6773 = vunpack.c.h.b16 %v6168
        %v6774 = vunpack.c.l.b16 %v6169
        %v6775 = vunpack.c.h.b16 %v6169
        %v6776 = vunpack.c.l.b16 %v6170
        %v6777 = vunpack.c.h.b16 %v6170
        %v6778 = vunpack.c.l.b16 %v6171
        %v6779 = vunpack.c.h.b16 %v6171
        %v6780 = vunpack.c.l.b16 %v6172
        %v6781 = vunpack.c.h.b16 %v6172
        %v6782 = vunpack.c.l.b16 %v6173
        %v6783 = vunpack.c.h.b16 %v6173
        %v6784 = vunpack.c.l.b16 %v6174
        %v6785 = vunpack.c.h.b16 %v6174
        %v6786 = vunpack.c.l.b16 %v6175
        %v6787 = vunpack.c.h.b16 %v6175
        %v6788 = vunpack.c.l.b16 %v6176
        %v6789 = vunpack.c.h.b16 %v6176
        %v6790 = vunpack.c.l.b16 %v6177
        %v6791 = vunpack.c.h.b16 %v6177
        %v6792 = vunpack.c.l.b16 %v6178
        %v6793 = vunpack.c.h.b16 %v6178
        %v6794 = vunpack.c.l.b16 %v6179
        %v6795 = vunpack.c.h.b16 %v6179
        %v6796 = vunpack.c.l.b16 %v6180
        %v6797 = vunpack.c.h.b16 %v6180
        %v6798 = vunpack.c.l.b16 %v6181
        %v6799 = vunpack.c.h.b16 %v6181
        %v6800 = vunpack.c.l.b16 %v6182
        %v6801 = vunpack.c.h.b16 %v6182
        %v6802 = vunpack.c.l.b16 %v6183
        %v6803 = vunpack.c.h.b16 %v6183
        %v6804 = vunpack.c.l.b16 %v6184
        %v6805 = vunpack.c.h.b16 %v6184
        %v6806 = vunpack.c.l.b16 %v6185
        %v6807 = vunpack.c.h.b16 %v6185
        %v6808 = vunpack.c.l.b16 %v6186
        %v6809 = vunpack.c.h.b16 %v6186
        %v6810 = vunpack.c.l.b16 %v6187
        %v6811 = vunpack.c.h.b16 %v6187
        %v6812 = vunpack.c.l.b16 %v6188
        %v6813 = vunpack.c.h.b16 %v6188
        %v6814 = vunpack.c.l.b16 %v6189
        %v6815 = vunpack.c.h.b16 %v6189
        %v6816 = vunpack.c.l.b16 %v6190
        %v6817 = vunpack.c.h.b16 %v6190
        %v6818 = vunpack.c.l.b16 %v6191
        %v6819 = vunpack.c.h.b16 %v6191
        %v6820 = vunpack.c.l.b16 %v6192
        %v6821 = vunpack.c.h.b16 %v6192
        %v6822 = vunpack.c.l.b16 %v6193
        %v6823 = vunpack.c.h.b16 %v6193
        %v6824 = vunpack.c.l.b16 %v6194
        %v6825 = vunpack.c.h.b16 %v6194
        %v6826 = vunpack.c.l.b16 %v6195
        %v6827 = vunpack.c.h.b16 %v6195
        %v6828 = vunpack.c.l.b16 %v6196
        %v6829 = vunpack.c.h.b16 %v6196
        %v6830 = vunpack.c.l.b16 %v6197
        %v6831 = vunpack.c.h.b16 %v6197
        %v6832 = vunpack.c.l.b16 %v6198
        %v6833 = vunpack.c.h.b16 %v6198
        %v6834 = vunpack.c.l.b16 %v6199
        %v6835 = vunpack.c.h.b16 %v6199
        %v6836 = vunpack.c.l.b16 %v6200
        %v6837 = vunpack.c.h.b16 %v6200
        %v6838 = vunpack.c.l.b16 %v6201
        %v6839 = vunpack.c.h.b16 %v6201
        %v6840 = vunpack.c.l.b16 %v6202
        %v6841 = vunpack.c.h.b16 %v6202
        %v6842 = vunpack.c.l.b16 %v6203
        %v6843 = vunpack.c.h.b16 %v6203
        %v6844 = vunpack.c.l.b16 %v6204
        %v6845 = vunpack.c.h.b16 %v6204
        %v6846 = vunpack.c.l.b16 %v6205
        %v6847 = vunpack.c.h.b16 %v6205
        %v6848 = vunpack.c.l.b16 %v6206
        %v6849 = vunpack.c.h.b16 %v6206
        %v6850 = vunpack.c.l.b16 %v6207
        %v6851 = vunpack.c.h.b16 %v6207
        %v6852 = vunpack.c.l.b16 %v6208
        %v6853 = vunpack.c.h.b16 %v6208
        %v6854 = vunpack.c.l.b16 %v6209
        %v6855 = vunpack.c.h.b16 %v6209
        %v6856 = vunpack.c.l.b16 %v6210
        %v6857 = vunpack.c.h.b16 %v6210
        %v6858 = vunpack.c.l.b16 %v6211
        %v6859 = vunpack.c.h.b16 %v6211
        %v6860 = vunpack.c.l.b16 %v6212
        %v6861 = vunpack.c.h.b16 %v6212
        %v6862 = vunpack.c.l.b16 %v6213
        %v6863 = vunpack.c.h.b16 %v6213
        %v6864 = vunpack.c.l.b16 %v6214
        %v6865 = vunpack.c.h.b16 %v6214
        %v6866 = vunpack.c.l.b16 %v6215
        %v6867 = vunpack.c.h.b16 %v6215
        %v6868 = vunpack.c.l.b16 %v6216
        %v6869 = vunpack.c.h.b16 %v6216
        %v6870 = vunpack.c.l.b16 %v6217
        %v6871 = vunpack.c.h.b16 %v6217
        %v6872 = vunpack.c.l.b16 %v6218
        %v6873 = vunpack.c.h.b16 %v6218
        %v6874 = vunpack.c.l.b16 %v6219
        %v6875 = vunpack.c.h.b16 %v6219
        %v6876 = vunpack.c.l.b16 %v6220
        %v6877 = vunpack.c.h.b16 %v6220
        %v6878 = vunpack.c.l.b16 %v6221
        %v6879 = vunpack.c.h.b16 %v6221
        %v6880 = vunpack.c.l.b16 %v6222
        %v6881 = vunpack.c.h.b16 %v6222
        %v6882 = vunpack.c.l.b16 %v6223
        %v6883 = vunpack.c.h.b16 %v6223
        %v6884 = vunpack.c.l.b16 %v6224
        %v6885 = vunpack.c.h.b16 %v6224
        %v6886 = vunpack.c.l.b16 %v6225
        %v6887 = vunpack.c.h.b16 %v6225
        %v6888 = vunpack.c.l.b16 %v6226
        %v6889 = vunpack.c.h.b16 %v6226
        %v6890 = vunpack.c.l.b16 %v6227
        %v6891 = vunpack.c.h.b16 %v6227
        %v6892 = vunpack.c.l.b16 %v6228
        %v6893 = vunpack.c.h.b16 %v6228
        %v6894 = vunpack.c.l.b16 %v6229
        %v6895 = vunpack.c.h.b16 %v6229
        %v6896 = vunpack.c.l.b16 %v6230
        %v6897 = vunpack.c.h.b16 %v6230
        %v6898 = vunpack.c.l.b16 %v6231
        %v6899 = vunpack.c.h.b16 %v6231
        %v6900 = vunpack.c.l.b16 %v6232
        %v6901 = vunpack.c.h.b16 %v6232
        %v6902 = vunpack.c.l.b16 %v6233
        %v6903 = vunpack.c.h.b16 %v6233
        %v6904 = vunpack.c.l.b16 %v6234
        %v6905 = vunpack.c.h.b16 %v6234
        %v6906 = vunpack.c.l.b16 %v6235
        %v6907 = vunpack.c.h.b16 %v6235
        %v6908 = vunpack.c.l.b16 %v6236
        %v6909 = vunpack.c.h.b16 %v6236
        %v6910 = vunpack.c.l.b16 %v6237
        %v6911 = vunpack.c.h.b16 %v6237
        %v6912 = vunpack.c.l.b16 %v6238
        %v6913 = vunpack.c.h.b16 %v6238
        %v6914 = vunpack.c.l.b16 %v6239
        %v6915 = vunpack.c.h.b16 %v6239
        %v6916 = vunpack.c.l.b16 %v6240
        %v6917 = vunpack.c.h.b16 %v6240
        %v6918 = vunpack.c.l.b16 %v6241
        %v6919 = vunpack.c.h.b16 %v6241
        %v6920 = vunpack.c.l.b16 %v6242
        %v6921 = vunpack.c.h.b16 %v6242
        %v6922 = vunpack.c.l.b16 %v6243
        %v6923 = vunpack.c.h.b16 %v6243
        %v6924 = vunpack.c.l.b16 %v6244
        %v6925 = vunpack.c.h.b16 %v6244
        %v6926 = vunpack.c.l.b16 %v6245
        %v6927 = vunpack.c.h.b16 %v6245
        %v6928 = vunpack.c.l.b16 %v6246
        %v6929 = vunpack.c.h.b16 %v6246
        %v6930 = vunpack.c.l.b16 %v6247
        %v6931 = vunpack.c.h.b16 %v6247
        %v6932 = vunpack.c.l.b16 %v6248
        %v6933 = vunpack.c.h.b16 %v6248
        %v6934 = vunpack.c.l.b16 %v6249
        %v6935 = vunpack.c.h.b16 %v6249
        %v6936 = vunpack.c.l.b16 %v6250
        %v6937 = vunpack.c.h.b16 %v6250
        %v6938 = vunpack.c.l.b16 %v6251
        %v6939 = vunpack.c.h.b16 %v6251
        %v6940 = vunpack.c.l.b16 %v6252
        %v6941 = vunpack.c.h.b16 %v6252
        %v6942 = vunpack.c.l.b16 %v6253
        %v6943 = vunpack.c.h.b16 %v6253
        %v6944 = vunpack.c.l.b16 %v6254
        %v6945 = vunpack.c.h.b16 %v6254
        %v6946 = vunpack.c.l.b16 %v6255
        %v6947 = vunpack.c.h.b16 %v6255
        %v6948 = vunpack.c.l.b16 %v6256
        %v6949 = vunpack.c.h.b16 %v6256
        %v6950 = vunpack.c.l.b16 %v6257
        %v6951 = vunpack.c.h.b16 %v6257
        %v6952 = vunpack.c.l.b16 %v6258
        %v6953 = vunpack.c.h.b16 %v6258
        %v6954 = vunpack.c.l.b16 %v6259
        %v6955 = vunpack.c.h.b16 %v6259
        %v6956 = vunpack.c.l.b16 %v6260
        %v6957 = vunpack.c.h.b16 %v6260
        %v6958 = vunpack.c.l.b16 %v6261
        %v6959 = vunpack.c.h.b16 %v6261
        %v6960 = vunpack.c.l.b16 %v6262
        %v6961 = vunpack.c.h.b16 %v6262
        %v6962 = vunpack.c.l.b16 %v6263
        %v6963 = vunpack.c.h.b16 %v6263
        %v6964 = vunpack.c.l.b16 %v6264
        %v6965 = vunpack.c.h.b16 %v6264
        %v6966 = vunpack.c.l.b16 %v6265
        %v6967 = vunpack.c.h.b16 %v6265
        %v6968 = vunpack.c.l.b16 %v6266
        %v6969 = vunpack.c.h.b16 %v6266
        %v6970 = vunpack.c.l.b16 %v6267
        %v6971 = vunpack.c.h.b16 %v6267
        %v6972 = vunpack.c.l.b16 %v6268
        %v6973 = vunpack.c.h.b16 %v6268
        %v6974 = vunpack.c.l.b16 %v6269
        %v6975 = vunpack.c.h.b16 %v6269
        %v6976 = vunpack.c.l.b16 %v6270
        %v6977 = vunpack.c.h.b16 %v6270
        %v6978 = vunpack.c.l.b16 %v6271
        %v6979 = vunpack.c.h.b16 %v6271
        %v6980 = vunpack.c.l.b16 %v6272
        %v6981 = vunpack.c.h.b16 %v6272
        %v6982 = vunpack.c.l.b16 %v6273
        %v6983 = vunpack.c.h.b16 %v6273
        %v6984 = vunpack.c.l.b16 %v6274
        %v6985 = vunpack.c.h.b16 %v6274
        %v6986 = vunpack.c.l.b16 %v6275
        %v6987 = vunpack.c.h.b16 %v6275
        %v6988 = vunpack.c.l.b16 %v6276
        %v6989 = vunpack.c.h.b16 %v6276
        %v6990 = vunpack.c.l.b16 %v6277
        %v6991 = vunpack.c.h.b16 %v6277
        %v6992 = vunpack.c.l.b16 %v6278
        %v6993 = vunpack.c.h.b16 %v6278
        %v6994 = vunpack.c.l.b16 %v6279
        %v6995 = vunpack.c.h.b16 %v6279
        %v6996 = vunpack.c.l.b16 %v6280
        %v6997 = vunpack.c.h.b16 %v6280
        %v6998 = vunpack.c.l.b16 %v6281
        %v6999 = vunpack.c.h.b16 %v6281
        %v7000 = vunpack.c.l.b16 %v6282
        %v7001 = vunpack.c.h.b16 %v6282
        %v7002 = vunpack.c.l.b16 %v6283
        %v7003 = vunpack.c.h.b16 %v6283
        %v7004 = vunpack.c.l.b16 %v6284
        %v7005 = vunpack.c.h.b16 %v6284
        %v7006 = vunpack.c.l.b16 %v6285
        %v7007 = vunpack.c.h.b16 %v6285
        %v7008 = vunpack.c.l.b16 %v6286
        %v7009 = vunpack.c.h.b16 %v6286
        %v7010 = vunpack.c.l.b16 %v6287
        %v7011 = vunpack.c.h.b16 %v6287
        %v7012 = vunpack.c.l.b16 %v6288
        %v7013 = vunpack.c.h.b16 %v6288
        %v7014 = vunpack.c.l.b16 %v6289
        %v7015 = vunpack.c.h.b16 %v6289
        %v7016 = vunpack.c.l.b16 %v6290
        %v7017 = vunpack.c.h.b16 %v6290
        %v7018 = vunpack.c.l.b16 %v6291
        %v7019 = vunpack.c.h.b16 %v6291
        %v7020 = vunpack.c.l.b16 %v6292
        %v7021 = vunpack.c.h.b16 %v6292
        %v7022 = vunpack.c.l.b16 %v6293
        %v7023 = vunpack.c.h.b16 %v6293
        %v7024 = vunpack.c.l.b16 %v6294
        %v7025 = vunpack.c.h.b16 %v6294
        %v7026 = vunpack.c.l.b16 %v6295
        %v7027 = vunpack.c.h.b16 %v6295
        %v7028 = vunpack.c.l.b16 %v6296
        %v7029 = vunpack.c.h.b16 %v6296
        %v7030 = vunpack.c.l.b16 %v6297
        %v7031 = vunpack.c.h.b16 %v6297
        %v7032 = vunpack.c.l.b16 %v6298
        %v7033 = vunpack.c.h.b16 %v6298
        %v7034 = vunpack.c.l.b16 %v6299
        %v7035 = vunpack.c.h.b16 %v6299
        %v7036 = vunpack.c.l.b16 %v6300
        %v7037 = vunpack.c.h.b16 %v6300
        %v7038 = vunpack.c.l.b16 %v6301
        %v7039 = vunpack.c.h.b16 %v6301
        %v7040 = vunpack.c.l.b16 %v6302
        %v7041 = vunpack.c.h.b16 %v6302
        %v7042 = vunpack.c.l.b16 %v6303
        %v7043 = vunpack.c.h.b16 %v6303
        %v7044 = vunpack.c.l.b16 %v6304
        %v7045 = vunpack.c.h.b16 %v6304
        %v7046 = vunpack.c.l.b16 %v6305
        %v7047 = vunpack.c.h.b16 %v6305
        %v7048 = vunpack.c.l.b16 %v6306
        %v7049 = vunpack.c.h.b16 %v6306
        %v7050 = vunpack.c.l.b16 %v6307
        %v7051 = vunpack.c.h.b16 %v6307
        %v7052 = vunpack.c.l.b16 %v6308
        %v7053 = vunpack.c.h.b16 %v6308
        %v7054 = vunpack.c.l.b16 %v6309
        %v7055 = vunpack.c.h.b16 %v6309
        %v7056 = vunpack.c.l.b16 %v6310
        %v7057 = vunpack.c.h.b16 %v6310
        %v7058 = vunpack.c.l.b16 %v6311
        %v7059 = vunpack.c.h.b16 %v6311
        %v7060 = vunpack.c.l.b16 %v6312
        %v7061 = vunpack.c.h.b16 %v6312
        %v7062 = vunpack.c.l.b16 %v6313
        %v7063 = vunpack.c.h.b16 %v6313
        %v7064 = vunpack.c.l.b16 %v6314
        %v7065 = vunpack.c.h.b16 %v6314
        %v7066 = vunpack.c.l.b16 %v6315
        %v7067 = vunpack.c.h.b16 %v6315
        %v7068 = vunpack.c.l.b16 %v6316
        %v7069 = vunpack.c.h.b16 %v6316
        %v7070 = vunpack.c.l.b16 %v6317
        %v7071 = vunpack.c.h.b16 %v6317
        %v7072 = vunpack.c.l.b16 %v6318
        %v7073 = vunpack.c.h.b16 %v6318
        %v7074 = vunpack.c.l.b16 %v6319
        %v7075 = vunpack.c.h.b16 %v6319
        %v7076 = vunpack.c.l.b16 %v6320
        %v7077 = vunpack.c.h.b16 %v6320
        %v7078 = vunpack.c.l.b16 %v6321
        %v7079 = vunpack.c.h.b16 %v6321
        %v7080 = vunpack.c.l.b16 %v6322
        %v7081 = vunpack.c.h.b16 %v6322
        %v7082 = vunpack.c.l.b16 %v6323
        %v7083 = vunpack.c.h.b16 %v6323
        %v7084 = vunpack.c.l.b16 %v6324
        %v7085 = vunpack.c.h.b16 %v6324
        %v7086 = vunpack.c.l.b16 %v6325
        %v7087 = vunpack.c.h.b16 %v6325
        %v7088 = vunpack.c.l.b16 %v6326
        %v7089 = vunpack.c.h.b16 %v6326
        %v7090 = vunpack.c.l.b16 %v6327
        %v7091 = vunpack.c.h.b16 %v6327
        %v7092 = vunpack.c.l.b16 %v6328
        %v7093 = vunpack.c.h.b16 %v6328
        %v7094 = vunpack.c.l.b16 %v6329
        %v7095 = vunpack.c.h.b16 %v6329
        %v7096 = vunpack.c.l.b16 %v6330
        %v7097 = vunpack.c.h.b16 %v6330
        %v7098 = vunpack.c.l.b16 %v6331
        %v7099 = vunpack.c.h.b16 %v6331
        %v7100 = vpack.c.b16 %v6596, %v6588
        %v7101 = vpack.c.b16 %v6597, %v6589
        %v7102 = vpack.c.b16 %v6598, %v6590
        %v7103 = vpack.c.b16 %v6599, %v6591
        %v7104 = vpack.c.b16 %v6600, %v6592
        %v7105 = vpack.c.b16 %v6601, %v6593
        %v7106 = vpack.c.b16 %v6602, %v6594
        %v7107 = vpack.c.b16 %v6603, %v6595
        %v7108 = vpack.c.b16 %v6612, %v6604
        %v7109 = vpack.c.b16 %v6613, %v6605
        %v7110 = vpack.c.b16 %v6614, %v6606
        %v7111 = vpack.c.b16 %v6615, %v6607
        %v7112 = vpack.c.b16 %v6616, %v6608
        %v7113 = vpack.c.b16 %v6617, %v6609
        %v7114 = vpack.c.b16 %v6618, %v6610
        %v7115 = vpack.c.b16 %v6619, %v6611
        %v7116 = vpack.c.b16 %v6628, %v6620
        %v7117 = vpack.c.b16 %v6629, %v6621
        %v7118 = vpack.c.b16 %v6630, %v6622
        %v7119 = vpack.c.b16 %v6631, %v6623
        %v7120 = vpack.c.b16 %v6632, %v6624
        %v7121 = vpack.c.b16 %v6633, %v6625
        %v7122 = vpack.c.b16 %v6634, %v6626
        %v7123 = vpack.c.b16 %v6635, %v6627
        %v7124 = vpack.c.b16 %v6644, %v6636
        %v7125 = vpack.c.b16 %v6645, %v6637
        %v7126 = vpack.c.b16 %v6646, %v6638
        %v7127 = vpack.c.b16 %v6647, %v6639
        %v7128 = vpack.c.b16 %v6648, %v6640
        %v7129 = vpack.c.b16 %v6649, %v6641
        %v7130 = vpack.c.b16 %v6650, %v6642
        %v7131 = vpack.c.b16 %v6651, %v6643
        %v7132 = vpack.c.b16 %v6660, %v6652
        %v7133 = vpack.c.b16 %v6661, %v6653
        %v7134 = vpack.c.b16 %v6662, %v6654
        %v7135 = vpack.c.b16 %v6663, %v6655
        %v7136 = vpack.c.b16 %v6664, %v6656
        %v7137 = vpack.c.b16 %v6665, %v6657
        %v7138 = vpack.c.b16 %v6666, %v6658
        %v7139 = vpack.c.b16 %v6667, %v6659
        %v7140 = vpack.c.b16 %v6676, %v6668
        %v7141 = vpack.c.b16 %v6677, %v6669
        %v7142 = vpack.c.b16 %v6678, %v6670
        %v7143 = vpack.c.b16 %v6679, %v6671
        %v7144 = vpack.c.b16 %v6680, %v6672
        %v7145 = vpack.c.b16 %v6681, %v6673
        %v7146 = vpack.c.b16 %v6682, %v6674
        %v7147 = vpack.c.b16 %v6683, %v6675
        %v7148 = vpack.c.b16 %v6692, %v6684
        %v7149 = vpack.c.b16 %v6693, %v6685
        %v7150 = vpack.c.b16 %v6694, %v6686
        %v7151 = vpack.c.b16 %v6695, %v6687
        %v7152 = vpack.c.b16 %v6696, %v6688
        %v7153 = vpack.c.b16 %v6697, %v6689
        %v7154 = vpack.c.b16 %v6698, %v6690
        %v7155 = vpack.c.b16 %v6699, %v6691
        %v7156 = vpack.c.b16 %v6708, %v6700
        %v7157 = vpack.c.b16 %v6709, %v6701
        %v7158 = vpack.c.b16 %v6710, %v6702
        %v7159 = vpack.c.b16 %v6711, %v6703
        %v7160 = vpack.c.b16 %v6712, %v6704
        %v7161 = vpack.c.b16 %v6713, %v6705
        %v7162 = vpack.c.b16 %v6714, %v6706
        %v7163 = vpack.c.b16 %v6715, %v6707
        %v7164 = vpack.c.b16 %v6724, %v6716
        %v7165 = vpack.c.b16 %v6725, %v6717
        %v7166 = vpack.c.b16 %v6726, %v6718
        %v7167 = vpack.c.b16 %v6727, %v6719
        %v7168 = vpack.c.b16 %v6728, %v6720
        %v7169 = vpack.c.b16 %v6729, %v6721
        %v7170 = vpack.c.b16 %v6730, %v6722
        %v7171 = vpack.c.b16 %v6731, %v6723
        %v7172 = vpack.c.b16 %v6740, %v6732
        %v7173 = vpack.c.b16 %v6741, %v6733
        %v7174 = vpack.c.b16 %v6742, %v6734
        %v7175 = vpack.c.b16 %v6743, %v6735
        %v7176 = vpack.c.b16 %v6744, %v6736
        %v7177 = vpack.c.b16 %v6745, %v6737
        %v7178 = vpack.c.b16 %v6746, %v6738
        %v7179 = vpack.c.b16 %v6747, %v6739
        %v7180 = vpack.c.b16 %v6756, %v6748
        %v7181 = vpack.c.b16 %v6757, %v6749
        %v7182 = vpack.c.b16 %v6758, %v6750
        %v7183 = vpack.c.b16 %v6759, %v6751
        %v7184 = vpack.c.b16 %v6760, %v6752
        %v7185 = vpack.c.b16 %v6761, %v6753
        %v7186 = vpack.c.b16 %v6762, %v6754
        %v7187 = vpack.c.b16 %v6763, %v6755
        %v7188 = vpack.c.b16 %v6772, %v6764
        %v7189 = vpack.c.b16 %v6773, %v6765
        %v7190 = vpack.c.b16 %v6774, %v6766
        %v7191 = vpack.c.b16 %v6775, %v6767
        %v7192 = vpack.c.b16 %v6776, %v6768
        %v7193 = vpack.c.b16 %v6777, %v6769
        %v7194 = vpack.c.b16 %v6778, %v6770
        %v7195 = vpack.c.b16 %v6779, %v6771
        %v7196 = vpack.c.b16 %v6788, %v6780
        %v7197 = vpack.c.b16 %v6789, %v6781
        %v7198 = vpack.c.b16 %v6790, %v6782
        %v7199 = vpack.c.b16 %v6791, %v6783
        %v7200 = vpack.c.b16 %v6792, %v6784
        %v7201 = vpack.c.b16 %v6793, %v6785
        %v7202 = vpack.c.b16 %v6794, %v6786
        %v7203 = vpack.c.b16 %v6795, %v6787
        %v7204 = vpack.c.b16 %v6804, %v6796
        %v7205 = vpack.c.b16 %v6805, %v6797
        %v7206 = vpack.c.b16 %v6806, %v6798
        %v7207 = vpack.c.b16 %v6807, %v6799
        %v7208 = vpack.c.b16 %v6808, %v6800
        %v7209 = vpack.c.b16 %v6809, %v6801
        %v7210 = vpack.c.b16 %v6810, %v6802
        %v7211 = vpack.c.b16 %v6811, %v6803
        %v7212 = vpack.c.b16 %v6820, %v6812
        %v7213 = vpack.c.b16 %v6821, %v6813
        %v7214 = vpack.c.b16 %v6822, %v6814
        %v7215 = vpack.c.b16 %v6823, %v6815
        %v7216 = vpack.c.b16 %v6824, %v6816
        %v7217 = vpack.c.b16 %v6825, %v6817
        %v7218 = vpack.c.b16 %v6826, %v6818
        %v7219 = vpack.c.b16 %v6827, %v6819
        %v7220 = vpack.c.b16 %v6836, %v6828
        %v7221 = vpack.c.b16 %v6837, %v6829
        %v7222 = vpack.c.b16 %v6838, %v6830
        %v7223 = vpack.c.b16 %v6839, %v6831
        %v7224 = vpack.c.b16 %v6840, %v6832
        %v7225 = vpack.c.b16 %v6841, %v6833
        %v7226 = vpack.c.b16 %v6842, %v6834
        %v7227 = vpack.c.b16 %v6843, %v6835
        %v7228 = vpack.c.b16 %v6852, %v6844
        %v7229 = vpack.c.b16 %v6853, %v6845
        %v7230 = vpack.c.b16 %v6854, %v6846
        %v7231 = vpack.c.b16 %v6855, %v6847
        %v7232 = vpack.c.b16 %v6856, %v6848
        %v7233 = vpack.c.b16 %v6857, %v6849
        %v7234 = vpack.c.b16 %v6858, %v6850
        %v7235 = vpack.c.b16 %v6859, %v6851
        %v7236 = vpack.c.b16 %v6868, %v6860
        %v7237 = vpack.c.b16 %v6869, %v6861
        %v7238 = vpack.c.b16 %v6870, %v6862
        %v7239 = vpack.c.b16 %v6871, %v6863
        %v7240 = vpack.c.b16 %v6872, %v6864
        %v7241 = vpack.c.b16 %v6873, %v6865
        %v7242 = vpack.c.b16 %v6874, %v6866
        %v7243 = vpack.c.b16 %v6875, %v6867
        %v7244 = vpack.c.b16 %v6884, %v6876
        %v7245 = vpack.c.b16 %v6885, %v6877
        %v7246 = vpack.c.b16 %v6886, %v6878
        %v7247 = vpack.c.b16 %v6887, %v6879
        %v7248 = vpack.c.b16 %v6888, %v6880
        %v7249 = vpack.c.b16 %v6889, %v6881
        %v7250 = vpack.c.b16 %v6890, %v6882
        %v7251 = vpack.c.b16 %v6891, %v6883
        %v7252 = vpack.c.b16 %v6900, %v6892
        %v7253 = vpack.c.b16 %v6901, %v6893
        %v7254 = vpack.c.b16 %v6902, %v6894
        %v7255 = vpack.c.b16 %v6903, %v6895
        %v7256 = vpack.c.b16 %v6904, %v6896
        %v7257 = vpack.c.b16 %v6905, %v6897
        %v7258 = vpack.c.b16 %v6906, %v6898
        %v7259 = vpack.c.b16 %v6907, %v6899
        %v7260 = vpack.c.b16 %v6916, %v6908
        %v7261 = vpack.c.b16 %v6917, %v6909
        %v7262 = vpack.c.b16 %v6918, %v6910
        %v7263 = vpack.c.b16 %v6919, %v6911
        %v7264 = vpack.c.b16 %v6920, %v6912
        %v7265 = vpack.c.b16 %v6921, %v6913
        %v7266 = vpack.c.b16 %v6922, %v6914
        %v7267 = vpack.c.b16 %v6923, %v6915
        %v7268 = vpack.c.b16 %v6932, %v6924
        %v7269 = vpack.c.b16 %v6933, %v6925
        %v7270 = vpack.c.b16 %v6934, %v6926
        %v7271 = vpack.c.b16 %v6935, %v6927
        %v7272 = vpack.c.b16 %v6936, %v6928
        %v7273 = vpack.c.b16 %v6937, %v6929
        %v7274 = vpack.c.b16 %v6938, %v6930
        %v7275 = vpack.c.b16 %v6939, %v6931
        %v7276 = vpack.c.b16 %v6948, %v6940
        %v7277 = vpack.c.b16 %v6949, %v6941
        %v7278 = vpack.c.b16 %v6950, %v6942
        %v7279 = vpack.c.b16 %v6951, %v6943
        %v7280 = vpack.c.b16 %v6952, %v6944
        %v7281 = vpack.c.b16 %v6953, %v6945
        %v7282 = vpack.c.b16 %v6954, %v6946
        %v7283 = vpack.c.b16 %v6955, %v6947
        %v7284 = vpack.c.b16 %v6964, %v6956
        %v7285 = vpack.c.b16 %v6965, %v6957
        %v7286 = vpack.c.b16 %v6966, %v6958
        %v7287 = vpack.c.b16 %v6967, %v6959
        %v7288 = vpack.c.b16 %v6968, %v6960
        %v7289 = vpack.c.b16 %v6969, %v6961
        %v7290 = vpack.c.b16 %v6970, %v6962
        %v7291 = vpack.c.b16 %v6971, %v6963
        %v7292 = vpack.c.b16 %v6980, %v6972
        %v7293 = vpack.c.b16 %v6981, %v6973
        %v7294 = vpack.c.b16 %v6982, %v6974
        %v7295 = vpack.c.b16 %v6983, %v6975
        %v7296 = vpack.c.b16 %v6984, %v6976
        %v7297 = vpack.c.b16 %v6985, %v6977
        %v7298 = vpack.c.b16 %v6986, %v6978
        %v7299 = vpack.c.b16 %v6987, %v6979
        %v7300 = vpack.c.b16 %v6996, %v6988
        %v7301 = vpack.c.b16 %v6997, %v6989
        %v7302 = vpack.c.b16 %v6998, %v6990
        %v7303 = vpack.c.b16 %v6999, %v6991
        %v7304 = vpack.c.b16 %v7000, %v6992
        %v7305 = vpack.c.b16 %v7001, %v6993
        %v7306 = vpack.c.b16 %v7002, %v6994
        %v7307 = vpack.c.b16 %v7003, %v6995
        %v7308 = vpack.c.b16 %v7012, %v7004
        %v7309 = vpack.c.b16 %v7013, %v7005
        %v7310 = vpack.c.b16 %v7014, %v7006
        %v7311 = vpack.c.b16 %v7015, %v7007
        %v7312 = vpack.c.b16 %v7016, %v7008
        %v7313 = vpack.c.b16 %v7017, %v7009
        %v7314 = vpack.c.b16 %v7018, %v7010
        %v7315 = vpack.c.b16 %v7019, %v7011
        %v7316 = vpack.c.b16 %v7028, %v7020
        %v7317 = vpack.c.b16 %v7029, %v7021
        %v7318 = vpack.c.b16 %v7030, %v7022
        %v7319 = vpack.c.b16 %v7031, %v7023
        %v7320 = vpack.c.b16 %v7032, %v7024
        %v7321 = vpack.c.b16 %v7033, %v7025
        %v7322 = vpack.c.b16 %v7034, %v7026
        %v7323 = vpack.c.b16 %v7035, %v7027
        %v7324 = vpack.c.b16 %v7044, %v7036
        %v7325 = vpack.c.b16 %v7045, %v7037
        %v7326 = vpack.c.b16 %v7046, %v7038
        %v7327 = vpack.c.b16 %v7047, %v7039
        %v7328 = vpack.c.b16 %v7048, %v7040
        %v7329 = vpack.c.b16 %v7049, %v7041
        %v7330 = vpack.c.b16 %v7050, %v7042
        %v7331 = vpack.c.b16 %v7051, %v7043
        %v7332 = vpack.c.b16 %v7060, %v7052
        %v7333 = vpack.c.b16 %v7061, %v7053
        %v7334 = vpack.c.b16 %v7062, %v7054
        %v7335 = vpack.c.b16 %v7063, %v7055
        %v7336 = vpack.c.b16 %v7064, %v7056
        %v7337 = vpack.c.b16 %v7065, %v7057
        %v7338 = vpack.c.b16 %v7066, %v7058
        %v7339 = vpack.c.b16 %v7067, %v7059
        %v7340 = vpack.c.b16 %v7076, %v7068
        %v7341 = vpack.c.b16 %v7077, %v7069
        %v7342 = vpack.c.b16 %v7078, %v7070
        %v7343 = vpack.c.b16 %v7079, %v7071
        %v7344 = vpack.c.b16 %v7080, %v7072
        %v7345 = vpack.c.b16 %v7081, %v7073
        %v7346 = vpack.c.b16 %v7082, %v7074
        %v7347 = vpack.c.b16 %v7083, %v7075
        %v7348 = vpack.c.b16 %v7092, %v7084
        %v7349 = vpack.c.b16 %v7093, %v7085
        %v7350 = vpack.c.b16 %v7094, %v7086
        %v7351 = vpack.c.b16 %v7095, %v7087
        %v7352 = vpack.c.b16 %v7096, %v7088
        %v7353 = vpack.c.b16 %v7097, %v7089
        %v7354 = vpack.c.b16 %v7098, %v7090
        %v7355 = vpack.c.b16 %v7099, %v7091
        %7612 = vmatprep.subr.bf16.mxu0 %v7157
        %7613 = vmatpush1.bf16.msra.mxu0 %v7156
        %7614 = vmatprep.subr.bf16.mxu0 %v7149
        %7615 = vmatpush1.bf16.msra.mxu0 %v7148
        %7616 = vmatprep.subr.bf16.mxu0 %v7141
        %7617 = vmatpush1.bf16.msra.mxu0 %v7140
        %7618 = vmatprep.subr.bf16.mxu0 %v7133
        %7619 = vmatpush1.bf16.msra.mxu0 %v7132
        %7620 = vmatprep.subr.bf16.mxu0 %v7125
        %7621 = vmatpush1.bf16.msra.mxu0 %v7124
        %7622 = vmatprep.subr.bf16.mxu0 %v7117
        %7623 = vmatpush1.bf16.msra.mxu0 %v7116
        %7624 = vmatprep.subr.bf16.mxu0 %v7109
        %7625 = vmatpush1.bf16.msra.mxu0 %v7108
        %7626 = vmatprep.subr.bf16.mxu0 %v7101
        %7627 = vmatpush1.bf16.msra.mxu0 %v7100
        %7628 = vmatprep.subr.bf16.mxu0 %v7221
        %7629 = vmatpush2.bf16.msra.mxu0 %v7220
        %7630 = vmatprep.subr.bf16.mxu0 %v7213
        %7631 = vmatpush2.bf16.msra.mxu0 %v7212
        %7632 = vmatprep.subr.bf16.mxu0 %v7205
        %7633 = vmatpush2.bf16.msra.mxu0 %v7204
        %7634 = vmatprep.subr.bf16.mxu0 %v7197
        %7635 = vmatpush2.bf16.msra.mxu0 %v7196
        %7636 = vmatprep.subr.bf16.mxu0 %v7189
        %7637 = vmatpush2.bf16.msra.mxu0 %v7188
        %7638 = vmatprep.subr.bf16.mxu0 %v7181
        %7639 = vmatpush2.bf16.msra.mxu0 %v7180
        %7640 = vmatprep.subr.bf16.mxu0 %v7173
        %7641 = vmatpush2.bf16.msra.mxu0 %v7172
        %7642 = vmatprep.subr.bf16.mxu0 %v7165
        %7643 = vmatpush2.bf16.msra.mxu0 %v7164
        %7644 = vmatprep.mubr.bf16.mxu0 %v6073
        %7645 = vmatmul.mubr.bf16.gmra.mxu0 %v6072
        %v7646 = vpop.f32.mrf.mxu0
        %v7647 = vadd.f32 0.0, %v7646
        %v7648 = vpop.f32.mrf.mxu0
        %v7649 = vadd.f32 0.0, %v7648
        %v7650 = vpop.f32.mrf.mxu0
        %v7651 = vpop.f32.mrf.mxu0
        %7652 = vdwg.mxu0
        %7653 = vmatprep.subr.bf16.mxu0 %v7285
        %7654 = vmatpush1.bf16.msra.mxu0 %v7284
        %7655 = vmatprep.subr.bf16.mxu0 %v7277
        %7656 = vmatpush1.bf16.msra.mxu0 %v7276
        %7657 = vmatprep.subr.bf16.mxu0 %v7269
        %7658 = vmatpush1.bf16.msra.mxu0 %v7268
        %7659 = vmatprep.subr.bf16.mxu0 %v7261
        %7660 = vmatpush1.bf16.msra.mxu0 %v7260
        %7661 = vmatprep.subr.bf16.mxu0 %v7253
        %7662 = vmatpush1.bf16.msra.mxu0 %v7252
        %7663 = vmatprep.subr.bf16.mxu0 %v7245
        %7664 = vmatpush1.bf16.msra.mxu0 %v7244
        %7665 = vmatprep.subr.bf16.mxu0 %v7237
        %7666 = vmatpush1.bf16.msra.mxu0 %v7236
        %7667 = vmatprep.subr.bf16.mxu0 %v7229
        %7668 = vmatpush1.bf16.msra.mxu0 %v7228
        %7669 = vmatprep.subr.bf16.mxu0 %v7349
        %7670 = vmatpush2.bf16.msra.mxu0 %v7348
        %7671 = vmatprep.subr.bf16.mxu0 %v7341
        %7672 = vmatpush2.bf16.msra.mxu0 %v7340
        %7673 = vmatprep.subr.bf16.mxu0 %v7333
        %7674 = vmatpush2.bf16.msra.mxu0 %v7332
        %7675 = vmatprep.subr.bf16.mxu0 %v7325
        %7676 = vmatpush2.bf16.msra.mxu0 %v7324
        %7677 = vmatprep.subr.bf16.mxu0 %v7317
        %7678 = vmatpush2.bf16.msra.mxu0 %v7316
        %7679 = vmatprep.subr.bf16.mxu0 %v7309
        %7680 = vmatpush2.bf16.msra.mxu0 %v7308
        %7681 = vmatprep.subr.bf16.mxu0 %v7301
        %7682 = vmatpush2.bf16.msra.mxu0 %v7300
        %7683 = vmatprep.subr.bf16.mxu0 %v7293
        %7684 = vmatpush2.bf16.msra.mxu0 %v7292
        %7685 = vmatprep.mubr.bf16.mxu0 %v6075
        %7686 = vmatmul.mubr.bf16.gmra.mxu0 %v6074
        %v7687 = vpop.f32.mrf.mxu0
        %v7688 = vadd.f32 %v7647, %v7687
        %v7689 = vpop.f32.mrf.mxu0
        %v7690 = vadd.f32 %v7649, %v7689
        %v7691 = vpop.f32.mrf.mxu0
        %v7692 = vpop.f32.mrf.mxu0
        %7693 = vdwg.mxu0
        %7694 = vmatprep.subr.bf16.mxu0 %v7159
        %7695 = vmatpush1.bf16.msra.mxu0 %v7158
        %7696 = vmatprep.subr.bf16.mxu0 %v7151
        %7697 = vmatpush1.bf16.msra.mxu0 %v7150
        %7698 = vmatprep.subr.bf16.mxu0 %v7143
        %7699 = vmatpush1.bf16.msra.mxu0 %v7142
        %7700 = vmatprep.subr.bf16.mxu0 %v7135
        %7701 = vmatpush1.bf16.msra.mxu0 %v7134
        %7702 = vmatprep.subr.bf16.mxu0 %v7127
        %7703 = vmatpush1.bf16.msra.mxu0 %v7126
        %7704 = vmatprep.subr.bf16.mxu0 %v7119
        %7705 = vmatpush1.bf16.msra.mxu0 %v7118
        %7706 = vmatprep.subr.bf16.mxu0 %v7111
        %7707 = vmatpush1.bf16.msra.mxu0 %v7110
        %7708 = vmatprep.subr.bf16.mxu0 %v7103
        %7709 = vmatpush1.bf16.msra.mxu0 %v7102
        %7710 = vmatprep.subr.bf16.mxu0 %v7223
        %7711 = vmatpush2.bf16.msra.mxu0 %v7222
        %7712 = vmatprep.subr.bf16.mxu0 %v7215
        %7713 = vmatpush2.bf16.msra.mxu0 %v7214
        %7714 = vmatprep.subr.bf16.mxu0 %v7207
        %7715 = vmatpush2.bf16.msra.mxu0 %v7206
        %7716 = vmatprep.subr.bf16.mxu0 %v7199
        %7717 = vmatpush2.bf16.msra.mxu0 %v7198
        %7718 = vmatprep.subr.bf16.mxu0 %v7191
        %7719 = vmatpush2.bf16.msra.mxu0 %v7190
        %7720 = vmatprep.subr.bf16.mxu0 %v7183
        %7721 = vmatpush2.bf16.msra.mxu0 %v7182
        %7722 = vmatprep.subr.bf16.mxu0 %v7175
        %7723 = vmatpush2.bf16.msra.mxu0 %v7174
        %7724 = vmatprep.subr.bf16.mxu0 %v7167
        %7725 = vmatpush2.bf16.msra.mxu0 %v7166
        %7726 = vmatprep.mubr.bf16.mxu0 %v6073
        %7727 = vmatmul.mubr.bf16.gmra.mxu0 %v6072
        %v7728 = vpop.f32.mrf.mxu0
        %v7729 = vadd.f32 0.0, %v7728
        %v7730 = vpop.f32.mrf.mxu0
        %v7731 = vadd.f32 0.0, %v7730
        %v7732 = vpop.f32.mrf.mxu0
        %v7733 = vpop.f32.mrf.mxu0
        %7734 = vdwg.mxu0
        %7735 = vmatprep.subr.bf16.mxu0 %v7287
        %7736 = vmatpush1.bf16.msra.mxu0 %v7286
        %7737 = vmatprep.subr.bf16.mxu0 %v7279
        %7738 = vmatpush1.bf16.msra.mxu0 %v7278
        %7739 = vmatprep.subr.bf16.mxu0 %v7271
        %7740 = vmatpush1.bf16.msra.mxu0 %v7270
        %7741 = vmatprep.subr.bf16.mxu0 %v7263
        %7742 = vmatpush1.bf16.msra.mxu0 %v7262
        %7743 = vmatprep.subr.bf16.mxu0 %v7255
        %7744 = vmatpush1.bf16.msra.mxu0 %v7254
        %7745 = vmatprep.subr.bf16.mxu0 %v7247
        %7746 = vmatpush1.bf16.msra.mxu0 %v7246
        %7747 = vmatprep.subr.bf16.mxu0 %v7239
        %7748 = vmatpush1.bf16.msra.mxu0 %v7238
        %7749 = vmatprep.subr.bf16.mxu0 %v7231
        %7750 = vmatpush1.bf16.msra.mxu0 %v7230
        %7751 = vmatprep.subr.bf16.mxu0 %v7351
        %7752 = vmatpush2.bf16.msra.mxu0 %v7350
        %7753 = vmatprep.subr.bf16.mxu0 %v7343
        %7754 = vmatpush2.bf16.msra.mxu0 %v7342
        %7755 = vmatprep.subr.bf16.mxu0 %v7335
        %7756 = vmatpush2.bf16.msra.mxu0 %v7334
        %7757 = vmatprep.subr.bf16.mxu0 %v7327
        %7758 = vmatpush2.bf16.msra.mxu0 %v7326
        %7759 = vmatprep.subr.bf16.mxu0 %v7319
        %7760 = vmatpush2.bf16.msra.mxu0 %v7318
        %7761 = vmatprep.subr.bf16.mxu0 %v7311
        %7762 = vmatpush2.bf16.msra.mxu0 %v7310
        %7763 = vmatprep.subr.bf16.mxu0 %v7303
        %7764 = vmatpush2.bf16.msra.mxu0 %v7302
        %7765 = vmatprep.subr.bf16.mxu0 %v7295
        %7766 = vmatpush2.bf16.msra.mxu0 %v7294
        %7767 = vmatprep.mubr.bf16.mxu0 %v6075
        %7768 = vmatmul.mubr.bf16.gmra.mxu0 %v6074
        %v7769 = vpop.f32.mrf.mxu0
        %v7770 = vadd.f32 %v7729, %v7769
        %v7771 = vpop.f32.mrf.mxu0
        %v7772 = vadd.f32 %v7731, %v7771
        %v7773 = vpop.f32.mrf.mxu0
        %v7774 = vpop.f32.mrf.mxu0
        %7775 = vdwg.mxu0
        %7776 = vmatprep.subr.bf16.mxu0 %v7161
        %7777 = vmatpush1.bf16.msra.mxu0 %v7160
        %7778 = vmatprep.subr.bf16.mxu0 %v7153
        %7779 = vmatpush1.bf16.msra.mxu0 %v7152
        %7780 = vmatprep.subr.bf16.mxu0 %v7145
        %7781 = vmatpush1.bf16.msra.mxu0 %v7144
        %7782 = vmatprep.subr.bf16.mxu0 %v7137
        %7783 = vmatpush1.bf16.msra.mxu0 %v7136
        %7784 = vmatprep.subr.bf16.mxu0 %v7129
        %7785 = vmatpush1.bf16.msra.mxu0 %v7128
        %7786 = vmatprep.subr.bf16.mxu0 %v7121
        %7787 = vmatpush1.bf16.msra.mxu0 %v7120
        %7788 = vmatprep.subr.bf16.mxu0 %v7113
        %7789 = vmatpush1.bf16.msra.mxu0 %v7112
        %7790 = vmatprep.subr.bf16.mxu0 %v7105
        %7791 = vmatpush1.bf16.msra.mxu0 %v7104
        %7792 = vmatprep.subr.bf16.mxu0 %v7225
        %7793 = vmatpush2.bf16.msra.mxu0 %v7224
        %7794 = vmatprep.subr.bf16.mxu0 %v7217
        %7795 = vmatpush2.bf16.msra.mxu0 %v7216
        %7796 = vmatprep.subr.bf16.mxu0 %v7209
        %7797 = vmatpush2.bf16.msra.mxu0 %v7208
        %7798 = vmatprep.subr.bf16.mxu0 %v7201
        %7799 = vmatpush2.bf16.msra.mxu0 %v7200
        %7800 = vmatprep.subr.bf16.mxu0 %v7193
        %7801 = vmatpush2.bf16.msra.mxu0 %v7192
        %7802 = vmatprep.subr.bf16.mxu0 %v7185
        %7803 = vmatpush2.bf16.msra.mxu0 %v7184
        %7804 = vmatprep.subr.bf16.mxu0 %v7177
        %7805 = vmatpush2.bf16.msra.mxu0 %v7176
        %7806 = vmatprep.subr.bf16.mxu0 %v7169
        %7807 = vmatpush2.bf16.msra.mxu0 %v7168
        %7808 = vmatprep.mubr.bf16.mxu0 %v6073
        %7809 = vmatmul.mubr.bf16.gmra.mxu0 %v6072
        %v7810 = vpop.f32.mrf.mxu0
        %v7811 = vadd.f32 0.0, %v7810
        %v7812 = vpop.f32.mrf.mxu0
        %v7813 = vadd.f32 0.0, %v7812
        %v7814 = vpop.f32.mrf.mxu0
        %v7815 = vpop.f32.mrf.mxu0
        %7816 = vdwg.mxu0
        %7817 = vmatprep.subr.bf16.mxu0 %v7289
        %7818 = vmatpush1.bf16.msra.mxu0 %v7288
        %7819 = vmatprep.subr.bf16.mxu0 %v7281
        %7820 = vmatpush1.bf16.msra.mxu0 %v7280
        %7821 = vmatprep.subr.bf16.mxu0 %v7273
        %7822 = vmatpush1.bf16.msra.mxu0 %v7272
        %7823 = vmatprep.subr.bf16.mxu0 %v7265
        %7824 = vmatpush1.bf16.msra.mxu0 %v7264
        %7825 = vmatprep.subr.bf16.mxu0 %v7257
        %7826 = vmatpush1.bf16.msra.mxu0 %v7256
        %7827 = vmatprep.subr.bf16.mxu0 %v7249
        %7828 = vmatpush1.bf16.msra.mxu0 %v7248
        %7829 = vmatprep.subr.bf16.mxu0 %v7241
        %7830 = vmatpush1.bf16.msra.mxu0 %v7240
        %7831 = vmatprep.subr.bf16.mxu0 %v7233
        %7832 = vmatpush1.bf16.msra.mxu0 %v7232
        %7833 = vmatprep.subr.bf16.mxu0 %v7353
        %7834 = vmatpush2.bf16.msra.mxu0 %v7352
        %7835 = vmatprep.subr.bf16.mxu0 %v7345
        %7836 = vmatpush2.bf16.msra.mxu0 %v7344
        %7837 = vmatprep.subr.bf16.mxu0 %v7337
        %7838 = vmatpush2.bf16.msra.mxu0 %v7336
        %7839 = vmatprep.subr.bf16.mxu0 %v7329
        %7840 = vmatpush2.bf16.msra.mxu0 %v7328
        %7841 = vmatprep.subr.bf16.mxu0 %v7321
        %7842 = vmatpush2.bf16.msra.mxu0 %v7320
        %7843 = vmatprep.subr.bf16.mxu0 %v7313
        %7844 = vmatpush2.bf16.msra.mxu0 %v7312
        %7845 = vmatprep.subr.bf16.mxu0 %v7305
        %7846 = vmatpush2.bf16.msra.mxu0 %v7304
        %7847 = vmatprep.subr.bf16.mxu0 %v7297
        %7848 = vmatpush2.bf16.msra.mxu0 %v7296
        %7849 = vmatprep.mubr.bf16.mxu0 %v6075
        %7850 = vmatmul.mubr.bf16.gmra.mxu0 %v6074
        %v7851 = vpop.f32.mrf.mxu0
        %v7852 = vadd.f32 %v7811, %v7851
        %v7853 = vpop.f32.mrf.mxu0
        %v7854 = vadd.f32 %v7813, %v7853
        %v7855 = vpop.f32.mrf.mxu0
        %v7856 = vpop.f32.mrf.mxu0
        %7857 = vdwg.mxu0
        %7858 = vmatprep.subr.bf16.mxu0 %v7163
        %7859 = vmatpush1.bf16.msra.mxu0 %v7162
        %7860 = vmatprep.subr.bf16.mxu0 %v7155
        %7861 = vmatpush1.bf16.msra.mxu0 %v7154
        %7862 = vmatprep.subr.bf16.mxu0 %v7147
        %7863 = vmatpush1.bf16.msra.mxu0 %v7146
        %7864 = vmatprep.subr.bf16.mxu0 %v7139
        %7865 = vmatpush1.bf16.msra.mxu0 %v7138
        %7866 = vmatprep.subr.bf16.mxu0 %v7131
        %7867 = vmatpush1.bf16.msra.mxu0 %v7130
        %7868 = vmatprep.subr.bf16.mxu0 %v7123
        %7869 = vmatpush1.bf16.msra.mxu0 %v7122
        %7870 = vmatprep.subr.bf16.mxu0 %v7115
        %7871 = vmatpush1.bf16.msra.mxu0 %v7114
        %7872 = vmatprep.subr.bf16.mxu0 %v7107
        %7873 = vmatpush1.bf16.msra.mxu0 %v7106
        %7874 = vmatprep.subr.bf16.mxu0 %v7227
        %7875 = vmatpush2.bf16.msra.mxu0 %v7226
        %7876 = vmatprep.subr.bf16.mxu0 %v7219
        %7877 = vmatpush2.bf16.msra.mxu0 %v7218
        %7878 = vmatprep.subr.bf16.mxu0 %v7211
        %7879 = vmatpush2.bf16.msra.mxu0 %v7210
        %7880 = vmatprep.subr.bf16.mxu0 %v7203
        %7881 = vmatpush2.bf16.msra.mxu0 %v7202
        %7882 = vmatprep.subr.bf16.mxu0 %v7195
        %7883 = vmatpush2.bf16.msra.mxu0 %v7194
        %7884 = vmatprep.subr.bf16.mxu0 %v7187
        %7885 = vmatpush2.bf16.msra.mxu0 %v7186
        %7886 = vmatprep.subr.bf16.mxu0 %v7179
        %7887 = vmatpush2.bf16.msra.mxu0 %v7178
        %7888 = vmatprep.subr.bf16.mxu0 %v7171
        %7889 = vmatpush2.bf16.msra.mxu0 %v7170
        %7890 = vmatprep.mubr.bf16.mxu0 %v6073
        %7891 = vmatmul.mubr.bf16.gmra.mxu0 %v6072
        %v7892 = vpop.f32.mrf.mxu0
        %v7893 = vadd.f32 0.0, %v7892
        %v7894 = vpop.f32.mrf.mxu0
        %v7895 = vadd.f32 0.0, %v7894
        %v7896 = vpop.f32.mrf.mxu0
        %v7897 = vpop.f32.mrf.mxu0
        %7898 = vdwg.mxu0
        %7899 = vmatprep.subr.bf16.mxu0 %v7291
        %7900 = vmatpush1.bf16.msra.mxu0 %v7290
        %7901 = vmatprep.subr.bf16.mxu0 %v7283
        %7902 = vmatpush1.bf16.msra.mxu0 %v7282
        %7903 = vmatprep.subr.bf16.mxu0 %v7275
        %7904 = vmatpush1.bf16.msra.mxu0 %v7274
        %7905 = vmatprep.subr.bf16.mxu0 %v7267
        %7906 = vmatpush1.bf16.msra.mxu0 %v7266
        %7907 = vmatprep.subr.bf16.mxu0 %v7259
        %7908 = vmatpush1.bf16.msra.mxu0 %v7258
        %7909 = vmatprep.subr.bf16.mxu0 %v7251
        %7910 = vmatpush1.bf16.msra.mxu0 %v7250
        %7911 = vmatprep.subr.bf16.mxu0 %v7243
        %7912 = vmatpush1.bf16.msra.mxu0 %v7242
        %7913 = vmatprep.subr.bf16.mxu0 %v7235
        %7914 = vmatpush1.bf16.msra.mxu0 %v7234
        %7915 = vmatprep.subr.bf16.mxu0 %v7355
        %7916 = vmatpush2.bf16.msra.mxu0 %v7354
        %7917 = vmatprep.subr.bf16.mxu0 %v7347
        %7918 = vmatpush2.bf16.msra.mxu0 %v7346
        %7919 = vmatprep.subr.bf16.mxu0 %v7339
        %7920 = vmatpush2.bf16.msra.mxu0 %v7338
        %7921 = vmatprep.subr.bf16.mxu0 %v7331
        %7922 = vmatpush2.bf16.msra.mxu0 %v7330
        %7923 = vmatprep.subr.bf16.mxu0 %v7323
        %7924 = vmatpush2.bf16.msra.mxu0 %v7322
        %7925 = vmatprep.subr.bf16.mxu0 %v7315
        %7926 = vmatpush2.bf16.msra.mxu0 %v7314
        %7927 = vmatprep.subr.bf16.mxu0 %v7307
        %7928 = vmatpush2.bf16.msra.mxu0 %v7306
        %7929 = vmatprep.subr.bf16.mxu0 %v7299
        %7930 = vmatpush2.bf16.msra.mxu0 %v7298
        %7931 = vmatprep.mubr.bf16.mxu0 %v6075
        %7932 = vmatmul.mubr.bf16.gmra.mxu0 %v6074
        %v7933 = vpop.f32.mrf.mxu0
        %v7934 = vadd.f32 %v7893, %v7933
        %v7935 = vpop.f32.mrf.mxu0
        %v7936 = vadd.f32 %v7895, %v7935
        %v7937 = vpop.f32.mrf.mxu0
        %v7938 = vpop.f32.mrf.mxu0
        %7939 = vdwg.mxu0
        %v7940 = vld [vmem:[#allocation3] sm:$0xff]
        %v7941 = vld [vmem:[#allocation3 + $0x8] sm:$0xff]
        %v7942 = vmul.f32 %v2201, %v7688
        %v7943 = vmul.f32 %v2201, %v7690
        %v7944 = vmul.f32 %v2201, %v7770
        %v7945 = vmul.f32 %v2201, %v7772
        %v7946 = vmul.f32 %v2201, %v7852
        %v7947 = vmul.f32 %v2201, %v7854
        %v7948 = vmul.f32 %v2201, %v7934
        %v7949 = vmul.f32 %v2201, %v7936
        %v7958 = vcombine.low %v7942, %v7943
        %v7959 = vcombine.low %v7944, %v7945
        %v7961 = vunpack.c.l.s4 1983009808
        %v7962 = vunpack.c.0.s8 %v7961
        %v7963 = vlaneseq
        %v7964 = vshrl.u32 %v7963, 7
        %v7965 = vsub.s32 %v7962, %v7964
        %v7966 = vrot.slane %v7958, %v7965
        %v7968 = vunpack.c.l.s4 1983009808
        %v7969 = vunpack.c.0.s8 %v7968
        %v7970 = vlaneseq
        %v7971 = vshrl.u32 %v7970, 7
        %v7972 = vsub.s32 %v7969, %v7971
        %v7973 = vrot.slane %v7959, %v7972
        %v7974 = vcombine.low %v7966, %v7973
        %v7975 = vcombine.low %v7946, %v7947
        %v7976 = vcombine.low %v7948, %v7949
        %v7978 = vunpack.c.l.s4 1983009808
        %v7979 = vunpack.c.0.s8 %v7978
        %v7980 = vlaneseq
        %v7981 = vshrl.u32 %v7980, 7
        %v7982 = vsub.s32 %v7979, %v7981
        %v7983 = vrot.slane %v7975, %v7982
        %v7985 = vunpack.c.l.s4 1983009808
        %v7986 = vunpack.c.0.s8 %v7985
        %v7987 = vlaneseq
        %v7988 = vshrl.u32 %v7987, 7
        %v7989 = vsub.s32 %v7986, %v7988
        %v7990 = vrot.slane %v7976, %v7989
        %v7991 = vcombine.low %v7983, %v7990
        %v7994 = vadd.f32 %v7940, %v7974
        %v7995 = vadd.f32 %v7941, %v7991
        %7996 = vst [vmem:[#allocation3] sm:$0xff] %v7994
        %7997 = vst [vmem:[#allocation3 + $0x8] sm:$0xff] %v7995
        // Predicated region
        $region101: #{gate_model_forward.1} parent=63 // pred_check
          %p7998 = pneg %p586
        $region102: #{gate_model_forward.1} parent=63 // pred_check_branch
          %8000 = sbr.rel (%p7998) target = $region104
        $region103: #{gate_model_forward.1} parent=63 // pred_region
          %v8001 = vld [vmem:[#allocation3] sm:$0xff]
          %v8002 = vld [vmem:[#allocation3 + $0x8] sm:$0xff]
          %v8003 = vld [vmem:[%s528] sm:$0xff]
          %v8005 = vlaneseq
          %v8006 = vshrl.u32 %v8005, 7
          %v8007 = vsub.s32 0, %v8006
          %v8008 = vrot.slane %v8003, %v8007
          %v8009 = vlaneseq
          %v8010 = vshrl.u32 %v8009, 7
          %v8011 = vsub.s32 1, %v8010
          %v8012 = vrot.slane %v8003, %v8011
          %v8013 = vlaneseq
          %v8014 = vshrl.u32 %v8013, 7
          %v8015 = vsub.s32 2, %v8014
          %v8016 = vrot.slane %v8003, %v8015
          %v8017 = vlaneseq
          %v8018 = vshrl.u32 %v8017, 7
          %v8019 = vsub.s32 3, %v8018
          %v8020 = vrot.slane %v8003, %v8019
          %v8021 = vlaneseq
          %v8022 = vshrl.u32 %v8021, 7
          %v8023 = vsub.s32 4, %v8022
          %v8024 = vrot.slane %v8003, %v8023
          %v8025 = vlaneseq
          %v8026 = vshrl.u32 %v8025, 7
          %v8027 = vsub.s32 5, %v8026
          %v8028 = vrot.slane %v8003, %v8027
          %v8029 = vlaneseq
          %v8030 = vshrl.u32 %v8029, 7
          %v8031 = vsub.s32 6, %v8030
          %v8032 = vrot.slane %v8003, %v8031
          %v8033 = vlaneseq
          %v8034 = vshrl.u32 %v8033, 7
          %v8035 = vsub.s32 7, %v8034
          %v8036 = vrot.slane %v8003, %v8035
          %v8045 = vmul.f32 %v2201, %v8008
          %v8046 = vmul.f32 %v2201, %v8012
          %v8047 = vmul.f32 %v2201, %v8016
          %v8048 = vmul.f32 %v2201, %v8020
          %v8049 = vmul.f32 %v2201, %v8024
          %v8050 = vmul.f32 %v2201, %v8028
          %v8051 = vmul.f32 %v2201, %v8032
          %v8052 = vmul.f32 %v2201, %v8036
          %v8061 = vcombine.low %v8045, %v8046
          %v8062 = vcombine.low %v8047, %v8048
          %v8064 = vunpack.c.l.s4 1983009808
          %v8065 = vunpack.c.0.s8 %v8064
          %v8066 = vlaneseq
          %v8067 = vshrl.u32 %v8066, 7
          %v8068 = vsub.s32 %v8065, %v8067
          %v8069 = vrot.slane %v8061, %v8068
          %v8071 = vunpack.c.l.s4 1983009808
          %v8072 = vunpack.c.0.s8 %v8071
          %v8073 = vlaneseq
          %v8074 = vshrl.u32 %v8073, 7
          %v8075 = vsub.s32 %v8072, %v8074
          %v8076 = vrot.slane %v8062, %v8075
          %v8077 = vcombine.low %v8069, %v8076
          %v8078 = vcombine.low %v8049, %v8050
          %v8079 = vcombine.low %v8051, %v8052
          %v8081 = vunpack.c.l.s4 1983009808
          %v8082 = vunpack.c.0.s8 %v8081
          %v8083 = vlaneseq
          %v8084 = vshrl.u32 %v8083, 7
          %v8085 = vsub.s32 %v8082, %v8084
          %v8086 = vrot.slane %v8078, %v8085
          %v8088 = vunpack.c.l.s4 1983009808
          %v8089 = vunpack.c.0.s8 %v8088
          %v8090 = vlaneseq
          %v8091 = vshrl.u32 %v8090, 7
          %v8092 = vsub.s32 %v8089, %v8091
          %v8093 = vrot.slane %v8079, %v8092
          %v8094 = vcombine.low %v8086, %v8093
          %v8097 = vadd.f32 %v8001, %v8077
          %v8098 = vadd.f32 %v8002, %v8094
          %8099 = vst [vmem:[#allocation3] sm:$0xff] %v8097
          %8100 = vst [vmem:[#allocation3 + $0x8] sm:$0xff] %v8098
        $region104: #{gate_model_forward.1} parent=63 // pred_fallthru
          _
        // Predicated region
        $region105: #{gate_model_forward.1} parent=63 // pred_check
          _
        $region106: #{gate_model_forward.1} parent=63 // pred_check_branch
          %8102 = sbr.rel (%p591) target = $region108
        $region107: #{gate_model_forward.1} parent=63 // pred_region
          %v8103 = vld [vmem:[#allocation3] sm:$0xff]
          %v8104 = vld [vmem:[#allocation3 + $0x8] sm:$0xff]
          %v8105 = vmax.f32 %v8103, 0.0
          %v8106 = vmax.f32 %v8104, 0.0
          %v8109 = vcombine.high %v8105, %v8105
          %v8111 = vunpack.c.l.s4 1983009808
          %v8112 = vunpack.c.0.s8 %v8111
          %v8113 = vlaneseq
          %v8114 = vshrl.u32 %v8113, 7
          %v8115 = vsub.s32 %v8112, %v8114
          %v8116 = vrot.slane %v8105, %v8115
          %v8118 = vunpack.c.l.s4 1983009808
          %v8119 = vunpack.c.0.s8 %v8118
          %v8120 = vlaneseq
          %v8121 = vshrl.u32 %v8120, 7
          %v8122 = vsub.s32 %v8119, %v8121
          %v8123 = vrot.slane %v8109, %v8122
          %v8124 = vcombine.high %v8116, %v8116
          %v8125 = vcombine.high %v8123, %v8123
          %v8126 = vcombine.high %v8106, %v8106
          %v8128 = vunpack.c.l.s4 1983009808
          %v8129 = vunpack.c.0.s8 %v8128
          %v8130 = vlaneseq
          %v8131 = vshrl.u32 %v8130, 7
          %v8132 = vsub.s32 %v8129, %v8131
          %v8133 = vrot.slane %v8106, %v8132
          %v8135 = vunpack.c.l.s4 1983009808
          %v8136 = vunpack.c.0.s8 %v8135
          %v8137 = vlaneseq
          %v8138 = vshrl.u32 %v8137, 7
          %v8139 = vsub.s32 %v8136, %v8138
          %v8140 = vrot.slane %v8126, %v8139
          %v8141 = vcombine.high %v8133, %v8133
          %v8142 = vcombine.high %v8140, %v8140
          %v8151 = vpack.c.bf16 %v8116, %v8116
          %v8152 = vpack.c.bf16 %v8124, %v8124
          %v8153 = vpack.c.bf16 %v8123, %v8123
          %v8154 = vpack.c.bf16 %v8125, %v8125
          %v8155 = vpack.c.bf16 %v8133, %v8133
          %v8156 = vpack.c.bf16 %v8141, %v8141
          %v8157 = vpack.c.bf16 %v8140, %v8140
          %v8158 = vpack.c.bf16 %v8142, %v8142
          %v8159 = vld [vmem:[%s9] sm:$0xf]
          %v8160 = vld [vmem:[%s9 + $0x4] sm:$0xf]
          %v8161 = vld [vmem:[%s9 + $0x8] sm:$0xf]
          %v8162 = vld [vmem:[%s9 + $0xc] sm:$0xf]
          %v8163 = vld [vmem:[%s9 + $0x10] sm:$0xf]
          %v8164 = vld [vmem:[%s9 + $0x14] sm:$0xf]
          %v8165 = vld [vmem:[%s9 + $0x18] sm:$0xf]
          %v8166 = vld [vmem:[%s9 + $0x1c] sm:$0xf]
          %v8167 = vld [vmem:[%s9 + $0x20] sm:$0xf]
          %v8168 = vld [vmem:[%s9 + $0x24] sm:$0xf]
          %v8169 = vld [vmem:[%s9 + $0x28] sm:$0xf]
          %v8170 = vld [vmem:[%s9 + $0x2c] sm:$0xf]
          %v8171 = vld [vmem:[%s9 + $0x30] sm:$0xf]
          %v8172 = vld [vmem:[%s9 + $0x34] sm:$0xf]
          %v8173 = vld [vmem:[%s9 + $0x38] sm:$0xf]
          %v8174 = vld [vmem:[%s9 + $0x3c] sm:$0xf]
          %v8175 = vld [vmem:[%s9 + $0x40] sm:$0xf]
          %v8176 = vld [vmem:[%s9 + $0x44] sm:$0xf]
          %v8177 = vld [vmem:[%s9 + $0x48] sm:$0xf]
          %v8178 = vld [vmem:[%s9 + $0x4c] sm:$0xf]
          %v8179 = vld [vmem:[%s9 + $0x50] sm:$0xf]
          %v8180 = vld [vmem:[%s9 + $0x54] sm:$0xf]
          %v8181 = vld [vmem:[%s9 + $0x58] sm:$0xf]
          %v8182 = vld [vmem:[%s9 + $0x5c] sm:$0xf]
          %v8183 = vld [vmem:[%s9 + $0x60] sm:$0xf]
          %v8184 = vld [vmem:[%s9 + $0x64] sm:$0xf]
          %v8185 = vld [vmem:[%s9 + $0x68] sm:$0xf]
          %v8186 = vld [vmem:[%s9 + $0x6c] sm:$0xf]
          %v8187 = vld [vmem:[%s9 + $0x70] sm:$0xf]
          %v8188 = vld [vmem:[%s9 + $0x74] sm:$0xf]
          %v8189 = vld [vmem:[%s9 + $0x78] sm:$0xf]
          %v8190 = vld [vmem:[%s9 + $0x7c] sm:$0xf]
          %v8191 = vld [vmem:[%s9 + $0x80] sm:$0xf]
          %v8192 = vld [vmem:[%s9 + $0x84] sm:$0xf]
          %v8193 = vld [vmem:[%s9 + $0x88] sm:$0xf]
          %v8194 = vld [vmem:[%s9 + $0x8c] sm:$0xf]
          %v8195 = vld [vmem:[%s9 + $0x90] sm:$0xf]
          %v8196 = vld [vmem:[%s9 + $0x94] sm:$0xf]
          %v8197 = vld [vmem:[%s9 + $0x98] sm:$0xf]
          %v8198 = vld [vmem:[%s9 + $0x9c] sm:$0xf]
          %v8199 = vld [vmem:[%s9 + $0xa0] sm:$0xf]
          %v8200 = vld [vmem:[%s9 + $0xa4] sm:$0xf]
          %v8201 = vld [vmem:[%s9 + $0xa8] sm:$0xf]
          %v8202 = vld [vmem:[%s9 + $0xac] sm:$0xf]
          %v8203 = vld [vmem:[%s9 + $0xb0] sm:$0xf]
          %v8204 = vld [vmem:[%s9 + $0xb4] sm:$0xf]
          %v8205 = vld [vmem:[%s9 + $0xb8] sm:$0xf]
          %v8206 = vld [vmem:[%s9 + $0xbc] sm:$0xf]
          %v8207 = vld [vmem:[%s9 + $0xc0] sm:$0xf]
          %v8208 = vld [vmem:[%s9 + $0xc4] sm:$0xf]
          %v8209 = vld [vmem:[%s9 + $0xc8] sm:$0xf]
          %v8210 = vld [vmem:[%s9 + $0xcc] sm:$0xf]
          %v8211 = vld [vmem:[%s9 + $0xd0] sm:$0xf]
          %v8212 = vld [vmem:[%s9 + $0xd4] sm:$0xf]
          %v8213 = vld [vmem:[%s9 + $0xd8] sm:$0xf]
          %v8214 = vld [vmem:[%s9 + $0xdc] sm:$0xf]
          %v8215 = vld [vmem:[%s9 + $0xe0] sm:$0xf]
          %v8216 = vld [vmem:[%s9 + $0xe4] sm:$0xf]
          %v8217 = vld [vmem:[%s9 + $0xe8] sm:$0xf]
          %v8218 = vld [vmem:[%s9 + $0xec] sm:$0xf]
          %v8219 = vld [vmem:[%s9 + $0xf0] sm:$0xf]
          %v8220 = vld [vmem:[%s9 + $0xf4] sm:$0xf]
          %v8221 = vld [vmem:[%s9 + $0xf8] sm:$0xf]
          %v8222 = vld [vmem:[%s9 + $0xfc] sm:$0xf]
          %v8223 = vld [vmem:[%s9 + $0x100] sm:$0xf]
          %v8224 = vld [vmem:[%s9 + $0x104] sm:$0xf]
          %v8225 = vld [vmem:[%s9 + $0x108] sm:$0xf]
          %v8226 = vld [vmem:[%s9 + $0x10c] sm:$0xf]
          %v8227 = vld [vmem:[%s9 + $0x110] sm:$0xf]
          %v8228 = vld [vmem:[%s9 + $0x114] sm:$0xf]
          %v8229 = vld [vmem:[%s9 + $0x118] sm:$0xf]
          %v8230 = vld [vmem:[%s9 + $0x11c] sm:$0xf]
          %v8231 = vld [vmem:[%s9 + $0x120] sm:$0xf]
          %v8232 = vld [vmem:[%s9 + $0x124] sm:$0xf]
          %v8233 = vld [vmem:[%s9 + $0x128] sm:$0xf]
          %v8234 = vld [vmem:[%s9 + $0x12c] sm:$0xf]
          %v8235 = vld [vmem:[%s9 + $0x130] sm:$0xf]
          %v8236 = vld [vmem:[%s9 + $0x134] sm:$0xf]
          %v8237 = vld [vmem:[%s9 + $0x138] sm:$0xf]
          %v8238 = vld [vmem:[%s9 + $0x13c] sm:$0xf]
          %v8239 = vld [vmem:[%s9 + $0x140] sm:$0xf]
          %v8240 = vld [vmem:[%s9 + $0x144] sm:$0xf]
          %v8241 = vld [vmem:[%s9 + $0x148] sm:$0xf]
          %v8242 = vld [vmem:[%s9 + $0x14c] sm:$0xf]
          %v8243 = vld [vmem:[%s9 + $0x150] sm:$0xf]
          %v8244 = vld [vmem:[%s9 + $0x154] sm:$0xf]
          %v8245 = vld [vmem:[%s9 + $0x158] sm:$0xf]
          %v8246 = vld [vmem:[%s9 + $0x15c] sm:$0xf]
          %v8247 = vld [vmem:[%s9 + $0x160] sm:$0xf]
          %v8248 = vld [vmem:[%s9 + $0x164] sm:$0xf]
          %v8249 = vld [vmem:[%s9 + $0x168] sm:$0xf]
          %v8250 = vld [vmem:[%s9 + $0x16c] sm:$0xf]
          %v8251 = vld [vmem:[%s9 + $0x170] sm:$0xf]
          %v8252 = vld [vmem:[%s9 + $0x174] sm:$0xf]
          %v8253 = vld [vmem:[%s9 + $0x178] sm:$0xf]
          %v8254 = vld [vmem:[%s9 + $0x17c] sm:$0xf]
          %v8255 = vld [vmem:[%s9 + $0x180] sm:$0xf]
          %v8256 = vld [vmem:[%s9 + $0x184] sm:$0xf]
          %v8257 = vld [vmem:[%s9 + $0x188] sm:$0xf]
          %v8258 = vld [vmem:[%s9 + $0x18c] sm:$0xf]
          %v8259 = vld [vmem:[%s9 + $0x190] sm:$0xf]
          %v8260 = vld [vmem:[%s9 + $0x194] sm:$0xf]
          %v8261 = vld [vmem:[%s9 + $0x198] sm:$0xf]
          %v8262 = vld [vmem:[%s9 + $0x19c] sm:$0xf]
          %v8263 = vld [vmem:[%s9 + $0x1a0] sm:$0xf]
          %v8264 = vld [vmem:[%s9 + $0x1a4] sm:$0xf]
          %v8265 = vld [vmem:[%s9 + $0x1a8] sm:$0xf]
          %v8266 = vld [vmem:[%s9 + $0x1ac] sm:$0xf]
          %v8267 = vld [vmem:[%s9 + $0x1b0] sm:$0xf]
          %v8268 = vld [vmem:[%s9 + $0x1b4] sm:$0xf]
          %v8269 = vld [vmem:[%s9 + $0x1b8] sm:$0xf]
          %v8270 = vld [vmem:[%s9 + $0x1bc] sm:$0xf]
          %v8271 = vld [vmem:[%s9 + $0x1c0] sm:$0xf]
          %v8272 = vld [vmem:[%s9 + $0x1c4] sm:$0xf]
          %v8273 = vld [vmem:[%s9 + $0x1c8] sm:$0xf]
          %v8274 = vld [vmem:[%s9 + $0x1cc] sm:$0xf]
          %v8275 = vld [vmem:[%s9 + $0x1d0] sm:$0xf]
          %v8276 = vld [vmem:[%s9 + $0x1d4] sm:$0xf]
          %v8277 = vld [vmem:[%s9 + $0x1d8] sm:$0xf]
          %v8278 = vld [vmem:[%s9 + $0x1dc] sm:$0xf]
          %v8279 = vld [vmem:[%s9 + $0x1e0] sm:$0xf]
          %v8280 = vld [vmem:[%s9 + $0x1e4] sm:$0xf]
          %v8281 = vld [vmem:[%s9 + $0x1e8] sm:$0xf]
          %v8282 = vld [vmem:[%s9 + $0x1ec] sm:$0xf]
          %v8283 = vld [vmem:[%s9 + $0x1f0] sm:$0xf]
          %v8284 = vld [vmem:[%s9 + $0x1f4] sm:$0xf]
          %v8285 = vld [vmem:[%s9 + $0x1f8] sm:$0xf]
          %v8286 = vld [vmem:[%s9 + $0x1fc] sm:$0xf]
          %v8287 = vld [vmem:[#allocation16] sm:$0x1]
          %v8289 = vlaneseq
          %v8290 = vshrl.u32 %v8289, 7
          %v8291 = vsub.s32 0, %v8290
          %v8292 = vrot.slane %v8287, %v8291
          %v8422 = vunpack.c.l.b16 %v8159
          %v8423 = vunpack.c.l.b16 %v8160
          %v8424 = vunpack.c.l.b16 %v8161
          %v8425 = vunpack.c.l.b16 %v8162
          %v8426 = vunpack.c.l.b16 %v8163
          %v8427 = vunpack.c.l.b16 %v8164
          %v8428 = vunpack.c.l.b16 %v8165
          %v8429 = vunpack.c.l.b16 %v8166
          %v8430 = vunpack.c.l.b16 %v8167
          %v8431 = vunpack.c.l.b16 %v8168
          %v8432 = vunpack.c.l.b16 %v8169
          %v8433 = vunpack.c.l.b16 %v8170
          %v8434 = vunpack.c.l.b16 %v8171
          %v8435 = vunpack.c.l.b16 %v8172
          %v8436 = vunpack.c.l.b16 %v8173
          %v8437 = vunpack.c.l.b16 %v8174
          %v8438 = vunpack.c.l.b16 %v8175
          %v8439 = vunpack.c.l.b16 %v8176
          %v8440 = vunpack.c.l.b16 %v8177
          %v8441 = vunpack.c.l.b16 %v8178
          %v8442 = vunpack.c.l.b16 %v8179
          %v8443 = vunpack.c.l.b16 %v8180
          %v8444 = vunpack.c.l.b16 %v8181
          %v8445 = vunpack.c.l.b16 %v8182
          %v8446 = vunpack.c.l.b16 %v8183
          %v8447 = vunpack.c.l.b16 %v8184
          %v8448 = vunpack.c.l.b16 %v8185
          %v8449 = vunpack.c.l.b16 %v8186
          %v8450 = vunpack.c.l.b16 %v8187
          %v8451 = vunpack.c.l.b16 %v8188
          %v8452 = vunpack.c.l.b16 %v8189
          %v8453 = vunpack.c.l.b16 %v8190
          %v8454 = vunpack.c.l.b16 %v8191
          %v8455 = vunpack.c.l.b16 %v8192
          %v8456 = vunpack.c.l.b16 %v8193
          %v8457 = vunpack.c.l.b16 %v8194
          %v8458 = vunpack.c.l.b16 %v8195
          %v8459 = vunpack.c.l.b16 %v8196
          %v8460 = vunpack.c.l.b16 %v8197
          %v8461 = vunpack.c.l.b16 %v8198
          %v8462 = vunpack.c.l.b16 %v8199
          %v8463 = vunpack.c.l.b16 %v8200
          %v8464 = vunpack.c.l.b16 %v8201
          %v8465 = vunpack.c.l.b16 %v8202
          %v8466 = vunpack.c.l.b16 %v8203
          %v8467 = vunpack.c.l.b16 %v8204
          %v8468 = vunpack.c.l.b16 %v8205
          %v8469 = vunpack.c.l.b16 %v8206
          %v8470 = vunpack.c.l.b16 %v8207
          %v8471 = vunpack.c.l.b16 %v8208
          %v8472 = vunpack.c.l.b16 %v8209
          %v8473 = vunpack.c.l.b16 %v8210
          %v8474 = vunpack.c.l.b16 %v8211
          %v8475 = vunpack.c.l.b16 %v8212
          %v8476 = vunpack.c.l.b16 %v8213
          %v8477 = vunpack.c.l.b16 %v8214
          %v8478 = vunpack.c.l.b16 %v8215
          %v8479 = vunpack.c.l.b16 %v8216
          %v8480 = vunpack.c.l.b16 %v8217
          %v8481 = vunpack.c.l.b16 %v8218
          %v8482 = vunpack.c.l.b16 %v8219
          %v8483 = vunpack.c.l.b16 %v8220
          %v8484 = vunpack.c.l.b16 %v8221
          %v8485 = vunpack.c.l.b16 %v8222
          %v8486 = vunpack.c.l.b16 %v8223
          %v8487 = vunpack.c.l.b16 %v8224
          %v8488 = vunpack.c.l.b16 %v8225
          %v8489 = vunpack.c.l.b16 %v8226
          %v8490 = vunpack.c.l.b16 %v8227
          %v8491 = vunpack.c.l.b16 %v8228
          %v8492 = vunpack.c.l.b16 %v8229
          %v8493 = vunpack.c.l.b16 %v8230
          %v8494 = vunpack.c.l.b16 %v8231
          %v8495 = vunpack.c.l.b16 %v8232
          %v8496 = vunpack.c.l.b16 %v8233
          %v8497 = vunpack.c.l.b16 %v8234
          %v8498 = vunpack.c.l.b16 %v8235
          %v8499 = vunpack.c.l.b16 %v8236
          %v8500 = vunpack.c.l.b16 %v8237
          %v8501 = vunpack.c.l.b16 %v8238
          %v8502 = vunpack.c.l.b16 %v8239
          %v8503 = vunpack.c.l.b16 %v8240
          %v8504 = vunpack.c.l.b16 %v8241
          %v8505 = vunpack.c.l.b16 %v8242
          %v8506 = vunpack.c.l.b16 %v8243
          %v8507 = vunpack.c.l.b16 %v8244
          %v8508 = vunpack.c.l.b16 %v8245
          %v8509 = vunpack.c.l.b16 %v8246
          %v8510 = vunpack.c.l.b16 %v8247
          %v8511 = vunpack.c.l.b16 %v8248
          %v8512 = vunpack.c.l.b16 %v8249
          %v8513 = vunpack.c.l.b16 %v8250
          %v8514 = vunpack.c.l.b16 %v8251
          %v8515 = vunpack.c.l.b16 %v8252
          %v8516 = vunpack.c.l.b16 %v8253
          %v8517 = vunpack.c.l.b16 %v8254
          %v8518 = vunpack.c.l.b16 %v8255
          %v8519 = vunpack.c.l.b16 %v8256
          %v8520 = vunpack.c.l.b16 %v8257
          %v8521 = vunpack.c.l.b16 %v8258
          %v8522 = vunpack.c.l.b16 %v8259
          %v8523 = vunpack.c.l.b16 %v8260
          %v8524 = vunpack.c.l.b16 %v8261
          %v8525 = vunpack.c.l.b16 %v8262
          %v8526 = vunpack.c.l.b16 %v8263
          %v8527 = vunpack.c.l.b16 %v8264
          %v8528 = vunpack.c.l.b16 %v8265
          %v8529 = vunpack.c.l.b16 %v8266
          %v8530 = vunpack.c.l.b16 %v8267
          %v8531 = vunpack.c.l.b16 %v8268
          %v8532 = vunpack.c.l.b16 %v8269
          %v8533 = vunpack.c.l.b16 %v8270
          %v8534 = vunpack.c.l.b16 %v8271
          %v8535 = vunpack.c.l.b16 %v8272
          %v8536 = vunpack.c.l.b16 %v8273
          %v8537 = vunpack.c.l.b16 %v8274
          %v8538 = vunpack.c.l.b16 %v8275
          %v8539 = vunpack.c.l.b16 %v8276
          %v8540 = vunpack.c.l.b16 %v8277
          %v8541 = vunpack.c.l.b16 %v8278
          %v8542 = vunpack.c.l.b16 %v8279
          %v8543 = vunpack.c.l.b16 %v8280
          %v8544 = vunpack.c.l.b16 %v8281
          %v8545 = vunpack.c.l.b16 %v8282
          %v8546 = vunpack.c.l.b16 %v8283
          %v8547 = vunpack.c.l.b16 %v8284
          %v8548 = vunpack.c.l.b16 %v8285
          %v8549 = vunpack.c.l.b16 %v8286
          %v8550 = vpack.c.b16 %v8423, %v8422
          %v8551 = vpack.c.b16 %v8425, %v8424
          %v8552 = vpack.c.b16 %v8427, %v8426
          %v8553 = vpack.c.b16 %v8429, %v8428
          %v8554 = vpack.c.b16 %v8431, %v8430
          %v8555 = vpack.c.b16 %v8433, %v8432
          %v8556 = vpack.c.b16 %v8435, %v8434
          %v8557 = vpack.c.b16 %v8437, %v8436
          %v8558 = vpack.c.b16 %v8439, %v8438
          %v8559 = vpack.c.b16 %v8441, %v8440
          %v8560 = vpack.c.b16 %v8443, %v8442
          %v8561 = vpack.c.b16 %v8445, %v8444
          %v8562 = vpack.c.b16 %v8447, %v8446
          %v8563 = vpack.c.b16 %v8449, %v8448
          %v8564 = vpack.c.b16 %v8451, %v8450
          %v8565 = vpack.c.b16 %v8453, %v8452
          %v8566 = vpack.c.b16 %v8455, %v8454
          %v8567 = vpack.c.b16 %v8457, %v8456
          %v8568 = vpack.c.b16 %v8459, %v8458
          %v8569 = vpack.c.b16 %v8461, %v8460
          %v8570 = vpack.c.b16 %v8463, %v8462
          %v8571 = vpack.c.b16 %v8465, %v8464
          %v8572 = vpack.c.b16 %v8467, %v8466
          %v8573 = vpack.c.b16 %v8469, %v8468
          %v8574 = vpack.c.b16 %v8471, %v8470
          %v8575 = vpack.c.b16 %v8473, %v8472
          %v8576 = vpack.c.b16 %v8475, %v8474
          %v8577 = vpack.c.b16 %v8477, %v8476
          %v8578 = vpack.c.b16 %v8479, %v8478
          %v8579 = vpack.c.b16 %v8481, %v8480
          %v8580 = vpack.c.b16 %v8483, %v8482
          %v8581 = vpack.c.b16 %v8485, %v8484
          %v8582 = vpack.c.b16 %v8487, %v8486
          %v8583 = vpack.c.b16 %v8489, %v8488
          %v8584 = vpack.c.b16 %v8491, %v8490
          %v8585 = vpack.c.b16 %v8493, %v8492
          %v8586 = vpack.c.b16 %v8495, %v8494
          %v8587 = vpack.c.b16 %v8497, %v8496
          %v8588 = vpack.c.b16 %v8499, %v8498
          %v8589 = vpack.c.b16 %v8501, %v8500
          %v8590 = vpack.c.b16 %v8503, %v8502
          %v8591 = vpack.c.b16 %v8505, %v8504
          %v8592 = vpack.c.b16 %v8507, %v8506
          %v8593 = vpack.c.b16 %v8509, %v8508
          %v8594 = vpack.c.b16 %v8511, %v8510
          %v8595 = vpack.c.b16 %v8513, %v8512
          %v8596 = vpack.c.b16 %v8515, %v8514
          %v8597 = vpack.c.b16 %v8517, %v8516
          %v8598 = vpack.c.b16 %v8519, %v8518
          %v8599 = vpack.c.b16 %v8521, %v8520
          %v8600 = vpack.c.b16 %v8523, %v8522
          %v8601 = vpack.c.b16 %v8525, %v8524
          %v8602 = vpack.c.b16 %v8527, %v8526
          %v8603 = vpack.c.b16 %v8529, %v8528
          %v8604 = vpack.c.b16 %v8531, %v8530
          %v8605 = vpack.c.b16 %v8533, %v8532
          %v8606 = vpack.c.b16 %v8535, %v8534
          %v8607 = vpack.c.b16 %v8537, %v8536
          %v8608 = vpack.c.b16 %v8539, %v8538
          %v8609 = vpack.c.b16 %v8541, %v8540
          %v8610 = vpack.c.b16 %v8543, %v8542
          %v8611 = vpack.c.b16 %v8545, %v8544
          %v8612 = vpack.c.b16 %v8547, %v8546
          %v8613 = vpack.c.b16 %v8549, %v8548
          %8678 = vmatprep.subr.bf16.mxu0 0
          %8679 = vmatpush1.bf16.msra.mxu0 %v8557
          %8680 = vmatprep.subr.bf16.mxu0 0
          %8681 = vmatpush1.bf16.msra.mxu0 %v8556
          %8682 = vmatprep.subr.bf16.mxu0 0
          %8683 = vmatpush1.bf16.msra.mxu0 %v8555
          %8684 = vmatprep.subr.bf16.mxu0 0
          %8685 = vmatpush1.bf16.msra.mxu0 %v8554
          %8686 = vmatprep.subr.bf16.mxu0 0
          %8687 = vmatpush1.bf16.msra.mxu0 %v8553
          %8688 = vmatprep.subr.bf16.mxu0 0
          %8689 = vmatpush1.bf16.msra.mxu0 %v8552
          %8690 = vmatprep.subr.bf16.mxu0 0
          %8691 = vmatpush1.bf16.msra.mxu0 %v8551
          %8692 = vmatprep.subr.bf16.mxu0 0
          %8693 = vmatpush1.bf16.msra.mxu0 %v8550
          %8694 = vmatprep.subr.bf16.mxu0 0
          %8695 = vmatpush2.bf16.msra.mxu0 %v8565
          %8696 = vmatprep.subr.bf16.mxu0 0
          %8697 = vmatpush2.bf16.msra.mxu0 %v8564
          %8698 = vmatprep.subr.bf16.mxu0 0
          %8699 = vmatpush2.bf16.msra.mxu0 %v8563
          %8700 = vmatprep.subr.bf16.mxu0 0
          %8701 = vmatpush2.bf16.msra.mxu0 %v8562
          %8702 = vmatprep.subr.bf16.mxu0 0
          %8703 = vmatpush2.bf16.msra.mxu0 %v8561
          %8704 = vmatprep.subr.bf16.mxu0 0
          %8705 = vmatpush2.bf16.msra.mxu0 %v8560
          %8706 = vmatprep.subr.bf16.mxu0 0
          %8707 = vmatpush2.bf16.msra.mxu0 %v8559
          %8708 = vmatprep.subr.bf16.mxu0 0
          %8709 = vmatpush2.bf16.msra.mxu0 %v8558
          %8710 = vmatprep.mubr.bf16.mxu0 %v8152
          %8711 = vmatmul.mubr.bf16.gmra.mxu0 %v8151
          %v8712 = vpop.f32.mrf.mxu0
          %v8713 = vadd.f32 %v8292, %v8712
          %v8714 = vpop.f32.mrf.mxu0
          %v8715 = vpop.f32.mrf.mxu0
          %v8716 = vpop.f32.mrf.mxu0
          %8717 = vdwg.mxu0
          %8718 = vmatprep.subr.bf16.mxu0 0
          %8719 = vmatpush1.bf16.msra.mxu0 %v8573
          %8720 = vmatprep.subr.bf16.mxu0 0
          %8721 = vmatpush1.bf16.msra.mxu0 %v8572
          %8722 = vmatprep.subr.bf16.mxu0 0
          %8723 = vmatpush1.bf16.msra.mxu0 %v8571
          %8724 = vmatprep.subr.bf16.mxu0 0
          %8725 = vmatpush1.bf16.msra.mxu0 %v8570
          %8726 = vmatprep.subr.bf16.mxu0 0
          %8727 = vmatpush1.bf16.msra.mxu0 %v8569
          %8728 = vmatprep.subr.bf16.mxu0 0
          %8729 = vmatpush1.bf16.msra.mxu0 %v8568
          %8730 = vmatprep.subr.bf16.mxu0 0
          %8731 = vmatpush1.bf16.msra.mxu0 %v8567
          %8732 = vmatprep.subr.bf16.mxu0 0
          %8733 = vmatpush1.bf16.msra.mxu0 %v8566
          %8734 = vmatprep.subr.bf16.mxu0 0
          %8735 = vmatpush2.bf16.msra.mxu0 %v8581
          %8736 = vmatprep.subr.bf16.mxu0 0
          %8737 = vmatpush2.bf16.msra.mxu0 %v8580
          %8738 = vmatprep.subr.bf16.mxu0 0
          %8739 = vmatpush2.bf16.msra.mxu0 %v8579
          %8740 = vmatprep.subr.bf16.mxu0 0
          %8741 = vmatpush2.bf16.msra.mxu0 %v8578
          %8742 = vmatprep.subr.bf16.mxu0 0
          %8743 = vmatpush2.bf16.msra.mxu0 %v8577
          %8744 = vmatprep.subr.bf16.mxu0 0
          %8745 = vmatpush2.bf16.msra.mxu0 %v8576
          %8746 = vmatprep.subr.bf16.mxu0 0
          %8747 = vmatpush2.bf16.msra.mxu0 %v8575
          %8748 = vmatprep.subr.bf16.mxu0 0
          %8749 = vmatpush2.bf16.msra.mxu0 %v8574
          %8750 = vmatprep.mubr.bf16.mxu0 %v8154
          %8751 = vmatmul.mubr.bf16.gmra.mxu0 %v8153
          %v8752 = vpop.f32.mrf.mxu0
          %v8753 = vadd.f32 %v8713, %v8752
          %v8754 = vpop.f32.mrf.mxu0
          %v8755 = vpop.f32.mrf.mxu0
          %v8756 = vpop.f32.mrf.mxu0
          %8757 = vdwg.mxu0
          %8758 = vmatprep.subr.bf16.mxu0 0
          %8759 = vmatpush1.bf16.msra.mxu0 %v8589
          %8760 = vmatprep.subr.bf16.mxu0 0
          %8761 = vmatpush1.bf16.msra.mxu0 %v8588
          %8762 = vmatprep.subr.bf16.mxu0 0
          %8763 = vmatpush1.bf16.msra.mxu0 %v8587
          %8764 = vmatprep.subr.bf16.mxu0 0
          %8765 = vmatpush1.bf16.msra.mxu0 %v8586
          %8766 = vmatprep.subr.bf16.mxu0 0
          %8767 = vmatpush1.bf16.msra.mxu0 %v8585
          %8768 = vmatprep.subr.bf16.mxu0 0
          %8769 = vmatpush1.bf16.msra.mxu0 %v8584
          %8770 = vmatprep.subr.bf16.mxu0 0
          %8771 = vmatpush1.bf16.msra.mxu0 %v8583
          %8772 = vmatprep.subr.bf16.mxu0 0
          %8773 = vmatpush1.bf16.msra.mxu0 %v8582
          %8774 = vmatprep.subr.bf16.mxu0 0
          %8775 = vmatpush2.bf16.msra.mxu0 %v8597
          %8776 = vmatprep.subr.bf16.mxu0 0
          %8777 = vmatpush2.bf16.msra.mxu0 %v8596
          %8778 = vmatprep.subr.bf16.mxu0 0
          %8779 = vmatpush2.bf16.msra.mxu0 %v8595
          %8780 = vmatprep.subr.bf16.mxu0 0
          %8781 = vmatpush2.bf16.msra.mxu0 %v8594
          %8782 = vmatprep.subr.bf16.mxu0 0
          %8783 = vmatpush2.bf16.msra.mxu0 %v8593
          %8784 = vmatprep.subr.bf16.mxu0 0
          %8785 = vmatpush2.bf16.msra.mxu0 %v8592
          %8786 = vmatprep.subr.bf16.mxu0 0
          %8787 = vmatpush2.bf16.msra.mxu0 %v8591
          %8788 = vmatprep.subr.bf16.mxu0 0
          %8789 = vmatpush2.bf16.msra.mxu0 %v8590
          %8790 = vmatprep.mubr.bf16.mxu0 %v8156
          %8791 = vmatmul.mubr.bf16.gmra.mxu0 %v8155
          %v8792 = vpop.f32.mrf.mxu0
          %v8793 = vadd.f32 %v8753, %v8792
          %v8794 = vpop.f32.mrf.mxu0
          %v8795 = vpop.f32.mrf.mxu0
          %v8796 = vpop.f32.mrf.mxu0
          %8797 = vdwg.mxu0
          %8798 = vmatprep.subr.bf16.mxu0 0
          %8799 = vmatpush1.bf16.msra.mxu0 %v8605
          %8800 = vmatprep.subr.bf16.mxu0 0
          %8801 = vmatpush1.bf16.msra.mxu0 %v8604
          %8802 = vmatprep.subr.bf16.mxu0 0
          %8803 = vmatpush1.bf16.msra.mxu0 %v8603
          %8804 = vmatprep.subr.bf16.mxu0 0
          %8805 = vmatpush1.bf16.msra.mxu0 %v8602
          %8806 = vmatprep.subr.bf16.mxu0 0
          %8807 = vmatpush1.bf16.msra.mxu0 %v8601
          %8808 = vmatprep.subr.bf16.mxu0 0
          %8809 = vmatpush1.bf16.msra.mxu0 %v8600
          %8810 = vmatprep.subr.bf16.mxu0 0
          %8811 = vmatpush1.bf16.msra.mxu0 %v8599
          %8812 = vmatprep.subr.bf16.mxu0 0
          %8813 = vmatpush1.bf16.msra.mxu0 %v8598
          %8814 = vmatprep.subr.bf16.mxu0 0
          %8815 = vmatpush2.bf16.msra.mxu0 %v8613
          %8816 = vmatprep.subr.bf16.mxu0 0
          %8817 = vmatpush2.bf16.msra.mxu0 %v8612
          %8818 = vmatprep.subr.bf16.mxu0 0
          %8819 = vmatpush2.bf16.msra.mxu0 %v8611
          %8820 = vmatprep.subr.bf16.mxu0 0
          %8821 = vmatpush2.bf16.msra.mxu0 %v8610
          %8822 = vmatprep.subr.bf16.mxu0 0
          %8823 = vmatpush2.bf16.msra.mxu0 %v8609
          %8824 = vmatprep.subr.bf16.mxu0 0
          %8825 = vmatpush2.bf16.msra.mxu0 %v8608
          %8826 = vmatprep.subr.bf16.mxu0 0
          %8827 = vmatpush2.bf16.msra.mxu0 %v8607
          %8828 = vmatprep.subr.bf16.mxu0 0
          %8829 = vmatpush2.bf16.msra.mxu0 %v8606
          %8830 = vmatprep.mubr.bf16.mxu0 %v8158
          %8831 = vmatmul.mubr.bf16.gmra.mxu0 %v8157
          %v8832 = vpop.f32.mrf.mxu0
          %v8833 = vadd.f32 %v8793, %v8832
          %v8834 = vpop.f32.mrf.mxu0
          %v8835 = vpop.f32.mrf.mxu0
          %v8836 = vpop.f32.mrf.mxu0
          %8837 = vdwg.mxu0
          %vm8838 = vcmask 492544
          %8839 = vst.msk [vmem:[#allocation18] sm:$0x3] %vm8838, %v8833
        $region108: #{gate_model_forward.1} parent=63 // pred_fallthru
          _
        // Predicated region
        $region109: #{gate_model_forward.1} parent=63 // pred_check
          %p8840 = pneg %p314
        $region110: #{gate_model_forward.1} parent=63 // pred_check_branch
          %8842 = sbr.rel (%p8840) target = $region112
        $region111: #{gate_model_forward.1} parent=63 // pred_region
          %s8844 = ssub.s32 32, 32
          %8845 = vsyncadd [#allocation6], %s8844
          %s8847 = sshll.u32 [#allocation18], 4
          %s8848 = int_to_ptr.vmem [resolvable:$true] %s8847
          %8850 = dma.vmem_to_hbm [thread:$0]  %s8848, 32, %s11, [#allocation6]
        $region112: #{gate_model_forward.1} parent=63 // pred_fallthru
          _
        // Predicated region
        $region113: #{gate_model_forward.1} parent=63 // pred_check
          %p8851 = pneg %p314
        $region114: #{gate_model_forward.1} parent=63 // pred_check_branch
          %8853 = sbr.rel (%p8851) target = $region116
        $region115: #{gate_model_forward.1} parent=63 // pred_region
          %8854 = dma.done [#allocation6], 32
        $region116: #{gate_model_forward.1} parent=63 // pred_fallthru
          _
      $region64: #{gate_model_forward.1} parent=5 // pred_fallthru
        _
      %p8855 = scmp.le.s32.totalorder 2, %s27
      // Predicated region
      $region117: #{gate_model_forward.1} parent=5 // pred_check
        %p8856 = pneg %p8855
      $region118: #{gate_model_forward.1} parent=5 // pred_check_branch
        %8858 = sbr.rel (%p8856) target = $region120
      $region119: #{gate_model_forward.1} parent=5 // pred_region
        %s8859 = ssub.s32 %s27, 2
      $region120: #{gate_model_forward.1} parent=5 // pred_fallthru
        _
    $region6: #{gate_model_forward.1} parent=1 // loop_footer
      %s31 = sadd.s32 1, %s27
    $region7: #{gate_model_forward.1} parent=1 // loop_footer_branch
      %26 = sbr.rel target = $region3
    $region8: #{gate_model_forward.1} parent=1 // loop_exit
      _
    %8860 = vsyncpa [#allocation5], 1
    %s8861 = scalar_lea.sflag [#allocation5], 1
    %8862 = vsyncpa %s8861, 1
    %8863 = vsyncpa [#allocation8], 1
    %8864 = vsyncpa [#allocation11], 1
    %s8865 = scalar_lea.sflag [#allocation11], 1
    %8866 = vsyncpa %s8865, 1
    %8867 = vsyncpa [#allocation14], 1
    %s8868 = scalar_lea.sflag [#allocation14], 1
    %8869 = vsyncpa %s8868, 1
    %8870 = vsyncpa [#allocation17], 1
    %8871 = vsyncpa [#allocation6], 1
    %s8872 = scalar_lea.sflag [#allocation6], 1
    %8873 = vsyncpa %s8872, 1

</llo_original>
